<compile_context>
chip_gen: v7x
topology: tpu7x:2x2x1
jax: 0.10.0
libtpu: 0.0.40
codegen_flags: <defaults>
</compile_context>

<pallas_src>
import functools
import math

import jax
import jax.numpy as jnp
from jax.experimental import pallas as pl
from jax.experimental.pallas import tpu as pltpu


def _layernorm(x, gamma, beta, eps=1e-5):
    mu = jnp.mean(x, axis=-1, keepdims=True)
    var = jnp.mean((x - mu) ** 2, axis=-1, keepdims=True)
    return (x - mu) * jax.lax.rsqrt(var + eps) * gamma + beta


def _bert_block_kernel(BB, T, D, H,
                       kpb_ref, x_ref,
                       wqkv_ref, bqkv_ref,
                       wo_ref, bo_ref, g1_ref, be1_ref,
                       w1_ref, b1_ref, w2_ref, b2_ref, g2_ref, be2_ref,
                       o_ref,
                       qkv_ref, ctx_ref):
    hd = D // H

    xf = x_ref[...].astype(jnp.float32)        # (N, D) f32, kept for the residual
    x_bf = xf.astype(jnp.bfloat16)             # bf16 operand for the MXU

    # ---- fused Q/K/V projection: one lane-dense (N, D) x (D, 3D) matmul ----
    # (1/sqrt(hd) already folded into the Q columns of wqkv / bqkv on the host)
    qkv = jnp.dot(x_bf, wqkv_ref[...], preferred_element_type=jnp.float32)
    qkv = qkv + bqkv_ref[...]
    qkv_ref[...] = qkv.astype(jnp.bfloat16)    # bound live range: bf16 slab in scratch

    # ---- attention: per example (softmax must not mix examples), per head ----
    dn = (((1,), (1,)), ((), ()))              # q @ k^T without an explicit transpose
    for e in range(BB):                        # BB, H are small & static
        r0 = e * T
        bias_e = kpb_ref[e]                    # (1, T) additive key-padding bias
        for h in range(H):
            c0 = h * hd
            q_h = qkv_ref[r0:r0 + T, c0:c0 + hd]
            k_h = qkv_ref[r0:r0 + T, D + c0:D + c0 + hd]
            v_h = qkv_ref[r0:r0 + T, 2 * D + c0:2 * D + c0 + hd]
            s = jax.lax.dot_general(q_h, k_h, dn, preferred_element_type=jnp.float32)
            s = s + bias_e
            s = s - jnp.max(s, axis=-1, keepdims=True)
            p = jnp.exp(s)
            p = p * pl.reciprocal(jnp.sum(p, axis=-1, keepdims=True), approx=True)
            ctx = jnp.dot(p.astype(jnp.bfloat16), v_h,
                          preferred_element_type=jnp.float32)           # (T, hd)
            # lane-slice store into the (N, D) context scratch (no head concat)
            ctx_ref[r0:r0 + T, c0:c0 + hd] = ctx.astype(jnp.bfloat16)

    # ---- output projection: single (N, D) x (D, D) dot over all rows ----
    attn = jnp.dot(ctx_ref[...], wo_ref[...],
                   preferred_element_type=jnp.float32) + bo_ref[...]
    # dropout is identity at inference
    h1 = _layernorm(attn + xf, g1_ref[...], be1_ref[...])

    # ---- FFN: linear1 -> exact GELU -> linear2 -> residual -> LN ----
    f = jnp.dot(h1.astype(jnp.bfloat16), w1_ref[...],
                preferred_element_type=jnp.float32) + b1_ref[...]
    f = 0.5 * f * (1.0 + jax.lax.erf(f * jnp.float32(1.0 / math.sqrt(2.0))))
    f = jnp.dot(f.astype(jnp.bfloat16), w2_ref[...],
                preferred_element_type=jnp.float32) + b2_ref[...]
    h2 = _layernorm(f + h1, g2_ref[...], be2_ref[...])

    o_ref[...] = h2.astype(o_ref.dtype)


def _vmem_budget_bytes():
    """Generation-aware VMEM budget: physical capacity minus headroom for compiler
    scratch / semaphores / pipeline internals (~56 MiB on v7x, ~112 MiB on v5e/v6e)."""
    cap = 64 * 2 ** 20
    try:
        info = pltpu.get_tpu_info()
        cap = int(getattr(info, "vmem_capacity_bytes", cap))
    except Exception:
        pass
    return max(32 * 2 ** 20, cap - max(8 * 2 ** 20, cap // 8))


def _vmem_need_bytes(bb, T, D):
    """Rough resident-set estimate for one grid step with bb examples."""
    n = bb * T
    weights = 12 * D * D * 2                       # bf16 wqkv/wo/w1/w2 (single-buffered)
    io = 2 * (n * D * 4) * 2                       # x in + out, double-buffered f32
    scratch = n * 4 * D * 2                        # qkv + ctx bf16 scratch
    temps = (2 * n * 4 * D + n * 3 * D + 6 * n * D + bb * T * T) * 4
    return weights + io + scratch + temps


def _pick_block_batch(B, T, D, vmem_budget):
    """Examples per grid step.  Largest block that fits the VMEM budget (amortizes the
    per-step overhead and fills the MXU M dim); (BB*T) kept a multiple of 8 unless the
    block covers the whole batch; prefer 1 or an even number of grid steps (v7x)."""
    cands = [bb for bb in range(1, B + 1)
             if B % bb == 0 and ((bb * T) % 8 == 0 or bb == B)]
    max_rows = max(1024, T)
    best = cands[0]
    for bb in cands:
        if bb * T <= max_rows and _vmem_need_bytes(bb, T, D) * 3 // 2 <= vmem_budget:
            best = bb
    steps = B // best
    if steps > 1 and steps % 2 == 1:               # avoid odd step counts (megacore)
        for bb in cands:
            s = B // bb
            if (s == 1 or s % 2 == 0) and bb * T <= max_rows \
               and _vmem_need_bytes(bb, T, D) * 3 // 2 <= vmem_budget:
                best = bb
    return best


def bert_transformer_forward(x, padding_mask, params):
    """x: (B, T, D) float32; padding_mask: (B, T) with 1 = real token, 0 = padded."""
    B, T, D = x.shape
    H = params["num_heads"]
    assert D % H == 0, "embedding_dim must be divisible by num_heads"
    hd = D // H

    vmem_budget = _vmem_budget_bytes()
    BB = _pick_block_batch(B, T, D, vmem_budget)
    grid = (B // BB,)
    N = BB * T

    # additive key-padding bias, (B, 1, T): 0 for real tokens, -1e9 for padded.
    kp_bias = jnp.where(padding_mask == 0, -1e9, 0.0).astype(jnp.float32)[:, None, :]

    # Weights in bf16 (f32 accumulation on the MXU).  Q/K/V fused into one (D, 3D)
    # matrix with 1/sqrt(hd) folded into the Q columns; biases stay f32.
    wdt = jnp.bfloat16
    scale = 1.0 / math.sqrt(hd)
    wqkv = jnp.concatenate(
        [jnp.asarray(params["wq"]) * scale,
         jnp.asarray(params["wk"]),
         jnp.asarray(params["wv"])], axis=1).astype(wdt)              # (D, 3D)
    bqkv = jnp.concatenate(
        [jnp.asarray(params["bq"]) * scale,
         jnp.asarray(params["bk"]),
         jnp.asarray(params["bv"])], axis=1).astype(jnp.float32)      # (1, 3D)
    wo = params["wo"].astype(wdt); bo = params["bo"].astype(jnp.float32)
    w1 = params["w1"].astype(wdt); b1 = params["b1"].astype(jnp.float32)
    w2 = params["w2"].astype(wdt); b2 = params["b2"].astype(jnp.float32)
    g1 = params["g1"].astype(jnp.float32); be1 = params["be1"].astype(jnp.float32)
    g2 = params["g2"].astype(jnp.float32); be2 = params["be2"].astype(jnp.float32)

    x2 = x.reshape(B * T, D)   # lane-dense 2-D activation slab

    need = _vmem_need_bytes(BB, T, D)
    vmem_limit = int(min(vmem_budget, max(8 * 2 ** 20, int(need * 1.5))))

    flops = 24 * B * T * D * D + 4 * B * T * T * D
    transcendentals = B * H * T * T + 4 * B * T * D
    bytes_accessed = 12 * D * D * 2 + 2 * B * T * D * 4 + B * T * 4

    def build(single_buffer_weights):
        def const_spec(shape):
            nd = len(shape)
            idx = lambda i, _nd=nd: (0,) * _nd
            if single_buffer_weights:
                # constant operands never re-DMA -> single buffer halves their VMEM
                return pl.BlockSpec(shape, idx, pipeline_mode=pl.Buffered(1))
            return pl.BlockSpec(shape, idx)

        in_specs = [
            pl.BlockSpec((BB, 1, T), lambda i: (i, 0, 0)),   # key-padding bias
            pl.BlockSpec((N, D), lambda i: (i, 0)),          # x rows (BB examples)
            const_spec((D, 3 * D)), const_spec((1, 3 * D)),  # wqkv, bqkv
            const_spec((D, D)), const_spec((1, D)),          # wo, bo
            const_spec((1, D)), const_spec((1, D)),          # ln1 gamma, beta
            const_spec((D, 4 * D)), const_spec((1, 4 * D)),  # w1, b1
            const_spec((4 * D, D)), const_spec((1, D)),      # w2, b2
            const_spec((1, D)), const_spec((1, D)),          # ln2 gamma, beta
        ]
        return pl.pallas_call(
            functools.partial(_bert_block_kernel, BB, T, D, H),
            out_shape=jax.ShapeDtypeStruct((B * T, D), x.dtype),
            grid_spec=pltpu.PrefetchScalarGridSpec(
                num_scalar_prefetch=0,
                grid=grid,
                in_specs=in_specs,
                out_specs=pl.BlockSpec((N, D), lambda i: (i, 0)),
                scratch_shapes=[pltpu.VMEM((N, 3 * D), jnp.bfloat16),   # QKV slab
                                pltpu.VMEM((N, D), jnp.bfloat16)]),     # head contexts
            compiler_params=pltpu.CompilerParams(
                dimension_semantics=("parallel",),
                vmem_limit_bytes=vmem_limit),
            cost_estimate=pl.CostEstimate(
                flops=int(flops),
                transcendentals=int(transcendentals),
                bytes_accessed=int(bytes_accessed)),
        )

    args = (kp_bias, x2, wqkv, bqkv, wo, bo, g1, be1, w1, b1, w2, b2, g2, be2)
    try:
        out2 = build(True)(*args)
    except Exception:
        # Fallback if this jax build rejects single-buffered (Buffered(1)) operands.
        out2 = build(False)(*args)

    return out2.reshape(B, T, D)


def reference_forward(x, padding_mask, params):
    """Pure-JAX f32 reference matching PyTorch semantics (eval mode)."""
    B, T, D = x.shape
    H = params["num_heads"]
    hd = D // H
    q = x @ params["wq"] + params["bq"]
    k = x @ params["wk"] + params["bk"]
    v = x @ params["wv"] + params["bv"]
    q = q.reshape(B, T, H, hd).transpose(0, 2, 1, 3)
    k = k.reshape(B, T, H, hd).transpose(0, 2, 1, 3)
    v = v.reshape(B, T, H, hd).transpose(0, 2, 1, 3)
    s = jnp.einsum("bhqd,bhkd->bhqk", q, k) / math.sqrt(hd)
    s = s + jnp.where(padding_mask == 0, -1e9, 0.0)[:, None, None, :]
    p = jax.nn.softmax(s, axis=-1)
    ctx = jnp.einsum("bhqk,bhkd->bhqd", p, v).transpose(0, 2, 1, 3).reshape(B, T, D)
    attn = ctx @ params["wo"] + params["bo"]
    h1 = _layernorm(attn + x, params["g1"], params["be1"])
    f = h1 @ params["w1"] + params["b1"]
    f = jax.nn.gelu(f, approximate=False)
    f = f @ params["w2"] + params["b2"]
    return _layernorm(f + h1, params["g2"], params["be2"])


def init_params(key, D, H):
    ks = jax.random.split(key, 12)
    std = 0.02
    return {
        "num_heads": H,
        "wq": jax.random.normal(ks[0], (D, D), jnp.float32) * std,
        "bq": jax.random.normal(ks[1], (1, D), jnp.float32) * std,
        "wk": jax.random.normal(ks[2], (D, D), jnp.float32) * std,
        "bk": jax.random.normal(ks[3], (1, D), jnp.float32) * std,
        "wv": jax.random.normal(ks[4], (D, D), jnp.float32) * std,
        "bv": jax.random.normal(ks[5], (1, D), jnp.float32) * std,
        "wo": jax.random.normal(ks[6], (D, D), jnp.float32) * std,
        "bo": jax.random.normal(ks[7], (1, D), jnp.float32) * std,
        "g1": jnp.ones((1, D), jnp.float32),
        "be1": jnp.zeros((1, D), jnp.float32),
        "w1": jax.random.normal(ks[8], (D, 4 * D), jnp.float32) * std,
        "b1": jax.random.normal(ks[9], (1, 4 * D), jnp.float32) * std,
        "w2": jax.random.normal(ks[10], (4 * D, D), jnp.float32) * std,
        "b2": jax.random.normal(ks[11], (1, D), jnp.float32) * std,
        "g2": jnp.ones((1, D), jnp.float32),
        "be2": jnp.zeros((1, D), jnp.float32),
    }


if __name__ == "__main__":
    # embedding_dim=32, num_heads=4, T=8 (<= Tmax), batch=4.
    B, T, D, H = 4, 8, 32, 4

    key = jax.random.PRNGKey(0)
    k_x, k_p = jax.random.split(key)
    x = jax.random.normal(k_x, (B, T, D), jnp.float32)
    # padding_mask: 1 = real token, 0 = padded
    padding_mask = jnp.array(
        [[1] * T,
         [1] * (T - 3) + [0] * 3,
         [1] * (T - 1) + [0] * 1,
         [1] * (T - 5) + [0] * 5], dtype=jnp.int32)

    params = init_params(k_p, D, H)

    out = bert_transformer_forward(x, padding_mask, params)
    out = jax.block_until_ready(out)

    ref = reference_forward(x, padding_mask, params)
    assert out.shape == (B, T, D)
    # bf16 MXU operands + approx reciprocal => looser tolerance vs. the f32 reference.
    assert jnp.allclose(out, ref, atol=2e-2, rtol=2e-2), (
        f"max abs err = {jnp.max(jnp.abs(out - ref))}")

    print("KERNEL_OK")
</pallas_src>

<mosaic_0001>
module attributes {stable_mosaic.version = 11 : i64} {
  func.func @_bert_block_kernel(%arg0: i32, %arg1: memref<4x1x8xf32, #tpu.memory_space<vmem>>, %arg2: memref<32x32xf32, #tpu.memory_space<vmem>>, %arg3: memref<32x96xbf16, #tpu.memory_space<vmem>>, %arg4: memref<1x96xf32, #tpu.memory_space<vmem>>, %arg5: memref<32x32xbf16, #tpu.memory_space<vmem>>, %arg6: memref<1x32xf32, #tpu.memory_space<vmem>>, %arg7: memref<1x32xf32, #tpu.memory_space<vmem>>, %arg8: memref<1x32xf32, #tpu.memory_space<vmem>>, %arg9: memref<32x128xbf16, #tpu.memory_space<vmem>>, %arg10: memref<1x128xf32, #tpu.memory_space<vmem>>, %arg11: memref<128x32xbf16, #tpu.memory_space<vmem>>, %arg12: memref<1x32xf32, #tpu.memory_space<vmem>>, %arg13: memref<1x32xf32, #tpu.memory_space<vmem>>, %arg14: memref<1x32xf32, #tpu.memory_space<vmem>>, %arg15: memref<32x32xf32, #tpu.memory_space<vmem>>, %arg16: memref<32x96xbf16, #tpu.memory_space<vmem>>, %arg17: memref<32x32xbf16, #tpu.memory_space<vmem>>) attributes {dimension_semantics = [#tpu.dimension_semantics<parallel>], iteration_bounds = array<i64: 1>, scalar_prefetch = 0 : i64, scratch_operands = 2 : i64, tpu.core_type = #tpu.core_type<tc>, window_params = [{transform_indices = @transform_0, window_bounds = array<i64: 4, 1, 8>}, {transform_indices = @transform_1, window_bounds = array<i64: 32, 32>}, {pipeline_mode = #tpu.pipeline_mode<synchronous>, transform_indices = @transform_2, window_bounds = array<i64: 32, 96>}, {pipeline_mode = #tpu.pipeline_mode<synchronous>, transform_indices = @transform_3, window_bounds = array<i64: 1, 96>}, {pipeline_mode = #tpu.pipeline_mode<synchronous>, transform_indices = @transform_4, window_bounds = array<i64: 32, 32>}, {pipeline_mode = #tpu.pipeline_mode<synchronous>, transform_indices = @transform_5, window_bounds = array<i64: 1, 32>}, {pipeline_mode = #tpu.pipeline_mode<synchronous>, transform_indices = @transform_6, window_bounds = array<i64: 1, 32>}, {pipeline_mode = #tpu.pipeline_mode<synchronous>, transform_indices = @transform_7, window_bounds = array<i64: 1, 32>}, {pipeline_mode = #tpu.pipeline_mode<synchronous>, transform_indices = @transform_8, window_bounds = array<i64: 32, 128>}, {pipeline_mode = #tpu.pipeline_mode<synchronous>, transform_indices = @transform_9, window_bounds = array<i64: 1, 128>}, {pipeline_mode = #tpu.pipeline_mode<synchronous>, transform_indices = @transform_10, window_bounds = array<i64: 128, 32>}, {pipeline_mode = #tpu.pipeline_mode<synchronous>, transform_indices = @transform_11, window_bounds = array<i64: 1, 32>}, {pipeline_mode = #tpu.pipeline_mode<synchronous>, transform_indices = @transform_12, window_bounds = array<i64: 1, 32>}, {pipeline_mode = #tpu.pipeline_mode<synchronous>, transform_indices = @transform_13, window_bounds = array<i64: 1, 32>}, {transform_indices = @transform_14, window_bounds = array<i64: 32, 32>}]} {
    %c0 = arith.constant 0 : index
    %c0_0 = arith.constant 0 : index
    %0 = vector.load %arg2[%c0, %c0_0] : memref<32x32xf32, #tpu.memory_space<vmem>>, vector<32x32xf32>
    %1 = arith.truncf %0 : vector<32x32xf32> to vector<32x32xbf16>
    %c0_1 = arith.constant 0 : index
    %c0_2 = arith.constant 0 : index
    %2 = vector.load %arg3[%c0_1, %c0_2] : memref<32x96xbf16, #tpu.memory_space<vmem>>, vector<32x96xbf16>
    %cst = arith.constant dense<0.000000e+00> : vector<32x96xf32>
    %3 = tpu.matmul %1, %2, %cst {dimension_numbers = #tpu.dot_dimension_numbers<[1], [0], [0], [1], [0, 0, 1, 1], [], []>} : vector<32x32xbf16>, vector<32x96xbf16>, vector<32x96xf32> -> vector<32x96xf32>
    %c0_3 = arith.constant 0 : index
    %c0_4 = arith.constant 0 : index
    %4 = vector.load %arg4[%c0_3, %c0_4] : memref<1x96xf32, #tpu.memory_space<vmem>>, vector<1x96xf32>
    %5 = vector.broadcast %4 : vector<1x96xf32> to vector<32x96xf32>
    %6 = arith.addf %3, %5 : vector<32x96xf32>
    %7 = arith.truncf %6 : vector<32x96xf32> to vector<32x96xbf16>
    %c0_5 = arith.constant 0 : index
    %c0_6 = arith.constant 0 : index
    %8 = vector.load %arg16[%c0_5, %c0_6] : memref<32x96xbf16, #tpu.memory_space<vmem>>, vector<32x96xbf16>
    tpu.vector_store %arg16[%c0_5, %c0_6], %7 {strides = array<i32>} : memref<32x96xbf16, #tpu.memory_space<vmem>>, vector<32x96xbf16>,
    %c0_7 = arith.constant 0 : index
    %c0_8 = arith.constant 0 : index
    %c0_9 = arith.constant 0 : index
    %9 = vector.load %arg1[%c0_7, %c0_8, %c0_9] : memref<4x1x8xf32, #tpu.memory_space<vmem>>, vector<1x1x8xf32>
    %10 = vector.shape_cast %9 : vector<1x1x8xf32> to vector<1x8xf32>
    %c0_10 = arith.constant 0 : index
    %c0_11 = arith.constant 0 : index
    %11 = vector.load %arg16[%c0_10, %c0_11] : memref<32x96xbf16, #tpu.memory_space<vmem>>, vector<8x8xbf16>
    %c0_12 = arith.constant 0 : index
    %c32 = arith.constant 32 : index
    %12 = vector.load %arg16[%c0_12, %c32] : memref<32x96xbf16, #tpu.memory_space<vmem>>, vector<8x8xbf16>
    %c0_13 = arith.constant 0 : index
    %c64 = arith.constant 64 : index
    %13 = vector.load %arg16[%c0_13, %c64] : memref<32x96xbf16, #tpu.memory_space<vmem>>, vector<8x8xbf16>
    %cst_14 = arith.constant dense<0.000000e+00> : vector<8x8xf32>
    %14 = tpu.matmul %11, %12, %cst_14 {dimension_numbers = #tpu.dot_dimension_numbers<[1], [1], [0], [0], [0, 0, 1, 0], [], []>} : vector<8x8xbf16>, vector<8x8xbf16>, vector<8x8xf32> -> vector<8x8xf32>
    %15 = vector.broadcast %10 : vector<1x8xf32> to vector<8x8xf32>
    %16 = arith.addf %14, %15 : vector<8x8xf32>
    %cst_15 = arith.constant dense<0xFF800000> : vector<8xf32>
    %17 = vector.multi_reduction <maximumf>, %16, %cst_15 [1] : vector<8x8xf32> to vector<8xf32>
    %18 = vector.shape_cast %17 : vector<8xf32> to vector<8x1xf32>
    %19 = vector.broadcast %18 : vector<8x1xf32> to vector<8x8xf32>
    %20 = arith.subf %16, %19 : vector<8x8xf32>
    %21 = math.exp %20 : vector<8x8xf32>
    %cst_16 = arith.constant dense<0.000000e+00> : vector<8xf32>
    %22 = vector.multi_reduction <add>, %21, %cst_16 [1] : vector<8x8xf32> to vector<8xf32>
    %23 = vector.shape_cast %22 : vector<8xf32> to vector<8x1xf32>
    %24 = tpu.reciprocal %23 {approx = true} : vector<8x1xf32> -> vector<8x1xf32>
    %25 = vector.broadcast %24 : vector<8x1xf32> to vector<8x8xf32>
    %26 = arith.mulf %21, %25 : vector<8x8xf32>
    %27 = arith.truncf %26 : vector<8x8xf32> to vector<8x8xbf16>
    %cst_17 = arith.constant dense<0.000000e+00> : vector<8x8xf32>
    %28 = tpu.matmul %27, %13, %cst_17 {dimension_numbers = #tpu.dot_dimension_numbers<[1], [0], [0], [1], [0, 0, 1, 1], [], []>} : vector<8x8xbf16>, vector<8x8xbf16>, vector<8x8xf32> -> vector<8x8xf32>
    %29 = arith.truncf %28 : vector<8x8xf32> to vector<8x8xbf16>
    %c0_18 = arith.constant 0 : index
    %c0_19 = arith.constant 0 : index
    %30 = vector.load %arg17[%c0_18, %c0_19] : memref<32x32xbf16, #tpu.memory_space<vmem>>, vector<8x8xbf16>
    tpu.vector_store %arg17[%c0_18, %c0_19], %29 {strides = array<i32>} : memref<32x32xbf16, #tpu.memory_space<vmem>>, vector<8x8xbf16>,
    %c0_20 = arith.constant 0 : index
    %c8 = arith.constant 8 : index
    %31 = vector.load %arg16[%c0_20, %c8] : memref<32x96xbf16, #tpu.memory_space<vmem>>, vector<8x8xbf16>
    %c0_21 = arith.constant 0 : index
    %c40 = arith.constant 40 : index
    %32 = vector.load %arg16[%c0_21, %c40] : memref<32x96xbf16, #tpu.memory_space<vmem>>, vector<8x8xbf16>
    %c0_22 = arith.constant 0 : index
    %c72 = arith.constant 72 : index
    %33 = vector.load %arg16[%c0_22, %c72] : memref<32x96xbf16, #tpu.memory_space<vmem>>, vector<8x8xbf16>
    %cst_23 = arith.constant dense<0.000000e+00> : vector<8x8xf32>
    %34 = tpu.matmul %31, %32, %cst_23 {dimension_numbers = #tpu.dot_dimension_numbers<[1], [1], [0], [0], [0, 0, 1, 0], [], []>} : vector<8x8xbf16>, vector<8x8xbf16>, vector<8x8xf32> -> vector<8x8xf32>
    %35 = vector.broadcast %10 : vector<1x8xf32> to vector<8x8xf32>
    %36 = arith.addf %34, %35 : vector<8x8xf32>
    %cst_24 = arith.constant dense<0xFF800000> : vector<8xf32>
    %37 = vector.multi_reduction <maximumf>, %36, %cst_24 [1] : vector<8x8xf32> to vector<8xf32>
    %38 = vector.shape_cast %37 : vector<8xf32> to vector<8x1xf32>
    %39 = vector.broadcast %38 : vector<8x1xf32> to vector<8x8xf32>
    %40 = arith.subf %36, %39 : vector<8x8xf32>
    %41 = math.exp %40 : vector<8x8xf32>
    %cst_25 = arith.constant dense<0.000000e+00> : vector<8xf32>
    %42 = vector.multi_reduction <add>, %41, %cst_25 [1] : vector<8x8xf32> to vector<8xf32>
    %43 = vector.shape_cast %42 : vector<8xf32> to vector<8x1xf32>
    %44 = tpu.reciprocal %43 {approx = true} : vector<8x1xf32> -> vector<8x1xf32>
    %45 = vector.broadcast %44 : vector<8x1xf32> to vector<8x8xf32>
    %46 = arith.mulf %41, %45 : vector<8x8xf32>
    %47 = arith.truncf %46 : vector<8x8xf32> to vector<8x8xbf16>
    %cst_26 = arith.constant dense<0.000000e+00> : vector<8x8xf32>
    %48 = tpu.matmul %47, %33, %cst_26 {dimension_numbers = #tpu.dot_dimension_numbers<[1], [0], [0], [1], [0, 0, 1, 1], [], []>} : vector<8x8xbf16>, vector<8x8xbf16>, vector<8x8xf32> -> vector<8x8xf32>
    %49 = arith.truncf %48 : vector<8x8xf32> to vector<8x8xbf16>
    %c0_27 = arith.constant 0 : index
    %c8_28 = arith.constant 8 : index
    %50 = vector.load %arg17[%c0_27, %c8_28] : memref<32x32xbf16, #tpu.memory_space<vmem>>, vector<8x8xbf16>
    tpu.vector_store %arg17[%c0_27, %c8_28], %49 {strides = array<i32>} : memref<32x32xbf16, #tpu.memory_space<vmem>>, vector<8x8xbf16>,
    %c0_29 = arith.constant 0 : index
    %c16 = arith.constant 16 : index
    %51 = vector.load %arg16[%c0_29, %c16] : memref<32x96xbf16, #tpu.memory_space<vmem>>, vector<8x8xbf16>
    %c0_30 = arith.constant 0 : index
    %c48 = arith.constant 48 : index
    %52 = vector.load %arg16[%c0_30, %c48] : memref<32x96xbf16, #tpu.memory_space<vmem>>, vector<8x8xbf16>
    %c0_31 = arith.constant 0 : index
    %c80 = arith.constant 80 : index
    %53 = vector.load %arg16[%c0_31, %c80] : memref<32x96xbf16, #tpu.memory_space<vmem>>, vector<8x8xbf16>
    %cst_32 = arith.constant dense<0.000000e+00> : vector<8x8xf32>
    %54 = tpu.matmul %51, %52, %cst_32 {dimension_numbers = #tpu.dot_dimension_numbers<[1], [1], [0], [0], [0, 0, 1, 0], [], []>} : vector<8x8xbf16>, vector<8x8xbf16>, vector<8x8xf32> -> vector<8x8xf32>
    %55 = vector.broadcast %10 : vector<1x8xf32> to vector<8x8xf32>
    %56 = arith.addf %54, %55 : vector<8x8xf32>
    %cst_33 = arith.constant dense<0xFF800000> : vector<8xf32>
    %57 = vector.multi_reduction <maximumf>, %56, %cst_33 [1] : vector<8x8xf32> to vector<8xf32>
    %58 = vector.shape_cast %57 : vector<8xf32> to vector<8x1xf32>
    %59 = vector.broadcast %58 : vector<8x1xf32> to vector<8x8xf32>
    %60 = arith.subf %56, %59 : vector<8x8xf32>
    %61 = math.exp %60 : vector<8x8xf32>
    %cst_34 = arith.constant dense<0.000000e+00> : vector<8xf32>
    %62 = vector.multi_reduction <add>, %61, %cst_34 [1] : vector<8x8xf32> to vector<8xf32>
    %63 = vector.shape_cast %62 : vector<8xf32> to vector<8x1xf32>
    %64 = tpu.reciprocal %63 {approx = true} : vector<8x1xf32> -> vector<8x1xf32>
    %65 = vector.broadcast %64 : vector<8x1xf32> to vector<8x8xf32>
    %66 = arith.mulf %61, %65 : vector<8x8xf32>
    %67 = arith.truncf %66 : vector<8x8xf32> to vector<8x8xbf16>
    %cst_35 = arith.constant dense<0.000000e+00> : vector<8x8xf32>
    %68 = tpu.matmul %67, %53, %cst_35 {dimension_numbers = #tpu.dot_dimension_numbers<[1], [0], [0], [1], [0, 0, 1, 1], [], []>} : vector<8x8xbf16>, vector<8x8xbf16>, vector<8x8xf32> -> vector<8x8xf32>
    %69 = arith.truncf %68 : vector<8x8xf32> to vector<8x8xbf16>
    %c0_36 = arith.constant 0 : index
    %c16_37 = arith.constant 16 : index
    %70 = vector.load %arg17[%c0_36, %c16_37] : memref<32x32xbf16, #tpu.memory_space<vmem>>, vector<8x8xbf16>
    tpu.vector_store %arg17[%c0_36, %c16_37], %69 {strides = array<i32>} : memref<32x32xbf16, #tpu.memory_space<vmem>>, vector<8x8xbf16>,
    %c0_38 = arith.constant 0 : index
    %c24 = arith.constant 24 : index
    %71 = vector.load %arg16[%c0_38, %c24] : memref<32x96xbf16, #tpu.memory_space<vmem>>, vector<8x8xbf16>
    %c0_39 = arith.constant 0 : index
    %c56 = arith.constant 56 : index
    %72 = vector.load %arg16[%c0_39, %c56] : memref<32x96xbf16, #tpu.memory_space<vmem>>, vector<8x8xbf16>
    %c0_40 = arith.constant 0 : index
    %c88 = arith.constant 88 : index
    %73 = vector.load %arg16[%c0_40, %c88] : memref<32x96xbf16, #tpu.memory_space<vmem>>, vector<8x8xbf16>
    %cst_41 = arith.constant dense<0.000000e+00> : vector<8x8xf32>
    %74 = tpu.matmul %71, %72, %cst_41 {dimension_numbers = #tpu.dot_dimension_numbers<[1], [1], [0], [0], [0, 0, 1, 0], [], []>} : vector<8x8xbf16>, vector<8x8xbf16>, vector<8x8xf32> -> vector<8x8xf32>
    %75 = vector.broadcast %10 : vector<1x8xf32> to vector<8x8xf32>
    %76 = arith.addf %74, %75 : vector<8x8xf32>
    %cst_42 = arith.constant dense<0xFF800000> : vector<8xf32>
    %77 = vector.multi_reduction <maximumf>, %76, %cst_42 [1] : vector<8x8xf32> to vector<8xf32>
    %78 = vector.shape_cast %77 : vector<8xf32> to vector<8x1xf32>
    %79 = vector.broadcast %78 : vector<8x1xf32> to vector<8x8xf32>
    %80 = arith.subf %76, %79 : vector<8x8xf32>
    %81 = math.exp %80 : vector<8x8xf32>
    %cst_43 = arith.constant dense<0.000000e+00> : vector<8xf32>
    %82 = vector.multi_reduction <add>, %81, %cst_43 [1] : vector<8x8xf32> to vector<8xf32>
    %83 = vector.shape_cast %82 : vector<8xf32> to vector<8x1xf32>
    %84 = tpu.reciprocal %83 {approx = true} : vector<8x1xf32> -> vector<8x1xf32>
    %85 = vector.broadcast %84 : vector<8x1xf32> to vector<8x8xf32>
    %86 = arith.mulf %81, %85 : vector<8x8xf32>
    %87 = arith.truncf %86 : vector<8x8xf32> to vector<8x8xbf16>
    %cst_44 = arith.constant dense<0.000000e+00> : vector<8x8xf32>
    %88 = tpu.matmul %87, %73, %cst_44 {dimension_numbers = #tpu.dot_dimension_numbers<[1], [0], [0], [1], [0, 0, 1, 1], [], []>} : vector<8x8xbf16>, vector<8x8xbf16>, vector<8x8xf32> -> vector<8x8xf32>
    %89 = arith.truncf %88 : vector<8x8xf32> to vector<8x8xbf16>
    %c0_45 = arith.constant 0 : index
    %c24_46 = arith.constant 24 : index
    %90 = vector.load %arg17[%c0_45, %c24_46] : memref<32x32xbf16, #tpu.memory_space<vmem>>, vector<8x8xbf16>
    tpu.vector_store %arg17[%c0_45, %c24_46], %89 {strides = array<i32>} : memref<32x32xbf16, #tpu.memory_space<vmem>>, vector<8x8xbf16>,
    %c1 = arith.constant 1 : index
    %c0_47 = arith.constant 0 : index
    %c0_48 = arith.constant 0 : index
    %91 = vector.load %arg1[%c1, %c0_47, %c0_48] : memref<4x1x8xf32, #tpu.memory_space<vmem>>, vector<1x1x8xf32>
    %92 = vector.shape_cast %91 : vector<1x1x8xf32> to vector<1x8xf32>
    %c8_49 = arith.constant 8 : index
    %c0_50 = arith.constant 0 : index
    %93 = vector.load %arg16[%c8_49, %c0_50] : memref<32x96xbf16, #tpu.memory_space<vmem>>, vector<8x8xbf16>
    %c8_51 = arith.constant 8 : index
    %c32_52 = arith.constant 32 : index
    %94 = vector.load %arg16[%c8_51, %c32_52] : memref<32x96xbf16, #tpu.memory_space<vmem>>, vector<8x8xbf16>
    %c8_53 = arith.constant 8 : index
    %c64_54 = arith.constant 64 : index
    %95 = vector.load %arg16[%c8_53, %c64_54] : memref<32x96xbf16, #tpu.memory_space<vmem>>, vector<8x8xbf16>
    %cst_55 = arith.constant dense<0.000000e+00> : vector<8x8xf32>
    %96 = tpu.matmul %93, %94, %cst_55 {dimension_numbers = #tpu.dot_dimension_numbers<[1], [1], [0], [0], [0, 0, 1, 0], [], []>} : vector<8x8xbf16>, vector<8x8xbf16>, vector<8x8xf32> -> vector<8x8xf32>
    %97 = vector.broadcast %92 : vector<1x8xf32> to vector<8x8xf32>
    %98 = arith.addf %96, %97 : vector<8x8xf32>
    %cst_56 = arith.constant dense<0xFF800000> : vector<8xf32>
    %99 = vector.multi_reduction <maximumf>, %98, %cst_56 [1] : vector<8x8xf32> to vector<8xf32>
    %100 = vector.shape_cast %99 : vector<8xf32> to vector<8x1xf32>
    %101 = vector.broadcast %100 : vector<8x1xf32> to vector<8x8xf32>
    %102 = arith.subf %98, %101 : vector<8x8xf32>
    %103 = math.exp %102 : vector<8x8xf32>
    %cst_57 = arith.constant dense<0.000000e+00> : vector<8xf32>
    %104 = vector.multi_reduction <add>, %103, %cst_57 [1] : vector<8x8xf32> to vector<8xf32>
    %105 = vector.shape_cast %104 : vector<8xf32> to vector<8x1xf32>
    %106 = tpu.reciprocal %105 {approx = true} : vector<8x1xf32> -> vector<8x1xf32>
    %107 = vector.broadcast %106 : vector<8x1xf32> to vector<8x8xf32>
    %108 = arith.mulf %103, %107 : vector<8x8xf32>
    %109 = arith.truncf %108 : vector<8x8xf32> to vector<8x8xbf16>
    %cst_58 = arith.constant dense<0.000000e+00> : vector<8x8xf32>
    %110 = tpu.matmul %109, %95, %cst_58 {dimension_numbers = #tpu.dot_dimension_numbers<[1], [0], [0], [1], [0, 0, 1, 1], [], []>} : vector<8x8xbf16>, vector<8x8xbf16>, vector<8x8xf32> -> vector<8x8xf32>
    %111 = arith.truncf %110 : vector<8x8xf32> to vector<8x8xbf16>
    %c8_59 = arith.constant 8 : index
    %c0_60 = arith.constant 0 : index
    %112 = vector.load %arg17[%c8_59, %c0_60] : memref<32x32xbf16, #tpu.memory_space<vmem>>, vector<8x8xbf16>
    tpu.vector_store %arg17[%c8_59, %c0_60], %111 {strides = array<i32>} : memref<32x32xbf16, #tpu.memory_space<vmem>>, vector<8x8xbf16>,
    %c8_61 = arith.constant 8 : index
    %c8_62 = arith.constant 8 : index
    %113 = vector.load %arg16[%c8_61, %c8_62] : memref<32x96xbf16, #tpu.memory_space<vmem>>, vector<8x8xbf16>
    %c8_63 = arith.constant 8 : index
    %c40_64 = arith.constant 40 : index
    %114 = vector.load %arg16[%c8_63, %c40_64] : memref<32x96xbf16, #tpu.memory_space<vmem>>, vector<8x8xbf16>
    %c8_65 = arith.constant 8 : index
    %c72_66 = arith.constant 72 : index
    %115 = vector.load %arg16[%c8_65, %c72_66] : memref<32x96xbf16, #tpu.memory_space<vmem>>, vector<8x8xbf16>
    %cst_67 = arith.constant dense<0.000000e+00> : vector<8x8xf32>
    %116 = tpu.matmul %113, %114, %cst_67 {dimension_numbers = #tpu.dot_dimension_numbers<[1], [1], [0], [0], [0, 0, 1, 0], [], []>} : vector<8x8xbf16>, vector<8x8xbf16>, vector<8x8xf32> -> vector<8x8xf32>
    %117 = vector.broadcast %92 : vector<1x8xf32> to vector<8x8xf32>
    %118 = arith.addf %116, %117 : vector<8x8xf32>
    %cst_68 = arith.constant dense<0xFF800000> : vector<8xf32>
    %119 = vector.multi_reduction <maximumf>, %118, %cst_68 [1] : vector<8x8xf32> to vector<8xf32>
    %120 = vector.shape_cast %119 : vector<8xf32> to vector<8x1xf32>
    %121 = vector.broadcast %120 : vector<8x1xf32> to vector<8x8xf32>
    %122 = arith.subf %118, %121 : vector<8x8xf32>
    %123 = math.exp %122 : vector<8x8xf32>
    %cst_69 = arith.constant dense<0.000000e+00> : vector<8xf32>
    %124 = vector.multi_reduction <add>, %123, %cst_69 [1] : vector<8x8xf32> to vector<8xf32>
    %125 = vector.shape_cast %124 : vector<8xf32> to vector<8x1xf32>
    %126 = tpu.reciprocal %125 {approx = true} : vector<8x1xf32> -> vector<8x1xf32>
    %127 = vector.broadcast %126 : vector<8x1xf32> to vector<8x8xf32>
    %128 = arith.mulf %123, %127 : vector<8x8xf32>
    %129 = arith.truncf %128 : vector<8x8xf32> to vector<8x8xbf16>
    %cst_70 = arith.constant dense<0.000000e+00> : vector<8x8xf32>
    %130 = tpu.matmul %129, %115, %cst_70 {dimension_numbers = #tpu.dot_dimension_numbers<[1], [0], [0], [1], [0, 0, 1, 1], [], []>} : vector<8x8xbf16>, vector<8x8xbf16>, vector<8x8xf32> -> vector<8x8xf32>
    %131 = arith.truncf %130 : vector<8x8xf32> to vector<8x8xbf16>
    %c8_71 = arith.constant 8 : index
    %c8_72 = arith.constant 8 : index
    %132 = vector.load %arg17[%c8_71, %c8_72] : memref<32x32xbf16, #tpu.memory_space<vmem>>, vector<8x8xbf16>
    tpu.vector_store %arg17[%c8_71, %c8_72], %131 {strides = array<i32>} : memref<32x32xbf16, #tpu.memory_space<vmem>>, vector<8x8xbf16>,
    %c8_73 = arith.constant 8 : index
    %c16_74 = arith.constant 16 : index
    %133 = vector.load %arg16[%c8_73, %c16_74] : memref<32x96xbf16, #tpu.memory_space<vmem>>, vector<8x8xbf16>
    %c8_75 = arith.constant 8 : index
    %c48_76 = arith.constant 48 : index
    %134 = vector.load %arg16[%c8_75, %c48_76] : memref<32x96xbf16, #tpu.memory_space<vmem>>, vector<8x8xbf16>
    %c8_77 = arith.constant 8 : index
    %c80_78 = arith.constant 80 : index
    %135 = vector.load %arg16[%c8_77, %c80_78] : memref<32x96xbf16, #tpu.memory_space<vmem>>, vector<8x8xbf16>
    %cst_79 = arith.constant dense<0.000000e+00> : vector<8x8xf32>
    %136 = tpu.matmul %133, %134, %cst_79 {dimension_numbers = #tpu.dot_dimension_numbers<[1], [1], [0], [0], [0, 0, 1, 0], [], []>} : vector<8x8xbf16>, vector<8x8xbf16>, vector<8x8xf32> -> vector<8x8xf32>
    %137 = vector.broadcast %92 : vector<1x8xf32> to vector<8x8xf32>
    %138 = arith.addf %136, %137 : vector<8x8xf32>
    %cst_80 = arith.constant dense<0xFF800000> : vector<8xf32>
    %139 = vector.multi_reduction <maximumf>, %138, %cst_80 [1] : vector<8x8xf32> to vector<8xf32>
    %140 = vector.shape_cast %139 : vector<8xf32> to vector<8x1xf32>
    %141 = vector.broadcast %140 : vector<8x1xf32> to vector<8x8xf32>
    %142 = arith.subf %138, %141 : vector<8x8xf32>
    %143 = math.exp %142 : vector<8x8xf32>
    %cst_81 = arith.constant dense<0.000000e+00> : vector<8xf32>
    %144 = vector.multi_reduction <add>, %143, %cst_81 [1] : vector<8x8xf32> to vector<8xf32>
    %145 = vector.shape_cast %144 : vector<8xf32> to vector<8x1xf32>
    %146 = tpu.reciprocal %145 {approx = true} : vector<8x1xf32> -> vector<8x1xf32>
    %147 = vector.broadcast %146 : vector<8x1xf32> to vector<8x8xf32>
    %148 = arith.mulf %143, %147 : vector<8x8xf32>
    %149 = arith.truncf %148 : vector<8x8xf32> to vector<8x8xbf16>
    %cst_82 = arith.constant dense<0.000000e+00> : vector<8x8xf32>
    %150 = tpu.matmul %149, %135, %cst_82 {dimension_numbers = #tpu.dot_dimension_numbers<[1], [0], [0], [1], [0, 0, 1, 1], [], []>} : vector<8x8xbf16>, vector<8x8xbf16>, vector<8x8xf32> -> vector<8x8xf32>
    %151 = arith.truncf %150 : vector<8x8xf32> to vector<8x8xbf16>
    %c8_83 = arith.constant 8 : index
    %c16_84 = arith.constant 16 : index
    %152 = vector.load %arg17[%c8_83, %c16_84] : memref<32x32xbf16, #tpu.memory_space<vmem>>, vector<8x8xbf16>
    tpu.vector_store %arg17[%c8_83, %c16_84], %151 {strides = array<i32>} : memref<32x32xbf16, #tpu.memory_space<vmem>>, vector<8x8xbf16>,
    %c8_85 = arith.constant 8 : index
    %c24_86 = arith.constant 24 : index
    %153 = vector.load %arg16[%c8_85, %c24_86] : memref<32x96xbf16, #tpu.memory_space<vmem>>, vector<8x8xbf16>
    %c8_87 = arith.constant 8 : index
    %c56_88 = arith.constant 56 : index
    %154 = vector.load %arg16[%c8_87, %c56_88] : memref<32x96xbf16, #tpu.memory_space<vmem>>, vector<8x8xbf16>
    %c8_89 = arith.constant 8 : index
    %c88_90 = arith.constant 88 : index
    %155 = vector.load %arg16[%c8_89, %c88_90] : memref<32x96xbf16, #tpu.memory_space<vmem>>, vector<8x8xbf16>
    %cst_91 = arith.constant dense<0.000000e+00> : vector<8x8xf32>
    %156 = tpu.matmul %153, %154, %cst_91 {dimension_numbers = #tpu.dot_dimension_numbers<[1], [1], [0], [0], [0, 0, 1, 0], [], []>} : vector<8x8xbf16>, vector<8x8xbf16>, vector<8x8xf32> -> vector<8x8xf32>
    %157 = vector.broadcast %92 : vector<1x8xf32> to vector<8x8xf32>
    %158 = arith.addf %156, %157 : vector<8x8xf32>
    %cst_92 = arith.constant dense<0xFF800000> : vector<8xf32>
    %159 = vector.multi_reduction <maximumf>, %158, %cst_92 [1] : vector<8x8xf32> to vector<8xf32>
    %160 = vector.shape_cast %159 : vector<8xf32> to vector<8x1xf32>
    %161 = vector.broadcast %160 : vector<8x1xf32> to vector<8x8xf32>
    %162 = arith.subf %158, %161 : vector<8x8xf32>
    %163 = math.exp %162 : vector<8x8xf32>
    %cst_93 = arith.constant dense<0.000000e+00> : vector<8xf32>
    %164 = vector.multi_reduction <add>, %163, %cst_93 [1] : vector<8x8xf32> to vector<8xf32>
    %165 = vector.shape_cast %164 : vector<8xf32> to vector<8x1xf32>
    %166 = tpu.reciprocal %165 {approx = true} : vector<8x1xf32> -> vector<8x1xf32>
    %167 = vector.broadcast %166 : vector<8x1xf32> to vector<8x8xf32>
    %168 = arith.mulf %163, %167 : vector<8x8xf32>
    %169 = arith.truncf %168 : vector<8x8xf32> to vector<8x8xbf16>
    %cst_94 = arith.constant dense<0.000000e+00> : vector<8x8xf32>
    %170 = tpu.matmul %169, %155, %cst_94 {dimension_numbers = #tpu.dot_dimension_numbers<[1], [0], [0], [1], [0, 0, 1, 1], [], []>} : vector<8x8xbf16>, vector<8x8xbf16>, vector<8x8xf32> -> vector<8x8xf32>
    %171 = arith.truncf %170 : vector<8x8xf32> to vector<8x8xbf16>
    %c8_95 = arith.constant 8 : index
    %c24_96 = arith.constant 24 : index
    %172 = vector.load %arg17[%c8_95, %c24_96] : memref<32x32xbf16, #tpu.memory_space<vmem>>, vector<8x8xbf16>
    tpu.vector_store %arg17[%c8_95, %c24_96], %171 {strides = array<i32>} : memref<32x32xbf16, #tpu.memory_space<vmem>>, vector<8x8xbf16>,
    %c2 = arith.constant 2 : index
    %c0_97 = arith.constant 0 : index
    %c0_98 = arith.constant 0 : index
    %173 = vector.load %arg1[%c2, %c0_97, %c0_98] : memref<4x1x8xf32, #tpu.memory_space<vmem>>, vector<1x1x8xf32>
    %174 = vector.shape_cast %173 : vector<1x1x8xf32> to vector<1x8xf32>
    %c16_99 = arith.constant 16 : index
    %c0_100 = arith.constant 0 : index
    %175 = vector.load %arg16[%c16_99, %c0_100] : memref<32x96xbf16, #tpu.memory_space<vmem>>, vector<8x8xbf16>
    %c16_101 = arith.constant 16 : index
    %c32_102 = arith.constant 32 : index
    %176 = vector.load %arg16[%c16_101, %c32_102] : memref<32x96xbf16, #tpu.memory_space<vmem>>, vector<8x8xbf16>
    %c16_103 = arith.constant 16 : index
    %c64_104 = arith.constant 64 : index
    %177 = vector.load %arg16[%c16_103, %c64_104] : memref<32x96xbf16, #tpu.memory_space<vmem>>, vector<8x8xbf16>
    %cst_105 = arith.constant dense<0.000000e+00> : vector<8x8xf32>
    %178 = tpu.matmul %175, %176, %cst_105 {dimension_numbers = #tpu.dot_dimension_numbers<[1], [1], [0], [0], [0, 0, 1, 0], [], []>} : vector<8x8xbf16>, vector<8x8xbf16>, vector<8x8xf32> -> vector<8x8xf32>
    %179 = vector.broadcast %174 : vector<1x8xf32> to vector<8x8xf32>
    %180 = arith.addf %178, %179 : vector<8x8xf32>
    %cst_106 = arith.constant dense<0xFF800000> : vector<8xf32>
    %181 = vector.multi_reduction <maximumf>, %180, %cst_106 [1] : vector<8x8xf32> to vector<8xf32>
    %182 = vector.shape_cast %181 : vector<8xf32> to vector<8x1xf32>
    %183 = vector.broadcast %182 : vector<8x1xf32> to vector<8x8xf32>
    %184 = arith.subf %180, %183 : vector<8x8xf32>
    %185 = math.exp %184 : vector<8x8xf32>
    %cst_107 = arith.constant dense<0.000000e+00> : vector<8xf32>
    %186 = vector.multi_reduction <add>, %185, %cst_107 [1] : vector<8x8xf32> to vector<8xf32>
    %187 = vector.shape_cast %186 : vector<8xf32> to vector<8x1xf32>
    %188 = tpu.reciprocal %187 {approx = true} : vector<8x1xf32> -> vector<8x1xf32>
    %189 = vector.broadcast %188 : vector<8x1xf32> to vector<8x8xf32>
    %190 = arith.mulf %185, %189 : vector<8x8xf32>
    %191 = arith.truncf %190 : vector<8x8xf32> to vector<8x8xbf16>
    %cst_108 = arith.constant dense<0.000000e+00> : vector<8x8xf32>
    %192 = tpu.matmul %191, %177, %cst_108 {dimension_numbers = #tpu.dot_dimension_numbers<[1], [0], [0], [1], [0, 0, 1, 1], [], []>} : vector<8x8xbf16>, vector<8x8xbf16>, vector<8x8xf32> -> vector<8x8xf32>
    %193 = arith.truncf %192 : vector<8x8xf32> to vector<8x8xbf16>
    %c16_109 = arith.constant 16 : index
    %c0_110 = arith.constant 0 : index
    %194 = vector.load %arg17[%c16_109, %c0_110] : memref<32x32xbf16, #tpu.memory_space<vmem>>, vector<8x8xbf16>
    tpu.vector_store %arg17[%c16_109, %c0_110], %193 {strides = array<i32>} : memref<32x32xbf16, #tpu.memory_space<vmem>>, vector<8x8xbf16>,
    %c16_111 = arith.constant 16 : index
    %c8_112 = arith.constant 8 : index
    %195 = vector.load %arg16[%c16_111, %c8_112] : memref<32x96xbf16, #tpu.memory_space<vmem>>, vector<8x8xbf16>
    %c16_113 = arith.constant 16 : index
    %c40_114 = arith.constant 40 : index
    %196 = vector.load %arg16[%c16_113, %c40_114] : memref<32x96xbf16, #tpu.memory_space<vmem>>, vector<8x8xbf16>
    %c16_115 = arith.constant 16 : index
    %c72_116 = arith.constant 72 : index
    %197 = vector.load %arg16[%c16_115, %c72_116] : memref<32x96xbf16, #tpu.memory_space<vmem>>, vector<8x8xbf16>
    %cst_117 = arith.constant dense<0.000000e+00> : vector<8x8xf32>
    %198 = tpu.matmul %195, %196, %cst_117 {dimension_numbers = #tpu.dot_dimension_numbers<[1], [1], [0], [0], [0, 0, 1, 0], [], []>} : vector<8x8xbf16>, vector<8x8xbf16>, vector<8x8xf32> -> vector<8x8xf32>
    %199 = vector.broadcast %174 : vector<1x8xf32> to vector<8x8xf32>
    %200 = arith.addf %198, %199 : vector<8x8xf32>
    %cst_118 = arith.constant dense<0xFF800000> : vector<8xf32>
    %201 = vector.multi_reduction <maximumf>, %200, %cst_118 [1] : vector<8x8xf32> to vector<8xf32>
    %202 = vector.shape_cast %201 : vector<8xf32> to vector<8x1xf32>
    %203 = vector.broadcast %202 : vector<8x1xf32> to vector<8x8xf32>
    %204 = arith.subf %200, %203 : vector<8x8xf32>
    %205 = math.exp %204 : vector<8x8xf32>
    %cst_119 = arith.constant dense<0.000000e+00> : vector<8xf32>
    %206 = vector.multi_reduction <add>, %205, %cst_119 [1] : vector<8x8xf32> to vector<8xf32>
    %207 = vector.shape_cast %206 : vector<8xf32> to vector<8x1xf32>
    %208 = tpu.reciprocal %207 {approx = true} : vector<8x1xf32> -> vector<8x1xf32>
    %209 = vector.broadcast %208 : vector<8x1xf32> to vector<8x8xf32>
    %210 = arith.mulf %205, %209 : vector<8x8xf32>
    %211 = arith.truncf %210 : vector<8x8xf32> to vector<8x8xbf16>
    %cst_120 = arith.constant dense<0.000000e+00> : vector<8x8xf32>
    %212 = tpu.matmul %211, %197, %cst_120 {dimension_numbers = #tpu.dot_dimension_numbers<[1], [0], [0], [1], [0, 0, 1, 1], [], []>} : vector<8x8xbf16>, vector<8x8xbf16>, vector<8x8xf32> -> vector<8x8xf32>
    %213 = arith.truncf %212 : vector<8x8xf32> to vector<8x8xbf16>
    %c16_121 = arith.constant 16 : index
    %c8_122 = arith.constant 8 : index
    %214 = vector.load %arg17[%c16_121, %c8_122] : memref<32x32xbf16, #tpu.memory_space<vmem>>, vector<8x8xbf16>
    tpu.vector_store %arg17[%c16_121, %c8_122], %213 {strides = array<i32>} : memref<32x32xbf16, #tpu.memory_space<vmem>>, vector<8x8xbf16>,
    %c16_123 = arith.constant 16 : index
    %c16_124 = arith.constant 16 : index
    %215 = vector.load %arg16[%c16_123, %c16_124] : memref<32x96xbf16, #tpu.memory_space<vmem>>, vector<8x8xbf16>
    %c16_125 = arith.constant 16 : index
    %c48_126 = arith.constant 48 : index
    %216 = vector.load %arg16[%c16_125, %c48_126] : memref<32x96xbf16, #tpu.memory_space<vmem>>, vector<8x8xbf16>
    %c16_127 = arith.constant 16 : index
    %c80_128 = arith.constant 80 : index
    %217 = vector.load %arg16[%c16_127, %c80_128] : memref<32x96xbf16, #tpu.memory_space<vmem>>, vector<8x8xbf16>
    %cst_129 = arith.constant dense<0.000000e+00> : vector<8x8xf32>
    %218 = tpu.matmul %215, %216, %cst_129 {dimension_numbers = #tpu.dot_dimension_numbers<[1], [1], [0], [0], [0, 0, 1, 0], [], []>} : vector<8x8xbf16>, vector<8x8xbf16>, vector<8x8xf32> -> vector<8x8xf32>
    %219 = vector.broadcast %174 : vector<1x8xf32> to vector<8x8xf32>
    %220 = arith.addf %218, %219 : vector<8x8xf32>
    %cst_130 = arith.constant dense<0xFF800000> : vector<8xf32>
    %221 = vector.multi_reduction <maximumf>, %220, %cst_130 [1] : vector<8x8xf32> to vector<8xf32>
    %222 = vector.shape_cast %221 : vector<8xf32> to vector<8x1xf32>
    %223 = vector.broadcast %222 : vector<8x1xf32> to vector<8x8xf32>
    %224 = arith.subf %220, %223 : vector<8x8xf32>
    %225 = math.exp %224 : vector<8x8xf32>
    %cst_131 = arith.constant dense<0.000000e+00> : vector<8xf32>
    %226 = vector.multi_reduction <add>, %225, %cst_131 [1] : vector<8x8xf32> to vector<8xf32>
    %227 = vector.shape_cast %226 : vector<8xf32> to vector<8x1xf32>
    %228 = tpu.reciprocal %227 {approx = true} : vector<8x1xf32> -> vector<8x1xf32>
    %229 = vector.broadcast %228 : vector<8x1xf32> to vector<8x8xf32>
    %230 = arith.mulf %225, %229 : vector<8x8xf32>
    %231 = arith.truncf %230 : vector<8x8xf32> to vector<8x8xbf16>
    %cst_132 = arith.constant dense<0.000000e+00> : vector<8x8xf32>
    %232 = tpu.matmul %231, %217, %cst_132 {dimension_numbers = #tpu.dot_dimension_numbers<[1], [0], [0], [1], [0, 0, 1, 1], [], []>} : vector<8x8xbf16>, vector<8x8xbf16>, vector<8x8xf32> -> vector<8x8xf32>
    %233 = arith.truncf %232 : vector<8x8xf32> to vector<8x8xbf16>
    %c16_133 = arith.constant 16 : index
    %c16_134 = arith.constant 16 : index
    %234 = vector.load %arg17[%c16_133, %c16_134] : memref<32x32xbf16, #tpu.memory_space<vmem>>, vector<8x8xbf16>
    tpu.vector_store %arg17[%c16_133, %c16_134], %233 {strides = array<i32>} : memref<32x32xbf16, #tpu.memory_space<vmem>>, vector<8x8xbf16>,
    %c16_135 = arith.constant 16 : index
    %c24_136 = arith.constant 24 : index
    %235 = vector.load %arg16[%c16_135, %c24_136] : memref<32x96xbf16, #tpu.memory_space<vmem>>, vector<8x8xbf16>
    %c16_137 = arith.constant 16 : index
    %c56_138 = arith.constant 56 : index
    %236 = vector.load %arg16[%c16_137, %c56_138] : memref<32x96xbf16, #tpu.memory_space<vmem>>, vector<8x8xbf16>
    %c16_139 = arith.constant 16 : index
    %c88_140 = arith.constant 88 : index
    %237 = vector.load %arg16[%c16_139, %c88_140] : memref<32x96xbf16, #tpu.memory_space<vmem>>, vector<8x8xbf16>
    %cst_141 = arith.constant dense<0.000000e+00> : vector<8x8xf32>
    %238 = tpu.matmul %235, %236, %cst_141 {dimension_numbers = #tpu.dot_dimension_numbers<[1], [1], [0], [0], [0, 0, 1, 0], [], []>} : vector<8x8xbf16>, vector<8x8xbf16>, vector<8x8xf32> -> vector<8x8xf32>
    %239 = vector.broadcast %174 : vector<1x8xf32> to vector<8x8xf32>
    %240 = arith.addf %238, %239 : vector<8x8xf32>
    %cst_142 = arith.constant dense<0xFF800000> : vector<8xf32>
    %241 = vector.multi_reduction <maximumf>, %240, %cst_142 [1] : vector<8x8xf32> to vector<8xf32>
    %242 = vector.shape_cast %241 : vector<8xf32> to vector<8x1xf32>
    %243 = vector.broadcast %242 : vector<8x1xf32> to vector<8x8xf32>
    %244 = arith.subf %240, %243 : vector<8x8xf32>
    %245 = math.exp %244 : vector<8x8xf32>
    %cst_143 = arith.constant dense<0.000000e+00> : vector<8xf32>
    %246 = vector.multi_reduction <add>, %245, %cst_143 [1] : vector<8x8xf32> to vector<8xf32>
    %247 = vector.shape_cast %246 : vector<8xf32> to vector<8x1xf32>
    %248 = tpu.reciprocal %247 {approx = true} : vector<8x1xf32> -> vector<8x1xf32>
    %249 = vector.broadcast %248 : vector<8x1xf32> to vector<8x8xf32>
    %250 = arith.mulf %245, %249 : vector<8x8xf32>
    %251 = arith.truncf %250 : vector<8x8xf32> to vector<8x8xbf16>
    %cst_144 = arith.constant dense<0.000000e+00> : vector<8x8xf32>
    %252 = tpu.matmul %251, %237, %cst_144 {dimension_numbers = #tpu.dot_dimension_numbers<[1], [0], [0], [1], [0, 0, 1, 1], [], []>} : vector<8x8xbf16>, vector<8x8xbf16>, vector<8x8xf32> -> vector<8x8xf32>
    %253 = arith.truncf %252 : vector<8x8xf32> to vector<8x8xbf16>
    %c16_145 = arith.constant 16 : index
    %c24_146 = arith.constant 24 : index
    %254 = vector.load %arg17[%c16_145, %c24_146] : memref<32x32xbf16, #tpu.memory_space<vmem>>, vector<8x8xbf16>
    tpu.vector_store %arg17[%c16_145, %c24_146], %253 {strides = array<i32>} : memref<32x32xbf16, #tpu.memory_space<vmem>>, vector<8x8xbf16>,
    %c3 = arith.constant 3 : index
    %c0_147 = arith.constant 0 : index
    %c0_148 = arith.constant 0 : index
    %255 = vector.load %arg1[%c3, %c0_147, %c0_148] : memref<4x1x8xf32, #tpu.memory_space<vmem>>, vector<1x1x8xf32>
    %256 = vector.shape_cast %255 : vector<1x1x8xf32> to vector<1x8xf32>
    %c24_149 = arith.constant 24 : index
    %c0_150 = arith.constant 0 : index
    %257 = vector.load %arg16[%c24_149, %c0_150] : memref<32x96xbf16, #tpu.memory_space<vmem>>, vector<8x8xbf16>
    %c24_151 = arith.constant 24 : index
    %c32_152 = arith.constant 32 : index
    %258 = vector.load %arg16[%c24_151, %c32_152] : memref<32x96xbf16, #tpu.memory_space<vmem>>, vector<8x8xbf16>
    %c24_153 = arith.constant 24 : index
    %c64_154 = arith.constant 64 : index
    %259 = vector.load %arg16[%c24_153, %c64_154] : memref<32x96xbf16, #tpu.memory_space<vmem>>, vector<8x8xbf16>
    %cst_155 = arith.constant dense<0.000000e+00> : vector<8x8xf32>
    %260 = tpu.matmul %257, %258, %cst_155 {dimension_numbers = #tpu.dot_dimension_numbers<[1], [1], [0], [0], [0, 0, 1, 0], [], []>} : vector<8x8xbf16>, vector<8x8xbf16>, vector<8x8xf32> -> vector<8x8xf32>
    %261 = vector.broadcast %256 : vector<1x8xf32> to vector<8x8xf32>
    %262 = arith.addf %260, %261 : vector<8x8xf32>
    %cst_156 = arith.constant dense<0xFF800000> : vector<8xf32>
    %263 = vector.multi_reduction <maximumf>, %262, %cst_156 [1] : vector<8x8xf32> to vector<8xf32>
    %264 = vector.shape_cast %263 : vector<8xf32> to vector<8x1xf32>
    %265 = vector.broadcast %264 : vector<8x1xf32> to vector<8x8xf32>
    %266 = arith.subf %262, %265 : vector<8x8xf32>
    %267 = math.exp %266 : vector<8x8xf32>
    %cst_157 = arith.constant dense<0.000000e+00> : vector<8xf32>
    %268 = vector.multi_reduction <add>, %267, %cst_157 [1] : vector<8x8xf32> to vector<8xf32>
    %269 = vector.shape_cast %268 : vector<8xf32> to vector<8x1xf32>
    %270 = tpu.reciprocal %269 {approx = true} : vector<8x1xf32> -> vector<8x1xf32>
    %271 = vector.broadcast %270 : vector<8x1xf32> to vector<8x8xf32>
    %272 = arith.mulf %267, %271 : vector<8x8xf32>
    %273 = arith.truncf %272 : vector<8x8xf32> to vector<8x8xbf16>
    %cst_158 = arith.constant dense<0.000000e+00> : vector<8x8xf32>
    %274 = tpu.matmul %273, %259, %cst_158 {dimension_numbers = #tpu.dot_dimension_numbers<[1], [0], [0], [1], [0, 0, 1, 1], [], []>} : vector<8x8xbf16>, vector<8x8xbf16>, vector<8x8xf32> -> vector<8x8xf32>
    %275 = arith.truncf %274 : vector<8x8xf32> to vector<8x8xbf16>
    %c24_159 = arith.constant 24 : index
    %c0_160 = arith.constant 0 : index
    %276 = vector.load %arg17[%c24_159, %c0_160] : memref<32x32xbf16, #tpu.memory_space<vmem>>, vector<8x8xbf16>
    tpu.vector_store %arg17[%c24_159, %c0_160], %275 {strides = array<i32>} : memref<32x32xbf16, #tpu.memory_space<vmem>>, vector<8x8xbf16>,
    %c24_161 = arith.constant 24 : index
    %c8_162 = arith.constant 8 : index
    %277 = vector.load %arg16[%c24_161, %c8_162] : memref<32x96xbf16, #tpu.memory_space<vmem>>, vector<8x8xbf16>
    %c24_163 = arith.constant 24 : index
    %c40_164 = arith.constant 40 : index
    %278 = vector.load %arg16[%c24_163, %c40_164] : memref<32x96xbf16, #tpu.memory_space<vmem>>, vector<8x8xbf16>
    %c24_165 = arith.constant 24 : index
    %c72_166 = arith.constant 72 : index
    %279 = vector.load %arg16[%c24_165, %c72_166] : memref<32x96xbf16, #tpu.memory_space<vmem>>, vector<8x8xbf16>
    %cst_167 = arith.constant dense<0.000000e+00> : vector<8x8xf32>
    %280 = tpu.matmul %277, %278, %cst_167 {dimension_numbers = #tpu.dot_dimension_numbers<[1], [1], [0], [0], [0, 0, 1, 0], [], []>} : vector<8x8xbf16>, vector<8x8xbf16>, vector<8x8xf32> -> vector<8x8xf32>
    %281 = vector.broadcast %256 : vector<1x8xf32> to vector<8x8xf32>
    %282 = arith.addf %280, %281 : vector<8x8xf32>
    %cst_168 = arith.constant dense<0xFF800000> : vector<8xf32>
    %283 = vector.multi_reduction <maximumf>, %282, %cst_168 [1] : vector<8x8xf32> to vector<8xf32>
    %284 = vector.shape_cast %283 : vector<8xf32> to vector<8x1xf32>
    %285 = vector.broadcast %284 : vector<8x1xf32> to vector<8x8xf32>
    %286 = arith.subf %282, %285 : vector<8x8xf32>
    %287 = math.exp %286 : vector<8x8xf32>
    %cst_169 = arith.constant dense<0.000000e+00> : vector<8xf32>
    %288 = vector.multi_reduction <add>, %287, %cst_169 [1] : vector<8x8xf32> to vector<8xf32>
    %289 = vector.shape_cast %288 : vector<8xf32> to vector<8x1xf32>
    %290 = tpu.reciprocal %289 {approx = true} : vector<8x1xf32> -> vector<8x1xf32>
    %291 = vector.broadcast %290 : vector<8x1xf32> to vector<8x8xf32>
    %292 = arith.mulf %287, %291 : vector<8x8xf32>
    %293 = arith.truncf %292 : vector<8x8xf32> to vector<8x8xbf16>
    %cst_170 = arith.constant dense<0.000000e+00> : vector<8x8xf32>
    %294 = tpu.matmul %293, %279, %cst_170 {dimension_numbers = #tpu.dot_dimension_numbers<[1], [0], [0], [1], [0, 0, 1, 1], [], []>} : vector<8x8xbf16>, vector<8x8xbf16>, vector<8x8xf32> -> vector<8x8xf32>
    %295 = arith.truncf %294 : vector<8x8xf32> to vector<8x8xbf16>
    %c24_171 = arith.constant 24 : index
    %c8_172 = arith.constant 8 : index
    %296 = vector.load %arg17[%c24_171, %c8_172] : memref<32x32xbf16, #tpu.memory_space<vmem>>, vector<8x8xbf16>
    tpu.vector_store %arg17[%c24_171, %c8_172], %295 {strides = array<i32>} : memref<32x32xbf16, #tpu.memory_space<vmem>>, vector<8x8xbf16>,
    %c24_173 = arith.constant 24 : index
    %c16_174 = arith.constant 16 : index
    %297 = vector.load %arg16[%c24_173, %c16_174] : memref<32x96xbf16, #tpu.memory_space<vmem>>, vector<8x8xbf16>
    %c24_175 = arith.constant 24 : index
    %c48_176 = arith.constant 48 : index
    %298 = vector.load %arg16[%c24_175, %c48_176] : memref<32x96xbf16, #tpu.memory_space<vmem>>, vector<8x8xbf16>
    %c24_177 = arith.constant 24 : index
    %c80_178 = arith.constant 80 : index
    %299 = vector.load %arg16[%c24_177, %c80_178] : memref<32x96xbf16, #tpu.memory_space<vmem>>, vector<8x8xbf16>
    %cst_179 = arith.constant dense<0.000000e+00> : vector<8x8xf32>
    %300 = tpu.matmul %297, %298, %cst_179 {dimension_numbers = #tpu.dot_dimension_numbers<[1], [1], [0], [0], [0, 0, 1, 0], [], []>} : vector<8x8xbf16>, vector<8x8xbf16>, vector<8x8xf32> -> vector<8x8xf32>
    %301 = vector.broadcast %256 : vector<1x8xf32> to vector<8x8xf32>
    %302 = arith.addf %300, %301 : vector<8x8xf32>
    %cst_180 = arith.constant dense<0xFF800000> : vector<8xf32>
    %303 = vector.multi_reduction <maximumf>, %302, %cst_180 [1] : vector<8x8xf32> to vector<8xf32>
    %304 = vector.shape_cast %303 : vector<8xf32> to vector<8x1xf32>
    %305 = vector.broadcast %304 : vector<8x1xf32> to vector<8x8xf32>
    %306 = arith.subf %302, %305 : vector<8x8xf32>
    %307 = math.exp %306 : vector<8x8xf32>
    %cst_181 = arith.constant dense<0.000000e+00> : vector<8xf32>
    %308 = vector.multi_reduction <add>, %307, %cst_181 [1] : vector<8x8xf32> to vector<8xf32>
    %309 = vector.shape_cast %308 : vector<8xf32> to vector<8x1xf32>
    %310 = tpu.reciprocal %309 {approx = true} : vector<8x1xf32> -> vector<8x1xf32>
    %311 = vector.broadcast %310 : vector<8x1xf32> to vector<8x8xf32>
    %312 = arith.mulf %307, %311 : vector<8x8xf32>
    %313 = arith.truncf %312 : vector<8x8xf32> to vector<8x8xbf16>
    %cst_182 = arith.constant dense<0.000000e+00> : vector<8x8xf32>
    %314 = tpu.matmul %313, %299, %cst_182 {dimension_numbers = #tpu.dot_dimension_numbers<[1], [0], [0], [1], [0, 0, 1, 1], [], []>} : vector<8x8xbf16>, vector<8x8xbf16>, vector<8x8xf32> -> vector<8x8xf32>
    %315 = arith.truncf %314 : vector<8x8xf32> to vector<8x8xbf16>
    %c24_183 = arith.constant 24 : index
    %c16_184 = arith.constant 16 : index
    %316 = vector.load %arg17[%c24_183, %c16_184] : memref<32x32xbf16, #tpu.memory_space<vmem>>, vector<8x8xbf16>
    tpu.vector_store %arg17[%c24_183, %c16_184], %315 {strides = array<i32>} : memref<32x32xbf16, #tpu.memory_space<vmem>>, vector<8x8xbf16>,
    %c24_185 = arith.constant 24 : index
    %c24_186 = arith.constant 24 : index
    %317 = vector.load %arg16[%c24_185, %c24_186] : memref<32x96xbf16, #tpu.memory_space<vmem>>, vector<8x8xbf16>
    %c24_187 = arith.constant 24 : index
    %c56_188 = arith.constant 56 : index
    %318 = vector.load %arg16[%c24_187, %c56_188] : memref<32x96xbf16, #tpu.memory_space<vmem>>, vector<8x8xbf16>
    %c24_189 = arith.constant 24 : index
    %c88_190 = arith.constant 88 : index
    %319 = vector.load %arg16[%c24_189, %c88_190] : memref<32x96xbf16, #tpu.memory_space<vmem>>, vector<8x8xbf16>
    %cst_191 = arith.constant dense<0.000000e+00> : vector<8x8xf32>
    %320 = tpu.matmul %317, %318, %cst_191 {dimension_numbers = #tpu.dot_dimension_numbers<[1], [1], [0], [0], [0, 0, 1, 0], [], []>} : vector<8x8xbf16>, vector<8x8xbf16>, vector<8x8xf32> -> vector<8x8xf32>
    %321 = vector.broadcast %256 : vector<1x8xf32> to vector<8x8xf32>
    %322 = arith.addf %320, %321 : vector<8x8xf32>
    %cst_192 = arith.constant dense<0xFF800000> : vector<8xf32>
    %323 = vector.multi_reduction <maximumf>, %322, %cst_192 [1] : vector<8x8xf32> to vector<8xf32>
    %324 = vector.shape_cast %323 : vector<8xf32> to vector<8x1xf32>
    %325 = vector.broadcast %324 : vector<8x1xf32> to vector<8x8xf32>
    %326 = arith.subf %322, %325 : vector<8x8xf32>
    %327 = math.exp %326 : vector<8x8xf32>
    %cst_193 = arith.constant dense<0.000000e+00> : vector<8xf32>
    %328 = vector.multi_reduction <add>, %327, %cst_193 [1] : vector<8x8xf32> to vector<8xf32>
    %329 = vector.shape_cast %328 : vector<8xf32> to vector<8x1xf32>
    %330 = tpu.reciprocal %329 {approx = true} : vector<8x1xf32> -> vector<8x1xf32>
    %331 = vector.broadcast %330 : vector<8x1xf32> to vector<8x8xf32>
    %332 = arith.mulf %327, %331 : vector<8x8xf32>
    %333 = arith.truncf %332 : vector<8x8xf32> to vector<8x8xbf16>
    %cst_194 = arith.constant dense<0.000000e+00> : vector<8x8xf32>
    %334 = tpu.matmul %333, %319, %cst_194 {dimension_numbers = #tpu.dot_dimension_numbers<[1], [0], [0], [1], [0, 0, 1, 1], [], []>} : vector<8x8xbf16>, vector<8x8xbf16>, vector<8x8xf32> -> vector<8x8xf32>
    %335 = arith.truncf %334 : vector<8x8xf32> to vector<8x8xbf16>
    %c24_195 = arith.constant 24 : index
    %c24_196 = arith.constant 24 : index
    %336 = vector.load %arg17[%c24_195, %c24_196] : memref<32x32xbf16, #tpu.memory_space<vmem>>, vector<8x8xbf16>
    tpu.vector_store %arg17[%c24_195, %c24_196], %335 {strides = array<i32>} : memref<32x32xbf16, #tpu.memory_space<vmem>>, vector<8x8xbf16>,
    %c0_197 = arith.constant 0 : index
    %c0_198 = arith.constant 0 : index
    %337 = vector.load %arg17[%c0_197, %c0_198] : memref<32x32xbf16, #tpu.memory_space<vmem>>, vector<32x32xbf16>
    %c0_199 = arith.constant 0 : index
    %c0_200 = arith.constant 0 : index
    %338 = vector.load %arg5[%c0_199, %c0_200] : memref<32x32xbf16, #tpu.memory_space<vmem>>, vector<32x32xbf16>
    %cst_201 = arith.constant dense<0.000000e+00> : vector<32x32xf32>
    %339 = tpu.matmul %337, %338, %cst_201 {dimension_numbers = #tpu.dot_dimension_numbers<[1], [0], [0], [1], [0, 0, 1, 1], [], []>} : vector<32x32xbf16>, vector<32x32xbf16>, vector<32x32xf32> -> vector<32x32xf32>
    %c0_202 = arith.constant 0 : index
    %c0_203 = arith.constant 0 : index
    %340 = vector.load %arg6[%c0_202, %c0_203] : memref<1x32xf32, #tpu.memory_space<vmem>>, vector<1x32xf32>
    %341 = vector.broadcast %340 : vector<1x32xf32> to vector<32x32xf32>
    %342 = arith.addf %339, %341 : vector<32x32xf32>
    %343 = arith.addf %342, %0 : vector<32x32xf32>
    %c0_204 = arith.constant 0 : index
    %c0_205 = arith.constant 0 : index
    %344 = vector.load %arg7[%c0_204, %c0_205] : memref<1x32xf32, #tpu.memory_space<vmem>>, vector<1x32xf32>
    %c0_206 = arith.constant 0 : index
    %c0_207 = arith.constant 0 : index
    %345 = vector.load %arg8[%c0_206, %c0_207] : memref<1x32xf32, #tpu.memory_space<vmem>>, vector<1x32xf32>
    %cst_208 = arith.constant dense<0.000000e+00> : vector<32xf32>
    %346 = vector.multi_reduction <add>, %343, %cst_208 [1] : vector<32x32xf32> to vector<32xf32>
    %347 = vector.shape_cast %346 : vector<32xf32> to vector<32x1xf32>
    %cst_209 = arith.constant 3.200000e+01 : f32
    %348 = vector.broadcast %cst_209 : f32 to vector<32x1xf32>
    %349 = arith.divf %347, %348 : vector<32x1xf32>
    %350 = vector.broadcast %349 : vector<32x1xf32> to vector<32x32xf32>
    %351 = arith.subf %343, %350 : vector<32x32xf32>
    %352 = arith.mulf %351, %351 : vector<32x32xf32>
    %cst_210 = arith.constant dense<0.000000e+00> : vector<32xf32>
    %353 = vector.multi_reduction <add>, %352, %cst_210 [1] : vector<32x32xf32> to vector<32xf32>
    %354 = vector.shape_cast %353 : vector<32xf32> to vector<32x1xf32>
    %cst_211 = arith.constant 3.200000e+01 : f32
    %355 = vector.broadcast %cst_211 : f32 to vector<32x1xf32>
    %356 = arith.divf %354, %355 : vector<32x1xf32>
    %357 = vector.broadcast %349 : vector<32x1xf32> to vector<32x32xf32>
    %358 = arith.subf %343, %357 : vector<32x32xf32>
    %cst_212 = arith.constant 9.99999974E-6 : f32
    %359 = vector.broadcast %cst_212 : f32 to vector<32x1xf32>
    %360 = arith.addf %356, %359 : vector<32x1xf32>
    %361 = math.rsqrt %360 : vector<32x1xf32>
    %362 = vector.broadcast %361 : vector<32x1xf32> to vector<32x32xf32>
    %363 = arith.mulf %358, %362 : vector<32x32xf32>
    %364 = vector.broadcast %344 : vector<1x32xf32> to vector<32x32xf32>
    %365 = arith.mulf %363, %364 : vector<32x32xf32>
    %366 = vector.broadcast %345 : vector<1x32xf32> to vector<32x32xf32>
    %367 = arith.addf %365, %366 : vector<32x32xf32>
    %368 = arith.truncf %367 : vector<32x32xf32> to vector<32x32xbf16>
    %c0_213 = arith.constant 0 : index
    %c0_214 = arith.constant 0 : index
    %369 = vector.load %arg9[%c0_213, %c0_214] : memref<32x128xbf16, #tpu.memory_space<vmem>>, vector<32x128xbf16>
    %cst_215 = arith.constant dense<0.000000e+00> : vector<32x128xf32>
    %370 = tpu.matmul %368, %369, %cst_215 {dimension_numbers = #tpu.dot_dimension_numbers<[1], [0], [0], [1], [0, 0, 1, 1], [], []>} : vector<32x32xbf16>, vector<32x128xbf16>, vector<32x128xf32> -> vector<32x128xf32>
    %c0_216 = arith.constant 0 : index
    %c0_217 = arith.constant 0 : index
    %371 = vector.load %arg10[%c0_216, %c0_217] : memref<1x128xf32, #tpu.memory_space<vmem>>, vector<1x128xf32>
    %372 = vector.broadcast %371 : vector<1x128xf32> to vector<32x128xf32>
    %373 = arith.addf %370, %372 : vector<32x128xf32>
    %cst_218 = arith.constant 5.000000e-01 : f32
    %374 = vector.broadcast %cst_218 : f32 to vector<32x128xf32>
    %375 = arith.mulf %374, %373 : vector<32x128xf32>
    %cst_219 = arith.constant 0.707106769 : f32
    %376 = vector.broadcast %cst_219 : f32 to vector<32x128xf32>
    %377 = arith.mulf %373, %376 : vector<32x128xf32>
    %378 = math.erf %377 : vector<32x128xf32>
    %cst_220 = arith.constant 1.000000e+00 : f32
    %379 = vector.broadcast %cst_220 : f32 to vector<32x128xf32>
    %380 = arith.addf %379, %378 : vector<32x128xf32>
    %381 = arith.mulf %375, %380 : vector<32x128xf32>
    %382 = arith.truncf %381 : vector<32x128xf32> to vector<32x128xbf16>
    %c0_221 = arith.constant 0 : index
    %c0_222 = arith.constant 0 : index
    %383 = vector.load %arg11[%c0_221, %c0_222] : memref<128x32xbf16, #tpu.memory_space<vmem>>, vector<128x32xbf16>
    %cst_223 = arith.constant dense<0.000000e+00> : vector<32x32xf32>
    %384 = tpu.matmul %382, %383, %cst_223 {dimension_numbers = #tpu.dot_dimension_numbers<[1], [0], [0], [1], [0, 0, 1, 1], [], []>} : vector<32x128xbf16>, vector<128x32xbf16>, vector<32x32xf32> -> vector<32x32xf32>
    %c0_224 = arith.constant 0 : index
    %c0_225 = arith.constant 0 : index
    %385 = vector.load %arg12[%c0_224, %c0_225] : memref<1x32xf32, #tpu.memory_space<vmem>>, vector<1x32xf32>
    %386 = vector.broadcast %385 : vector<1x32xf32> to vector<32x32xf32>
    %387 = arith.addf %384, %386 : vector<32x32xf32>
    %388 = arith.addf %387, %367 : vector<32x32xf32>
    %c0_226 = arith.constant 0 : index
    %c0_227 = arith.constant 0 : index
    %389 = vector.load %arg13[%c0_226, %c0_227] : memref<1x32xf32, #tpu.memory_space<vmem>>, vector<1x32xf32>
    %c0_228 = arith.constant 0 : index
    %c0_229 = arith.constant 0 : index
    %390 = vector.load %arg14[%c0_228, %c0_229] : memref<1x32xf32, #tpu.memory_space<vmem>>, vector<1x32xf32>
    %cst_230 = arith.constant dense<0.000000e+00> : vector<32xf32>
    %391 = vector.multi_reduction <add>, %388, %cst_230 [1] : vector<32x32xf32> to vector<32xf32>
    %392 = vector.shape_cast %391 : vector<32xf32> to vector<32x1xf32>
    %cst_231 = arith.constant 3.200000e+01 : f32
    %393 = vector.broadcast %cst_231 : f32 to vector<32x1xf32>
    %394 = arith.divf %392, %393 : vector<32x1xf32>
    %395 = vector.broadcast %394 : vector<32x1xf32> to vector<32x32xf32>
    %396 = arith.subf %388, %395 : vector<32x32xf32>
    %397 = arith.mulf %396, %396 : vector<32x32xf32>
    %cst_232 = arith.constant dense<0.000000e+00> : vector<32xf32>
    %398 = vector.multi_reduction <add>, %397, %cst_232 [1] : vector<32x32xf32> to vector<32xf32>
    %399 = vector.shape_cast %398 : vector<32xf32> to vector<32x1xf32>
    %cst_233 = arith.constant 3.200000e+01 : f32
    %400 = vector.broadcast %cst_233 : f32 to vector<32x1xf32>
    %401 = arith.divf %399, %400 : vector<32x1xf32>
    %402 = vector.broadcast %394 : vector<32x1xf32> to vector<32x32xf32>
    %403 = arith.subf %388, %402 : vector<32x32xf32>
    %cst_234 = arith.constant 9.99999974E-6 : f32
    %404 = vector.broadcast %cst_234 : f32 to vector<32x1xf32>
    %405 = arith.addf %401, %404 : vector<32x1xf32>
    %406 = math.rsqrt %405 : vector<32x1xf32>
    %407 = vector.broadcast %406 : vector<32x1xf32> to vector<32x32xf32>
    %408 = arith.mulf %403, %407 : vector<32x32xf32>
    %409 = vector.broadcast %389 : vector<1x32xf32> to vector<32x32xf32>
    %410 = arith.mulf %408, %409 : vector<32x32xf32>
    %411 = vector.broadcast %390 : vector<1x32xf32> to vector<32x32xf32>
    %412 = arith.addf %410, %411 : vector<32x32xf32>
    %c0_235 = arith.constant 0 : index
    %c0_236 = arith.constant 0 : index
    %413 = vector.load %arg15[%c0_235, %c0_236] : memref<32x32xf32, #tpu.memory_space<vmem>>, vector<32x32xf32>
    tpu.vector_store %arg15[%c0_235, %c0_236], %412 {strides = array<i32>} : memref<32x32xf32, #tpu.memory_space<vmem>>, vector<32x32xf32>,
    return
  }
  func.func @transform_0(%arg0: i32) -> (i32, i32, i32) {
    %c0_i32 = arith.constant 0 : i32
    %c0_i32_0 = arith.constant 0 : i32
    %c0_i32_1 = arith.constant 0 : i32
    return %arg0, %c0_i32, %c0_i32_0 : i32, i32, i32
  }
  func.func @transform_1(%arg0: i32) -> (i32, i32) {
    %c0_i32 = arith.constant 0 : i32
    %c0_i32_0 = arith.constant 0 : i32
    return %arg0, %c0_i32 : i32, i32
  }
  func.func @transform_2(%arg0: i32) -> (i32, i32) {
    %c0_i32 = arith.constant 0 : i32
    %c0_i32_0 = arith.constant 0 : i32
    %c0_i32_1 = arith.constant 0 : i32
    return %c0_i32, %c0_i32_0 : i32, i32
  }
  func.func @transform_3(%arg0: i32) -> (i32, i32) {
    %c0_i32 = arith.constant 0 : i32
    %c0_i32_0 = arith.constant 0 : i32
    %c0_i32_1 = arith.constant 0 : i32
    return %c0_i32, %c0_i32_0 : i32, i32
  }
  func.func @transform_4(%arg0: i32) -> (i32, i32) {
    %c0_i32 = arith.constant 0 : i32
    %c0_i32_0 = arith.constant 0 : i32
    %c0_i32_1 = arith.constant 0 : i32
    return %c0_i32, %c0_i32_0 : i32, i32
  }
  func.func @transform_5(%arg0: i32) -> (i32, i32) {
    %c0_i32 = arith.constant 0 : i32
    %c0_i32_0 = arith.constant 0 : i32
    %c0_i32_1 = arith.constant 0 : i32
    return %c0_i32, %c0_i32_0 : i32, i32
  }
  func.func @transform_6(%arg0: i32) -> (i32, i32) {
    %c0_i32 = arith.constant 0 : i32
    %c0_i32_0 = arith.constant 0 : i32
    %c0_i32_1 = arith.constant 0 : i32
    return %c0_i32, %c0_i32_0 : i32, i32
  }
  func.func @transform_7(%arg0: i32) -> (i32, i32) {
    %c0_i32 = arith.constant 0 : i32
    %c0_i32_0 = arith.constant 0 : i32
    %c0_i32_1 = arith.constant 0 : i32
    return %c0_i32, %c0_i32_0 : i32, i32
  }
  func.func @transform_8(%arg0: i32) -> (i32, i32) {
    %c0_i32 = arith.constant 0 : i32
    %c0_i32_0 = arith.constant 0 : i32
    %c0_i32_1 = arith.constant 0 : i32
    return %c0_i32, %c0_i32_0 : i32, i32
  }
  func.func @transform_9(%arg0: i32) -> (i32, i32) {
    %c0_i32 = arith.constant 0 : i32
    %c0_i32_0 = arith.constant 0 : i32
    %c0_i32_1 = arith.constant 0 : i32
    return %c0_i32, %c0_i32_0 : i32, i32
  }
  func.func @transform_10(%arg0: i32) -> (i32, i32) {
    %c0_i32 = arith.constant 0 : i32
    %c0_i32_0 = arith.constant 0 : i32
    %c0_i32_1 = arith.constant 0 : i32
    return %c0_i32, %c0_i32_0 : i32, i32
  }
  func.func @transform_11(%arg0: i32) -> (i32, i32) {
    %c0_i32 = arith.constant 0 : i32
    %c0_i32_0 = arith.constant 0 : i32
    %c0_i32_1 = arith.constant 0 : i32
    return %c0_i32, %c0_i32_0 : i32, i32
  }
  func.func @transform_12(%arg0: i32) -> (i32, i32) {
    %c0_i32 = arith.constant 0 : i32
    %c0_i32_0 = arith.constant 0 : i32
    %c0_i32_1 = arith.constant 0 : i32
    return %c0_i32, %c0_i32_0 : i32, i32
  }
  func.func @transform_13(%arg0: i32) -> (i32, i32) {
    %c0_i32 = arith.constant 0 : i32
    %c0_i32_0 = arith.constant 0 : i32
    %c0_i32_1 = arith.constant 0 : i32
    return %c0_i32, %c0_i32_0 : i32, i32
  }
  func.func @transform_14(%arg0: i32) -> (i32, i32) {
    %c0_i32 = arith.constant 0 : i32
    %c0_i32_0 = arith.constant 0 : i32
    return %arg0, %c0_i32 : i32, i32
  }
}

module attributes {stable_mosaic.version = 11 : i64} {
  func.func @_bert_block_kernel(%arg0: i32, %arg1: memref<4x1x8xf32, #tpu.memory_space<vmem>>, %arg2: memref<32x32xf32, #tpu.memory_space<vmem>>, %arg3: memref<32x96xbf16, #tpu.memory_space<vmem>>, %arg4: memref<1x96xf32, #tpu.memory_space<vmem>>, %arg5: memref<32x32xbf16, #tpu.memory_space<vmem>>, %arg6: memref<1x32xf32, #tpu.memory_space<vmem>>, %arg7: memref<1x32xf32, #tpu.memory_space<vmem>>, %arg8: memref<1x32xf32, #tpu.memory_space<vmem>>, %arg9: memref<32x128xbf16, #tpu.memory_space<vmem>>, %arg10: memref<1x128xf32, #tpu.memory_space<vmem>>, %arg11: memref<128x32xbf16, #tpu.memory_space<vmem>>, %arg12: memref<1x32xf32, #tpu.memory_space<vmem>>, %arg13: memref<1x32xf32, #tpu.memory_space<vmem>>, %arg14: memref<1x32xf32, #tpu.memory_space<vmem>>, %arg15: memref<32x32xf32, #tpu.memory_space<vmem>>, %arg16: memref<32x96xbf16, #tpu.memory_space<vmem>>, %arg17: memref<32x32xbf16, #tpu.memory_space<vmem>>) attributes {dimension_semantics = [#tpu.dimension_semantics<parallel>], iteration_bounds = array<i64: 1>, scalar_prefetch = 0 : i64, scratch_operands = 2 : i64, tpu.core_type = #tpu.core_type<tc>, window_params = [{transform_indices = @transform_0, window_bounds = array<i64: 4, 1, 8>}, {transform_indices = @transform_1, window_bounds = array<i64: 32, 32>}, {pipeline_mode = #tpu.pipeline_mode<synchronous>, transform_indices = @transform_2, window_bounds = array<i64: 32, 96>}, {pipeline_mode = #tpu.pipeline_mode<synchronous>, transform_indices = @transform_3, window_bounds = array<i64: 1, 96>}, {pipeline_mode = #tpu.pipeline_mode<synchronous>, transform_indices = @transform_4, window_bounds = array<i64: 32, 32>}, {pipeline_mode = #tpu.pipeline_mode<synchronous>, transform_indices = @transform_5, window_bounds = array<i64: 1, 32>}, {pipeline_mode = #tpu.pipeline_mode<synchronous>, transform_indices = @transform_6, window_bounds = array<i64: 1, 32>}, {pipeline_mode = #tpu.pipeline_mode<synchronous>, transform_indices = @transform_7, window_bounds = array<i64: 1, 32>}, {pipeline_mode = #tpu.pipeline_mode<synchronous>, transform_indices = @transform_8, window_bounds = array<i64: 32, 128>}, {pipeline_mode = #tpu.pipeline_mode<synchronous>, transform_indices = @transform_9, window_bounds = array<i64: 1, 128>}, {pipeline_mode = #tpu.pipeline_mode<synchronous>, transform_indices = @transform_10, window_bounds = array<i64: 128, 32>}, {pipeline_mode = #tpu.pipeline_mode<synchronous>, transform_indices = @transform_11, window_bounds = array<i64: 1, 32>}, {pipeline_mode = #tpu.pipeline_mode<synchronous>, transform_indices = @transform_12, window_bounds = array<i64: 1, 32>}, {pipeline_mode = #tpu.pipeline_mode<synchronous>, transform_indices = @transform_13, window_bounds = array<i64: 1, 32>}, {transform_indices = @transform_14, window_bounds = array<i64: 32, 32>}]} {
    %c0 = arith.constant 0 : index
    %c0_0 = arith.constant 0 : index
    %0 = vector.load %arg2[%c0, %c0_0] : memref<32x32xf32, #tpu.memory_space<vmem>>, vector<32x32xf32>
    %1 = arith.truncf %0 : vector<32x32xf32> to vector<32x32xbf16>
    %c0_1 = arith.constant 0 : index
    %c0_2 = arith.constant 0 : index
    %2 = vector.load %arg3[%c0_1, %c0_2] : memref<32x96xbf16, #tpu.memory_space<vmem>>, vector<32x96xbf16>
    %cst = arith.constant dense<0.000000e+00> : vector<32x96xf32>
    %3 = tpu.matmul %1, %2, %cst {dimension_numbers = #tpu.dot_dimension_numbers<[1], [0], [0], [1], [0, 0, 1, 1], [], []>} : vector<32x32xbf16>, vector<32x96xbf16>, vector<32x96xf32> -> vector<32x96xf32>
    %c0_3 = arith.constant 0 : index
    %c0_4 = arith.constant 0 : index
    %4 = vector.load %arg4[%c0_3, %c0_4] : memref<1x96xf32, #tpu.memory_space<vmem>>, vector<1x96xf32>
    %5 = vector.broadcast %4 : vector<1x96xf32> to vector<32x96xf32>
    %6 = arith.addf %3, %5 : vector<32x96xf32>
    %7 = arith.truncf %6 : vector<32x96xf32> to vector<32x96xbf16>
    %c0_5 = arith.constant 0 : index
    %c0_6 = arith.constant 0 : index
    %8 = vector.load %arg16[%c0_5, %c0_6] : memref<32x96xbf16, #tpu.memory_space<vmem>>, vector<32x96xbf16>
    tpu.vector_store %arg16[%c0_5, %c0_6], %7 {strides = array<i32>} : memref<32x96xbf16, #tpu.memory_space<vmem>>, vector<32x96xbf16>,
    %c0_7 = arith.constant 0 : index
    %c0_8 = arith.constant 0 : index
    %c0_9 = arith.constant 0 : index
    %9 = vector.load %arg1[%c0_7, %c0_8, %c0_9] : memref<4x1x8xf32, #tpu.memory_space<vmem>>, vector<1x1x8xf32>
    %10 = vector.shape_cast %9 : vector<1x1x8xf32> to vector<1x8xf32>
    %c0_10 = arith.constant 0 : index
    %c0_11 = arith.constant 0 : index
    %11 = vector.load %arg16[%c0_10, %c0_11] : memref<32x96xbf16, #tpu.memory_space<vmem>>, vector<8x8xbf16>
    %c0_12 = arith.constant 0 : index
    %c32 = arith.constant 32 : index
    %12 = vector.load %arg16[%c0_12, %c32] : memref<32x96xbf16, #tpu.memory_space<vmem>>, vector<8x8xbf16>
    %c0_13 = arith.constant 0 : index
    %c64 = arith.constant 64 : index
    %13 = vector.load %arg16[%c0_13, %c64] : memref<32x96xbf16, #tpu.memory_space<vmem>>, vector<8x8xbf16>
    %cst_14 = arith.constant dense<0.000000e+00> : vector<8x8xf32>
    %14 = tpu.matmul %11, %12, %cst_14 {dimension_numbers = #tpu.dot_dimension_numbers<[1], [1], [0], [0], [0, 0, 1, 0], [], []>} : vector<8x8xbf16>, vector<8x8xbf16>, vector<8x8xf32> -> vector<8x8xf32>
    %15 = vector.broadcast %10 : vector<1x8xf32> to vector<8x8xf32>
    %16 = arith.addf %14, %15 : vector<8x8xf32>
    %cst_15 = arith.constant dense<0xFF800000> : vector<8xf32>
    %17 = vector.multi_reduction <maximumf>, %16, %cst_15 [1] : vector<8x8xf32> to vector<8xf32>
    %18 = vector.shape_cast %17 : vector<8xf32> to vector<8x1xf32>
    %19 = vector.broadcast %18 : vector<8x1xf32> to vector<8x8xf32>
    %20 = arith.subf %16, %19 : vector<8x8xf32>
    %21 = math.exp %20 : vector<8x8xf32>
    %cst_16 = arith.constant dense<0.000000e+00> : vector<8xf32>
    %22 = vector.multi_reduction <add>, %21, %cst_16 [1] : vector<8x8xf32> to vector<8xf32>
    %23 = vector.shape_cast %22 : vector<8xf32> to vector<8x1xf32>
    %24 = tpu.reciprocal %23 {approx = true} : vector<8x1xf32> -> vector<8x1xf32>
    %25 = vector.broadcast %24 : vector<8x1xf32> to vector<8x8xf32>
    %26 = arith.mulf %21, %25 : vector<8x8xf32>
    %27 = arith.truncf %26 : vector<8x8xf32> to vector<8x8xbf16>
    %cst_17 = arith.constant dense<0.000000e+00> : vector<8x8xf32>
    %28 = tpu.matmul %27, %13, %cst_17 {dimension_numbers = #tpu.dot_dimension_numbers<[1], [0], [0], [1], [0, 0, 1, 1], [], []>} : vector<8x8xbf16>, vector<8x8xbf16>, vector<8x8xf32> -> vector<8x8xf32>
    %29 = arith.truncf %28 : vector<8x8xf32> to vector<8x8xbf16>
    %c0_18 = arith.constant 0 : index
    %c0_19 = arith.constant 0 : index
    %30 = vector.load %arg17[%c0_18, %c0_19] : memref<32x32xbf16, #tpu.memory_space<vmem>>, vector<8x8xbf16>
    tpu.vector_store %arg17[%c0_18, %c0_19], %29 {strides = array<i32>} : memref<32x32xbf16, #tpu.memory_space<vmem>>, vector<8x8xbf16>,
    %c0_20 = arith.constant 0 : index
    %c8 = arith.constant 8 : index
    %31 = vector.load %arg16[%c0_20, %c8] : memref<32x96xbf16, #tpu.memory_space<vmem>>, vector<8x8xbf16>
    %c0_21 = arith.constant 0 : index
    %c40 = arith.constant 40 : index
    %32 = vector.load %arg16[%c0_21, %c40] : memref<32x96xbf16, #tpu.memory_space<vmem>>, vector<8x8xbf16>
    %c0_22 = arith.constant 0 : index
    %c72 = arith.constant 72 : index
    %33 = vector.load %arg16[%c0_22, %c72] : memref<32x96xbf16, #tpu.memory_space<vmem>>, vector<8x8xbf16>
    %cst_23 = arith.constant dense<0.000000e+00> : vector<8x8xf32>
    %34 = tpu.matmul %31, %32, %cst_23 {dimension_numbers = #tpu.dot_dimension_numbers<[1], [1], [0], [0], [0, 0, 1, 0], [], []>} : vector<8x8xbf16>, vector<8x8xbf16>, vector<8x8xf32> -> vector<8x8xf32>
    %35 = vector.broadcast %10 : vector<1x8xf32> to vector<8x8xf32>
    %36 = arith.addf %34, %35 : vector<8x8xf32>
    %cst_24 = arith.constant dense<0xFF800000> : vector<8xf32>
    %37 = vector.multi_reduction <maximumf>, %36, %cst_24 [1] : vector<8x8xf32> to vector<8xf32>
    %38 = vector.shape_cast %37 : vector<8xf32> to vector<8x1xf32>
    %39 = vector.broadcast %38 : vector<8x1xf32> to vector<8x8xf32>
    %40 = arith.subf %36, %39 : vector<8x8xf32>
    %41 = math.exp %40 : vector<8x8xf32>
    %cst_25 = arith.constant dense<0.000000e+00> : vector<8xf32>
    %42 = vector.multi_reduction <add>, %41, %cst_25 [1] : vector<8x8xf32> to vector<8xf32>
    %43 = vector.shape_cast %42 : vector<8xf32> to vector<8x1xf32>
    %44 = tpu.reciprocal %43 {approx = true} : vector<8x1xf32> -> vector<8x1xf32>
    %45 = vector.broadcast %44 : vector<8x1xf32> to vector<8x8xf32>
    %46 = arith.mulf %41, %45 : vector<8x8xf32>
    %47 = arith.truncf %46 : vector<8x8xf32> to vector<8x8xbf16>
    %cst_26 = arith.constant dense<0.000000e+00> : vector<8x8xf32>
    %48 = tpu.matmul %47, %33, %cst_26 {dimension_numbers = #tpu.dot_dimension_numbers<[1], [0], [0], [1], [0, 0, 1, 1], [], []>} : vector<8x8xbf16>, vector<8x8xbf16>, vector<8x8xf32> -> vector<8x8xf32>
    %49 = arith.truncf %48 : vector<8x8xf32> to vector<8x8xbf16>
    %c0_27 = arith.constant 0 : index
    %c8_28 = arith.constant 8 : index
    %50 = vector.load %arg17[%c0_27, %c8_28] : memref<32x32xbf16, #tpu.memory_space<vmem>>, vector<8x8xbf16>
    tpu.vector_store %arg17[%c0_27, %c8_28], %49 {strides = array<i32>} : memref<32x32xbf16, #tpu.memory_space<vmem>>, vector<8x8xbf16>,
    %c0_29 = arith.constant 0 : index
    %c16 = arith.constant 16 : index
    %51 = vector.load %arg16[%c0_29, %c16] : memref<32x96xbf16, #tpu.memory_space<vmem>>, vector<8x8xbf16>
    %c0_30 = arith.constant 0 : index
    %c48 = arith.constant 48 : index
    %52 = vector.load %arg16[%c0_30, %c48] : memref<32x96xbf16, #tpu.memory_space<vmem>>, vector<8x8xbf16>
    %c0_31 = arith.constant 0 : index
    %c80 = arith.constant 80 : index
    %53 = vector.load %arg16[%c0_31, %c80] : memref<32x96xbf16, #tpu.memory_space<vmem>>, vector<8x8xbf16>
    %cst_32 = arith.constant dense<0.000000e+00> : vector<8x8xf32>
    %54 = tpu.matmul %51, %52, %cst_32 {dimension_numbers = #tpu.dot_dimension_numbers<[1], [1], [0], [0], [0, 0, 1, 0], [], []>} : vector<8x8xbf16>, vector<8x8xbf16>, vector<8x8xf32> -> vector<8x8xf32>
    %55 = vector.broadcast %10 : vector<1x8xf32> to vector<8x8xf32>
    %56 = arith.addf %54, %55 : vector<8x8xf32>
    %cst_33 = arith.constant dense<0xFF800000> : vector<8xf32>
    %57 = vector.multi_reduction <maximumf>, %56, %cst_33 [1] : vector<8x8xf32> to vector<8xf32>
    %58 = vector.shape_cast %57 : vector<8xf32> to vector<8x1xf32>
    %59 = vector.broadcast %58 : vector<8x1xf32> to vector<8x8xf32>
    %60 = arith.subf %56, %59 : vector<8x8xf32>
    %61 = math.exp %60 : vector<8x8xf32>
    %cst_34 = arith.constant dense<0.000000e+00> : vector<8xf32>
    %62 = vector.multi_reduction <add>, %61, %cst_34 [1] : vector<8x8xf32> to vector<8xf32>
    %63 = vector.shape_cast %62 : vector<8xf32> to vector<8x1xf32>
    %64 = tpu.reciprocal %63 {approx = true} : vector<8x1xf32> -> vector<8x1xf32>
    %65 = vector.broadcast %64 : vector<8x1xf32> to vector<8x8xf32>
    %66 = arith.mulf %61, %65 : vector<8x8xf32>
    %67 = arith.truncf %66 : vector<8x8xf32> to vector<8x8xbf16>
    %cst_35 = arith.constant dense<0.000000e+00> : vector<8x8xf32>
    %68 = tpu.matmul %67, %53, %cst_35 {dimension_numbers = #tpu.dot_dimension_numbers<[1], [0], [0], [1], [0, 0, 1, 1], [], []>} : vector<8x8xbf16>, vector<8x8xbf16>, vector<8x8xf32> -> vector<8x8xf32>
    %69 = arith.truncf %68 : vector<8x8xf32> to vector<8x8xbf16>
    %c0_36 = arith.constant 0 : index
    %c16_37 = arith.constant 16 : index
    %70 = vector.load %arg17[%c0_36, %c16_37] : memref<32x32xbf16, #tpu.memory_space<vmem>>, vector<8x8xbf16>
    tpu.vector_store %arg17[%c0_36, %c16_37], %69 {strides = array<i32>} : memref<32x32xbf16, #tpu.memory_space<vmem>>, vector<8x8xbf16>,
    %c0_38 = arith.constant 0 : index
    %c24 = arith.constant 24 : index
    %71 = vector.load %arg16[%c0_38, %c24] : memref<32x96xbf16, #tpu.memory_space<vmem>>, vector<8x8xbf16>
    %c0_39 = arith.constant 0 : index
    %c56 = arith.constant 56 : index
    %72 = vector.load %arg16[%c0_39, %c56] : memref<32x96xbf16, #tpu.memory_space<vmem>>, vector<8x8xbf16>
    %c0_40 = arith.constant 0 : index
    %c88 = arith.constant 88 : index
    %73 = vector.load %arg16[%c0_40, %c88] : memref<32x96xbf16, #tpu.memory_space<vmem>>, vector<8x8xbf16>
    %cst_41 = arith.constant dense<0.000000e+00> : vector<8x8xf32>
    %74 = tpu.matmul %71, %72, %cst_41 {dimension_numbers = #tpu.dot_dimension_numbers<[1], [1], [0], [0], [0, 0, 1, 0], [], []>} : vector<8x8xbf16>, vector<8x8xbf16>, vector<8x8xf32> -> vector<8x8xf32>
    %75 = vector.broadcast %10 : vector<1x8xf32> to vector<8x8xf32>
    %76 = arith.addf %74, %75 : vector<8x8xf32>
    %cst_42 = arith.constant dense<0xFF800000> : vector<8xf32>
    %77 = vector.multi_reduction <maximumf>, %76, %cst_42 [1] : vector<8x8xf32> to vector<8xf32>
    %78 = vector.shape_cast %77 : vector<8xf32> to vector<8x1xf32>
    %79 = vector.broadcast %78 : vector<8x1xf32> to vector<8x8xf32>
    %80 = arith.subf %76, %79 : vector<8x8xf32>
    %81 = math.exp %80 : vector<8x8xf32>
    %cst_43 = arith.constant dense<0.000000e+00> : vector<8xf32>
    %82 = vector.multi_reduction <add>, %81, %cst_43 [1] : vector<8x8xf32> to vector<8xf32>
    %83 = vector.shape_cast %82 : vector<8xf32> to vector<8x1xf32>
    %84 = tpu.reciprocal %83 {approx = true} : vector<8x1xf32> -> vector<8x1xf32>
    %85 = vector.broadcast %84 : vector<8x1xf32> to vector<8x8xf32>
    %86 = arith.mulf %81, %85 : vector<8x8xf32>
    %87 = arith.truncf %86 : vector<8x8xf32> to vector<8x8xbf16>
    %cst_44 = arith.constant dense<0.000000e+00> : vector<8x8xf32>
    %88 = tpu.matmul %87, %73, %cst_44 {dimension_numbers = #tpu.dot_dimension_numbers<[1], [0], [0], [1], [0, 0, 1, 1], [], []>} : vector<8x8xbf16>, vector<8x8xbf16>, vector<8x8xf32> -> vector<8x8xf32>
    %89 = arith.truncf %88 : vector<8x8xf32> to vector<8x8xbf16>
    %c0_45 = arith.constant 0 : index
    %c24_46 = arith.constant 24 : index
    %90 = vector.load %arg17[%c0_45, %c24_46] : memref<32x32xbf16, #tpu.memory_space<vmem>>, vector<8x8xbf16>
    tpu.vector_store %arg17[%c0_45, %c24_46], %89 {strides = array<i32>} : memref<32x32xbf16, #tpu.memory_space<vmem>>, vector<8x8xbf16>,
    %c1 = arith.constant 1 : index
    %c0_47 = arith.constant 0 : index
    %c0_48 = arith.constant 0 : index
    %91 = vector.load %arg1[%c1, %c0_47, %c0_48] : memref<4x1x8xf32, #tpu.memory_space<vmem>>, vector<1x1x8xf32>
    %92 = vector.shape_cast %91 : vector<1x1x8xf32> to vector<1x8xf32>
    %c8_49 = arith.constant 8 : index
    %c0_50 = arith.constant 0 : index
    %93 = vector.load %arg16[%c8_49, %c0_50] : memref<32x96xbf16, #tpu.memory_space<vmem>>, vector<8x8xbf16>
    %c8_51 = arith.constant 8 : index
    %c32_52 = arith.constant 32 : index
    %94 = vector.load %arg16[%c8_51, %c32_52] : memref<32x96xbf16, #tpu.memory_space<vmem>>, vector<8x8xbf16>
    %c8_53 = arith.constant 8 : index
    %c64_54 = arith.constant 64 : index
    %95 = vector.load %arg16[%c8_53, %c64_54] : memref<32x96xbf16, #tpu.memory_space<vmem>>, vector<8x8xbf16>
    %cst_55 = arith.constant dense<0.000000e+00> : vector<8x8xf32>
    %96 = tpu.matmul %93, %94, %cst_55 {dimension_numbers = #tpu.dot_dimension_numbers<[1], [1], [0], [0], [0, 0, 1, 0], [], []>} : vector<8x8xbf16>, vector<8x8xbf16>, vector<8x8xf32> -> vector<8x8xf32>
    %97 = vector.broadcast %92 : vector<1x8xf32> to vector<8x8xf32>
    %98 = arith.addf %96, %97 : vector<8x8xf32>
    %cst_56 = arith.constant dense<0xFF800000> : vector<8xf32>
    %99 = vector.multi_reduction <maximumf>, %98, %cst_56 [1] : vector<8x8xf32> to vector<8xf32>
    %100 = vector.shape_cast %99 : vector<8xf32> to vector<8x1xf32>
    %101 = vector.broadcast %100 : vector<8x1xf32> to vector<8x8xf32>
    %102 = arith.subf %98, %101 : vector<8x8xf32>
    %103 = math.exp %102 : vector<8x8xf32>
    %cst_57 = arith.constant dense<0.000000e+00> : vector<8xf32>
    %104 = vector.multi_reduction <add>, %103, %cst_57 [1] : vector<8x8xf32> to vector<8xf32>
    %105 = vector.shape_cast %104 : vector<8xf32> to vector<8x1xf32>
    %106 = tpu.reciprocal %105 {approx = true} : vector<8x1xf32> -> vector<8x1xf32>
    %107 = vector.broadcast %106 : vector<8x1xf32> to vector<8x8xf32>
    %108 = arith.mulf %103, %107 : vector<8x8xf32>
    %109 = arith.truncf %108 : vector<8x8xf32> to vector<8x8xbf16>
    %cst_58 = arith.constant dense<0.000000e+00> : vector<8x8xf32>
    %110 = tpu.matmul %109, %95, %cst_58 {dimension_numbers = #tpu.dot_dimension_numbers<[1], [0], [0], [1], [0, 0, 1, 1], [], []>} : vector<8x8xbf16>, vector<8x8xbf16>, vector<8x8xf32> -> vector<8x8xf32>
    %111 = arith.truncf %110 : vector<8x8xf32> to vector<8x8xbf16>
    %c8_59 = arith.constant 8 : index
    %c0_60 = arith.constant 0 : index
    %112 = vector.load %arg17[%c8_59, %c0_60] : memref<32x32xbf16, #tpu.memory_space<vmem>>, vector<8x8xbf16>
    tpu.vector_store %arg17[%c8_59, %c0_60], %111 {strides = array<i32>} : memref<32x32xbf16, #tpu.memory_space<vmem>>, vector<8x8xbf16>,
    %c8_61 = arith.constant 8 : index
    %c8_62 = arith.constant 8 : index
    %113 = vector.load %arg16[%c8_61, %c8_62] : memref<32x96xbf16, #tpu.memory_space<vmem>>, vector<8x8xbf16>
    %c8_63 = arith.constant 8 : index
    %c40_64 = arith.constant 40 : index
    %114 = vector.load %arg16[%c8_63, %c40_64] : memref<32x96xbf16, #tpu.memory_space<vmem>>, vector<8x8xbf16>
    %c8_65 = arith.constant 8 : index
    %c72_66 = arith.constant 72 : index
    %115 = vector.load %arg16[%c8_65, %c72_66] : memref<32x96xbf16, #tpu.memory_space<vmem>>, vector<8x8xbf16>
    %cst_67 = arith.constant dense<0.000000e+00> : vector<8x8xf32>
    %116 = tpu.matmul %113, %114, %cst_67 {dimension_numbers = #tpu.dot_dimension_numbers<[1], [1], [0], [0], [0, 0, 1, 0], [], []>} : vector<8x8xbf16>, vector<8x8xbf16>, vector<8x8xf32> -> vector<8x8xf32>
    %117 = vector.broadcast %92 : vector<1x8xf32> to vector<8x8xf32>
    %118 = arith.addf %116, %117 : vector<8x8xf32>
    %cst_68 = arith.constant dense<0xFF800000> : vector<8xf32>
    %119 = vector.multi_reduction <maximumf>, %118, %cst_68 [1] : vector<8x8xf32> to vector<8xf32>
    %120 = vector.shape_cast %119 : vector<8xf32> to vector<8x1xf32>
    %121 = vector.broadcast %120 : vector<8x1xf32> to vector<8x8xf32>
    %122 = arith.subf %118, %121 : vector<8x8xf32>
    %123 = math.exp %122 : vector<8x8xf32>
    %cst_69 = arith.constant dense<0.000000e+00> : vector<8xf32>
    %124 = vector.multi_reduction <add>, %123, %cst_69 [1] : vector<8x8xf32> to vector<8xf32>
    %125 = vector.shape_cast %124 : vector<8xf32> to vector<8x1xf32>
    %126 = tpu.reciprocal %125 {approx = true} : vector<8x1xf32> -> vector<8x1xf32>
    %127 = vector.broadcast %126 : vector<8x1xf32> to vector<8x8xf32>
    %128 = arith.mulf %123, %127 : vector<8x8xf32>
    %129 = arith.truncf %128 : vector<8x8xf32> to vector<8x8xbf16>
    %cst_70 = arith.constant dense<0.000000e+00> : vector<8x8xf32>
    %130 = tpu.matmul %129, %115, %cst_70 {dimension_numbers = #tpu.dot_dimension_numbers<[1], [0], [0], [1], [0, 0, 1, 1], [], []>} : vector<8x8xbf16>, vector<8x8xbf16>, vector<8x8xf32> -> vector<8x8xf32>
    %131 = arith.truncf %130 : vector<8x8xf32> to vector<8x8xbf16>
    %c8_71 = arith.constant 8 : index
    %c8_72 = arith.constant 8 : index
    %132 = vector.load %arg17[%c8_71, %c8_72] : memref<32x32xbf16, #tpu.memory_space<vmem>>, vector<8x8xbf16>
    tpu.vector_store %arg17[%c8_71, %c8_72], %131 {strides = array<i32>} : memref<32x32xbf16, #tpu.memory_space<vmem>>, vector<8x8xbf16>,
    %c8_73 = arith.constant 8 : index
    %c16_74 = arith.constant 16 : index
    %133 = vector.load %arg16[%c8_73, %c16_74] : memref<32x96xbf16, #tpu.memory_space<vmem>>, vector<8x8xbf16>
    %c8_75 = arith.constant 8 : index
    %c48_76 = arith.constant 48 : index
    %134 = vector.load %arg16[%c8_75, %c48_76] : memref<32x96xbf16, #tpu.memory_space<vmem>>, vector<8x8xbf16>
    %c8_77 = arith.constant 8 : index
    %c80_78 = arith.constant 80 : index
    %135 = vector.load %arg16[%c8_77, %c80_78] : memref<32x96xbf16, #tpu.memory_space<vmem>>, vector<8x8xbf16>
    %cst_79 = arith.constant dense<0.000000e+00> : vector<8x8xf32>
    %136 = tpu.matmul %133, %134, %cst_79 {dimension_numbers = #tpu.dot_dimension_numbers<[1], [1], [0], [0], [0, 0, 1, 0], [], []>} : vector<8x8xbf16>, vector<8x8xbf16>, vector<8x8xf32> -> vector<8x8xf32>
    %137 = vector.broadcast %92 : vector<1x8xf32> to vector<8x8xf32>
    %138 = arith.addf %136, %137 : vector<8x8xf32>
    %cst_80 = arith.constant dense<0xFF800000> : vector<8xf32>
    %139 = vector.multi_reduction <maximumf>, %138, %cst_80 [1] : vector<8x8xf32> to vector<8xf32>
    %140 = vector.shape_cast %139 : vector<8xf32> to vector<8x1xf32>
    %141 = vector.broadcast %140 : vector<8x1xf32> to vector<8x8xf32>
    %142 = arith.subf %138, %141 : vector<8x8xf32>
    %143 = math.exp %142 : vector<8x8xf32>
    %cst_81 = arith.constant dense<0.000000e+00> : vector<8xf32>
    %144 = vector.multi_reduction <add>, %143, %cst_81 [1] : vector<8x8xf32> to vector<8xf32>
    %145 = vector.shape_cast %144 : vector<8xf32> to vector<8x1xf32>
    %146 = tpu.reciprocal %145 {approx = true} : vector<8x1xf32> -> vector<8x1xf32>
    %147 = vector.broadcast %146 : vector<8x1xf32> to vector<8x8xf32>
    %148 = arith.mulf %143, %147 : vector<8x8xf32>
    %149 = arith.truncf %148 : vector<8x8xf32> to vector<8x8xbf16>
    %cst_82 = arith.constant dense<0.000000e+00> : vector<8x8xf32>
    %150 = tpu.matmul %149, %135, %cst_82 {dimension_numbers = #tpu.dot_dimension_numbers<[1], [0], [0], [1], [0, 0, 1, 1], [], []>} : vector<8x8xbf16>, vector<8x8xbf16>, vector<8x8xf32> -> vector<8x8xf32>
    %151 = arith.truncf %150 : vector<8x8xf32> to vector<8x8xbf16>
    %c8_83 = arith.constant 8 : index
    %c16_84 = arith.constant 16 : index
    %152 = vector.load %arg17[%c8_83, %c16_84] : memref<32x32xbf16, #tpu.memory_space<vmem>>, vector<8x8xbf16>
    tpu.vector_store %arg17[%c8_83, %c16_84], %151 {strides = array<i32>} : memref<32x32xbf16, #tpu.memory_space<vmem>>, vector<8x8xbf16>,
    %c8_85 = arith.constant 8 : index
    %c24_86 = arith.constant 24 : index
    %153 = vector.load %arg16[%c8_85, %c24_86] : memref<32x96xbf16, #tpu.memory_space<vmem>>, vector<8x8xbf16>
    %c8_87 = arith.constant 8 : index
    %c56_88 = arith.constant 56 : index
    %154 = vector.load %arg16[%c8_87, %c56_88] : memref<32x96xbf16, #tpu.memory_space<vmem>>, vector<8x8xbf16>
    %c8_89 = arith.constant 8 : index
    %c88_90 = arith.constant 88 : index
    %155 = vector.load %arg16[%c8_89, %c88_90] : memref<32x96xbf16, #tpu.memory_space<vmem>>, vector<8x8xbf16>
    %cst_91 = arith.constant dense<0.000000e+00> : vector<8x8xf32>
    %156 = tpu.matmul %153, %154, %cst_91 {dimension_numbers = #tpu.dot_dimension_numbers<[1], [1], [0], [0], [0, 0, 1, 0], [], []>} : vector<8x8xbf16>, vector<8x8xbf16>, vector<8x8xf32> -> vector<8x8xf32>
    %157 = vector.broadcast %92 : vector<1x8xf32> to vector<8x8xf32>
    %158 = arith.addf %156, %157 : vector<8x8xf32>
    %cst_92 = arith.constant dense<0xFF800000> : vector<8xf32>
    %159 = vector.multi_reduction <maximumf>, %158, %cst_92 [1] : vector<8x8xf32> to vector<8xf32>
    %160 = vector.shape_cast %159 : vector<8xf32> to vector<8x1xf32>
    %161 = vector.broadcast %160 : vector<8x1xf32> to vector<8x8xf32>
    %162 = arith.subf %158, %161 : vector<8x8xf32>
    %163 = math.exp %162 : vector<8x8xf32>
    %cst_93 = arith.constant dense<0.000000e+00> : vector<8xf32>
    %164 = vector.multi_reduction <add>, %163, %cst_93 [1] : vector<8x8xf32> to vector<8xf32>
    %165 = vector.shape_cast %164 : vector<8xf32> to vector<8x1xf32>
    %166 = tpu.reciprocal %165 {approx = true} : vector<8x1xf32> -> vector<8x1xf32>
    %167 = vector.broadcast %166 : vector<8x1xf32> to vector<8x8xf32>
    %168 = arith.mulf %163, %167 : vector<8x8xf32>
    %169 = arith.truncf %168 : vector<8x8xf32> to vector<8x8xbf16>
    %cst_94 = arith.constant dense<0.000000e+00> : vector<8x8xf32>
    %170 = tpu.matmul %169, %155, %cst_94 {dimension_numbers = #tpu.dot_dimension_numbers<[1], [0], [0], [1], [0, 0, 1, 1], [], []>} : vector<8x8xbf16>, vector<8x8xbf16>, vector<8x8xf32> -> vector<8x8xf32>
    %171 = arith.truncf %170 : vector<8x8xf32> to vector<8x8xbf16>
    %c8_95 = arith.constant 8 : index
    %c24_96 = arith.constant 24 : index
    %172 = vector.load %arg17[%c8_95, %c24_96] : memref<32x32xbf16, #tpu.memory_space<vmem>>, vector<8x8xbf16>
    tpu.vector_store %arg17[%c8_95, %c24_96], %171 {strides = array<i32>} : memref<32x32xbf16, #tpu.memory_space<vmem>>, vector<8x8xbf16>,
    %c2 = arith.constant 2 : index
    %c0_97 = arith.constant 0 : index
    %c0_98 = arith.constant 0 : index
    %173 = vector.load %arg1[%c2, %c0_97, %c0_98] : memref<4x1x8xf32, #tpu.memory_space<vmem>>, vector<1x1x8xf32>
    %174 = vector.shape_cast %173 : vector<1x1x8xf32> to vector<1x8xf32>
    %c16_99 = arith.constant 16 : index
    %c0_100 = arith.constant 0 : index
    %175 = vector.load %arg16[%c16_99, %c0_100] : memref<32x96xbf16, #tpu.memory_space<vmem>>, vector<8x8xbf16>
    %c16_101 = arith.constant 16 : index
    %c32_102 = arith.constant 32 : index
    %176 = vector.load %arg16[%c16_101, %c32_102] : memref<32x96xbf16, #tpu.memory_space<vmem>>, vector<8x8xbf16>
    %c16_103 = arith.constant 16 : index
    %c64_104 = arith.constant 64 : index
    %177 = vector.load %arg16[%c16_103, %c64_104] : memref<32x96xbf16, #tpu.memory_space<vmem>>, vector<8x8xbf16>
    %cst_105 = arith.constant dense<0.000000e+00> : vector<8x8xf32>
    %178 = tpu.matmul %175, %176, %cst_105 {dimension_numbers = #tpu.dot_dimension_numbers<[1], [1], [0], [0], [0, 0, 1, 0], [], []>} : vector<8x8xbf16>, vector<8x8xbf16>, vector<8x8xf32> -> vector<8x8xf32>
    %179 = vector.broadcast %174 : vector<1x8xf32> to vector<8x8xf32>
    %180 = arith.addf %178, %179 : vector<8x8xf32>
    %cst_106 = arith.constant dense<0xFF800000> : vector<8xf32>
    %181 = vector.multi_reduction <maximumf>, %180, %cst_106 [1] : vector<8x8xf32> to vector<8xf32>
    %182 = vector.shape_cast %181 : vector<8xf32> to vector<8x1xf32>
    %183 = vector.broadcast %182 : vector<8x1xf32> to vector<8x8xf32>
    %184 = arith.subf %180, %183 : vector<8x8xf32>
    %185 = math.exp %184 : vector<8x8xf32>
    %cst_107 = arith.constant dense<0.000000e+00> : vector<8xf32>
    %186 = vector.multi_reduction <add>, %185, %cst_107 [1] : vector<8x8xf32> to vector<8xf32>
    %187 = vector.shape_cast %186 : vector<8xf32> to vector<8x1xf32>
    %188 = tpu.reciprocal %187 {approx = true} : vector<8x1xf32> -> vector<8x1xf32>
    %189 = vector.broadcast %188 : vector<8x1xf32> to vector<8x8xf32>
    %190 = arith.mulf %185, %189 : vector<8x8xf32>
    %191 = arith.truncf %190 : vector<8x8xf32> to vector<8x8xbf16>
    %cst_108 = arith.constant dense<0.000000e+00> : vector<8x8xf32>
    %192 = tpu.matmul %191, %177, %cst_108 {dimension_numbers = #tpu.dot_dimension_numbers<[1], [0], [0], [1], [0, 0, 1, 1], [], []>} : vector<8x8xbf16>, vector<8x8xbf16>, vector<8x8xf32> -> vector<8x8xf32>
    %193 = arith.truncf %192 : vector<8x8xf32> to vector<8x8xbf16>
    %c16_109 = arith.constant 16 : index
    %c0_110 = arith.constant 0 : index
    %194 = vector.load %arg17[%c16_109, %c0_110] : memref<32x32xbf16, #tpu.memory_space<vmem>>, vector<8x8xbf16>
    tpu.vector_store %arg17[%c16_109, %c0_110], %193 {strides = array<i32>} : memref<32x32xbf16, #tpu.memory_space<vmem>>, vector<8x8xbf16>,
    %c16_111 = arith.constant 16 : index
    %c8_112 = arith.constant 8 : index
    %195 = vector.load %arg16[%c16_111, %c8_112] : memref<32x96xbf16, #tpu.memory_space<vmem>>, vector<8x8xbf16>
    %c16_113 = arith.constant 16 : index
    %c40_114 = arith.constant 40 : index
    %196 = vector.load %arg16[%c16_113, %c40_114] : memref<32x96xbf16, #tpu.memory_space<vmem>>, vector<8x8xbf16>
    %c16_115 = arith.constant 16 : index
    %c72_116 = arith.constant 72 : index
    %197 = vector.load %arg16[%c16_115, %c72_116] : memref<32x96xbf16, #tpu.memory_space<vmem>>, vector<8x8xbf16>
    %cst_117 = arith.constant dense<0.000000e+00> : vector<8x8xf32>
    %198 = tpu.matmul %195, %196, %cst_117 {dimension_numbers = #tpu.dot_dimension_numbers<[1], [1], [0], [0], [0, 0, 1, 0], [], []>} : vector<8x8xbf16>, vector<8x8xbf16>, vector<8x8xf32> -> vector<8x8xf32>
    %199 = vector.broadcast %174 : vector<1x8xf32> to vector<8x8xf32>
    %200 = arith.addf %198, %199 : vector<8x8xf32>
    %cst_118 = arith.constant dense<0xFF800000> : vector<8xf32>
    %201 = vector.multi_reduction <maximumf>, %200, %cst_118 [1] : vector<8x8xf32> to vector<8xf32>
    %202 = vector.shape_cast %201 : vector<8xf32> to vector<8x1xf32>
    %203 = vector.broadcast %202 : vector<8x1xf32> to vector<8x8xf32>
    %204 = arith.subf %200, %203 : vector<8x8xf32>
    %205 = math.exp %204 : vector<8x8xf32>
    %cst_119 = arith.constant dense<0.000000e+00> : vector<8xf32>
    %206 = vector.multi_reduction <add>, %205, %cst_119 [1] : vector<8x8xf32> to vector<8xf32>
    %207 = vector.shape_cast %206 : vector<8xf32> to vector<8x1xf32>
    %208 = tpu.reciprocal %207 {approx = true} : vector<8x1xf32> -> vector<8x1xf32>
    %209 = vector.broadcast %208 : vector<8x1xf32> to vector<8x8xf32>
    %210 = arith.mulf %205, %209 : vector<8x8xf32>
    %211 = arith.truncf %210 : vector<8x8xf32> to vector<8x8xbf16>
    %cst_120 = arith.constant dense<0.000000e+00> : vector<8x8xf32>
    %212 = tpu.matmul %211, %197, %cst_120 {dimension_numbers = #tpu.dot_dimension_numbers<[1], [0], [0], [1], [0, 0, 1, 1], [], []>} : vector<8x8xbf16>, vector<8x8xbf16>, vector<8x8xf32> -> vector<8x8xf32>
    %213 = arith.truncf %212 : vector<8x8xf32> to vector<8x8xbf16>
    %c16_121 = arith.constant 16 : index
    %c8_122 = arith.constant 8 : index
    %214 = vector.load %arg17[%c16_121, %c8_122] : memref<32x32xbf16, #tpu.memory_space<vmem>>, vector<8x8xbf16>
    tpu.vector_store %arg17[%c16_121, %c8_122], %213 {strides = array<i32>} : memref<32x32xbf16, #tpu.memory_space<vmem>>, vector<8x8xbf16>,
    %c16_123 = arith.constant 16 : index
    %c16_124 = arith.constant 16 : index
    %215 = vector.load %arg16[%c16_123, %c16_124] : memref<32x96xbf16, #tpu.memory_space<vmem>>, vector<8x8xbf16>
    %c16_125 = arith.constant 16 : index
    %c48_126 = arith.constant 48 : index
    %216 = vector.load %arg16[%c16_125, %c48_126] : memref<32x96xbf16, #tpu.memory_space<vmem>>, vector<8x8xbf16>
    %c16_127 = arith.constant 16 : index
    %c80_128 = arith.constant 80 : index
    %217 = vector.load %arg16[%c16_127, %c80_128] : memref<32x96xbf16, #tpu.memory_space<vmem>>, vector<8x8xbf16>
    %cst_129 = arith.constant dense<0.000000e+00> : vector<8x8xf32>
    %218 = tpu.matmul %215, %216, %cst_129 {dimension_numbers = #tpu.dot_dimension_numbers<[1], [1], [0], [0], [0, 0, 1, 0], [], []>} : vector<8x8xbf16>, vector<8x8xbf16>, vector<8x8xf32> -> vector<8x8xf32>
    %219 = vector.broadcast %174 : vector<1x8xf32> to vector<8x8xf32>
    %220 = arith.addf %218, %219 : vector<8x8xf32>
    %cst_130 = arith.constant dense<0xFF800000> : vector<8xf32>
    %221 = vector.multi_reduction <maximumf>, %220, %cst_130 [1] : vector<8x8xf32> to vector<8xf32>
    %222 = vector.shape_cast %221 : vector<8xf32> to vector<8x1xf32>
    %223 = vector.broadcast %222 : vector<8x1xf32> to vector<8x8xf32>
    %224 = arith.subf %220, %223 : vector<8x8xf32>
    %225 = math.exp %224 : vector<8x8xf32>
    %cst_131 = arith.constant dense<0.000000e+00> : vector<8xf32>
    %226 = vector.multi_reduction <add>, %225, %cst_131 [1] : vector<8x8xf32> to vector<8xf32>
    %227 = vector.shape_cast %226 : vector<8xf32> to vector<8x1xf32>
    %228 = tpu.reciprocal %227 {approx = true} : vector<8x1xf32> -> vector<8x1xf32>
    %229 = vector.broadcast %228 : vector<8x1xf32> to vector<8x8xf32>
    %230 = arith.mulf %225, %229 : vector<8x8xf32>
    %231 = arith.truncf %230 : vector<8x8xf32> to vector<8x8xbf16>
    %cst_132 = arith.constant dense<0.000000e+00> : vector<8x8xf32>
    %232 = tpu.matmul %231, %217, %cst_132 {dimension_numbers = #tpu.dot_dimension_numbers<[1], [0], [0], [1], [0, 0, 1, 1], [], []>} : vector<8x8xbf16>, vector<8x8xbf16>, vector<8x8xf32> -> vector<8x8xf32>
    %233 = arith.truncf %232 : vector<8x8xf32> to vector<8x8xbf16>
    %c16_133 = arith.constant 16 : index
    %c16_134 = arith.constant 16 : index
    %234 = vector.load %arg17[%c16_133, %c16_134] : memref<32x32xbf16, #tpu.memory_space<vmem>>, vector<8x8xbf16>
    tpu.vector_store %arg17[%c16_133, %c16_134], %233 {strides = array<i32>} : memref<32x32xbf16, #tpu.memory_space<vmem>>, vector<8x8xbf16>,
    %c16_135 = arith.constant 16 : index
    %c24_136 = arith.constant 24 : index
    %235 = vector.load %arg16[%c16_135, %c24_136] : memref<32x96xbf16, #tpu.memory_space<vmem>>, vector<8x8xbf16>
    %c16_137 = arith.constant 16 : index
    %c56_138 = arith.constant 56 : index
    %236 = vector.load %arg16[%c16_137, %c56_138] : memref<32x96xbf16, #tpu.memory_space<vmem>>, vector<8x8xbf16>
    %c16_139 = arith.constant 16 : index
    %c88_140 = arith.constant 88 : index
    %237 = vector.load %arg16[%c16_139, %c88_140] : memref<32x96xbf16, #tpu.memory_space<vmem>>, vector<8x8xbf16>
    %cst_141 = arith.constant dense<0.000000e+00> : vector<8x8xf32>
    %238 = tpu.matmul %235, %236, %cst_141 {dimension_numbers = #tpu.dot_dimension_numbers<[1], [1], [0], [0], [0, 0, 1, 0], [], []>} : vector<8x8xbf16>, vector<8x8xbf16>, vector<8x8xf32> -> vector<8x8xf32>
    %239 = vector.broadcast %174 : vector<1x8xf32> to vector<8x8xf32>
    %240 = arith.addf %238, %239 : vector<8x8xf32>
    %cst_142 = arith.constant dense<0xFF800000> : vector<8xf32>
    %241 = vector.multi_reduction <maximumf>, %240, %cst_142 [1] : vector<8x8xf32> to vector<8xf32>
    %242 = vector.shape_cast %241 : vector<8xf32> to vector<8x1xf32>
    %243 = vector.broadcast %242 : vector<8x1xf32> to vector<8x8xf32>
    %244 = arith.subf %240, %243 : vector<8x8xf32>
    %245 = math.exp %244 : vector<8x8xf32>
    %cst_143 = arith.constant dense<0.000000e+00> : vector<8xf32>
    %246 = vector.multi_reduction <add>, %245, %cst_143 [1] : vector<8x8xf32> to vector<8xf32>
    %247 = vector.shape_cast %246 : vector<8xf32> to vector<8x1xf32>
    %248 = tpu.reciprocal %247 {approx = true} : vector<8x1xf32> -> vector<8x1xf32>
    %249 = vector.broadcast %248 : vector<8x1xf32> to vector<8x8xf32>
    %250 = arith.mulf %245, %249 : vector<8x8xf32>
    %251 = arith.truncf %250 : vector<8x8xf32> to vector<8x8xbf16>
    %cst_144 = arith.constant dense<0.000000e+00> : vector<8x8xf32>
    %252 = tpu.matmul %251, %237, %cst_144 {dimension_numbers = #tpu.dot_dimension_numbers<[1], [0], [0], [1], [0, 0, 1, 1], [], []>} : vector<8x8xbf16>, vector<8x8xbf16>, vector<8x8xf32> -> vector<8x8xf32>
    %253 = arith.truncf %252 : vector<8x8xf32> to vector<8x8xbf16>
    %c16_145 = arith.constant 16 : index
    %c24_146 = arith.constant 24 : index
    %254 = vector.load %arg17[%c16_145, %c24_146] : memref<32x32xbf16, #tpu.memory_space<vmem>>, vector<8x8xbf16>
    tpu.vector_store %arg17[%c16_145, %c24_146], %253 {strides = array<i32>} : memref<32x32xbf16, #tpu.memory_space<vmem>>, vector<8x8xbf16>,
    %c3 = arith.constant 3 : index
    %c0_147 = arith.constant 0 : index
    %c0_148 = arith.constant 0 : index
    %255 = vector.load %arg1[%c3, %c0_147, %c0_148] : memref<4x1x8xf32, #tpu.memory_space<vmem>>, vector<1x1x8xf32>
    %256 = vector.shape_cast %255 : vector<1x1x8xf32> to vector<1x8xf32>
    %c24_149 = arith.constant 24 : index
    %c0_150 = arith.constant 0 : index
    %257 = vector.load %arg16[%c24_149, %c0_150] : memref<32x96xbf16, #tpu.memory_space<vmem>>, vector<8x8xbf16>
    %c24_151 = arith.constant 24 : index
    %c32_152 = arith.constant 32 : index
    %258 = vector.load %arg16[%c24_151, %c32_152] : memref<32x96xbf16, #tpu.memory_space<vmem>>, vector<8x8xbf16>
    %c24_153 = arith.constant 24 : index
    %c64_154 = arith.constant 64 : index
    %259 = vector.load %arg16[%c24_153, %c64_154] : memref<32x96xbf16, #tpu.memory_space<vmem>>, vector<8x8xbf16>
    %cst_155 = arith.constant dense<0.000000e+00> : vector<8x8xf32>
    %260 = tpu.matmul %257, %258, %cst_155 {dimension_numbers = #tpu.dot_dimension_numbers<[1], [1], [0], [0], [0, 0, 1, 0], [], []>} : vector<8x8xbf16>, vector<8x8xbf16>, vector<8x8xf32> -> vector<8x8xf32>
    %261 = vector.broadcast %256 : vector<1x8xf32> to vector<8x8xf32>
    %262 = arith.addf %260, %261 : vector<8x8xf32>
    %cst_156 = arith.constant dense<0xFF800000> : vector<8xf32>
    %263 = vector.multi_reduction <maximumf>, %262, %cst_156 [1] : vector<8x8xf32> to vector<8xf32>
    %264 = vector.shape_cast %263 : vector<8xf32> to vector<8x1xf32>
    %265 = vector.broadcast %264 : vector<8x1xf32> to vector<8x8xf32>
    %266 = arith.subf %262, %265 : vector<8x8xf32>
    %267 = math.exp %266 : vector<8x8xf32>
    %cst_157 = arith.constant dense<0.000000e+00> : vector<8xf32>
    %268 = vector.multi_reduction <add>, %267, %cst_157 [1] : vector<8x8xf32> to vector<8xf32>
    %269 = vector.shape_cast %268 : vector<8xf32> to vector<8x1xf32>
    %270 = tpu.reciprocal %269 {approx = true} : vector<8x1xf32> -> vector<8x1xf32>
    %271 = vector.broadcast %270 : vector<8x1xf32> to vector<8x8xf32>
    %272 = arith.mulf %267, %271 : vector<8x8xf32>
    %273 = arith.truncf %272 : vector<8x8xf32> to vector<8x8xbf16>
    %cst_158 = arith.constant dense<0.000000e+00> : vector<8x8xf32>
    %274 = tpu.matmul %273, %259, %cst_158 {dimension_numbers = #tpu.dot_dimension_numbers<[1], [0], [0], [1], [0, 0, 1, 1], [], []>} : vector<8x8xbf16>, vector<8x8xbf16>, vector<8x8xf32> -> vector<8x8xf32>
    %275 = arith.truncf %274 : vector<8x8xf32> to vector<8x8xbf16>
    %c24_159 = arith.constant 24 : index
    %c0_160 = arith.constant 0 : index
    %276 = vector.load %arg17[%c24_159, %c0_160] : memref<32x32xbf16, #tpu.memory_space<vmem>>, vector<8x8xbf16>
    tpu.vector_store %arg17[%c24_159, %c0_160], %275 {strides = array<i32>} : memref<32x32xbf16, #tpu.memory_space<vmem>>, vector<8x8xbf16>,
    %c24_161 = arith.constant 24 : index
    %c8_162 = arith.constant 8 : index
    %277 = vector.load %arg16[%c24_161, %c8_162] : memref<32x96xbf16, #tpu.memory_space<vmem>>, vector<8x8xbf16>
    %c24_163 = arith.constant 24 : index
    %c40_164 = arith.constant 40 : index
    %278 = vector.load %arg16[%c24_163, %c40_164] : memref<32x96xbf16, #tpu.memory_space<vmem>>, vector<8x8xbf16>
    %c24_165 = arith.constant 24 : index
    %c72_166 = arith.constant 72 : index
    %279 = vector.load %arg16[%c24_165, %c72_166] : memref<32x96xbf16, #tpu.memory_space<vmem>>, vector<8x8xbf16>
    %cst_167 = arith.constant dense<0.000000e+00> : vector<8x8xf32>
    %280 = tpu.matmul %277, %278, %cst_167 {dimension_numbers = #tpu.dot_dimension_numbers<[1], [1], [0], [0], [0, 0, 1, 0], [], []>} : vector<8x8xbf16>, vector<8x8xbf16>, vector<8x8xf32> -> vector<8x8xf32>
    %281 = vector.broadcast %256 : vector<1x8xf32> to vector<8x8xf32>
    %282 = arith.addf %280, %281 : vector<8x8xf32>
    %cst_168 = arith.constant dense<0xFF800000> : vector<8xf32>
    %283 = vector.multi_reduction <maximumf>, %282, %cst_168 [1] : vector<8x8xf32> to vector<8xf32>
    %284 = vector.shape_cast %283 : vector<8xf32> to vector<8x1xf32>
    %285 = vector.broadcast %284 : vector<8x1xf32> to vector<8x8xf32>
    %286 = arith.subf %282, %285 : vector<8x8xf32>
    %287 = math.exp %286 : vector<8x8xf32>
    %cst_169 = arith.constant dense<0.000000e+00> : vector<8xf32>
    %288 = vector.multi_reduction <add>, %287, %cst_169 [1] : vector<8x8xf32> to vector<8xf32>
    %289 = vector.shape_cast %288 : vector<8xf32> to vector<8x1xf32>
    %290 = tpu.reciprocal %289 {approx = true} : vector<8x1xf32> -> vector<8x1xf32>
    %291 = vector.broadcast %290 : vector<8x1xf32> to vector<8x8xf32>
    %292 = arith.mulf %287, %291 : vector<8x8xf32>
    %293 = arith.truncf %292 : vector<8x8xf32> to vector<8x8xbf16>
    %cst_170 = arith.constant dense<0.000000e+00> : vector<8x8xf32>
    %294 = tpu.matmul %293, %279, %cst_170 {dimension_numbers = #tpu.dot_dimension_numbers<[1], [0], [0], [1], [0, 0, 1, 1], [], []>} : vector<8x8xbf16>, vector<8x8xbf16>, vector<8x8xf32> -> vector<8x8xf32>
    %295 = arith.truncf %294 : vector<8x8xf32> to vector<8x8xbf16>
    %c24_171 = arith.constant 24 : index
    %c8_172 = arith.constant 8 : index
    %296 = vector.load %arg17[%c24_171, %c8_172] : memref<32x32xbf16, #tpu.memory_space<vmem>>, vector<8x8xbf16>
    tpu.vector_store %arg17[%c24_171, %c8_172], %295 {strides = array<i32>} : memref<32x32xbf16, #tpu.memory_space<vmem>>, vector<8x8xbf16>,
    %c24_173 = arith.constant 24 : index
    %c16_174 = arith.constant 16 : index
    %297 = vector.load %arg16[%c24_173, %c16_174] : memref<32x96xbf16, #tpu.memory_space<vmem>>, vector<8x8xbf16>
    %c24_175 = arith.constant 24 : index
    %c48_176 = arith.constant 48 : index
    %298 = vector.load %arg16[%c24_175, %c48_176] : memref<32x96xbf16, #tpu.memory_space<vmem>>, vector<8x8xbf16>
    %c24_177 = arith.constant 24 : index
    %c80_178 = arith.constant 80 : index
    %299 = vector.load %arg16[%c24_177, %c80_178] : memref<32x96xbf16, #tpu.memory_space<vmem>>, vector<8x8xbf16>
    %cst_179 = arith.constant dense<0.000000e+00> : vector<8x8xf32>
    %300 = tpu.matmul %297, %298, %cst_179 {dimension_numbers = #tpu.dot_dimension_numbers<[1], [1], [0], [0], [0, 0, 1, 0], [], []>} : vector<8x8xbf16>, vector<8x8xbf16>, vector<8x8xf32> -> vector<8x8xf32>
    %301 = vector.broadcast %256 : vector<1x8xf32> to vector<8x8xf32>
    %302 = arith.addf %300, %301 : vector<8x8xf32>
    %cst_180 = arith.constant dense<0xFF800000> : vector<8xf32>
    %303 = vector.multi_reduction <maximumf>, %302, %cst_180 [1] : vector<8x8xf32> to vector<8xf32>
    %304 = vector.shape_cast %303 : vector<8xf32> to vector<8x1xf32>
    %305 = vector.broadcast %304 : vector<8x1xf32> to vector<8x8xf32>
    %306 = arith.subf %302, %305 : vector<8x8xf32>
    %307 = math.exp %306 : vector<8x8xf32>
    %cst_181 = arith.constant dense<0.000000e+00> : vector<8xf32>
    %308 = vector.multi_reduction <add>, %307, %cst_181 [1] : vector<8x8xf32> to vector<8xf32>
    %309 = vector.shape_cast %308 : vector<8xf32> to vector<8x1xf32>
    %310 = tpu.reciprocal %309 {approx = true} : vector<8x1xf32> -> vector<8x1xf32>
    %311 = vector.broadcast %310 : vector<8x1xf32> to vector<8x8xf32>
    %312 = arith.mulf %307, %311 : vector<8x8xf32>
    %313 = arith.truncf %312 : vector<8x8xf32> to vector<8x8xbf16>
    %cst_182 = arith.constant dense<0.000000e+00> : vector<8x8xf32>
    %314 = tpu.matmul %313, %299, %cst_182 {dimension_numbers = #tpu.dot_dimension_numbers<[1], [0], [0], [1], [0, 0, 1, 1], [], []>} : vector<8x8xbf16>, vector<8x8xbf16>, vector<8x8xf32> -> vector<8x8xf32>
    %315 = arith.truncf %314 : vector<8x8xf32> to vector<8x8xbf16>
    %c24_183 = arith.constant 24 : index
    %c16_184 = arith.constant 16 : index
    %316 = vector.load %arg17[%c24_183, %c16_184] : memref<32x32xbf16, #tpu.memory_space<vmem>>, vector<8x8xbf16>
    tpu.vector_store %arg17[%c24_183, %c16_184], %315 {strides = array<i32>} : memref<32x32xbf16, #tpu.memory_space<vmem>>, vector<8x8xbf16>,
    %c24_185 = arith.constant 24 : index
    %c24_186 = arith.constant 24 : index
    %317 = vector.load %arg16[%c24_185, %c24_186] : memref<32x96xbf16, #tpu.memory_space<vmem>>, vector<8x8xbf16>
    %c24_187 = arith.constant 24 : index
    %c56_188 = arith.constant 56 : index
    %318 = vector.load %arg16[%c24_187, %c56_188] : memref<32x96xbf16, #tpu.memory_space<vmem>>, vector<8x8xbf16>
    %c24_189 = arith.constant 24 : index
    %c88_190 = arith.constant 88 : index
    %319 = vector.load %arg16[%c24_189, %c88_190] : memref<32x96xbf16, #tpu.memory_space<vmem>>, vector<8x8xbf16>
    %cst_191 = arith.constant dense<0.000000e+00> : vector<8x8xf32>
    %320 = tpu.matmul %317, %318, %cst_191 {dimension_numbers = #tpu.dot_dimension_numbers<[1], [1], [0], [0], [0, 0, 1, 0], [], []>} : vector<8x8xbf16>, vector<8x8xbf16>, vector<8x8xf32> -> vector<8x8xf32>
    %321 = vector.broadcast %256 : vector<1x8xf32> to vector<8x8xf32>
    %322 = arith.addf %320, %321 : vector<8x8xf32>
    %cst_192 = arith.constant dense<0xFF800000> : vector<8xf32>
    %323 = vector.multi_reduction <maximumf>, %322, %cst_192 [1] : vector<8x8xf32> to vector<8xf32>
    %324 = vector.shape_cast %323 : vector<8xf32> to vector<8x1xf32>
    %325 = vector.broadcast %324 : vector<8x1xf32> to vector<8x8xf32>
    %326 = arith.subf %322, %325 : vector<8x8xf32>
    %327 = math.exp %326 : vector<8x8xf32>
    %cst_193 = arith.constant dense<0.000000e+00> : vector<8xf32>
    %328 = vector.multi_reduction <add>, %327, %cst_193 [1] : vector<8x8xf32> to vector<8xf32>
    %329 = vector.shape_cast %328 : vector<8xf32> to vector<8x1xf32>
    %330 = tpu.reciprocal %329 {approx = true} : vector<8x1xf32> -> vector<8x1xf32>
    %331 = vector.broadcast %330 : vector<8x1xf32> to vector<8x8xf32>
    %332 = arith.mulf %327, %331 : vector<8x8xf32>
    %333 = arith.truncf %332 : vector<8x8xf32> to vector<8x8xbf16>
    %cst_194 = arith.constant dense<0.000000e+00> : vector<8x8xf32>
    %334 = tpu.matmul %333, %319, %cst_194 {dimension_numbers = #tpu.dot_dimension_numbers<[1], [0], [0], [1], [0, 0, 1, 1], [], []>} : vector<8x8xbf16>, vector<8x8xbf16>, vector<8x8xf32> -> vector<8x8xf32>
    %335 = arith.truncf %334 : vector<8x8xf32> to vector<8x8xbf16>
    %c24_195 = arith.constant 24 : index
    %c24_196 = arith.constant 24 : index
    %336 = vector.load %arg17[%c24_195, %c24_196] : memref<32x32xbf16, #tpu.memory_space<vmem>>, vector<8x8xbf16>
    tpu.vector_store %arg17[%c24_195, %c24_196], %335 {strides = array<i32>} : memref<32x32xbf16, #tpu.memory_space<vmem>>, vector<8x8xbf16>,
    %c0_197 = arith.constant 0 : index
    %c0_198 = arith.constant 0 : index
    %337 = vector.load %arg17[%c0_197, %c0_198] : memref<32x32xbf16, #tpu.memory_space<vmem>>, vector<32x32xbf16>
    %c0_199 = arith.constant 0 : index
    %c0_200 = arith.constant 0 : index
    %338 = vector.load %arg5[%c0_199, %c0_200] : memref<32x32xbf16, #tpu.memory_space<vmem>>, vector<32x32xbf16>
    %cst_201 = arith.constant dense<0.000000e+00> : vector<32x32xf32>
    %339 = tpu.matmul %337, %338, %cst_201 {dimension_numbers = #tpu.dot_dimension_numbers<[1], [0], [0], [1], [0, 0, 1, 1], [], []>} : vector<32x32xbf16>, vector<32x32xbf16>, vector<32x32xf32> -> vector<32x32xf32>
    %c0_202 = arith.constant 0 : index
    %c0_203 = arith.constant 0 : index
    %340 = vector.load %arg6[%c0_202, %c0_203] : memref<1x32xf32, #tpu.memory_space<vmem>>, vector<1x32xf32>
    %341 = vector.broadcast %340 : vector<1x32xf32> to vector<32x32xf32>
    %342 = arith.addf %339, %341 : vector<32x32xf32>
    %343 = arith.addf %342, %0 : vector<32x32xf32>
    %c0_204 = arith.constant 0 : index
    %c0_205 = arith.constant 0 : index
    %344 = vector.load %arg7[%c0_204, %c0_205] : memref<1x32xf32, #tpu.memory_space<vmem>>, vector<1x32xf32>
    %c0_206 = arith.constant 0 : index
    %c0_207 = arith.constant 0 : index
    %345 = vector.load %arg8[%c0_206, %c0_207] : memref<1x32xf32, #tpu.memory_space<vmem>>, vector<1x32xf32>
    %cst_208 = arith.constant dense<0.000000e+00> : vector<32xf32>
    %346 = vector.multi_reduction <add>, %343, %cst_208 [1] : vector<32x32xf32> to vector<32xf32>
    %347 = vector.shape_cast %346 : vector<32xf32> to vector<32x1xf32>
    %cst_209 = arith.constant 3.200000e+01 : f32
    %348 = vector.broadcast %cst_209 : f32 to vector<32x1xf32>
    %349 = arith.divf %347, %348 : vector<32x1xf32>
    %350 = vector.broadcast %349 : vector<32x1xf32> to vector<32x32xf32>
    %351 = arith.subf %343, %350 : vector<32x32xf32>
    %352 = arith.mulf %351, %351 : vector<32x32xf32>
    %cst_210 = arith.constant dense<0.000000e+00> : vector<32xf32>
    %353 = vector.multi_reduction <add>, %352, %cst_210 [1] : vector<32x32xf32> to vector<32xf32>
    %354 = vector.shape_cast %353 : vector<32xf32> to vector<32x1xf32>
    %cst_211 = arith.constant 3.200000e+01 : f32
    %355 = vector.broadcast %cst_211 : f32 to vector<32x1xf32>
    %356 = arith.divf %354, %355 : vector<32x1xf32>
    %357 = vector.broadcast %349 : vector<32x1xf32> to vector<32x32xf32>
    %358 = arith.subf %343, %357 : vector<32x32xf32>
    %cst_212 = arith.constant 9.99999974E-6 : f32
    %359 = vector.broadcast %cst_212 : f32 to vector<32x1xf32>
    %360 = arith.addf %356, %359 : vector<32x1xf32>
    %361 = math.rsqrt %360 : vector<32x1xf32>
    %362 = vector.broadcast %361 : vector<32x1xf32> to vector<32x32xf32>
    %363 = arith.mulf %358, %362 : vector<32x32xf32>
    %364 = vector.broadcast %344 : vector<1x32xf32> to vector<32x32xf32>
    %365 = arith.mulf %363, %364 : vector<32x32xf32>
    %366 = vector.broadcast %345 : vector<1x32xf32> to vector<32x32xf32>
    %367 = arith.addf %365, %366 : vector<32x32xf32>
    %368 = arith.truncf %367 : vector<32x32xf32> to vector<32x32xbf16>
    %c0_213 = arith.constant 0 : index
    %c0_214 = arith.constant 0 : index
    %369 = vector.load %arg9[%c0_213, %c0_214] : memref<32x128xbf16, #tpu.memory_space<vmem>>, vector<32x128xbf16>
    %cst_215 = arith.constant dense<0.000000e+00> : vector<32x128xf32>
    %370 = tpu.matmul %368, %369, %cst_215 {dimension_numbers = #tpu.dot_dimension_numbers<[1], [0], [0], [1], [0, 0, 1, 1], [], []>} : vector<32x32xbf16>, vector<32x128xbf16>, vector<32x128xf32> -> vector<32x128xf32>
    %c0_216 = arith.constant 0 : index
    %c0_217 = arith.constant 0 : index
    %371 = vector.load %arg10[%c0_216, %c0_217] : memref<1x128xf32, #tpu.memory_space<vmem>>, vector<1x128xf32>
    %372 = vector.broadcast %371 : vector<1x128xf32> to vector<32x128xf32>
    %373 = arith.addf %370, %372 : vector<32x128xf32>
    %cst_218 = arith.constant 5.000000e-01 : f32
    %374 = vector.broadcast %cst_218 : f32 to vector<32x128xf32>
    %375 = arith.mulf %374, %373 : vector<32x128xf32>
    %cst_219 = arith.constant 0.707106769 : f32
    %376 = vector.broadcast %cst_219 : f32 to vector<32x128xf32>
    %377 = arith.mulf %373, %376 : vector<32x128xf32>
    %378 = math.erf %377 : vector<32x128xf32>
    %cst_220 = arith.constant 1.000000e+00 : f32
    %379 = vector.broadcast %cst_220 : f32 to vector<32x128xf32>
    %380 = arith.addf %379, %378 : vector<32x128xf32>
    %381 = arith.mulf %375, %380 : vector<32x128xf32>
    %382 = arith.truncf %381 : vector<32x128xf32> to vector<32x128xbf16>
    %c0_221 = arith.constant 0 : index
    %c0_222 = arith.constant 0 : index
    %383 = vector.load %arg11[%c0_221, %c0_222] : memref<128x32xbf16, #tpu.memory_space<vmem>>, vector<128x32xbf16>
    %cst_223 = arith.constant dense<0.000000e+00> : vector<32x32xf32>
    %384 = tpu.matmul %382, %383, %cst_223 {dimension_numbers = #tpu.dot_dimension_numbers<[1], [0], [0], [1], [0, 0, 1, 1], [], []>} : vector<32x128xbf16>, vector<128x32xbf16>, vector<32x32xf32> -> vector<32x32xf32>
    %c0_224 = arith.constant 0 : index
    %c0_225 = arith.constant 0 : index
    %385 = vector.load %arg12[%c0_224, %c0_225] : memref<1x32xf32, #tpu.memory_space<vmem>>, vector<1x32xf32>
    %386 = vector.broadcast %385 : vector<1x32xf32> to vector<32x32xf32>
    %387 = arith.addf %384, %386 : vector<32x32xf32>
    %388 = arith.addf %387, %367 : vector<32x32xf32>
    %c0_226 = arith.constant 0 : index
    %c0_227 = arith.constant 0 : index
    %389 = vector.load %arg13[%c0_226, %c0_227] : memref<1x32xf32, #tpu.memory_space<vmem>>, vector<1x32xf32>
    %c0_228 = arith.constant 0 : index
    %c0_229 = arith.constant 0 : index
    %390 = vector.load %arg14[%c0_228, %c0_229] : memref<1x32xf32, #tpu.memory_space<vmem>>, vector<1x32xf32>
    %cst_230 = arith.constant dense<0.000000e+00> : vector<32xf32>
    %391 = vector.multi_reduction <add>, %388, %cst_230 [1] : vector<32x32xf32> to vector<32xf32>
    %392 = vector.shape_cast %391 : vector<32xf32> to vector<32x1xf32>
    %cst_231 = arith.constant 3.200000e+01 : f32
    %393 = vector.broadcast %cst_231 : f32 to vector<32x1xf32>
    %394 = arith.divf %392, %393 : vector<32x1xf32>
    %395 = vector.broadcast %394 : vector<32x1xf32> to vector<32x32xf32>
    %396 = arith.subf %388, %395 : vector<32x32xf32>
    %397 = arith.mulf %396, %396 : vector<32x32xf32>
    %cst_232 = arith.constant dense<0.000000e+00> : vector<32xf32>
    %398 = vector.multi_reduction <add>, %397, %cst_232 [1] : vector<32x32xf32> to vector<32xf32>
    %399 = vector.shape_cast %398 : vector<32xf32> to vector<32x1xf32>
    %cst_233 = arith.constant 3.200000e+01 : f32
    %400 = vector.broadcast %cst_233 : f32 to vector<32x1xf32>
    %401 = arith.divf %399, %400 : vector<32x1xf32>
    %402 = vector.broadcast %394 : vector<32x1xf32> to vector<32x32xf32>
    %403 = arith.subf %388, %402 : vector<32x32xf32>
    %cst_234 = arith.constant 9.99999974E-6 : f32
    %404 = vector.broadcast %cst_234 : f32 to vector<32x1xf32>
    %405 = arith.addf %401, %404 : vector<32x1xf32>
    %406 = math.rsqrt %405 : vector<32x1xf32>
    %407 = vector.broadcast %406 : vector<32x1xf32> to vector<32x32xf32>
    %408 = arith.mulf %403, %407 : vector<32x32xf32>
    %409 = vector.broadcast %389 : vector<1x32xf32> to vector<32x32xf32>
    %410 = arith.mulf %408, %409 : vector<32x32xf32>
    %411 = vector.broadcast %390 : vector<1x32xf32> to vector<32x32xf32>
    %412 = arith.addf %410, %411 : vector<32x32xf32>
    %c0_235 = arith.constant 0 : index
    %c0_236 = arith.constant 0 : index
    %413 = vector.load %arg15[%c0_235, %c0_236] : memref<32x32xf32, #tpu.memory_space<vmem>>, vector<32x32xf32>
    tpu.vector_store %arg15[%c0_235, %c0_236], %412 {strides = array<i32>} : memref<32x32xf32, #tpu.memory_space<vmem>>, vector<32x32xf32>,
    return
  }
  func.func @transform_0(%arg0: i32) -> (i32, i32, i32) {
    %c0_i32 = arith.constant 0 : i32
    %c0_i32_0 = arith.constant 0 : i32
    %c0_i32_1 = arith.constant 0 : i32
    return %arg0, %c0_i32, %c0_i32_0 : i32, i32, i32
  }
  func.func @transform_1(%arg0: i32) -> (i32, i32) {
    %c0_i32 = arith.constant 0 : i32
    %c0_i32_0 = arith.constant 0 : i32
    return %arg0, %c0_i32 : i32, i32
  }
  func.func @transform_2(%arg0: i32) -> (i32, i32) {
    %c0_i32 = arith.constant 0 : i32
    %c0_i32_0 = arith.constant 0 : i32
    %c0_i32_1 = arith.constant 0 : i32
    return %c0_i32, %c0_i32_0 : i32, i32
  }
  func.func @transform_3(%arg0: i32) -> (i32, i32) {
    %c0_i32 = arith.constant 0 : i32
    %c0_i32_0 = arith.constant 0 : i32
    %c0_i32_1 = arith.constant 0 : i32
    return %c0_i32, %c0_i32_0 : i32, i32
  }
  func.func @transform_4(%arg0: i32) -> (i32, i32) {
    %c0_i32 = arith.constant 0 : i32
    %c0_i32_0 = arith.constant 0 : i32
    %c0_i32_1 = arith.constant 0 : i32
    return %c0_i32, %c0_i32_0 : i32, i32
  }
  func.func @transform_5(%arg0: i32) -> (i32, i32) {
    %c0_i32 = arith.constant 0 : i32
    %c0_i32_0 = arith.constant 0 : i32
    %c0_i32_1 = arith.constant 0 : i32
    return %c0_i32, %c0_i32_0 : i32, i32
  }
  func.func @transform_6(%arg0: i32) -> (i32, i32) {
    %c0_i32 = arith.constant 0 : i32
    %c0_i32_0 = arith.constant 0 : i32
    %c0_i32_1 = arith.constant 0 : i32
    return %c0_i32, %c0_i32_0 : i32, i32
  }
  func.func @transform_7(%arg0: i32) -> (i32, i32) {
    %c0_i32 = arith.constant 0 : i32
    %c0_i32_0 = arith.constant 0 : i32
    %c0_i32_1 = arith.constant 0 : i32
    return %c0_i32, %c0_i32_0 : i32, i32
  }
  func.func @transform_8(%arg0: i32) -> (i32, i32) {
    %c0_i32 = arith.constant 0 : i32
    %c0_i32_0 = arith.constant 0 : i32
    %c0_i32_1 = arith.constant 0 : i32
    return %c0_i32, %c0_i32_0 : i32, i32
  }
  func.func @transform_9(%arg0: i32) -> (i32, i32) {
    %c0_i32 = arith.constant 0 : i32
    %c0_i32_0 = arith.constant 0 : i32
    %c0_i32_1 = arith.constant 0 : i32
    return %c0_i32, %c0_i32_0 : i32, i32
  }
  func.func @transform_10(%arg0: i32) -> (i32, i32) {
    %c0_i32 = arith.constant 0 : i32
    %c0_i32_0 = arith.constant 0 : i32
    %c0_i32_1 = arith.constant 0 : i32
    return %c0_i32, %c0_i32_0 : i32, i32
  }
  func.func @transform_11(%arg0: i32) -> (i32, i32) {
    %c0_i32 = arith.constant 0 : i32
    %c0_i32_0 = arith.constant 0 : i32
    %c0_i32_1 = arith.constant 0 : i32
    return %c0_i32, %c0_i32_0 : i32, i32
  }
  func.func @transform_12(%arg0: i32) -> (i32, i32) {
    %c0_i32 = arith.constant 0 : i32
    %c0_i32_0 = arith.constant 0 : i32
    %c0_i32_1 = arith.constant 0 : i32
    return %c0_i32, %c0_i32_0 : i32, i32
  }
  func.func @transform_13(%arg0: i32) -> (i32, i32) {
    %c0_i32 = arith.constant 0 : i32
    %c0_i32_0 = arith.constant 0 : i32
    %c0_i32_1 = arith.constant 0 : i32
    return %c0_i32, %c0_i32_0 : i32, i32
  }
  func.func @transform_14(%arg0: i32) -> (i32, i32) {
    %c0_i32 = arith.constant 0 : i32
    %c0_i32_0 = arith.constant 0 : i32
    return %arg0, %c0_i32 : i32, i32
  }
}

</mosaic_0001>

<llo_original>
// kernel: tpu_custom_call.1
$region0: #{tpu_custom_call.1}
  #allocation0 [shape = 'u32[]', space=smem, size = 0x4, offset = 0x4, fixed_abs, tag = 'smem constant byte address 0x4 - core index']
  #allocation1 [shape = 'u32[144,128]{1,0:T(1,128)}', space=vmem, size = 0x12000, scoped, tag = 'internal scratch']
  #allocation2 [shape = 'bf16[32,96]{1,0:T(16,128)(2,1)}', space=vmem, size = 0x2000, scoped, tag = 'scratch operand']
  #allocation3 [shape = 'bf16[32,32]{1,0:T(16,128)(2,1)}', space=vmem, size = 0x2000, scoped, tag = 'scratch operand']
  %s0 = inlined_call_operand.hbm [shape: f32[4,1,8], index: 0, kind: input, shape index: {}]
  %s1 = inlined_call_operand.vmem [shape: f32[32,32], index: 1, kind: input, shape index: {}]
  %s2 = inlined_call_operand.vmem [shape: bf16[32,96], index: 2, kind: input, shape index: {}]
  %s3 = inlined_call_operand.vmem [shape: f32[1,96], index: 3, kind: input, shape index: {}]
  %s4 = inlined_call_operand.vmem [shape: bf16[32,32], index: 4, kind: input, shape index: {}]
  %s5 = inlined_call_operand.vmem [shape: f32[1,32], index: 5, kind: input, shape index: {}]
  %s6 = inlined_call_operand.vmem [shape: f32[1,32], index: 6, kind: input, shape index: {}]
  %s7 = inlined_call_operand.vmem [shape: f32[1,32], index: 7, kind: input, shape index: {}]
  %s8 = inlined_call_operand.vmem [shape: bf16[32,128], index: 8, kind: input, shape index: {}]
  %s9 = inlined_call_operand.vmem [shape: f32[1,128], index: 9, kind: input, shape index: {}]
  %s10 = inlined_call_operand.vmem [shape: bf16[128,32], index: 10, kind: input, shape index: {}]
  %s11 = inlined_call_operand.vmem [shape: f32[1,32], index: 11, kind: input, shape index: {}]
  %s12 = inlined_call_operand.vmem [shape: f32[1,32], index: 12, kind: input, shape index: {}]
  %s13 = inlined_call_operand.vmem [shape: f32[1,32], index: 13, kind: input, shape index: {}]
  %s14 = inlined_call_operand.hbm [shape: f32[32,32], index: 14, kind: output, shape index: {}]
  %s15 = sld [smem:[#allocation0]]
  $region70: #{tpu_custom_call.1} parent=0
    _
  %s17 = ssub.s32 1, %s15
  %s18 = scalar_select 0, %s17, %s15
  $region1: #{tpu_custom_call.1} parent=0
    #allocation4 [shape = 'u8[2048]{0}', space=vmem, size = 0x800, scoped, tag = 'input window, operand 0, single buffered']
    #allocation5 [shape = 's32[1]{0}', space=sflag, size = 0x4, scoped, tag = 'scoped memory for tpu_custom_call.1']
    #allocation6 [shape = 's32[1]{0}', space=sflag, size = 0x4, scoped, tag = 'scoped memory for tpu_custom_call.1']
    #allocation7 [shape = 'u8[16384]{0}', space=vmem, size = 0x4000, scoped, tag = 'output window, operand 0, single buffered']
    %19 = vsyncpa [#allocation5], 0
    %20 = vsyncpa [#allocation6], 0
    // Predicated region
    $region2: #{tpu_custom_call.1} parent=1 // pred_check
      _
    $region3: #{tpu_custom_call.1} parent=1 // pred_check_branch
      %22 = sbr.rel (0) target = $region5
    $region4: #{tpu_custom_call.1} parent=1 // pred_region
      %s24 = ssub.s32 64, 64
      %25 = vsyncadd [#allocation5], %s24
      %s26 = sshll.u32 [#allocation4], 4
      %s27 = int_to_ptr.vmem [resolvable:$true] %s26
      %32 = dma.hbm_to_vmem [thread:$0]  %s0, 64, %s27, [#allocation5], 16, 16, 1
    $region5: #{tpu_custom_call.1} parent=1 // pred_fallthru
      _
    // Predicated region
    $region6: #{tpu_custom_call.1} parent=1 // pred_check
      _
    $region7: #{tpu_custom_call.1} parent=1 // pred_check_branch
      %34 = sbr.rel (0) target = $region9
    $region8: #{tpu_custom_call.1} parent=1 // pred_region
      _
    $region9: #{tpu_custom_call.1} parent=1 // pred_fallthru
      _
    // Predicated region
    $region10: #{tpu_custom_call.1} parent=1 // pred_check
      _
    $region11: #{tpu_custom_call.1} parent=1 // pred_check_branch
      %36 = sbr.rel (0) target = $region13
    $region12: #{tpu_custom_call.1} parent=1 // pred_region
      _
    $region13: #{tpu_custom_call.1} parent=1 // pred_fallthru
      _
    // Predicated region
    $region14: #{tpu_custom_call.1} parent=1 // pred_check
      _
    $region15: #{tpu_custom_call.1} parent=1 // pred_check_branch
      %38 = sbr.rel (0) target = $region17
    $region16: #{tpu_custom_call.1} parent=1 // pred_region
      _
    $region17: #{tpu_custom_call.1} parent=1 // pred_fallthru
      _
    // Predicated region
    $region18: #{tpu_custom_call.1} parent=1 // pred_check
      _
    $region19: #{tpu_custom_call.1} parent=1 // pred_check_branch
      %40 = sbr.rel (0) target = $region21
    $region20: #{tpu_custom_call.1} parent=1 // pred_region
      _
    $region21: #{tpu_custom_call.1} parent=1 // pred_fallthru
      _
    // Predicated region
    $region22: #{tpu_custom_call.1} parent=1 // pred_check
      _
    $region23: #{tpu_custom_call.1} parent=1 // pred_check_branch
      %42 = sbr.rel (0) target = $region25
    $region24: #{tpu_custom_call.1} parent=1 // pred_region
      _
    $region25: #{tpu_custom_call.1} parent=1 // pred_fallthru
      _
    // Predicated region
    $region26: #{tpu_custom_call.1} parent=1 // pred_check
      _
    $region27: #{tpu_custom_call.1} parent=1 // pred_check_branch
      %44 = sbr.rel (0) target = $region29
    $region28: #{tpu_custom_call.1} parent=1 // pred_region
      _
    $region29: #{tpu_custom_call.1} parent=1 // pred_fallthru
      _
    // Predicated region
    $region30: #{tpu_custom_call.1} parent=1 // pred_check
      _
    $region31: #{tpu_custom_call.1} parent=1 // pred_check_branch
      %46 = sbr.rel (0) target = $region33
    $region32: #{tpu_custom_call.1} parent=1 // pred_region
      _
    $region33: #{tpu_custom_call.1} parent=1 // pred_fallthru
      _
    // Predicated region
    $region34: #{tpu_custom_call.1} parent=1 // pred_check
      _
    $region35: #{tpu_custom_call.1} parent=1 // pred_check_branch
      %48 = sbr.rel (0) target = $region37
    $region36: #{tpu_custom_call.1} parent=1 // pred_region
      _
    $region37: #{tpu_custom_call.1} parent=1 // pred_fallthru
      _
    // Predicated region
    $region38: #{tpu_custom_call.1} parent=1 // pred_check
      _
    $region39: #{tpu_custom_call.1} parent=1 // pred_check_branch
      %50 = sbr.rel (0) target = $region41
    $region40: #{tpu_custom_call.1} parent=1 // pred_region
      _
    $region41: #{tpu_custom_call.1} parent=1 // pred_fallthru
      _
    // Predicated region
    $region42: #{tpu_custom_call.1} parent=1 // pred_check
      _
    $region43: #{tpu_custom_call.1} parent=1 // pred_check_branch
      %52 = sbr.rel (0) target = $region45
    $region44: #{tpu_custom_call.1} parent=1 // pred_region
      _
    $region45: #{tpu_custom_call.1} parent=1 // pred_fallthru
      _
    // Predicated region
    $region46: #{tpu_custom_call.1} parent=1 // pred_check
      _
    $region47: #{tpu_custom_call.1} parent=1 // pred_check_branch
      %54 = sbr.rel (0) target = $region49
    $region48: #{tpu_custom_call.1} parent=1 // pred_region
      _
    $region49: #{tpu_custom_call.1} parent=1 // pred_fallthru
      _
    // Predicated region
    $region50: #{tpu_custom_call.1} parent=1 // pred_check
      _
    $region51: #{tpu_custom_call.1} parent=1 // pred_check_branch
      %56 = sbr.rel (0) target = $region53
    $region52: #{tpu_custom_call.1} parent=1 // pred_region
      _
    $region53: #{tpu_custom_call.1} parent=1 // pred_fallthru
      _
    // Predicated region
    $region54: #{tpu_custom_call.1} parent=1 // pred_check
      _
    $region55: #{tpu_custom_call.1} parent=1 // pred_check_branch
      %58 = sbr.rel (0) target = $region57
    $region56: #{tpu_custom_call.1} parent=1 // pred_region
      _
    $region57: #{tpu_custom_call.1} parent=1 // pred_fallthru
      _
    // Predicated region
    $region58: #{tpu_custom_call.1} parent=1 // pred_check
      _
    $region59: #{tpu_custom_call.1} parent=1 // pred_check_branch
      %60 = sbr.rel (0) target = $region61
    $region60: #{tpu_custom_call.1} parent=1 // pred_region
      %61 = dma.done [#allocation5], 64
    $region61: #{tpu_custom_call.1} parent=1 // pred_fallthru
      _
    %v63 = vld [vmem:[%s1] sm:$0xff]
    %v64 = vld [vmem:[%s1 + $0x8] sm:$0xff]
    %v65 = vld [vmem:[%s1 + $0x10] sm:$0xff]
    %v66 = vld [vmem:[%s1 + $0x18] sm:$0xff]
    %v67 = vpack.c.bf16 %v64, %v63
    %v68 = vpack.c.bf16 %v66, %v65
    %v69 = vld [vmem:[%s2] sm:$0xf]
    %v70 = vld [vmem:[%s2 + $0x4] sm:$0xf]
    %v71 = vld [vmem:[%s2 + $0x8] sm:$0xf]
    %v72 = vld [vmem:[%s2 + $0xc] sm:$0xf]
    %v73 = vld [vmem:[%s3] sm:$0x1]
    %v75 = vlaneseq
    %v76 = vshrl.u32 %v75, 7
    %v77 = vsub.s32 0, %v76
    %v78 = vrot.slane %v73, %v77
    %v84 = vunpack.c.l.b16 %v69
    %v85 = vunpack.c.l.b16 %v70
    %v86 = vunpack.c.l.b16 %v71
    %v87 = vunpack.c.l.b16 %v72
    %v88 = vpack.c.b16 %v85, %v84
    %v89 = vpack.c.b16 %v87, %v86
    %vm92 = vcmask 261120
    %v94 = vsel %vm92, %v67, 0
    %v97 = vsel %vm92, %v68, 0
    %99 = vmatprep.subr.bf16.mxu0 0
    %100 = vmatpush1.bf16.msra.mxu0 %v88
    %101 = vmatprep.subr.bf16.mxu0 0
    %102 = vmatpush1.bf16.msra.mxu0 %v89
    %103 = vmatprep.subr.bf16.mxu0 0
    %104 = vmatpush1.bf16.msra.mxu0 0
    %105 = vmatprep.subr.bf16.mxu0 0
    %106 = vmatpush1.bf16.msra.mxu0 0
    %107 = vmatprep.subr.bf16.mxu0 0
    %108 = vmatpush1.bf16.msra.mxu0 0
    %109 = vmatprep.subr.bf16.mxu0 0
    %110 = vmatpush1.bf16.msra.mxu0 0
    %111 = vmatprep.subr.bf16.mxu0 0
    %112 = vmatpush1.bf16.msra.mxu0 0
    %113 = vmatprep.subr.bf16.mxu0 0
    %114 = vmatpush1.bf16.msra.mxu0 0
    %115 = vmatprep.subr.bf16.mxu0 0
    %116 = vmatpush1.bf16.msra.mxu0 0
    %117 = vmatprep.subr.bf16.mxu0 0
    %118 = vmatpush1.bf16.msra.mxu0 0
    %119 = vmatprep.subr.bf16.mxu0 0
    %120 = vmatpush1.bf16.msra.mxu0 0
    %121 = vmatprep.subr.bf16.mxu0 0
    %122 = vmatpush1.bf16.msra.mxu0 0
    %123 = vmatprep.subr.bf16.mxu0 0
    %124 = vmatpush1.bf16.msra.mxu0 0
    %125 = vmatprep.subr.bf16.mxu0 0
    %126 = vmatpush1.bf16.msra.mxu0 0
    %127 = vmatprep.subr.bf16.mxu0 0
    %128 = vmatpush1.bf16.msra.mxu0 0
    %129 = vmatprep.subr.bf16.mxu0 0
    %130 = vmatpush1.bf16.msra.mxu0 0
    %131 = vmatprep.mubr.bf16.mxu0 0
    %132 = vmatmul.mubr.bf16.gmra.mrb[0].mxu0 %v94
    %v133 = vpop.f32.mrb[0].mxu0
    %v134 = vadd.f32 %v78, %v133
    %v135 = vpop.f32.mrb[0].mxu0
    %v136 = vpop.f32.mrb[0].mxu0
    %v137 = vadd.f32 %v78, %v136
    %v138 = vpop.f32.mrb[0].mxu0
    %139 = vmatprep.mubr.bf16.mxu0 0
    %140 = vmatmul.mubr.bf16.gmra.mrb[0].mxu0 %v97
    %v141 = vpop.f32.mrb[0].mxu0
    %v142 = vadd.f32 %v78, %v141
    %v143 = vpop.f32.mrb[0].mxu0
    %v144 = vpop.f32.mrb[0].mxu0
    %v145 = vadd.f32 %v78, %v144
    %v146 = vpop.f32.mrb[0].mxu0
    %147 = vdwg.mxu0
    %v148 = vpack.c.bf16 %v137, %v134
    %v149 = vpack.c.bf16 %v145, %v142
    %vm150 = vcmask 785408
    %151 = vst.msk [vmem:[#allocation2] sm:$0xff] %vm150, %v148
    %152 = vst.msk [vmem:[#allocation2 + $0x8] sm:$0xff] %vm150, %v149
    %v153 = vld [vmem:[#allocation4] sm:$0x1]
    %v154 = vld [vmem:[#allocation2] sm:$0xf]
    %v156 = vlaneseq
    %v157 = vshrl.u32 %v156, 7
    %v158 = vsub.s32 0, %v157
    %v159 = vrot.slane %v153, %v158
    %162 = vrot.lane.b32.xlu0 %v154, 96
    %v163 = vpop.permute.xlu0 %162
    %vm164 = vcmask 64512
    %v166 = vsel %vm164, %v154, 0
    %v169 = vsel %vm164, %v163, 0
    %171 = vmatprep.subr.bf16.mxu0 0
    %172 = vmatpush1.bf16.xpose.msra.mxu0 %v169
    %173 = vmatprep.subr.bf16.mxu0 0
    %174 = vmatpush1.bf16.xpose.msra.mxu0 0
    %175 = vmatprep.subr.bf16.mxu0 0
    %176 = vmatpush1.bf16.xpose.msra.mxu0 0
    %177 = vmatprep.subr.bf16.mxu0 0
    %178 = vmatpush1.bf16.xpose.msra.mxu0 0
    %179 = vmatprep.subr.bf16.mxu0 0
    %180 = vmatpush1.bf16.xpose.msra.mxu0 0
    %181 = vmatprep.subr.bf16.mxu0 0
    %182 = vmatpush1.bf16.xpose.msra.mxu0 0
    %183 = vmatprep.subr.bf16.mxu0 0
    %184 = vmatpush1.bf16.xpose.msra.mxu0 0
    %185 = vmatprep.subr.bf16.mxu0 0
    %186 = vmatpush1.bf16.xpose.msra.mxu0 0
    %187 = vmatprep.subr.bf16.mxu0 0
    %188 = vmatpush1.bf16.xpose.msra.mxu0 0
    %189 = vmatprep.subr.bf16.mxu0 0
    %190 = vmatpush1.bf16.xpose.msra.mxu0 0
    %191 = vmatprep.subr.bf16.mxu0 0
    %192 = vmatpush1.bf16.xpose.msra.mxu0 0
    %193 = vmatprep.subr.bf16.mxu0 0
    %194 = vmatpush1.bf16.xpose.msra.mxu0 0
    %195 = vmatprep.subr.bf16.mxu0 0
    %196 = vmatpush1.bf16.xpose.msra.mxu0 0
    %197 = vmatprep.subr.bf16.mxu0 0
    %198 = vmatpush1.bf16.xpose.msra.mxu0 0
    %199 = vmatprep.subr.bf16.mxu0 0
    %200 = vmatpush1.bf16.xpose.msra.mxu0 0
    %201 = vmatprep.subr.bf16.mxu0 0
    %202 = vmatpush1.bf16.xpose.msra.mxu0 0
    %203 = vmatprep.mubr.bf16.mxu0 0
    %204 = vmatmul.mubr.bf16.gmra.mrb[0].mxu0 %v166
    %v205 = vpop.f32.mrb[0].mxu0
    %v206 = vadd.f32 %v159, %v205
    %v207 = vpop.f32.mrb[0].mxu0
    %v208 = vpop.f32.mrb[0].mxu0
    %v209 = vpop.f32.mrb[0].mxu0
    %210 = vdwg.mxu0
    %v211 = vsel %vm164, %v206, -inf
    %212 = vmax.xlane.f32.xlu0 %v211
    %v213 = vpop.xlane.xlu0 %212
    %v214 = vsub.f32 %v206, %v213
    %v215 = vmul.f32 %v214, 1.442695
    %v216 = vpow.pop %v215
    %v217 = vsel %vm164, %v216, 0.0
    %218 = vadd.xlane.f32.xlu0 %v217
    %v219 = vpop.xlane.xlu0 %218
    %v220 = vrcp.pop %v219
    %v221 = vmul.f32 %v216, %v220
    %v222 = vpack.c.bf16 %v221, %v221
    %223 = vrot.lane.b32.xlu0 %v154, 64
    %v224 = vpop.permute.xlu0 %223
    %v226 = vsel %vm164, %v222, 0
    %vm228 = vcmask 1043456
    %v230 = vsel %vm228, %v224, 0
    %232 = vmatprep.subr.bf16.mxu0 0
    %233 = vmatpush1.bf16.msra.mxu0 %v230
    %234 = vmatprep.subr.bf16.mxu0 0
    %235 = vmatpush1.bf16.msra.mxu0 0
    %236 = vmatprep.subr.bf16.mxu0 0
    %237 = vmatpush1.bf16.msra.mxu0 0
    %238 = vmatprep.subr.bf16.mxu0 0
    %239 = vmatpush1.bf16.msra.mxu0 0
    %240 = vmatprep.subr.bf16.mxu0 0
    %241 = vmatpush1.bf16.msra.mxu0 0
    %242 = vmatprep.subr.bf16.mxu0 0
    %243 = vmatpush1.bf16.msra.mxu0 0
    %244 = vmatprep.subr.bf16.mxu0 0
    %245 = vmatpush1.bf16.msra.mxu0 0
    %246 = vmatprep.subr.bf16.mxu0 0
    %247 = vmatpush1.bf16.msra.mxu0 0
    %248 = vmatprep.subr.bf16.mxu0 0
    %249 = vmatpush1.bf16.msra.mxu0 0
    %250 = vmatprep.subr.bf16.mxu0 0
    %251 = vmatpush1.bf16.msra.mxu0 0
    %252 = vmatprep.subr.bf16.mxu0 0
    %253 = vmatpush1.bf16.msra.mxu0 0
    %254 = vmatprep.subr.bf16.mxu0 0
    %255 = vmatpush1.bf16.msra.mxu0 0
    %256 = vmatprep.subr.bf16.mxu0 0
    %257 = vmatpush1.bf16.msra.mxu0 0
    %258 = vmatprep.subr.bf16.mxu0 0
    %259 = vmatpush1.bf16.msra.mxu0 0
    %260 = vmatprep.subr.bf16.mxu0 0
    %261 = vmatpush1.bf16.msra.mxu0 0
    %262 = vmatprep.subr.bf16.mxu0 0
    %263 = vmatpush1.bf16.msra.mxu0 0
    %264 = vmatprep.mubr.bf16.mxu0 0
    %265 = vmatmul.mubr.bf16.gmra.mrb[0].mxu0 %v226
    %v266 = vpop.f32.mrb[0].mxu0
    %v267 = vadd.f32 0.0, %v266
    %v268 = vpop.f32.mrb[0].mxu0
    %v269 = vpop.f32.mrb[0].mxu0
    %v270 = vpop.f32.mrb[0].mxu0
    %271 = vdwg.mxu0
    %v272 = vpack.c.bf16 %v267, %v267
    %vm273 = vcmask 60416
    %274 = vst.msk [vmem:[#allocation3] sm:$0xf] %vm273, %v272
    %v275 = vld [vmem:[#allocation2] sm:$0xf]
    %277 = vrot.lane.b32.xlu0 %v275, 120
    %v278 = vpop.permute.xlu0 %277
    %279 = vrot.lane.b32.xlu0 %v275, 88
    %v280 = vpop.permute.xlu0 %279
    %v282 = vsel %vm164, %v278, 0
    %v285 = vsel %vm164, %v280, 0
    %287 = vmatprep.subr.bf16.mxu0 0
    %288 = vmatpush1.bf16.xpose.msra.mxu0 %v285
    %289 = vmatprep.subr.bf16.mxu0 0
    %290 = vmatpush1.bf16.xpose.msra.mxu0 0
    %291 = vmatprep.subr.bf16.mxu0 0
    %292 = vmatpush1.bf16.xpose.msra.mxu0 0
    %293 = vmatprep.subr.bf16.mxu0 0
    %294 = vmatpush1.bf16.xpose.msra.mxu0 0
    %295 = vmatprep.subr.bf16.mxu0 0
    %296 = vmatpush1.bf16.xpose.msra.mxu0 0
    %297 = vmatprep.subr.bf16.mxu0 0
    %298 = vmatpush1.bf16.xpose.msra.mxu0 0
    %299 = vmatprep.subr.bf16.mxu0 0
    %300 = vmatpush1.bf16.xpose.msra.mxu0 0
    %301 = vmatprep.subr.bf16.mxu0 0
    %302 = vmatpush1.bf16.xpose.msra.mxu0 0
    %303 = vmatprep.subr.bf16.mxu0 0
    %304 = vmatpush1.bf16.xpose.msra.mxu0 0
    %305 = vmatprep.subr.bf16.mxu0 0
    %306 = vmatpush1.bf16.xpose.msra.mxu0 0
    %307 = vmatprep.subr.bf16.mxu0 0
    %308 = vmatpush1.bf16.xpose.msra.mxu0 0
    %309 = vmatprep.subr.bf16.mxu0 0
    %310 = vmatpush1.bf16.xpose.msra.mxu0 0
    %311 = vmatprep.subr.bf16.mxu0 0
    %312 = vmatpush1.bf16.xpose.msra.mxu0 0
    %313 = vmatprep.subr.bf16.mxu0 0
    %314 = vmatpush1.bf16.xpose.msra.mxu0 0
    %315 = vmatprep.subr.bf16.mxu0 0
    %316 = vmatpush1.bf16.xpose.msra.mxu0 0
    %317 = vmatprep.subr.bf16.mxu0 0
    %318 = vmatpush1.bf16.xpose.msra.mxu0 0
    %319 = vmatprep.mubr.bf16.mxu0 0
    %320 = vmatmul.mubr.bf16.gmra.mrb[0].mxu0 %v282
    %v321 = vpop.f32.mrb[0].mxu0
    %v322 = vadd.f32 %v159, %v321
    %v323 = vpop.f32.mrb[0].mxu0
    %v324 = vpop.f32.mrb[0].mxu0
    %v325 = vpop.f32.mrb[0].mxu0
    %326 = vdwg.mxu0
    %v327 = vsel %vm164, %v322, -inf
    %328 = vmax.xlane.f32.xlu0 %v327
    %v329 = vpop.xlane.xlu0 %328
    %v330 = vsub.f32 %v322, %v329
    %v331 = vmul.f32 %v330, 1.442695
    %v332 = vpow.pop %v331
    %v333 = vsel %vm164, %v332, 0.0
    %334 = vadd.xlane.f32.xlu0 %v333
    %v335 = vpop.xlane.xlu0 %334
    %v336 = vrcp.pop %v335
    %v337 = vmul.f32 %v332, %v336
    %v338 = vpack.c.bf16 %v337, %v337
    %339 = vrot.lane.b32.xlu0 %v275, 56
    %v340 = vpop.permute.xlu0 %339
    %v342 = vsel %vm164, %v338, 0
    %v345 = vsel %vm228, %v340, 0
    %347 = vmatprep.subr.bf16.mxu0 0
    %348 = vmatpush1.bf16.msra.mxu0 %v345
    %349 = vmatprep.subr.bf16.mxu0 0
    %350 = vmatpush1.bf16.msra.mxu0 0
    %351 = vmatprep.subr.bf16.mxu0 0
    %352 = vmatpush1.bf16.msra.mxu0 0
    %353 = vmatprep.subr.bf16.mxu0 0
    %354 = vmatpush1.bf16.msra.mxu0 0
    %355 = vmatprep.subr.bf16.mxu0 0
    %356 = vmatpush1.bf16.msra.mxu0 0
    %357 = vmatprep.subr.bf16.mxu0 0
    %358 = vmatpush1.bf16.msra.mxu0 0
    %359 = vmatprep.subr.bf16.mxu0 0
    %360 = vmatpush1.bf16.msra.mxu0 0
    %361 = vmatprep.subr.bf16.mxu0 0
    %362 = vmatpush1.bf16.msra.mxu0 0
    %363 = vmatprep.subr.bf16.mxu0 0
    %364 = vmatpush1.bf16.msra.mxu0 0
    %365 = vmatprep.subr.bf16.mxu0 0
    %366 = vmatpush1.bf16.msra.mxu0 0
    %367 = vmatprep.subr.bf16.mxu0 0
    %368 = vmatpush1.bf16.msra.mxu0 0
    %369 = vmatprep.subr.bf16.mxu0 0
    %370 = vmatpush1.bf16.msra.mxu0 0
    %371 = vmatprep.subr.bf16.mxu0 0
    %372 = vmatpush1.bf16.msra.mxu0 0
    %373 = vmatprep.subr.bf16.mxu0 0
    %374 = vmatpush1.bf16.msra.mxu0 0
    %375 = vmatprep.subr.bf16.mxu0 0
    %376 = vmatpush1.bf16.msra.mxu0 0
    %377 = vmatprep.subr.bf16.mxu0 0
    %378 = vmatpush1.bf16.msra.mxu0 0
    %379 = vmatprep.mubr.bf16.mxu0 0
    %380 = vmatmul.mubr.bf16.gmra.mrb[0].mxu0 %v342
    %v381 = vpop.f32.mrb[0].mxu0
    %v382 = vadd.f32 0.0, %v381
    %v383 = vpop.f32.mrb[0].mxu0
    %v384 = vpop.f32.mrb[0].mxu0
    %v385 = vpop.f32.mrb[0].mxu0
    %386 = vdwg.mxu0
    %v387 = vpack.c.bf16 %v382, %v382
    %389 = vrot.lane.b32.xlu0 %v387, 8
    %v390 = vpop.permute.xlu0 %389
    %vm392 = vcmask 126016
    %393 = vst.msk [vmem:[#allocation3] sm:$0xf] %vm392, %v390
    %v394 = vld [vmem:[#allocation2] sm:$0xf]
    %396 = vrot.lane.b32.xlu0 %v394, 112
    %v397 = vpop.permute.xlu0 %396
    %398 = vrot.lane.b32.xlu0 %v394, 80
    %v399 = vpop.permute.xlu0 %398
    %v401 = vsel %vm164, %v397, 0
    %v404 = vsel %vm164, %v399, 0
    %406 = vmatprep.subr.bf16.mxu0 0
    %407 = vmatpush1.bf16.xpose.msra.mxu0 %v404
    %408 = vmatprep.subr.bf16.mxu0 0
    %409 = vmatpush1.bf16.xpose.msra.mxu0 0
    %410 = vmatprep.subr.bf16.mxu0 0
    %411 = vmatpush1.bf16.xpose.msra.mxu0 0
    %412 = vmatprep.subr.bf16.mxu0 0
    %413 = vmatpush1.bf16.xpose.msra.mxu0 0
    %414 = vmatprep.subr.bf16.mxu0 0
    %415 = vmatpush1.bf16.xpose.msra.mxu0 0
    %416 = vmatprep.subr.bf16.mxu0 0
    %417 = vmatpush1.bf16.xpose.msra.mxu0 0
    %418 = vmatprep.subr.bf16.mxu0 0
    %419 = vmatpush1.bf16.xpose.msra.mxu0 0
    %420 = vmatprep.subr.bf16.mxu0 0
    %421 = vmatpush1.bf16.xpose.msra.mxu0 0
    %422 = vmatprep.subr.bf16.mxu0 0
    %423 = vmatpush1.bf16.xpose.msra.mxu0 0
    %424 = vmatprep.subr.bf16.mxu0 0
    %425 = vmatpush1.bf16.xpose.msra.mxu0 0
    %426 = vmatprep.subr.bf16.mxu0 0
    %427 = vmatpush1.bf16.xpose.msra.mxu0 0
    %428 = vmatprep.subr.bf16.mxu0 0
    %429 = vmatpush1.bf16.xpose.msra.mxu0 0
    %430 = vmatprep.subr.bf16.mxu0 0
    %431 = vmatpush1.bf16.xpose.msra.mxu0 0
    %432 = vmatprep.subr.bf16.mxu0 0
    %433 = vmatpush1.bf16.xpose.msra.mxu0 0
    %434 = vmatprep.subr.bf16.mxu0 0
    %435 = vmatpush1.bf16.xpose.msra.mxu0 0
    %436 = vmatprep.subr.bf16.mxu0 0
    %437 = vmatpush1.bf16.xpose.msra.mxu0 0
    %438 = vmatprep.mubr.bf16.mxu0 0
    %439 = vmatmul.mubr.bf16.gmra.mrb[0].mxu0 %v401
    %v440 = vpop.f32.mrb[0].mxu0
    %v441 = vadd.f32 %v159, %v440
    %v442 = vpop.f32.mrb[0].mxu0
    %v443 = vpop.f32.mrb[0].mxu0
    %v444 = vpop.f32.mrb[0].mxu0
    %445 = vdwg.mxu0
    %v446 = vsel %vm164, %v441, -inf
    %447 = vmax.xlane.f32.xlu0 %v446
    %v448 = vpop.xlane.xlu0 %447
    %v449 = vsub.f32 %v441, %v448
    %v450 = vmul.f32 %v449, 1.442695
    %v451 = vpow.pop %v450
    %v452 = vsel %vm164, %v451, 0.0
    %453 = vadd.xlane.f32.xlu0 %v452
    %v454 = vpop.xlane.xlu0 %453
    %v455 = vrcp.pop %v454
    %v456 = vmul.f32 %v451, %v455
    %v457 = vpack.c.bf16 %v456, %v456
    %458 = vrot.lane.b32.xlu0 %v394, 48
    %v459 = vpop.permute.xlu0 %458
    %v461 = vsel %vm164, %v457, 0
    %v464 = vsel %vm228, %v459, 0
    %466 = vmatprep.subr.bf16.mxu0 0
    %467 = vmatpush1.bf16.msra.mxu0 %v464
    %468 = vmatprep.subr.bf16.mxu0 0
    %469 = vmatpush1.bf16.msra.mxu0 0
    %470 = vmatprep.subr.bf16.mxu0 0
    %471 = vmatpush1.bf16.msra.mxu0 0
    %472 = vmatprep.subr.bf16.mxu0 0
    %473 = vmatpush1.bf16.msra.mxu0 0
    %474 = vmatprep.subr.bf16.mxu0 0
    %475 = vmatpush1.bf16.msra.mxu0 0
    %476 = vmatprep.subr.bf16.mxu0 0
    %477 = vmatpush1.bf16.msra.mxu0 0
    %478 = vmatprep.subr.bf16.mxu0 0
    %479 = vmatpush1.bf16.msra.mxu0 0
    %480 = vmatprep.subr.bf16.mxu0 0
    %481 = vmatpush1.bf16.msra.mxu0 0
    %482 = vmatprep.subr.bf16.mxu0 0
    %483 = vmatpush1.bf16.msra.mxu0 0
    %484 = vmatprep.subr.bf16.mxu0 0
    %485 = vmatpush1.bf16.msra.mxu0 0
    %486 = vmatprep.subr.bf16.mxu0 0
    %487 = vmatpush1.bf16.msra.mxu0 0
    %488 = vmatprep.subr.bf16.mxu0 0
    %489 = vmatpush1.bf16.msra.mxu0 0
    %490 = vmatprep.subr.bf16.mxu0 0
    %491 = vmatpush1.bf16.msra.mxu0 0
    %492 = vmatprep.subr.bf16.mxu0 0
    %493 = vmatpush1.bf16.msra.mxu0 0
    %494 = vmatprep.subr.bf16.mxu0 0
    %495 = vmatpush1.bf16.msra.mxu0 0
    %496 = vmatprep.subr.bf16.mxu0 0
    %497 = vmatpush1.bf16.msra.mxu0 0
    %498 = vmatprep.mubr.bf16.mxu0 0
    %499 = vmatmul.mubr.bf16.gmra.mrb[0].mxu0 %v461
    %v500 = vpop.f32.mrb[0].mxu0
    %v501 = vadd.f32 0.0, %v500
    %v502 = vpop.f32.mrb[0].mxu0
    %v503 = vpop.f32.mrb[0].mxu0
    %v504 = vpop.f32.mrb[0].mxu0
    %505 = vdwg.mxu0
    %v506 = vpack.c.bf16 %v501, %v501
    %508 = vrot.lane.b32.xlu0 %v506, 16
    %v509 = vpop.permute.xlu0 %508
    %vm511 = vcmask 191616
    %512 = vst.msk [vmem:[#allocation3] sm:$0xf] %vm511, %v509
    %v513 = vld [vmem:[#allocation2] sm:$0xf]
    %515 = vrot.lane.b32.xlu0 %v513, 104
    %v516 = vpop.permute.xlu0 %515
    %517 = vrot.lane.b32.xlu0 %v513, 72
    %v518 = vpop.permute.xlu0 %517
    %v520 = vsel %vm164, %v516, 0
    %v523 = vsel %vm164, %v518, 0
    %525 = vmatprep.subr.bf16.mxu0 0
    %526 = vmatpush1.bf16.xpose.msra.mxu0 %v523
    %527 = vmatprep.subr.bf16.mxu0 0
    %528 = vmatpush1.bf16.xpose.msra.mxu0 0
    %529 = vmatprep.subr.bf16.mxu0 0
    %530 = vmatpush1.bf16.xpose.msra.mxu0 0
    %531 = vmatprep.subr.bf16.mxu0 0
    %532 = vmatpush1.bf16.xpose.msra.mxu0 0
    %533 = vmatprep.subr.bf16.mxu0 0
    %534 = vmatpush1.bf16.xpose.msra.mxu0 0
    %535 = vmatprep.subr.bf16.mxu0 0
    %536 = vmatpush1.bf16.xpose.msra.mxu0 0
    %537 = vmatprep.subr.bf16.mxu0 0
    %538 = vmatpush1.bf16.xpose.msra.mxu0 0
    %539 = vmatprep.subr.bf16.mxu0 0
    %540 = vmatpush1.bf16.xpose.msra.mxu0 0
    %541 = vmatprep.subr.bf16.mxu0 0
    %542 = vmatpush1.bf16.xpose.msra.mxu0 0
    %543 = vmatprep.subr.bf16.mxu0 0
    %544 = vmatpush1.bf16.xpose.msra.mxu0 0
    %545 = vmatprep.subr.bf16.mxu0 0
    %546 = vmatpush1.bf16.xpose.msra.mxu0 0
    %547 = vmatprep.subr.bf16.mxu0 0
    %548 = vmatpush1.bf16.xpose.msra.mxu0 0
    %549 = vmatprep.subr.bf16.mxu0 0
    %550 = vmatpush1.bf16.xpose.msra.mxu0 0
    %551 = vmatprep.subr.bf16.mxu0 0
    %552 = vmatpush1.bf16.xpose.msra.mxu0 0
    %553 = vmatprep.subr.bf16.mxu0 0
    %554 = vmatpush1.bf16.xpose.msra.mxu0 0
    %555 = vmatprep.subr.bf16.mxu0 0
    %556 = vmatpush1.bf16.xpose.msra.mxu0 0
    %557 = vmatprep.mubr.bf16.mxu0 0
    %558 = vmatmul.mubr.bf16.gmra.mrb[0].mxu0 %v520
    %v559 = vpop.f32.mrb[0].mxu0
    %v560 = vadd.f32 %v159, %v559
    %v561 = vpop.f32.mrb[0].mxu0
    %v562 = vpop.f32.mrb[0].mxu0
    %v563 = vpop.f32.mrb[0].mxu0
    %564 = vdwg.mxu0
    %v565 = vsel %vm164, %v560, -inf
    %566 = vmax.xlane.f32.xlu0 %v565
    %v567 = vpop.xlane.xlu0 %566
    %v568 = vsub.f32 %v560, %v567
    %v569 = vmul.f32 %v568, 1.442695
    %v570 = vpow.pop %v569
    %v571 = vsel %vm164, %v570, 0.0
    %572 = vadd.xlane.f32.xlu0 %v571
    %v573 = vpop.xlane.xlu0 %572
    %v574 = vrcp.pop %v573
    %v575 = vmul.f32 %v570, %v574
    %v576 = vpack.c.bf16 %v575, %v575
    %577 = vrot.lane.b32.xlu0 %v513, 40
    %v578 = vpop.permute.xlu0 %577
    %v580 = vsel %vm164, %v576, 0
    %v583 = vsel %vm228, %v578, 0
    %585 = vmatprep.subr.bf16.mxu0 0
    %586 = vmatpush1.bf16.msra.mxu0 %v583
    %587 = vmatprep.subr.bf16.mxu0 0
    %588 = vmatpush1.bf16.msra.mxu0 0
    %589 = vmatprep.subr.bf16.mxu0 0
    %590 = vmatpush1.bf16.msra.mxu0 0
    %591 = vmatprep.subr.bf16.mxu0 0
    %592 = vmatpush1.bf16.msra.mxu0 0
    %593 = vmatprep.subr.bf16.mxu0 0
    %594 = vmatpush1.bf16.msra.mxu0 0
    %595 = vmatprep.subr.bf16.mxu0 0
    %596 = vmatpush1.bf16.msra.mxu0 0
    %597 = vmatprep.subr.bf16.mxu0 0
    %598 = vmatpush1.bf16.msra.mxu0 0
    %599 = vmatprep.subr.bf16.mxu0 0
    %600 = vmatpush1.bf16.msra.mxu0 0
    %601 = vmatprep.subr.bf16.mxu0 0
    %602 = vmatpush1.bf16.msra.mxu0 0
    %603 = vmatprep.subr.bf16.mxu0 0
    %604 = vmatpush1.bf16.msra.mxu0 0
    %605 = vmatprep.subr.bf16.mxu0 0
    %606 = vmatpush1.bf16.msra.mxu0 0
    %607 = vmatprep.subr.bf16.mxu0 0
    %608 = vmatpush1.bf16.msra.mxu0 0
    %609 = vmatprep.subr.bf16.mxu0 0
    %610 = vmatpush1.bf16.msra.mxu0 0
    %611 = vmatprep.subr.bf16.mxu0 0
    %612 = vmatpush1.bf16.msra.mxu0 0
    %613 = vmatprep.subr.bf16.mxu0 0
    %614 = vmatpush1.bf16.msra.mxu0 0
    %615 = vmatprep.subr.bf16.mxu0 0
    %616 = vmatpush1.bf16.msra.mxu0 0
    %617 = vmatprep.mubr.bf16.mxu0 0
    %618 = vmatmul.mubr.bf16.gmra.mrb[0].mxu0 %v580
    %v619 = vpop.f32.mrb[0].mxu0
    %v620 = vadd.f32 0.0, %v619
    %v621 = vpop.f32.mrb[0].mxu0
    %v622 = vpop.f32.mrb[0].mxu0
    %v623 = vpop.f32.mrb[0].mxu0
    %624 = vdwg.mxu0
    %v625 = vpack.c.bf16 %v620, %v620
    %627 = vrot.lane.b32.xlu0 %v625, 24
    %v628 = vpop.permute.xlu0 %627
    %vm630 = vcmask 257216
    %631 = vst.msk [vmem:[#allocation3] sm:$0xf] %vm630, %v628
    %s632 = scalar_lea.vmem [#allocation4], 1
    %v633 = vld [vmem:[%s632] sm:$0x1]
    %v634 = vld [vmem:[#allocation2] sm:$0xf0]
    %v636 = vlaneseq
    %v637 = vshrl.u32 %v636, 7
    %v638 = vsub.s32 0, %v637
    %v639 = vrot.slane %v633, %v638
    %v642 = vrot.slane %v634, 4
    %643 = vrot.lane.b32.xlu0 %v642, 96
    %v644 = vpop.permute.xlu0 %643
    %v646 = vsel %vm164, %v642, 0
    %v649 = vsel %vm164, %v644, 0
    %651 = vmatprep.subr.bf16.mxu0 0
    %652 = vmatpush1.bf16.xpose.msra.mxu0 %v649
    %653 = vmatprep.subr.bf16.mxu0 0
    %654 = vmatpush1.bf16.xpose.msra.mxu0 0
    %655 = vmatprep.subr.bf16.mxu0 0
    %656 = vmatpush1.bf16.xpose.msra.mxu0 0
    %657 = vmatprep.subr.bf16.mxu0 0
    %658 = vmatpush1.bf16.xpose.msra.mxu0 0
    %659 = vmatprep.subr.bf16.mxu0 0
    %660 = vmatpush1.bf16.xpose.msra.mxu0 0
    %661 = vmatprep.subr.bf16.mxu0 0
    %662 = vmatpush1.bf16.xpose.msra.mxu0 0
    %663 = vmatprep.subr.bf16.mxu0 0
    %664 = vmatpush1.bf16.xpose.msra.mxu0 0
    %665 = vmatprep.subr.bf16.mxu0 0
    %666 = vmatpush1.bf16.xpose.msra.mxu0 0
    %667 = vmatprep.subr.bf16.mxu0 0
    %668 = vmatpush1.bf16.xpose.msra.mxu0 0
    %669 = vmatprep.subr.bf16.mxu0 0
    %670 = vmatpush1.bf16.xpose.msra.mxu0 0
    %671 = vmatprep.subr.bf16.mxu0 0
    %672 = vmatpush1.bf16.xpose.msra.mxu0 0
    %673 = vmatprep.subr.bf16.mxu0 0
    %674 = vmatpush1.bf16.xpose.msra.mxu0 0
    %675 = vmatprep.subr.bf16.mxu0 0
    %676 = vmatpush1.bf16.xpose.msra.mxu0 0
    %677 = vmatprep.subr.bf16.mxu0 0
    %678 = vmatpush1.bf16.xpose.msra.mxu0 0
    %679 = vmatprep.subr.bf16.mxu0 0
    %680 = vmatpush1.bf16.xpose.msra.mxu0 0
    %681 = vmatprep.subr.bf16.mxu0 0
    %682 = vmatpush1.bf16.xpose.msra.mxu0 0
    %683 = vmatprep.mubr.bf16.mxu0 0
    %684 = vmatmul.mubr.bf16.gmra.mrb[0].mxu0 %v646
    %v685 = vpop.f32.mrb[0].mxu0
    %v686 = vadd.f32 %v639, %v685
    %v687 = vpop.f32.mrb[0].mxu0
    %v688 = vpop.f32.mrb[0].mxu0
    %v689 = vpop.f32.mrb[0].mxu0
    %690 = vdwg.mxu0
    %v691 = vsel %vm164, %v686, -inf
    %692 = vmax.xlane.f32.xlu0 %v691
    %v693 = vpop.xlane.xlu0 %692
    %v694 = vsub.f32 %v686, %v693
    %v695 = vmul.f32 %v694, 1.442695
    %v696 = vpow.pop %v695
    %v697 = vsel %vm164, %v696, 0.0
    %698 = vadd.xlane.f32.xlu0 %v697
    %v699 = vpop.xlane.xlu0 %698
    %v700 = vrcp.pop %v699
    %v701 = vmul.f32 %v696, %v700
    %v702 = vpack.c.bf16 %v701, %v701
    %703 = vrot.lane.b32.xlu0 %v642, 64
    %v704 = vpop.permute.xlu0 %703
    %v706 = vsel %vm164, %v702, 0
    %v709 = vsel %vm228, %v704, 0
    %711 = vmatprep.subr.bf16.mxu0 0
    %712 = vmatpush1.bf16.msra.mxu0 %v709
    %713 = vmatprep.subr.bf16.mxu0 0
    %714 = vmatpush1.bf16.msra.mxu0 0
    %715 = vmatprep.subr.bf16.mxu0 0
    %716 = vmatpush1.bf16.msra.mxu0 0
    %717 = vmatprep.subr.bf16.mxu0 0
    %718 = vmatpush1.bf16.msra.mxu0 0
    %719 = vmatprep.subr.bf16.mxu0 0
    %720 = vmatpush1.bf16.msra.mxu0 0
    %721 = vmatprep.subr.bf16.mxu0 0
    %722 = vmatpush1.bf16.msra.mxu0 0
    %723 = vmatprep.subr.bf16.mxu0 0
    %724 = vmatpush1.bf16.msra.mxu0 0
    %725 = vmatprep.subr.bf16.mxu0 0
    %726 = vmatpush1.bf16.msra.mxu0 0
    %727 = vmatprep.subr.bf16.mxu0 0
    %728 = vmatpush1.bf16.msra.mxu0 0
    %729 = vmatprep.subr.bf16.mxu0 0
    %730 = vmatpush1.bf16.msra.mxu0 0
    %731 = vmatprep.subr.bf16.mxu0 0
    %732 = vmatpush1.bf16.msra.mxu0 0
    %733 = vmatprep.subr.bf16.mxu0 0
    %734 = vmatpush1.bf16.msra.mxu0 0
    %735 = vmatprep.subr.bf16.mxu0 0
    %736 = vmatpush1.bf16.msra.mxu0 0
    %737 = vmatprep.subr.bf16.mxu0 0
    %738 = vmatpush1.bf16.msra.mxu0 0
    %739 = vmatprep.subr.bf16.mxu0 0
    %740 = vmatpush1.bf16.msra.mxu0 0
    %741 = vmatprep.subr.bf16.mxu0 0
    %742 = vmatpush1.bf16.msra.mxu0 0
    %743 = vmatprep.mubr.bf16.mxu0 0
    %744 = vmatmul.mubr.bf16.gmra.mrb[0].mxu0 %v706
    %v745 = vpop.f32.mrb[0].mxu0
    %v746 = vadd.f32 0.0, %v745
    %v747 = vpop.f32.mrb[0].mxu0
    %v748 = vpop.f32.mrb[0].mxu0
    %v749 = vpop.f32.mrb[0].mxu0
    %750 = vdwg.mxu0
    %v751 = vpack.c.bf16 %v746, %v746
    %v753 = vrot.slane %v751, 4
    %vm755 = vcmask 64516
    %756 = vst.msk [vmem:[#allocation3] sm:$0xf0] %vm755, %v753
    %v757 = vld [vmem:[#allocation2] sm:$0xf0]
    %v759 = vrot.slane %v757, 4
    %760 = vrot.lane.b32.xlu0 %v759, 120
    %v761 = vpop.permute.xlu0 %760
    %762 = vrot.lane.b32.xlu0 %v759, 88
    %v763 = vpop.permute.xlu0 %762
    %v765 = vsel %vm164, %v761, 0
    %v768 = vsel %vm164, %v763, 0
    %770 = vmatprep.subr.bf16.mxu0 0
    %771 = vmatpush1.bf16.xpose.msra.mxu0 %v768
    %772 = vmatprep.subr.bf16.mxu0 0
    %773 = vmatpush1.bf16.xpose.msra.mxu0 0
    %774 = vmatprep.subr.bf16.mxu0 0
    %775 = vmatpush1.bf16.xpose.msra.mxu0 0
    %776 = vmatprep.subr.bf16.mxu0 0
    %777 = vmatpush1.bf16.xpose.msra.mxu0 0
    %778 = vmatprep.subr.bf16.mxu0 0
    %779 = vmatpush1.bf16.xpose.msra.mxu0 0
    %780 = vmatprep.subr.bf16.mxu0 0
    %781 = vmatpush1.bf16.xpose.msra.mxu0 0
    %782 = vmatprep.subr.bf16.mxu0 0
    %783 = vmatpush1.bf16.xpose.msra.mxu0 0
    %784 = vmatprep.subr.bf16.mxu0 0
    %785 = vmatpush1.bf16.xpose.msra.mxu0 0
    %786 = vmatprep.subr.bf16.mxu0 0
    %787 = vmatpush1.bf16.xpose.msra.mxu0 0
    %788 = vmatprep.subr.bf16.mxu0 0
    %789 = vmatpush1.bf16.xpose.msra.mxu0 0
    %790 = vmatprep.subr.bf16.mxu0 0
    %791 = vmatpush1.bf16.xpose.msra.mxu0 0
    %792 = vmatprep.subr.bf16.mxu0 0
    %793 = vmatpush1.bf16.xpose.msra.mxu0 0
    %794 = vmatprep.subr.bf16.mxu0 0
    %795 = vmatpush1.bf16.xpose.msra.mxu0 0
    %796 = vmatprep.subr.bf16.mxu0 0
    %797 = vmatpush1.bf16.xpose.msra.mxu0 0
    %798 = vmatprep.subr.bf16.mxu0 0
    %799 = vmatpush1.bf16.xpose.msra.mxu0 0
    %800 = vmatprep.subr.bf16.mxu0 0
    %801 = vmatpush1.bf16.xpose.msra.mxu0 0
    %802 = vmatprep.mubr.bf16.mxu0 0
    %803 = vmatmul.mubr.bf16.gmra.mrb[0].mxu0 %v765
    %v804 = vpop.f32.mrb[0].mxu0
    %v805 = vadd.f32 %v639, %v804
    %v806 = vpop.f32.mrb[0].mxu0
    %v807 = vpop.f32.mrb[0].mxu0
    %v808 = vpop.f32.mrb[0].mxu0
    %809 = vdwg.mxu0
    %v810 = vsel %vm164, %v805, -inf
    %811 = vmax.xlane.f32.xlu0 %v810
    %v812 = vpop.xlane.xlu0 %811
    %v813 = vsub.f32 %v805, %v812
    %v814 = vmul.f32 %v813, 1.442695
    %v815 = vpow.pop %v814
    %v816 = vsel %vm164, %v815, 0.0
    %817 = vadd.xlane.f32.xlu0 %v816
    %v818 = vpop.xlane.xlu0 %817
    %v819 = vrcp.pop %v818
    %v820 = vmul.f32 %v815, %v819
    %v821 = vpack.c.bf16 %v820, %v820
    %822 = vrot.lane.b32.xlu0 %v759, 56
    %v823 = vpop.permute.xlu0 %822
    %v825 = vsel %vm164, %v821, 0
    %v828 = vsel %vm228, %v823, 0
    %830 = vmatprep.subr.bf16.mxu0 0
    %831 = vmatpush1.bf16.msra.mxu0 %v828
    %832 = vmatprep.subr.bf16.mxu0 0
    %833 = vmatpush1.bf16.msra.mxu0 0
    %834 = vmatprep.subr.bf16.mxu0 0
    %835 = vmatpush1.bf16.msra.mxu0 0
    %836 = vmatprep.subr.bf16.mxu0 0
    %837 = vmatpush1.bf16.msra.mxu0 0
    %838 = vmatprep.subr.bf16.mxu0 0
    %839 = vmatpush1.bf16.msra.mxu0 0
    %840 = vmatprep.subr.bf16.mxu0 0
    %841 = vmatpush1.bf16.msra.mxu0 0
    %842 = vmatprep.subr.bf16.mxu0 0
    %843 = vmatpush1.bf16.msra.mxu0 0
    %844 = vmatprep.subr.bf16.mxu0 0
    %845 = vmatpush1.bf16.msra.mxu0 0
    %846 = vmatprep.subr.bf16.mxu0 0
    %847 = vmatpush1.bf16.msra.mxu0 0
    %848 = vmatprep.subr.bf16.mxu0 0
    %849 = vmatpush1.bf16.msra.mxu0 0
    %850 = vmatprep.subr.bf16.mxu0 0
    %851 = vmatpush1.bf16.msra.mxu0 0
    %852 = vmatprep.subr.bf16.mxu0 0
    %853 = vmatpush1.bf16.msra.mxu0 0
    %854 = vmatprep.subr.bf16.mxu0 0
    %855 = vmatpush1.bf16.msra.mxu0 0
    %856 = vmatprep.subr.bf16.mxu0 0
    %857 = vmatpush1.bf16.msra.mxu0 0
    %858 = vmatprep.subr.bf16.mxu0 0
    %859 = vmatpush1.bf16.msra.mxu0 0
    %860 = vmatprep.subr.bf16.mxu0 0
    %861 = vmatpush1.bf16.msra.mxu0 0
    %862 = vmatprep.mubr.bf16.mxu0 0
    %863 = vmatmul.mubr.bf16.gmra.mrb[0].mxu0 %v825
    %v864 = vpop.f32.mrb[0].mxu0
    %v865 = vadd.f32 0.0, %v864
    %v866 = vpop.f32.mrb[0].mxu0
    %v867 = vpop.f32.mrb[0].mxu0
    %v868 = vpop.f32.mrb[0].mxu0
    %869 = vdwg.mxu0
    %v870 = vpack.c.bf16 %v865, %v865
    %v872 = vrot.slane %v870, 4
    %873 = vrot.lane.b32.xlu0 %v872, 8
    %v874 = vpop.permute.xlu0 %873
    %vm876 = vcmask 130116
    %877 = vst.msk [vmem:[#allocation3] sm:$0xf0] %vm876, %v874
    %v878 = vld [vmem:[#allocation2] sm:$0xf0]
    %v880 = vrot.slane %v878, 4
    %881 = vrot.lane.b32.xlu0 %v880, 112
    %v882 = vpop.permute.xlu0 %881
    %883 = vrot.lane.b32.xlu0 %v880, 80
    %v884 = vpop.permute.xlu0 %883
    %v886 = vsel %vm164, %v882, 0
    %v889 = vsel %vm164, %v884, 0
    %891 = vmatprep.subr.bf16.mxu0 0
    %892 = vmatpush1.bf16.xpose.msra.mxu0 %v889
    %893 = vmatprep.subr.bf16.mxu0 0
    %894 = vmatpush1.bf16.xpose.msra.mxu0 0
    %895 = vmatprep.subr.bf16.mxu0 0
    %896 = vmatpush1.bf16.xpose.msra.mxu0 0
    %897 = vmatprep.subr.bf16.mxu0 0
    %898 = vmatpush1.bf16.xpose.msra.mxu0 0
    %899 = vmatprep.subr.bf16.mxu0 0
    %900 = vmatpush1.bf16.xpose.msra.mxu0 0
    %901 = vmatprep.subr.bf16.mxu0 0
    %902 = vmatpush1.bf16.xpose.msra.mxu0 0
    %903 = vmatprep.subr.bf16.mxu0 0
    %904 = vmatpush1.bf16.xpose.msra.mxu0 0
    %905 = vmatprep.subr.bf16.mxu0 0
    %906 = vmatpush1.bf16.xpose.msra.mxu0 0
    %907 = vmatprep.subr.bf16.mxu0 0
    %908 = vmatpush1.bf16.xpose.msra.mxu0 0
    %909 = vmatprep.subr.bf16.mxu0 0
    %910 = vmatpush1.bf16.xpose.msra.mxu0 0
    %911 = vmatprep.subr.bf16.mxu0 0
    %912 = vmatpush1.bf16.xpose.msra.mxu0 0
    %913 = vmatprep.subr.bf16.mxu0 0
    %914 = vmatpush1.bf16.xpose.msra.mxu0 0
    %915 = vmatprep.subr.bf16.mxu0 0
    %916 = vmatpush1.bf16.xpose.msra.mxu0 0
    %917 = vmatprep.subr.bf16.mxu0 0
    %918 = vmatpush1.bf16.xpose.msra.mxu0 0
    %919 = vmatprep.subr.bf16.mxu0 0
    %920 = vmatpush1.bf16.xpose.msra.mxu0 0
    %921 = vmatprep.subr.bf16.mxu0 0
    %922 = vmatpush1.bf16.xpose.msra.mxu0 0
    %923 = vmatprep.mubr.bf16.mxu0 0
    %924 = vmatmul.mubr.bf16.gmra.mrb[0].mxu0 %v886
    %v925 = vpop.f32.mrb[0].mxu0
    %v926 = vadd.f32 %v639, %v925
    %v927 = vpop.f32.mrb[0].mxu0
    %v928 = vpop.f32.mrb[0].mxu0
    %v929 = vpop.f32.mrb[0].mxu0
    %930 = vdwg.mxu0
    %v931 = vsel %vm164, %v926, -inf
    %932 = vmax.xlane.f32.xlu0 %v931
    %v933 = vpop.xlane.xlu0 %932
    %v934 = vsub.f32 %v926, %v933
    %v935 = vmul.f32 %v934, 1.442695
    %v936 = vpow.pop %v935
    %v937 = vsel %vm164, %v936, 0.0
    %938 = vadd.xlane.f32.xlu0 %v937
    %v939 = vpop.xlane.xlu0 %938
    %v940 = vrcp.pop %v939
    %v941 = vmul.f32 %v936, %v940
    %v942 = vpack.c.bf16 %v941, %v941
    %943 = vrot.lane.b32.xlu0 %v880, 48
    %v944 = vpop.permute.xlu0 %943
    %v946 = vsel %vm164, %v942, 0
    %v949 = vsel %vm228, %v944, 0
    %951 = vmatprep.subr.bf16.mxu0 0
    %952 = vmatpush1.bf16.msra.mxu0 %v949
    %953 = vmatprep.subr.bf16.mxu0 0
    %954 = vmatpush1.bf16.msra.mxu0 0
    %955 = vmatprep.subr.bf16.mxu0 0
    %956 = vmatpush1.bf16.msra.mxu0 0
    %957 = vmatprep.subr.bf16.mxu0 0
    %958 = vmatpush1.bf16.msra.mxu0 0
    %959 = vmatprep.subr.bf16.mxu0 0
    %960 = vmatpush1.bf16.msra.mxu0 0
    %961 = vmatprep.subr.bf16.mxu0 0
    %962 = vmatpush1.bf16.msra.mxu0 0
    %963 = vmatprep.subr.bf16.mxu0 0
    %964 = vmatpush1.bf16.msra.mxu0 0
    %965 = vmatprep.subr.bf16.mxu0 0
    %966 = vmatpush1.bf16.msra.mxu0 0
    %967 = vmatprep.subr.bf16.mxu0 0
    %968 = vmatpush1.bf16.msra.mxu0 0
    %969 = vmatprep.subr.bf16.mxu0 0
    %970 = vmatpush1.bf16.msra.mxu0 0
    %971 = vmatprep.subr.bf16.mxu0 0
    %972 = vmatpush1.bf16.msra.mxu0 0
    %973 = vmatprep.subr.bf16.mxu0 0
    %974 = vmatpush1.bf16.msra.mxu0 0
    %975 = vmatprep.subr.bf16.mxu0 0
    %976 = vmatpush1.bf16.msra.mxu0 0
    %977 = vmatprep.subr.bf16.mxu0 0
    %978 = vmatpush1.bf16.msra.mxu0 0
    %979 = vmatprep.subr.bf16.mxu0 0
    %980 = vmatpush1.bf16.msra.mxu0 0
    %981 = vmatprep.subr.bf16.mxu0 0
    %982 = vmatpush1.bf16.msra.mxu0 0
    %983 = vmatprep.mubr.bf16.mxu0 0
    %984 = vmatmul.mubr.bf16.gmra.mrb[0].mxu0 %v946
    %v985 = vpop.f32.mrb[0].mxu0
    %v986 = vadd.f32 0.0, %v985
    %v987 = vpop.f32.mrb[0].mxu0
    %v988 = vpop.f32.mrb[0].mxu0
    %v989 = vpop.f32.mrb[0].mxu0
    %990 = vdwg.mxu0
    %v991 = vpack.c.bf16 %v986, %v986
    %v993 = vrot.slane %v991, 4
    %994 = vrot.lane.b32.xlu0 %v993, 16
    %v995 = vpop.permute.xlu0 %994
    %vm997 = vcmask 195716
    %998 = vst.msk [vmem:[#allocation3] sm:$0xf0] %vm997, %v995
    %v999 = vld [vmem:[#allocation2] sm:$0xf0]
    %v1001 = vrot.slane %v999, 4
    %1002 = vrot.lane.b32.xlu0 %v1001, 104
    %v1003 = vpop.permute.xlu0 %1002
    %1004 = vrot.lane.b32.xlu0 %v1001, 72
    %v1005 = vpop.permute.xlu0 %1004
    %v1007 = vsel %vm164, %v1003, 0
    %v1010 = vsel %vm164, %v1005, 0
    %1012 = vmatprep.subr.bf16.mxu0 0
    %1013 = vmatpush1.bf16.xpose.msra.mxu0 %v1010
    %1014 = vmatprep.subr.bf16.mxu0 0
    %1015 = vmatpush1.bf16.xpose.msra.mxu0 0
    %1016 = vmatprep.subr.bf16.mxu0 0
    %1017 = vmatpush1.bf16.xpose.msra.mxu0 0
    %1018 = vmatprep.subr.bf16.mxu0 0
    %1019 = vmatpush1.bf16.xpose.msra.mxu0 0
    %1020 = vmatprep.subr.bf16.mxu0 0
    %1021 = vmatpush1.bf16.xpose.msra.mxu0 0
    %1022 = vmatprep.subr.bf16.mxu0 0
    %1023 = vmatpush1.bf16.xpose.msra.mxu0 0
    %1024 = vmatprep.subr.bf16.mxu0 0
    %1025 = vmatpush1.bf16.xpose.msra.mxu0 0
    %1026 = vmatprep.subr.bf16.mxu0 0
    %1027 = vmatpush1.bf16.xpose.msra.mxu0 0
    %1028 = vmatprep.subr.bf16.mxu0 0
    %1029 = vmatpush1.bf16.xpose.msra.mxu0 0
    %1030 = vmatprep.subr.bf16.mxu0 0
    %1031 = vmatpush1.bf16.xpose.msra.mxu0 0
    %1032 = vmatprep.subr.bf16.mxu0 0
    %1033 = vmatpush1.bf16.xpose.msra.mxu0 0
    %1034 = vmatprep.subr.bf16.mxu0 0
    %1035 = vmatpush1.bf16.xpose.msra.mxu0 0
    %1036 = vmatprep.subr.bf16.mxu0 0
    %1037 = vmatpush1.bf16.xpose.msra.mxu0 0
    %1038 = vmatprep.subr.bf16.mxu0 0
    %1039 = vmatpush1.bf16.xpose.msra.mxu0 0
    %1040 = vmatprep.subr.bf16.mxu0 0
    %1041 = vmatpush1.bf16.xpose.msra.mxu0 0
    %1042 = vmatprep.subr.bf16.mxu0 0
    %1043 = vmatpush1.bf16.xpose.msra.mxu0 0
    %1044 = vmatprep.mubr.bf16.mxu0 0
    %1045 = vmatmul.mubr.bf16.gmra.mrb[0].mxu0 %v1007
    %v1046 = vpop.f32.mrb[0].mxu0
    %v1047 = vadd.f32 %v639, %v1046
    %v1048 = vpop.f32.mrb[0].mxu0
    %v1049 = vpop.f32.mrb[0].mxu0
    %v1050 = vpop.f32.mrb[0].mxu0
    %1051 = vdwg.mxu0
    %v1052 = vsel %vm164, %v1047, -inf
    %1053 = vmax.xlane.f32.xlu0 %v1052
    %v1054 = vpop.xlane.xlu0 %1053
    %v1055 = vsub.f32 %v1047, %v1054
    %v1056 = vmul.f32 %v1055, 1.442695
    %v1057 = vpow.pop %v1056
    %v1058 = vsel %vm164, %v1057, 0.0
    %1059 = vadd.xlane.f32.xlu0 %v1058
    %v1060 = vpop.xlane.xlu0 %1059
    %v1061 = vrcp.pop %v1060
    %v1062 = vmul.f32 %v1057, %v1061
    %v1063 = vpack.c.bf16 %v1062, %v1062
    %1064 = vrot.lane.b32.xlu0 %v1001, 40
    %v1065 = vpop.permute.xlu0 %1064
    %v1067 = vsel %vm164, %v1063, 0
    %v1070 = vsel %vm228, %v1065, 0
    %1072 = vmatprep.subr.bf16.mxu0 0
    %1073 = vmatpush1.bf16.msra.mxu0 %v1070
    %1074 = vmatprep.subr.bf16.mxu0 0
    %1075 = vmatpush1.bf16.msra.mxu0 0
    %1076 = vmatprep.subr.bf16.mxu0 0
    %1077 = vmatpush1.bf16.msra.mxu0 0
    %1078 = vmatprep.subr.bf16.mxu0 0
    %1079 = vmatpush1.bf16.msra.mxu0 0
    %1080 = vmatprep.subr.bf16.mxu0 0
    %1081 = vmatpush1.bf16.msra.mxu0 0
    %1082 = vmatprep.subr.bf16.mxu0 0
    %1083 = vmatpush1.bf16.msra.mxu0 0
    %1084 = vmatprep.subr.bf16.mxu0 0
    %1085 = vmatpush1.bf16.msra.mxu0 0
    %1086 = vmatprep.subr.bf16.mxu0 0
    %1087 = vmatpush1.bf16.msra.mxu0 0
    %1088 = vmatprep.subr.bf16.mxu0 0
    %1089 = vmatpush1.bf16.msra.mxu0 0
    %1090 = vmatprep.subr.bf16.mxu0 0
    %1091 = vmatpush1.bf16.msra.mxu0 0
    %1092 = vmatprep.subr.bf16.mxu0 0
    %1093 = vmatpush1.bf16.msra.mxu0 0
    %1094 = vmatprep.subr.bf16.mxu0 0
    %1095 = vmatpush1.bf16.msra.mxu0 0
    %1096 = vmatprep.subr.bf16.mxu0 0
    %1097 = vmatpush1.bf16.msra.mxu0 0
    %1098 = vmatprep.subr.bf16.mxu0 0
    %1099 = vmatpush1.bf16.msra.mxu0 0
    %1100 = vmatprep.subr.bf16.mxu0 0
    %1101 = vmatpush1.bf16.msra.mxu0 0
    %1102 = vmatprep.subr.bf16.mxu0 0
    %1103 = vmatpush1.bf16.msra.mxu0 0
    %1104 = vmatprep.mubr.bf16.mxu0 0
    %1105 = vmatmul.mubr.bf16.gmra.mrb[0].mxu0 %v1067
    %v1106 = vpop.f32.mrb[0].mxu0
    %v1107 = vadd.f32 0.0, %v1106
    %v1108 = vpop.f32.mrb[0].mxu0
    %v1109 = vpop.f32.mrb[0].mxu0
    %v1110 = vpop.f32.mrb[0].mxu0
    %1111 = vdwg.mxu0
    %v1112 = vpack.c.bf16 %v1107, %v1107
    %v1114 = vrot.slane %v1112, 4
    %1115 = vrot.lane.b32.xlu0 %v1114, 24
    %v1116 = vpop.permute.xlu0 %1115
    %vm1118 = vcmask 261316
    %1119 = vst.msk [vmem:[#allocation3] sm:$0xf0] %vm1118, %v1116
    %s1120 = scalar_lea.vmem [#allocation4], 2
    %v1121 = vld [vmem:[%s1120] sm:$0x1]
    %v1122 = vld [vmem:[#allocation2 + $0x8] sm:$0xf]
    %v1124 = vlaneseq
    %v1125 = vshrl.u32 %v1124, 7
    %v1126 = vsub.s32 0, %v1125
    %v1127 = vrot.slane %v1121, %v1126
    %1130 = vrot.lane.b32.xlu0 %v1122, 96
    %v1131 = vpop.permute.xlu0 %1130
    %v1133 = vsel %vm164, %v1122, 0
    %v1136 = vsel %vm164, %v1131, 0
    %1138 = vmatprep.subr.bf16.mxu0 0
    %1139 = vmatpush1.bf16.xpose.msra.mxu0 %v1136
    %1140 = vmatprep.subr.bf16.mxu0 0
    %1141 = vmatpush1.bf16.xpose.msra.mxu0 0
    %1142 = vmatprep.subr.bf16.mxu0 0
    %1143 = vmatpush1.bf16.xpose.msra.mxu0 0
    %1144 = vmatprep.subr.bf16.mxu0 0
    %1145 = vmatpush1.bf16.xpose.msra.mxu0 0
    %1146 = vmatprep.subr.bf16.mxu0 0
    %1147 = vmatpush1.bf16.xpose.msra.mxu0 0
    %1148 = vmatprep.subr.bf16.mxu0 0
    %1149 = vmatpush1.bf16.xpose.msra.mxu0 0
    %1150 = vmatprep.subr.bf16.mxu0 0
    %1151 = vmatpush1.bf16.xpose.msra.mxu0 0
    %1152 = vmatprep.subr.bf16.mxu0 0
    %1153 = vmatpush1.bf16.xpose.msra.mxu0 0
    %1154 = vmatprep.subr.bf16.mxu0 0
    %1155 = vmatpush1.bf16.xpose.msra.mxu0 0
    %1156 = vmatprep.subr.bf16.mxu0 0
    %1157 = vmatpush1.bf16.xpose.msra.mxu0 0
    %1158 = vmatprep.subr.bf16.mxu0 0
    %1159 = vmatpush1.bf16.xpose.msra.mxu0 0
    %1160 = vmatprep.subr.bf16.mxu0 0
    %1161 = vmatpush1.bf16.xpose.msra.mxu0 0
    %1162 = vmatprep.subr.bf16.mxu0 0
    %1163 = vmatpush1.bf16.xpose.msra.mxu0 0
    %1164 = vmatprep.subr.bf16.mxu0 0
    %1165 = vmatpush1.bf16.xpose.msra.mxu0 0
    %1166 = vmatprep.subr.bf16.mxu0 0
    %1167 = vmatpush1.bf16.xpose.msra.mxu0 0
    %1168 = vmatprep.subr.bf16.mxu0 0
    %1169 = vmatpush1.bf16.xpose.msra.mxu0 0
    %1170 = vmatprep.mubr.bf16.mxu0 0
    %1171 = vmatmul.mubr.bf16.gmra.mrb[0].mxu0 %v1133
    %v1172 = vpop.f32.mrb[0].mxu0
    %v1173 = vadd.f32 %v1127, %v1172
    %v1174 = vpop.f32.mrb[0].mxu0
    %v1175 = vpop.f32.mrb[0].mxu0
    %v1176 = vpop.f32.mrb[0].mxu0
    %1177 = vdwg.mxu0
    %v1178 = vsel %vm164, %v1173, -inf
    %1179 = vmax.xlane.f32.xlu0 %v1178
    %v1180 = vpop.xlane.xlu0 %1179
    %v1181 = vsub.f32 %v1173, %v1180
    %v1182 = vmul.f32 %v1181, 1.442695
    %v1183 = vpow.pop %v1182
    %v1184 = vsel %vm164, %v1183, 0.0
    %1185 = vadd.xlane.f32.xlu0 %v1184
    %v1186 = vpop.xlane.xlu0 %1185
    %v1187 = vrcp.pop %v1186
    %v1188 = vmul.f32 %v1183, %v1187
    %v1189 = vpack.c.bf16 %v1188, %v1188
    %1190 = vrot.lane.b32.xlu0 %v1122, 64
    %v1191 = vpop.permute.xlu0 %1190
    %v1193 = vsel %vm164, %v1189, 0
    %v1196 = vsel %vm228, %v1191, 0
    %1198 = vmatprep.subr.bf16.mxu0 0
    %1199 = vmatpush1.bf16.msra.mxu0 %v1196
    %1200 = vmatprep.subr.bf16.mxu0 0
    %1201 = vmatpush1.bf16.msra.mxu0 0
    %1202 = vmatprep.subr.bf16.mxu0 0
    %1203 = vmatpush1.bf16.msra.mxu0 0
    %1204 = vmatprep.subr.bf16.mxu0 0
    %1205 = vmatpush1.bf16.msra.mxu0 0
    %1206 = vmatprep.subr.bf16.mxu0 0
    %1207 = vmatpush1.bf16.msra.mxu0 0
    %1208 = vmatprep.subr.bf16.mxu0 0
    %1209 = vmatpush1.bf16.msra.mxu0 0
    %1210 = vmatprep.subr.bf16.mxu0 0
    %1211 = vmatpush1.bf16.msra.mxu0 0
    %1212 = vmatprep.subr.bf16.mxu0 0
    %1213 = vmatpush1.bf16.msra.mxu0 0
    %1214 = vmatprep.subr.bf16.mxu0 0
    %1215 = vmatpush1.bf16.msra.mxu0 0
    %1216 = vmatprep.subr.bf16.mxu0 0
    %1217 = vmatpush1.bf16.msra.mxu0 0
    %1218 = vmatprep.subr.bf16.mxu0 0
    %1219 = vmatpush1.bf16.msra.mxu0 0
    %1220 = vmatprep.subr.bf16.mxu0 0
    %1221 = vmatpush1.bf16.msra.mxu0 0
    %1222 = vmatprep.subr.bf16.mxu0 0
    %1223 = vmatpush1.bf16.msra.mxu0 0
    %1224 = vmatprep.subr.bf16.mxu0 0
    %1225 = vmatpush1.bf16.msra.mxu0 0
    %1226 = vmatprep.subr.bf16.mxu0 0
    %1227 = vmatpush1.bf16.msra.mxu0 0
    %1228 = vmatprep.subr.bf16.mxu0 0
    %1229 = vmatpush1.bf16.msra.mxu0 0
    %1230 = vmatprep.mubr.bf16.mxu0 0
    %1231 = vmatmul.mubr.bf16.gmra.mrb[0].mxu0 %v1193
    %v1232 = vpop.f32.mrb[0].mxu0
    %v1233 = vadd.f32 0.0, %v1232
    %v1234 = vpop.f32.mrb[0].mxu0
    %v1235 = vpop.f32.mrb[0].mxu0
    %v1236 = vpop.f32.mrb[0].mxu0
    %1237 = vdwg.mxu0
    %v1238 = vpack.c.bf16 %v1233, %v1233
    %1239 = vst.msk [vmem:[#allocation3 + $0x8] sm:$0xf] %vm273, %v1238
    %v1240 = vld [vmem:[#allocation2 + $0x8] sm:$0xf]
    %1242 = vrot.lane.b32.xlu0 %v1240, 120
    %v1243 = vpop.permute.xlu0 %1242
    %1244 = vrot.lane.b32.xlu0 %v1240, 88
    %v1245 = vpop.permute.xlu0 %1244
    %v1247 = vsel %vm164, %v1243, 0
    %v1250 = vsel %vm164, %v1245, 0
    %1252 = vmatprep.subr.bf16.mxu0 0
    %1253 = vmatpush1.bf16.xpose.msra.mxu0 %v1250
    %1254 = vmatprep.subr.bf16.mxu0 0
    %1255 = vmatpush1.bf16.xpose.msra.mxu0 0
    %1256 = vmatprep.subr.bf16.mxu0 0
    %1257 = vmatpush1.bf16.xpose.msra.mxu0 0
    %1258 = vmatprep.subr.bf16.mxu0 0
    %1259 = vmatpush1.bf16.xpose.msra.mxu0 0
    %1260 = vmatprep.subr.bf16.mxu0 0
    %1261 = vmatpush1.bf16.xpose.msra.mxu0 0
    %1262 = vmatprep.subr.bf16.mxu0 0
    %1263 = vmatpush1.bf16.xpose.msra.mxu0 0
    %1264 = vmatprep.subr.bf16.mxu0 0
    %1265 = vmatpush1.bf16.xpose.msra.mxu0 0
    %1266 = vmatprep.subr.bf16.mxu0 0
    %1267 = vmatpush1.bf16.xpose.msra.mxu0 0
    %1268 = vmatprep.subr.bf16.mxu0 0
    %1269 = vmatpush1.bf16.xpose.msra.mxu0 0
    %1270 = vmatprep.subr.bf16.mxu0 0
    %1271 = vmatpush1.bf16.xpose.msra.mxu0 0
    %1272 = vmatprep.subr.bf16.mxu0 0
    %1273 = vmatpush1.bf16.xpose.msra.mxu0 0
    %1274 = vmatprep.subr.bf16.mxu0 0
    %1275 = vmatpush1.bf16.xpose.msra.mxu0 0
    %1276 = vmatprep.subr.bf16.mxu0 0
    %1277 = vmatpush1.bf16.xpose.msra.mxu0 0
    %1278 = vmatprep.subr.bf16.mxu0 0
    %1279 = vmatpush1.bf16.xpose.msra.mxu0 0
    %1280 = vmatprep.subr.bf16.mxu0 0
    %1281 = vmatpush1.bf16.xpose.msra.mxu0 0
    %1282 = vmatprep.subr.bf16.mxu0 0
    %1283 = vmatpush1.bf16.xpose.msra.mxu0 0
    %1284 = vmatprep.mubr.bf16.mxu0 0
    %1285 = vmatmul.mubr.bf16.gmra.mrb[0].mxu0 %v1247
    %v1286 = vpop.f32.mrb[0].mxu0
    %v1287 = vadd.f32 %v1127, %v1286
    %v1288 = vpop.f32.mrb[0].mxu0
    %v1289 = vpop.f32.mrb[0].mxu0
    %v1290 = vpop.f32.mrb[0].mxu0
    %1291 = vdwg.mxu0
    %v1292 = vsel %vm164, %v1287, -inf
    %1293 = vmax.xlane.f32.xlu0 %v1292
    %v1294 = vpop.xlane.xlu0 %1293
    %v1295 = vsub.f32 %v1287, %v1294
    %v1296 = vmul.f32 %v1295, 1.442695
    %v1297 = vpow.pop %v1296
    %v1298 = vsel %vm164, %v1297, 0.0
    %1299 = vadd.xlane.f32.xlu0 %v1298
    %v1300 = vpop.xlane.xlu0 %1299
    %v1301 = vrcp.pop %v1300
    %v1302 = vmul.f32 %v1297, %v1301
    %v1303 = vpack.c.bf16 %v1302, %v1302
    %1304 = vrot.lane.b32.xlu0 %v1240, 56
    %v1305 = vpop.permute.xlu0 %1304
    %v1307 = vsel %vm164, %v1303, 0
    %v1310 = vsel %vm228, %v1305, 0
    %1312 = vmatprep.subr.bf16.mxu0 0
    %1313 = vmatpush1.bf16.msra.mxu0 %v1310
    %1314 = vmatprep.subr.bf16.mxu0 0
    %1315 = vmatpush1.bf16.msra.mxu0 0
    %1316 = vmatprep.subr.bf16.mxu0 0
    %1317 = vmatpush1.bf16.msra.mxu0 0
    %1318 = vmatprep.subr.bf16.mxu0 0
    %1319 = vmatpush1.bf16.msra.mxu0 0
    %1320 = vmatprep.subr.bf16.mxu0 0
    %1321 = vmatpush1.bf16.msra.mxu0 0
    %1322 = vmatprep.subr.bf16.mxu0 0
    %1323 = vmatpush1.bf16.msra.mxu0 0
    %1324 = vmatprep.subr.bf16.mxu0 0
    %1325 = vmatpush1.bf16.msra.mxu0 0
    %1326 = vmatprep.subr.bf16.mxu0 0
    %1327 = vmatpush1.bf16.msra.mxu0 0
    %1328 = vmatprep.subr.bf16.mxu0 0
    %1329 = vmatpush1.bf16.msra.mxu0 0
    %1330 = vmatprep.subr.bf16.mxu0 0
    %1331 = vmatpush1.bf16.msra.mxu0 0
    %1332 = vmatprep.subr.bf16.mxu0 0
    %1333 = vmatpush1.bf16.msra.mxu0 0
    %1334 = vmatprep.subr.bf16.mxu0 0
    %1335 = vmatpush1.bf16.msra.mxu0 0
    %1336 = vmatprep.subr.bf16.mxu0 0
    %1337 = vmatpush1.bf16.msra.mxu0 0
    %1338 = vmatprep.subr.bf16.mxu0 0
    %1339 = vmatpush1.bf16.msra.mxu0 0
    %1340 = vmatprep.subr.bf16.mxu0 0
    %1341 = vmatpush1.bf16.msra.mxu0 0
    %1342 = vmatprep.subr.bf16.mxu0 0
    %1343 = vmatpush1.bf16.msra.mxu0 0
    %1344 = vmatprep.mubr.bf16.mxu0 0
    %1345 = vmatmul.mubr.bf16.gmra.mrb[0].mxu0 %v1307
    %v1346 = vpop.f32.mrb[0].mxu0
    %v1347 = vadd.f32 0.0, %v1346
    %v1348 = vpop.f32.mrb[0].mxu0
    %v1349 = vpop.f32.mrb[0].mxu0
    %v1350 = vpop.f32.mrb[0].mxu0
    %1351 = vdwg.mxu0
    %v1352 = vpack.c.bf16 %v1347, %v1347
    %1354 = vrot.lane.b32.xlu0 %v1352, 8
    %v1355 = vpop.permute.xlu0 %1354
    %1357 = vst.msk [vmem:[#allocation3 + $0x8] sm:$0xf] %vm392, %v1355
    %v1358 = vld [vmem:[#allocation2 + $0x8] sm:$0xf]
    %1360 = vrot.lane.b32.xlu0 %v1358, 112
    %v1361 = vpop.permute.xlu0 %1360
    %1362 = vrot.lane.b32.xlu0 %v1358, 80
    %v1363 = vpop.permute.xlu0 %1362
    %v1365 = vsel %vm164, %v1361, 0
    %v1368 = vsel %vm164, %v1363, 0
    %1370 = vmatprep.subr.bf16.mxu0 0
    %1371 = vmatpush1.bf16.xpose.msra.mxu0 %v1368
    %1372 = vmatprep.subr.bf16.mxu0 0
    %1373 = vmatpush1.bf16.xpose.msra.mxu0 0
    %1374 = vmatprep.subr.bf16.mxu0 0
    %1375 = vmatpush1.bf16.xpose.msra.mxu0 0
    %1376 = vmatprep.subr.bf16.mxu0 0
    %1377 = vmatpush1.bf16.xpose.msra.mxu0 0
    %1378 = vmatprep.subr.bf16.mxu0 0
    %1379 = vmatpush1.bf16.xpose.msra.mxu0 0
    %1380 = vmatprep.subr.bf16.mxu0 0
    %1381 = vmatpush1.bf16.xpose.msra.mxu0 0
    %1382 = vmatprep.subr.bf16.mxu0 0
    %1383 = vmatpush1.bf16.xpose.msra.mxu0 0
    %1384 = vmatprep.subr.bf16.mxu0 0
    %1385 = vmatpush1.bf16.xpose.msra.mxu0 0
    %1386 = vmatprep.subr.bf16.mxu0 0
    %1387 = vmatpush1.bf16.xpose.msra.mxu0 0
    %1388 = vmatprep.subr.bf16.mxu0 0
    %1389 = vmatpush1.bf16.xpose.msra.mxu0 0
    %1390 = vmatprep.subr.bf16.mxu0 0
    %1391 = vmatpush1.bf16.xpose.msra.mxu0 0
    %1392 = vmatprep.subr.bf16.mxu0 0
    %1393 = vmatpush1.bf16.xpose.msra.mxu0 0
    %1394 = vmatprep.subr.bf16.mxu0 0
    %1395 = vmatpush1.bf16.xpose.msra.mxu0 0
    %1396 = vmatprep.subr.bf16.mxu0 0
    %1397 = vmatpush1.bf16.xpose.msra.mxu0 0
    %1398 = vmatprep.subr.bf16.mxu0 0
    %1399 = vmatpush1.bf16.xpose.msra.mxu0 0
    %1400 = vmatprep.subr.bf16.mxu0 0
    %1401 = vmatpush1.bf16.xpose.msra.mxu0 0
    %1402 = vmatprep.mubr.bf16.mxu0 0
    %1403 = vmatmul.mubr.bf16.gmra.mrb[0].mxu0 %v1365
    %v1404 = vpop.f32.mrb[0].mxu0
    %v1405 = vadd.f32 %v1127, %v1404
    %v1406 = vpop.f32.mrb[0].mxu0
    %v1407 = vpop.f32.mrb[0].mxu0
    %v1408 = vpop.f32.mrb[0].mxu0
    %1409 = vdwg.mxu0
    %v1410 = vsel %vm164, %v1405, -inf
    %1411 = vmax.xlane.f32.xlu0 %v1410
    %v1412 = vpop.xlane.xlu0 %1411
    %v1413 = vsub.f32 %v1405, %v1412
    %v1414 = vmul.f32 %v1413, 1.442695
    %v1415 = vpow.pop %v1414
    %v1416 = vsel %vm164, %v1415, 0.0
    %1417 = vadd.xlane.f32.xlu0 %v1416
    %v1418 = vpop.xlane.xlu0 %1417
    %v1419 = vrcp.pop %v1418
    %v1420 = vmul.f32 %v1415, %v1419
    %v1421 = vpack.c.bf16 %v1420, %v1420
    %1422 = vrot.lane.b32.xlu0 %v1358, 48
    %v1423 = vpop.permute.xlu0 %1422
    %v1425 = vsel %vm164, %v1421, 0
    %v1428 = vsel %vm228, %v1423, 0
    %1430 = vmatprep.subr.bf16.mxu0 0
    %1431 = vmatpush1.bf16.msra.mxu0 %v1428
    %1432 = vmatprep.subr.bf16.mxu0 0
    %1433 = vmatpush1.bf16.msra.mxu0 0
    %1434 = vmatprep.subr.bf16.mxu0 0
    %1435 = vmatpush1.bf16.msra.mxu0 0
    %1436 = vmatprep.subr.bf16.mxu0 0
    %1437 = vmatpush1.bf16.msra.mxu0 0
    %1438 = vmatprep.subr.bf16.mxu0 0
    %1439 = vmatpush1.bf16.msra.mxu0 0
    %1440 = vmatprep.subr.bf16.mxu0 0
    %1441 = vmatpush1.bf16.msra.mxu0 0
    %1442 = vmatprep.subr.bf16.mxu0 0
    %1443 = vmatpush1.bf16.msra.mxu0 0
    %1444 = vmatprep.subr.bf16.mxu0 0
    %1445 = vmatpush1.bf16.msra.mxu0 0
    %1446 = vmatprep.subr.bf16.mxu0 0
    %1447 = vmatpush1.bf16.msra.mxu0 0
    %1448 = vmatprep.subr.bf16.mxu0 0
    %1449 = vmatpush1.bf16.msra.mxu0 0
    %1450 = vmatprep.subr.bf16.mxu0 0
    %1451 = vmatpush1.bf16.msra.mxu0 0
    %1452 = vmatprep.subr.bf16.mxu0 0
    %1453 = vmatpush1.bf16.msra.mxu0 0
    %1454 = vmatprep.subr.bf16.mxu0 0
    %1455 = vmatpush1.bf16.msra.mxu0 0
    %1456 = vmatprep.subr.bf16.mxu0 0
    %1457 = vmatpush1.bf16.msra.mxu0 0
    %1458 = vmatprep.subr.bf16.mxu0 0
    %1459 = vmatpush1.bf16.msra.mxu0 0
    %1460 = vmatprep.subr.bf16.mxu0 0
    %1461 = vmatpush1.bf16.msra.mxu0 0
    %1462 = vmatprep.mubr.bf16.mxu0 0
    %1463 = vmatmul.mubr.bf16.gmra.mrb[0].mxu0 %v1425
    %v1464 = vpop.f32.mrb[0].mxu0
    %v1465 = vadd.f32 0.0, %v1464
    %v1466 = vpop.f32.mrb[0].mxu0
    %v1467 = vpop.f32.mrb[0].mxu0
    %v1468 = vpop.f32.mrb[0].mxu0
    %1469 = vdwg.mxu0
    %v1470 = vpack.c.bf16 %v1465, %v1465
    %1472 = vrot.lane.b32.xlu0 %v1470, 16
    %v1473 = vpop.permute.xlu0 %1472
    %1475 = vst.msk [vmem:[#allocation3 + $0x8] sm:$0xf] %vm511, %v1473
    %v1476 = vld [vmem:[#allocation2 + $0x8] sm:$0xf]
    %1478 = vrot.lane.b32.xlu0 %v1476, 104
    %v1479 = vpop.permute.xlu0 %1478
    %1480 = vrot.lane.b32.xlu0 %v1476, 72
    %v1481 = vpop.permute.xlu0 %1480
    %v1483 = vsel %vm164, %v1479, 0
    %v1486 = vsel %vm164, %v1481, 0
    %1488 = vmatprep.subr.bf16.mxu0 0
    %1489 = vmatpush1.bf16.xpose.msra.mxu0 %v1486
    %1490 = vmatprep.subr.bf16.mxu0 0
    %1491 = vmatpush1.bf16.xpose.msra.mxu0 0
    %1492 = vmatprep.subr.bf16.mxu0 0
    %1493 = vmatpush1.bf16.xpose.msra.mxu0 0
    %1494 = vmatprep.subr.bf16.mxu0 0
    %1495 = vmatpush1.bf16.xpose.msra.mxu0 0
    %1496 = vmatprep.subr.bf16.mxu0 0
    %1497 = vmatpush1.bf16.xpose.msra.mxu0 0
    %1498 = vmatprep.subr.bf16.mxu0 0
    %1499 = vmatpush1.bf16.xpose.msra.mxu0 0
    %1500 = vmatprep.subr.bf16.mxu0 0
    %1501 = vmatpush1.bf16.xpose.msra.mxu0 0
    %1502 = vmatprep.subr.bf16.mxu0 0
    %1503 = vmatpush1.bf16.xpose.msra.mxu0 0
    %1504 = vmatprep.subr.bf16.mxu0 0
    %1505 = vmatpush1.bf16.xpose.msra.mxu0 0
    %1506 = vmatprep.subr.bf16.mxu0 0
    %1507 = vmatpush1.bf16.xpose.msra.mxu0 0
    %1508 = vmatprep.subr.bf16.mxu0 0
    %1509 = vmatpush1.bf16.xpose.msra.mxu0 0
    %1510 = vmatprep.subr.bf16.mxu0 0
    %1511 = vmatpush1.bf16.xpose.msra.mxu0 0
    %1512 = vmatprep.subr.bf16.mxu0 0
    %1513 = vmatpush1.bf16.xpose.msra.mxu0 0
    %1514 = vmatprep.subr.bf16.mxu0 0
    %1515 = vmatpush1.bf16.xpose.msra.mxu0 0
    %1516 = vmatprep.subr.bf16.mxu0 0
    %1517 = vmatpush1.bf16.xpose.msra.mxu0 0
    %1518 = vmatprep.subr.bf16.mxu0 0
    %1519 = vmatpush1.bf16.xpose.msra.mxu0 0
    %1520 = vmatprep.mubr.bf16.mxu0 0
    %1521 = vmatmul.mubr.bf16.gmra.mrb[0].mxu0 %v1483
    %v1522 = vpop.f32.mrb[0].mxu0
    %v1523 = vadd.f32 %v1127, %v1522
    %v1524 = vpop.f32.mrb[0].mxu0
    %v1525 = vpop.f32.mrb[0].mxu0
    %v1526 = vpop.f32.mrb[0].mxu0
    %1527 = vdwg.mxu0
    %v1528 = vsel %vm164, %v1523, -inf
    %1529 = vmax.xlane.f32.xlu0 %v1528
    %v1530 = vpop.xlane.xlu0 %1529
    %v1531 = vsub.f32 %v1523, %v1530
    %v1532 = vmul.f32 %v1531, 1.442695
    %v1533 = vpow.pop %v1532
    %v1534 = vsel %vm164, %v1533, 0.0
    %1535 = vadd.xlane.f32.xlu0 %v1534
    %v1536 = vpop.xlane.xlu0 %1535
    %v1537 = vrcp.pop %v1536
    %v1538 = vmul.f32 %v1533, %v1537
    %v1539 = vpack.c.bf16 %v1538, %v1538
    %1540 = vrot.lane.b32.xlu0 %v1476, 40
    %v1541 = vpop.permute.xlu0 %1540
    %v1543 = vsel %vm164, %v1539, 0
    %v1546 = vsel %vm228, %v1541, 0
    %1548 = vmatprep.subr.bf16.mxu0 0
    %1549 = vmatpush1.bf16.msra.mxu0 %v1546
    %1550 = vmatprep.subr.bf16.mxu0 0
    %1551 = vmatpush1.bf16.msra.mxu0 0
    %1552 = vmatprep.subr.bf16.mxu0 0
    %1553 = vmatpush1.bf16.msra.mxu0 0
    %1554 = vmatprep.subr.bf16.mxu0 0
    %1555 = vmatpush1.bf16.msra.mxu0 0
    %1556 = vmatprep.subr.bf16.mxu0 0
    %1557 = vmatpush1.bf16.msra.mxu0 0
    %1558 = vmatprep.subr.bf16.mxu0 0
    %1559 = vmatpush1.bf16.msra.mxu0 0
    %1560 = vmatprep.subr.bf16.mxu0 0
    %1561 = vmatpush1.bf16.msra.mxu0 0
    %1562 = vmatprep.subr.bf16.mxu0 0
    %1563 = vmatpush1.bf16.msra.mxu0 0
    %1564 = vmatprep.subr.bf16.mxu0 0
    %1565 = vmatpush1.bf16.msra.mxu0 0
    %1566 = vmatprep.subr.bf16.mxu0 0
    %1567 = vmatpush1.bf16.msra.mxu0 0
    %1568 = vmatprep.subr.bf16.mxu0 0
    %1569 = vmatpush1.bf16.msra.mxu0 0
    %1570 = vmatprep.subr.bf16.mxu0 0
    %1571 = vmatpush1.bf16.msra.mxu0 0
    %1572 = vmatprep.subr.bf16.mxu0 0
    %1573 = vmatpush1.bf16.msra.mxu0 0
    %1574 = vmatprep.subr.bf16.mxu0 0
    %1575 = vmatpush1.bf16.msra.mxu0 0
    %1576 = vmatprep.subr.bf16.mxu0 0
    %1577 = vmatpush1.bf16.msra.mxu0 0
    %1578 = vmatprep.subr.bf16.mxu0 0
    %1579 = vmatpush1.bf16.msra.mxu0 0
    %1580 = vmatprep.mubr.bf16.mxu0 0
    %1581 = vmatmul.mubr.bf16.gmra.mrb[0].mxu0 %v1543
    %v1582 = vpop.f32.mrb[0].mxu0
    %v1583 = vadd.f32 0.0, %v1582
    %v1584 = vpop.f32.mrb[0].mxu0
    %v1585 = vpop.f32.mrb[0].mxu0
    %v1586 = vpop.f32.mrb[0].mxu0
    %1587 = vdwg.mxu0
    %v1588 = vpack.c.bf16 %v1583, %v1583
    %1590 = vrot.lane.b32.xlu0 %v1588, 24
    %v1591 = vpop.permute.xlu0 %1590
    %1593 = vst.msk [vmem:[#allocation3 + $0x8] sm:$0xf] %vm630, %v1591
    %s1594 = scalar_lea.vmem [#allocation4], 3
    %v1595 = vld [vmem:[%s1594] sm:$0x1]
    %v1596 = vld [vmem:[#allocation2 + $0x8] sm:$0xf0]
    %v1598 = vlaneseq
    %v1599 = vshrl.u32 %v1598, 7
    %v1600 = vsub.s32 0, %v1599
    %v1601 = vrot.slane %v1595, %v1600
    %v1604 = vrot.slane %v1596, 4
    %1605 = vrot.lane.b32.xlu0 %v1604, 96
    %v1606 = vpop.permute.xlu0 %1605
    %v1608 = vsel %vm164, %v1604, 0
    %v1611 = vsel %vm164, %v1606, 0
    %1613 = vmatprep.subr.bf16.mxu0 0
    %1614 = vmatpush1.bf16.xpose.msra.mxu0 %v1611
    %1615 = vmatprep.subr.bf16.mxu0 0
    %1616 = vmatpush1.bf16.xpose.msra.mxu0 0
    %1617 = vmatprep.subr.bf16.mxu0 0
    %1618 = vmatpush1.bf16.xpose.msra.mxu0 0
    %1619 = vmatprep.subr.bf16.mxu0 0
    %1620 = vmatpush1.bf16.xpose.msra.mxu0 0
    %1621 = vmatprep.subr.bf16.mxu0 0
    %1622 = vmatpush1.bf16.xpose.msra.mxu0 0
    %1623 = vmatprep.subr.bf16.mxu0 0
    %1624 = vmatpush1.bf16.xpose.msra.mxu0 0
    %1625 = vmatprep.subr.bf16.mxu0 0
    %1626 = vmatpush1.bf16.xpose.msra.mxu0 0
    %1627 = vmatprep.subr.bf16.mxu0 0
    %1628 = vmatpush1.bf16.xpose.msra.mxu0 0
    %1629 = vmatprep.subr.bf16.mxu0 0
    %1630 = vmatpush1.bf16.xpose.msra.mxu0 0
    %1631 = vmatprep.subr.bf16.mxu0 0
    %1632 = vmatpush1.bf16.xpose.msra.mxu0 0
    %1633 = vmatprep.subr.bf16.mxu0 0
    %1634 = vmatpush1.bf16.xpose.msra.mxu0 0
    %1635 = vmatprep.subr.bf16.mxu0 0
    %1636 = vmatpush1.bf16.xpose.msra.mxu0 0
    %1637 = vmatprep.subr.bf16.mxu0 0
    %1638 = vmatpush1.bf16.xpose.msra.mxu0 0
    %1639 = vmatprep.subr.bf16.mxu0 0
    %1640 = vmatpush1.bf16.xpose.msra.mxu0 0
    %1641 = vmatprep.subr.bf16.mxu0 0
    %1642 = vmatpush1.bf16.xpose.msra.mxu0 0
    %1643 = vmatprep.subr.bf16.mxu0 0
    %1644 = vmatpush1.bf16.xpose.msra.mxu0 0
    %1645 = vmatprep.mubr.bf16.mxu0 0
    %1646 = vmatmul.mubr.bf16.gmra.mrb[0].mxu0 %v1608
    %v1647 = vpop.f32.mrb[0].mxu0
    %v1648 = vadd.f32 %v1601, %v1647
    %v1649 = vpop.f32.mrb[0].mxu0
    %v1650 = vpop.f32.mrb[0].mxu0
    %v1651 = vpop.f32.mrb[0].mxu0
    %1652 = vdwg.mxu0
    %v1653 = vsel %vm164, %v1648, -inf
    %1654 = vmax.xlane.f32.xlu0 %v1653
    %v1655 = vpop.xlane.xlu0 %1654
    %v1656 = vsub.f32 %v1648, %v1655
    %v1657 = vmul.f32 %v1656, 1.442695
    %v1658 = vpow.pop %v1657
    %v1659 = vsel %vm164, %v1658, 0.0
    %1660 = vadd.xlane.f32.xlu0 %v1659
    %v1661 = vpop.xlane.xlu0 %1660
    %v1662 = vrcp.pop %v1661
    %v1663 = vmul.f32 %v1658, %v1662
    %v1664 = vpack.c.bf16 %v1663, %v1663
    %1665 = vrot.lane.b32.xlu0 %v1604, 64
    %v1666 = vpop.permute.xlu0 %1665
    %v1668 = vsel %vm164, %v1664, 0
    %v1671 = vsel %vm228, %v1666, 0
    %1673 = vmatprep.subr.bf16.mxu0 0
    %1674 = vmatpush1.bf16.msra.mxu0 %v1671
    %1675 = vmatprep.subr.bf16.mxu0 0
    %1676 = vmatpush1.bf16.msra.mxu0 0
    %1677 = vmatprep.subr.bf16.mxu0 0
    %1678 = vmatpush1.bf16.msra.mxu0 0
    %1679 = vmatprep.subr.bf16.mxu0 0
    %1680 = vmatpush1.bf16.msra.mxu0 0
    %1681 = vmatprep.subr.bf16.mxu0 0
    %1682 = vmatpush1.bf16.msra.mxu0 0
    %1683 = vmatprep.subr.bf16.mxu0 0
    %1684 = vmatpush1.bf16.msra.mxu0 0
    %1685 = vmatprep.subr.bf16.mxu0 0
    %1686 = vmatpush1.bf16.msra.mxu0 0
    %1687 = vmatprep.subr.bf16.mxu0 0
    %1688 = vmatpush1.bf16.msra.mxu0 0
    %1689 = vmatprep.subr.bf16.mxu0 0
    %1690 = vmatpush1.bf16.msra.mxu0 0
    %1691 = vmatprep.subr.bf16.mxu0 0
    %1692 = vmatpush1.bf16.msra.mxu0 0
    %1693 = vmatprep.subr.bf16.mxu0 0
    %1694 = vmatpush1.bf16.msra.mxu0 0
    %1695 = vmatprep.subr.bf16.mxu0 0
    %1696 = vmatpush1.bf16.msra.mxu0 0
    %1697 = vmatprep.subr.bf16.mxu0 0
    %1698 = vmatpush1.bf16.msra.mxu0 0
    %1699 = vmatprep.subr.bf16.mxu0 0
    %1700 = vmatpush1.bf16.msra.mxu0 0
    %1701 = vmatprep.subr.bf16.mxu0 0
    %1702 = vmatpush1.bf16.msra.mxu0 0
    %1703 = vmatprep.subr.bf16.mxu0 0
    %1704 = vmatpush1.bf16.msra.mxu0 0
    %1705 = vmatprep.mubr.bf16.mxu0 0
    %1706 = vmatmul.mubr.bf16.gmra.mrb[0].mxu0 %v1668
    %v1707 = vpop.f32.mrb[0].mxu0
    %v1708 = vadd.f32 0.0, %v1707
    %v1709 = vpop.f32.mrb[0].mxu0
    %v1710 = vpop.f32.mrb[0].mxu0
    %v1711 = vpop.f32.mrb[0].mxu0
    %1712 = vdwg.mxu0
    %v1713 = vpack.c.bf16 %v1708, %v1708
    %v1715 = vrot.slane %v1713, 4
    %1717 = vst.msk [vmem:[#allocation3 + $0x8] sm:$0xf0] %vm755, %v1715
    %v1718 = vld [vmem:[#allocation2 + $0x8] sm:$0xf0]
    %v1720 = vrot.slane %v1718, 4
    %1721 = vrot.lane.b32.xlu0 %v1720, 120
    %v1722 = vpop.permute.xlu0 %1721
    %1723 = vrot.lane.b32.xlu0 %v1720, 88
    %v1724 = vpop.permute.xlu0 %1723
    %v1726 = vsel %vm164, %v1722, 0
    %v1729 = vsel %vm164, %v1724, 0
    %1731 = vmatprep.subr.bf16.mxu0 0
    %1732 = vmatpush1.bf16.xpose.msra.mxu0 %v1729
    %1733 = vmatprep.subr.bf16.mxu0 0
    %1734 = vmatpush1.bf16.xpose.msra.mxu0 0
    %1735 = vmatprep.subr.bf16.mxu0 0
    %1736 = vmatpush1.bf16.xpose.msra.mxu0 0
    %1737 = vmatprep.subr.bf16.mxu0 0
    %1738 = vmatpush1.bf16.xpose.msra.mxu0 0
    %1739 = vmatprep.subr.bf16.mxu0 0
    %1740 = vmatpush1.bf16.xpose.msra.mxu0 0
    %1741 = vmatprep.subr.bf16.mxu0 0
    %1742 = vmatpush1.bf16.xpose.msra.mxu0 0
    %1743 = vmatprep.subr.bf16.mxu0 0
    %1744 = vmatpush1.bf16.xpose.msra.mxu0 0
    %1745 = vmatprep.subr.bf16.mxu0 0
    %1746 = vmatpush1.bf16.xpose.msra.mxu0 0
    %1747 = vmatprep.subr.bf16.mxu0 0
    %1748 = vmatpush1.bf16.xpose.msra.mxu0 0
    %1749 = vmatprep.subr.bf16.mxu0 0
    %1750 = vmatpush1.bf16.xpose.msra.mxu0 0
    %1751 = vmatprep.subr.bf16.mxu0 0
    %1752 = vmatpush1.bf16.xpose.msra.mxu0 0
    %1753 = vmatprep.subr.bf16.mxu0 0
    %1754 = vmatpush1.bf16.xpose.msra.mxu0 0
    %1755 = vmatprep.subr.bf16.mxu0 0
    %1756 = vmatpush1.bf16.xpose.msra.mxu0 0
    %1757 = vmatprep.subr.bf16.mxu0 0
    %1758 = vmatpush1.bf16.xpose.msra.mxu0 0
    %1759 = vmatprep.subr.bf16.mxu0 0
    %1760 = vmatpush1.bf16.xpose.msra.mxu0 0
    %1761 = vmatprep.subr.bf16.mxu0 0
    %1762 = vmatpush1.bf16.xpose.msra.mxu0 0
    %1763 = vmatprep.mubr.bf16.mxu0 0
    %1764 = vmatmul.mubr.bf16.gmra.mrb[0].mxu0 %v1726
    %v1765 = vpop.f32.mrb[0].mxu0
    %v1766 = vadd.f32 %v1601, %v1765
    %v1767 = vpop.f32.mrb[0].mxu0
    %v1768 = vpop.f32.mrb[0].mxu0
    %v1769 = vpop.f32.mrb[0].mxu0
    %1770 = vdwg.mxu0
    %v1771 = vsel %vm164, %v1766, -inf
    %1772 = vmax.xlane.f32.xlu0 %v1771
    %v1773 = vpop.xlane.xlu0 %1772
    %v1774 = vsub.f32 %v1766, %v1773
    %v1775 = vmul.f32 %v1774, 1.442695
    %v1776 = vpow.pop %v1775
    %v1777 = vsel %vm164, %v1776, 0.0
    %1778 = vadd.xlane.f32.xlu0 %v1777
    %v1779 = vpop.xlane.xlu0 %1778
    %v1780 = vrcp.pop %v1779
    %v1781 = vmul.f32 %v1776, %v1780
    %v1782 = vpack.c.bf16 %v1781, %v1781
    %1783 = vrot.lane.b32.xlu0 %v1720, 56
    %v1784 = vpop.permute.xlu0 %1783
    %v1786 = vsel %vm164, %v1782, 0
    %v1789 = vsel %vm228, %v1784, 0
    %1791 = vmatprep.subr.bf16.mxu0 0
    %1792 = vmatpush1.bf16.msra.mxu0 %v1789
    %1793 = vmatprep.subr.bf16.mxu0 0
    %1794 = vmatpush1.bf16.msra.mxu0 0
    %1795 = vmatprep.subr.bf16.mxu0 0
    %1796 = vmatpush1.bf16.msra.mxu0 0
    %1797 = vmatprep.subr.bf16.mxu0 0
    %1798 = vmatpush1.bf16.msra.mxu0 0
    %1799 = vmatprep.subr.bf16.mxu0 0
    %1800 = vmatpush1.bf16.msra.mxu0 0
    %1801 = vmatprep.subr.bf16.mxu0 0
    %1802 = vmatpush1.bf16.msra.mxu0 0
    %1803 = vmatprep.subr.bf16.mxu0 0
    %1804 = vmatpush1.bf16.msra.mxu0 0
    %1805 = vmatprep.subr.bf16.mxu0 0
    %1806 = vmatpush1.bf16.msra.mxu0 0
    %1807 = vmatprep.subr.bf16.mxu0 0
    %1808 = vmatpush1.bf16.msra.mxu0 0
    %1809 = vmatprep.subr.bf16.mxu0 0
    %1810 = vmatpush1.bf16.msra.mxu0 0
    %1811 = vmatprep.subr.bf16.mxu0 0
    %1812 = vmatpush1.bf16.msra.mxu0 0
    %1813 = vmatprep.subr.bf16.mxu0 0
    %1814 = vmatpush1.bf16.msra.mxu0 0
    %1815 = vmatprep.subr.bf16.mxu0 0
    %1816 = vmatpush1.bf16.msra.mxu0 0
    %1817 = vmatprep.subr.bf16.mxu0 0
    %1818 = vmatpush1.bf16.msra.mxu0 0
    %1819 = vmatprep.subr.bf16.mxu0 0
    %1820 = vmatpush1.bf16.msra.mxu0 0
    %1821 = vmatprep.subr.bf16.mxu0 0
    %1822 = vmatpush1.bf16.msra.mxu0 0
    %1823 = vmatprep.mubr.bf16.mxu0 0
    %1824 = vmatmul.mubr.bf16.gmra.mrb[0].mxu0 %v1786
    %v1825 = vpop.f32.mrb[0].mxu0
    %v1826 = vadd.f32 0.0, %v1825
    %v1827 = vpop.f32.mrb[0].mxu0
    %v1828 = vpop.f32.mrb[0].mxu0
    %v1829 = vpop.f32.mrb[0].mxu0
    %1830 = vdwg.mxu0
    %v1831 = vpack.c.bf16 %v1826, %v1826
    %v1833 = vrot.slane %v1831, 4
    %1834 = vrot.lane.b32.xlu0 %v1833, 8
    %v1835 = vpop.permute.xlu0 %1834
    %1837 = vst.msk [vmem:[#allocation3 + $0x8] sm:$0xf0] %vm876, %v1835
    %v1838 = vld [vmem:[#allocation2 + $0x8] sm:$0xf0]
    %v1840 = vrot.slane %v1838, 4
    %1841 = vrot.lane.b32.xlu0 %v1840, 112
    %v1842 = vpop.permute.xlu0 %1841
    %1843 = vrot.lane.b32.xlu0 %v1840, 80
    %v1844 = vpop.permute.xlu0 %1843
    %v1846 = vsel %vm164, %v1842, 0
    %v1849 = vsel %vm164, %v1844, 0
    %1851 = vmatprep.subr.bf16.mxu0 0
    %1852 = vmatpush1.bf16.xpose.msra.mxu0 %v1849
    %1853 = vmatprep.subr.bf16.mxu0 0
    %1854 = vmatpush1.bf16.xpose.msra.mxu0 0
    %1855 = vmatprep.subr.bf16.mxu0 0
    %1856 = vmatpush1.bf16.xpose.msra.mxu0 0
    %1857 = vmatprep.subr.bf16.mxu0 0
    %1858 = vmatpush1.bf16.xpose.msra.mxu0 0
    %1859 = vmatprep.subr.bf16.mxu0 0
    %1860 = vmatpush1.bf16.xpose.msra.mxu0 0
    %1861 = vmatprep.subr.bf16.mxu0 0
    %1862 = vmatpush1.bf16.xpose.msra.mxu0 0
    %1863 = vmatprep.subr.bf16.mxu0 0
    %1864 = vmatpush1.bf16.xpose.msra.mxu0 0
    %1865 = vmatprep.subr.bf16.mxu0 0
    %1866 = vmatpush1.bf16.xpose.msra.mxu0 0
    %1867 = vmatprep.subr.bf16.mxu0 0
    %1868 = vmatpush1.bf16.xpose.msra.mxu0 0
    %1869 = vmatprep.subr.bf16.mxu0 0
    %1870 = vmatpush1.bf16.xpose.msra.mxu0 0
    %1871 = vmatprep.subr.bf16.mxu0 0
    %1872 = vmatpush1.bf16.xpose.msra.mxu0 0
    %1873 = vmatprep.subr.bf16.mxu0 0
    %1874 = vmatpush1.bf16.xpose.msra.mxu0 0
    %1875 = vmatprep.subr.bf16.mxu0 0
    %1876 = vmatpush1.bf16.xpose.msra.mxu0 0
    %1877 = vmatprep.subr.bf16.mxu0 0
    %1878 = vmatpush1.bf16.xpose.msra.mxu0 0
    %1879 = vmatprep.subr.bf16.mxu0 0
    %1880 = vmatpush1.bf16.xpose.msra.mxu0 0
    %1881 = vmatprep.subr.bf16.mxu0 0
    %1882 = vmatpush1.bf16.xpose.msra.mxu0 0
    %1883 = vmatprep.mubr.bf16.mxu0 0
    %1884 = vmatmul.mubr.bf16.gmra.mrb[0].mxu0 %v1846
    %v1885 = vpop.f32.mrb[0].mxu0
    %v1886 = vadd.f32 %v1601, %v1885
    %v1887 = vpop.f32.mrb[0].mxu0
    %v1888 = vpop.f32.mrb[0].mxu0
    %v1889 = vpop.f32.mrb[0].mxu0
    %1890 = vdwg.mxu0
    %v1891 = vsel %vm164, %v1886, -inf
    %1892 = vmax.xlane.f32.xlu0 %v1891
    %v1893 = vpop.xlane.xlu0 %1892
    %v1894 = vsub.f32 %v1886, %v1893
    %v1895 = vmul.f32 %v1894, 1.442695
    %v1896 = vpow.pop %v1895
    %v1897 = vsel %vm164, %v1896, 0.0
    %1898 = vadd.xlane.f32.xlu0 %v1897
    %v1899 = vpop.xlane.xlu0 %1898
    %v1900 = vrcp.pop %v1899
    %v1901 = vmul.f32 %v1896, %v1900
    %v1902 = vpack.c.bf16 %v1901, %v1901
    %1903 = vrot.lane.b32.xlu0 %v1840, 48
    %v1904 = vpop.permute.xlu0 %1903
    %v1906 = vsel %vm164, %v1902, 0
    %v1909 = vsel %vm228, %v1904, 0
    %1911 = vmatprep.subr.bf16.mxu0 0
    %1912 = vmatpush1.bf16.msra.mxu0 %v1909
    %1913 = vmatprep.subr.bf16.mxu0 0
    %1914 = vmatpush1.bf16.msra.mxu0 0
    %1915 = vmatprep.subr.bf16.mxu0 0
    %1916 = vmatpush1.bf16.msra.mxu0 0
    %1917 = vmatprep.subr.bf16.mxu0 0
    %1918 = vmatpush1.bf16.msra.mxu0 0
    %1919 = vmatprep.subr.bf16.mxu0 0
    %1920 = vmatpush1.bf16.msra.mxu0 0
    %1921 = vmatprep.subr.bf16.mxu0 0
    %1922 = vmatpush1.bf16.msra.mxu0 0
    %1923 = vmatprep.subr.bf16.mxu0 0
    %1924 = vmatpush1.bf16.msra.mxu0 0
    %1925 = vmatprep.subr.bf16.mxu0 0
    %1926 = vmatpush1.bf16.msra.mxu0 0
    %1927 = vmatprep.subr.bf16.mxu0 0
    %1928 = vmatpush1.bf16.msra.mxu0 0
    %1929 = vmatprep.subr.bf16.mxu0 0
    %1930 = vmatpush1.bf16.msra.mxu0 0
    %1931 = vmatprep.subr.bf16.mxu0 0
    %1932 = vmatpush1.bf16.msra.mxu0 0
    %1933 = vmatprep.subr.bf16.mxu0 0
    %1934 = vmatpush1.bf16.msra.mxu0 0
    %1935 = vmatprep.subr.bf16.mxu0 0
    %1936 = vmatpush1.bf16.msra.mxu0 0
    %1937 = vmatprep.subr.bf16.mxu0 0
    %1938 = vmatpush1.bf16.msra.mxu0 0
    %1939 = vmatprep.subr.bf16.mxu0 0
    %1940 = vmatpush1.bf16.msra.mxu0 0
    %1941 = vmatprep.subr.bf16.mxu0 0
    %1942 = vmatpush1.bf16.msra.mxu0 0
    %1943 = vmatprep.mubr.bf16.mxu0 0
    %1944 = vmatmul.mubr.bf16.gmra.mrb[0].mxu0 %v1906
    %v1945 = vpop.f32.mrb[0].mxu0
    %v1946 = vadd.f32 0.0, %v1945
    %v1947 = vpop.f32.mrb[0].mxu0
    %v1948 = vpop.f32.mrb[0].mxu0
    %v1949 = vpop.f32.mrb[0].mxu0
    %1950 = vdwg.mxu0
    %v1951 = vpack.c.bf16 %v1946, %v1946
    %v1953 = vrot.slane %v1951, 4
    %1954 = vrot.lane.b32.xlu0 %v1953, 16
    %v1955 = vpop.permute.xlu0 %1954
    %1957 = vst.msk [vmem:[#allocation3 + $0x8] sm:$0xf0] %vm997, %v1955
    %v1958 = vld [vmem:[#allocation2 + $0x8] sm:$0xf0]
    %v1960 = vrot.slane %v1958, 4
    %1961 = vrot.lane.b32.xlu0 %v1960, 104
    %v1962 = vpop.permute.xlu0 %1961
    %1963 = vrot.lane.b32.xlu0 %v1960, 72
    %v1964 = vpop.permute.xlu0 %1963
    %v1966 = vsel %vm164, %v1962, 0
    %v1969 = vsel %vm164, %v1964, 0
    %1971 = vmatprep.subr.bf16.mxu0 0
    %1972 = vmatpush1.bf16.xpose.msra.mxu0 %v1969
    %1973 = vmatprep.subr.bf16.mxu0 0
    %1974 = vmatpush1.bf16.xpose.msra.mxu0 0
    %1975 = vmatprep.subr.bf16.mxu0 0
    %1976 = vmatpush1.bf16.xpose.msra.mxu0 0
    %1977 = vmatprep.subr.bf16.mxu0 0
    %1978 = vmatpush1.bf16.xpose.msra.mxu0 0
    %1979 = vmatprep.subr.bf16.mxu0 0
    %1980 = vmatpush1.bf16.xpose.msra.mxu0 0
    %1981 = vmatprep.subr.bf16.mxu0 0
    %1982 = vmatpush1.bf16.xpose.msra.mxu0 0
    %1983 = vmatprep.subr.bf16.mxu0 0
    %1984 = vmatpush1.bf16.xpose.msra.mxu0 0
    %1985 = vmatprep.subr.bf16.mxu0 0
    %1986 = vmatpush1.bf16.xpose.msra.mxu0 0
    %1987 = vmatprep.subr.bf16.mxu0 0
    %1988 = vmatpush1.bf16.xpose.msra.mxu0 0
    %1989 = vmatprep.subr.bf16.mxu0 0
    %1990 = vmatpush1.bf16.xpose.msra.mxu0 0
    %1991 = vmatprep.subr.bf16.mxu0 0
    %1992 = vmatpush1.bf16.xpose.msra.mxu0 0
    %1993 = vmatprep.subr.bf16.mxu0 0
    %1994 = vmatpush1.bf16.xpose.msra.mxu0 0
    %1995 = vmatprep.subr.bf16.mxu0 0
    %1996 = vmatpush1.bf16.xpose.msra.mxu0 0
    %1997 = vmatprep.subr.bf16.mxu0 0
    %1998 = vmatpush1.bf16.xpose.msra.mxu0 0
    %1999 = vmatprep.subr.bf16.mxu0 0
    %2000 = vmatpush1.bf16.xpose.msra.mxu0 0
    %2001 = vmatprep.subr.bf16.mxu0 0
    %2002 = vmatpush1.bf16.xpose.msra.mxu0 0
    %2003 = vmatprep.mubr.bf16.mxu0 0
    %2004 = vmatmul.mubr.bf16.gmra.mrb[0].mxu0 %v1966
    %v2005 = vpop.f32.mrb[0].mxu0
    %v2006 = vadd.f32 %v1601, %v2005
    %v2007 = vpop.f32.mrb[0].mxu0
    %v2008 = vpop.f32.mrb[0].mxu0
    %v2009 = vpop.f32.mrb[0].mxu0
    %2010 = vdwg.mxu0
    %v2011 = vsel %vm164, %v2006, -inf
    %2012 = vmax.xlane.f32.xlu0 %v2011
    %v2013 = vpop.xlane.xlu0 %2012
    %v2014 = vsub.f32 %v2006, %v2013
    %v2015 = vmul.f32 %v2014, 1.442695
    %v2016 = vpow.pop %v2015
    %v2017 = vsel %vm164, %v2016, 0.0
    %2018 = vadd.xlane.f32.xlu0 %v2017
    %v2019 = vpop.xlane.xlu0 %2018
    %v2020 = vrcp.pop %v2019
    %v2021 = vmul.f32 %v2016, %v2020
    %v2022 = vpack.c.bf16 %v2021, %v2021
    %2023 = vrot.lane.b32.xlu0 %v1960, 40
    %v2024 = vpop.permute.xlu0 %2023
    %v2026 = vsel %vm164, %v2022, 0
    %v2029 = vsel %vm228, %v2024, 0
    %2031 = vmatprep.subr.bf16.mxu0 0
    %2032 = vmatpush1.bf16.msra.mxu0 %v2029
    %2033 = vmatprep.subr.bf16.mxu0 0
    %2034 = vmatpush1.bf16.msra.mxu0 0
    %2035 = vmatprep.subr.bf16.mxu0 0
    %2036 = vmatpush1.bf16.msra.mxu0 0
    %2037 = vmatprep.subr.bf16.mxu0 0
    %2038 = vmatpush1.bf16.msra.mxu0 0
    %2039 = vmatprep.subr.bf16.mxu0 0
    %2040 = vmatpush1.bf16.msra.mxu0 0
    %2041 = vmatprep.subr.bf16.mxu0 0
    %2042 = vmatpush1.bf16.msra.mxu0 0
    %2043 = vmatprep.subr.bf16.mxu0 0
    %2044 = vmatpush1.bf16.msra.mxu0 0
    %2045 = vmatprep.subr.bf16.mxu0 0
    %2046 = vmatpush1.bf16.msra.mxu0 0
    %2047 = vmatprep.subr.bf16.mxu0 0
    %2048 = vmatpush1.bf16.msra.mxu0 0
    %2049 = vmatprep.subr.bf16.mxu0 0
    %2050 = vmatpush1.bf16.msra.mxu0 0
    %2051 = vmatprep.subr.bf16.mxu0 0
    %2052 = vmatpush1.bf16.msra.mxu0 0
    %2053 = vmatprep.subr.bf16.mxu0 0
    %2054 = vmatpush1.bf16.msra.mxu0 0
    %2055 = vmatprep.subr.bf16.mxu0 0
    %2056 = vmatpush1.bf16.msra.mxu0 0
    %2057 = vmatprep.subr.bf16.mxu0 0
    %2058 = vmatpush1.bf16.msra.mxu0 0
    %2059 = vmatprep.subr.bf16.mxu0 0
    %2060 = vmatpush1.bf16.msra.mxu0 0
    %2061 = vmatprep.subr.bf16.mxu0 0
    %2062 = vmatpush1.bf16.msra.mxu0 0
    %2063 = vmatprep.mubr.bf16.mxu0 0
    %2064 = vmatmul.mubr.bf16.gmra.mrb[0].mxu0 %v2026
    %v2065 = vpop.f32.mrb[0].mxu0
    %v2066 = vadd.f32 0.0, %v2065
    %v2067 = vpop.f32.mrb[0].mxu0
    %v2068 = vpop.f32.mrb[0].mxu0
    %v2069 = vpop.f32.mrb[0].mxu0
    %2070 = vdwg.mxu0
    %v2071 = vpack.c.bf16 %v2066, %v2066
    %v2073 = vrot.slane %v2071, 4
    %2074 = vrot.lane.b32.xlu0 %v2073, 24
    %v2075 = vpop.permute.xlu0 %2074
    %2077 = vst.msk [vmem:[#allocation3 + $0x8] sm:$0xf0] %vm1118, %v2075
    %v2078 = vld [vmem:[#allocation3] sm:$0xff]
    %v2079 = vld [vmem:[#allocation3 + $0x8] sm:$0xff]
    %v2080 = vld [vmem:[%s4] sm:$0xf]
    %v2081 = vld [vmem:[%s4 + $0x4] sm:$0xf]
    %v2082 = vld [vmem:[%s4 + $0x8] sm:$0xf]
    %v2083 = vld [vmem:[%s4 + $0xc] sm:$0xf]
    %v2084 = vld [vmem:[%s5] sm:$0x1]
    %v2086 = vlaneseq
    %v2087 = vshrl.u32 %v2086, 7
    %v2088 = vsub.s32 0, %v2087
    %v2089 = vrot.slane %v2084, %v2088
    %v2095 = vunpack.c.l.b16 %v2080
    %v2096 = vunpack.c.l.b16 %v2081
    %v2097 = vunpack.c.l.b16 %v2082
    %v2098 = vunpack.c.l.b16 %v2083
    %v2099 = vpack.c.b16 %v2096, %v2095
    %v2100 = vpack.c.b16 %v2098, %v2097
    %v2104 = vsel %vm92, %v2078, 0
    %v2107 = vsel %vm92, %v2079, 0
    %2109 = vmatprep.subr.bf16.mxu0 0
    %2110 = vmatpush1.bf16.msra.mxu0 %v2099
    %2111 = vmatprep.subr.bf16.mxu0 0
    %2112 = vmatpush1.bf16.msra.mxu0 %v2100
    %2113 = vmatprep.subr.bf16.mxu0 0
    %2114 = vmatpush1.bf16.msra.mxu0 0
    %2115 = vmatprep.subr.bf16.mxu0 0
    %2116 = vmatpush1.bf16.msra.mxu0 0
    %2117 = vmatprep.subr.bf16.mxu0 0
    %2118 = vmatpush1.bf16.msra.mxu0 0
    %2119 = vmatprep.subr.bf16.mxu0 0
    %2120 = vmatpush1.bf16.msra.mxu0 0
    %2121 = vmatprep.subr.bf16.mxu0 0
    %2122 = vmatpush1.bf16.msra.mxu0 0
    %2123 = vmatprep.subr.bf16.mxu0 0
    %2124 = vmatpush1.bf16.msra.mxu0 0
    %2125 = vmatprep.subr.bf16.mxu0 0
    %2126 = vmatpush1.bf16.msra.mxu0 0
    %2127 = vmatprep.subr.bf16.mxu0 0
    %2128 = vmatpush1.bf16.msra.mxu0 0
    %2129 = vmatprep.subr.bf16.mxu0 0
    %2130 = vmatpush1.bf16.msra.mxu0 0
    %2131 = vmatprep.subr.bf16.mxu0 0
    %2132 = vmatpush1.bf16.msra.mxu0 0
    %2133 = vmatprep.subr.bf16.mxu0 0
    %2134 = vmatpush1.bf16.msra.mxu0 0
    %2135 = vmatprep.subr.bf16.mxu0 0
    %2136 = vmatpush1.bf16.msra.mxu0 0
    %2137 = vmatprep.subr.bf16.mxu0 0
    %2138 = vmatpush1.bf16.msra.mxu0 0
    %2139 = vmatprep.subr.bf16.mxu0 0
    %2140 = vmatpush1.bf16.msra.mxu0 0
    %2141 = vmatprep.mubr.bf16.mxu0 0
    %2142 = vmatmul.mubr.bf16.gmra.mrb[0].mxu0 %v2104
    %v2143 = vpop.f32.mrb[0].mxu0
    %v2144 = vadd.f32 %v2089, %v2143
    %v2145 = vpop.f32.mrb[0].mxu0
    %v2146 = vpop.f32.mrb[0].mxu0
    %v2147 = vadd.f32 %v2089, %v2146
    %v2148 = vpop.f32.mrb[0].mxu0
    %2149 = vmatprep.mubr.bf16.mxu0 0
    %2150 = vmatmul.mubr.bf16.gmra.mrb[0].mxu0 %v2107
    %v2151 = vpop.f32.mrb[0].mxu0
    %v2152 = vadd.f32 %v2089, %v2151
    %v2153 = vpop.f32.mrb[0].mxu0
    %v2154 = vpop.f32.mrb[0].mxu0
    %v2155 = vadd.f32 %v2089, %v2154
    %v2156 = vpop.f32.mrb[0].mxu0
    %2157 = vdwg.mxu0
    %v2158 = vadd.f32 %v2144, %v63
    %v2159 = vadd.f32 %v2147, %v64
    %v2160 = vadd.f32 %v2152, %v65
    %v2161 = vadd.f32 %v2155, %v66
    %v2162 = vld [vmem:[%s6] sm:$0x1]
    %v2163 = vld [vmem:[%s7] sm:$0x1]
    %v2164 = vsel %vm92, %v2158, 0.0
    %2165 = vadd.xlane.f32.xlu0 %v2164
    %v2166 = vpop.xlane.xlu0 %2165
    %v2167 = vsel %vm92, %v2159, 0.0
    %2168 = vadd.xlane.f32.xlu0 %v2167
    %v2169 = vpop.xlane.xlu0 %2168
    %v2170 = vsel %vm92, %v2160, 0.0
    %2171 = vadd.xlane.f32.xlu0 %v2170
    %v2172 = vpop.xlane.xlu0 %2171
    %v2173 = vsel %vm92, %v2161, 0.0
    %2174 = vadd.xlane.f32.xlu0 %v2173
    %v2175 = vpop.xlane.xlu0 %2174
    %v2176 = vrcp.pop 32.0
    %v2177 = vmul.f32 %v2166, %v2176
    %v2178 = vmul.f32 %v2169, %v2176
    %v2179 = vmul.f32 %v2172, %v2176
    %v2180 = vmul.f32 %v2175, %v2176
    %v2181 = vsub.f32 %v2158, %v2177
    %v2182 = vsub.f32 %v2159, %v2178
    %v2183 = vsub.f32 %v2160, %v2179
    %v2184 = vsub.f32 %v2161, %v2180
    %v2185 = vmul.f32 %v2181, %v2181
    %v2186 = vmul.f32 %v2182, %v2182
    %v2187 = vmul.f32 %v2183, %v2183
    %v2188 = vmul.f32 %v2184, %v2184
    %v2189 = vsel %vm92, %v2185, 0.0
    %2190 = vadd.xlane.f32.xlu0 %v2189
    %v2191 = vpop.xlane.xlu0 %2190
    %v2192 = vsel %vm92, %v2186, 0.0
    %2193 = vadd.xlane.f32.xlu0 %v2192
    %v2194 = vpop.xlane.xlu0 %2193
    %v2195 = vsel %vm92, %v2187, 0.0
    %2196 = vadd.xlane.f32.xlu0 %v2195
    %v2197 = vpop.xlane.xlu0 %2196
    %v2198 = vsel %vm92, %v2188, 0.0
    %2199 = vadd.xlane.f32.xlu0 %v2198
    %v2200 = vpop.xlane.xlu0 %2199
    %v2201 = vmul.f32 %v2191, %v2176
    %v2202 = vmul.f32 %v2194, %v2176
    %v2203 = vmul.f32 %v2197, %v2176
    %v2204 = vmul.f32 %v2200, %v2176
    %v2205 = vadd.f32 %v2201, 1e-05
    %v2206 = vadd.f32 %v2202, 1e-05
    %v2207 = vadd.f32 %v2203, 1e-05
    %v2208 = vadd.f32 %v2204, 1e-05
    %v2209 = vrsqrt.pop %v2205
    %v2210 = vrsqrt.pop %v2206
    %v2211 = vrsqrt.pop %v2207
    %v2212 = vrsqrt.pop %v2208
    %v2213 = vmul.f32 %v2181, %v2209
    %v2214 = vmul.f32 %v2182, %v2210
    %v2215 = vmul.f32 %v2183, %v2211
    %v2216 = vmul.f32 %v2184, %v2212
    %v2218 = vlaneseq
    %v2219 = vshrl.u32 %v2218, 7
    %v2220 = vsub.s32 0, %v2219
    %v2221 = vrot.slane %v2162, %v2220
    %v2223 = vmul.f32 %v2213, %v2221
    %v2224 = vmul.f32 %v2214, %v2221
    %v2225 = vmul.f32 %v2215, %v2221
    %v2226 = vmul.f32 %v2216, %v2221
    %v2228 = vlaneseq
    %v2229 = vshrl.u32 %v2228, 7
    %v2230 = vsub.s32 0, %v2229
    %v2231 = vrot.slane %v2163, %v2230
    %v2233 = vadd.f32 %v2223, %v2231
    %v2234 = vadd.f32 %v2224, %v2231
    %v2235 = vadd.f32 %v2225, %v2231
    %v2236 = vadd.f32 %v2226, %v2231
    %v2237 = vpack.c.bf16 %v2234, %v2233
    %v2238 = vpack.c.bf16 %v2236, %v2235
    %v2239 = vld [vmem:[%s8] sm:$0xf]
    %v2240 = vld [vmem:[%s8 + $0x4] sm:$0xf]
    %v2241 = vld [vmem:[%s8 + $0x8] sm:$0xf]
    %v2242 = vld [vmem:[%s8 + $0xc] sm:$0xf]
    %v2243 = vld [vmem:[%s9] sm:$0x1]
    %v2245 = vlaneseq
    %v2246 = vshrl.u32 %v2245, 7
    %v2247 = vsub.s32 0, %v2246
    %v2248 = vrot.slane %v2243, %v2247
    %v2254 = vunpack.c.l.b16 %v2239
    %v2255 = vunpack.c.l.b16 %v2240
    %v2256 = vunpack.c.l.b16 %v2241
    %v2257 = vunpack.c.l.b16 %v2242
    %v2258 = vpack.c.b16 %v2255, %v2254
    %v2259 = vpack.c.b16 %v2257, %v2256
    %v2263 = vsel %vm92, %v2237, 0
    %v2266 = vsel %vm92, %v2238, 0
    %2268 = vmatprep.subr.bf16.mxu0 0
    %2269 = vmatpush1.bf16.msra.mxu0 %v2258
    %2270 = vmatprep.subr.bf16.mxu0 0
    %2271 = vmatpush1.bf16.msra.mxu0 %v2259
    %2272 = vmatprep.subr.bf16.mxu0 0
    %2273 = vmatpush1.bf16.msra.mxu0 0
    %2274 = vmatprep.subr.bf16.mxu0 0
    %2275 = vmatpush1.bf16.msra.mxu0 0
    %2276 = vmatprep.subr.bf16.mxu0 0
    %2277 = vmatpush1.bf16.msra.mxu0 0
    %2278 = vmatprep.subr.bf16.mxu0 0
    %2279 = vmatpush1.bf16.msra.mxu0 0
    %2280 = vmatprep.subr.bf16.mxu0 0
    %2281 = vmatpush1.bf16.msra.mxu0 0
    %2282 = vmatprep.subr.bf16.mxu0 0
    %2283 = vmatpush1.bf16.msra.mxu0 0
    %2284 = vmatprep.subr.bf16.mxu0 0
    %2285 = vmatpush1.bf16.msra.mxu0 0
    %2286 = vmatprep.subr.bf16.mxu0 0
    %2287 = vmatpush1.bf16.msra.mxu0 0
    %2288 = vmatprep.subr.bf16.mxu0 0
    %2289 = vmatpush1.bf16.msra.mxu0 0
    %2290 = vmatprep.subr.bf16.mxu0 0
    %2291 = vmatpush1.bf16.msra.mxu0 0
    %2292 = vmatprep.subr.bf16.mxu0 0
    %2293 = vmatpush1.bf16.msra.mxu0 0
    %2294 = vmatprep.subr.bf16.mxu0 0
    %2295 = vmatpush1.bf16.msra.mxu0 0
    %2296 = vmatprep.subr.bf16.mxu0 0
    %2297 = vmatpush1.bf16.msra.mxu0 0
    %2298 = vmatprep.subr.bf16.mxu0 0
    %2299 = vmatpush1.bf16.msra.mxu0 0
    %2300 = vmatprep.mubr.bf16.mxu0 0
    %2301 = vmatmul.mubr.bf16.gmra.mrb[0].mxu0 %v2263
    %v2302 = vpop.f32.mrb[0].mxu0
    %v2303 = vadd.f32 %v2248, %v2302
    %v2304 = vpop.f32.mrb[0].mxu0
    %v2305 = vpop.f32.mrb[0].mxu0
    %v2306 = vadd.f32 %v2248, %v2305
    %v2307 = vpop.f32.mrb[0].mxu0
    %2308 = vmatprep.mubr.bf16.mxu0 0
    %2309 = vmatmul.mubr.bf16.gmra.mrb[0].mxu0 %v2266
    %v2310 = vpop.f32.mrb[0].mxu0
    %v2311 = vadd.f32 %v2248, %v2310
    %v2312 = vpop.f32.mrb[0].mxu0
    %v2313 = vpop.f32.mrb[0].mxu0
    %v2314 = vadd.f32 %v2248, %v2313
    %v2315 = vpop.f32.mrb[0].mxu0
    %2316 = vdwg.mxu0
    %v2317 = vmul.f32 %v2303, 0.5
    %v2318 = vmul.f32 %v2306, 0.5
    %v2319 = vmul.f32 %v2311, 0.5
    %v2320 = vmul.f32 %v2314, 0.5
    %v2321 = vmul.f32 %v2303, 0.70710677
    %v2322 = vmul.f32 %v2306, 0.70710677
    %v2323 = vmul.f32 %v2311, 0.70710677
    %v2324 = vmul.f32 %v2314, 0.70710677
    %v2325 = verf.f32.pop %v2321
    %v2326 = verf.f32.pop %v2322
    %v2327 = verf.f32.pop %v2323
    %v2328 = verf.f32.pop %v2324
    %v2329 = vadd.f32 %v2325, 1.0
    %v2330 = vadd.f32 %v2326, 1.0
    %v2331 = vadd.f32 %v2327, 1.0
    %v2332 = vadd.f32 %v2328, 1.0
    %v2333 = vmul.f32 %v2317, %v2329
    %v2334 = vmul.f32 %v2318, %v2330
    %v2335 = vmul.f32 %v2319, %v2331
    %v2336 = vmul.f32 %v2320, %v2332
    %v2337 = vpack.c.bf16 %v2334, %v2333
    %v2338 = vpack.c.bf16 %v2336, %v2335
    %v2339 = vld [vmem:[%s10] sm:$0xf]
    %v2340 = vld [vmem:[%s10 + $0x4] sm:$0xf]
    %v2341 = vld [vmem:[%s10 + $0x8] sm:$0xf]
    %v2342 = vld [vmem:[%s10 + $0xc] sm:$0xf]
    %v2343 = vld [vmem:[%s10 + $0x10] sm:$0xf]
    %v2344 = vld [vmem:[%s10 + $0x14] sm:$0xf]
    %v2345 = vld [vmem:[%s10 + $0x18] sm:$0xf]
    %v2346 = vld [vmem:[%s10 + $0x1c] sm:$0xf]
    %v2347 = vld [vmem:[%s10 + $0x20] sm:$0xf]
    %v2348 = vld [vmem:[%s10 + $0x24] sm:$0xf]
    %v2349 = vld [vmem:[%s10 + $0x28] sm:$0xf]
    %v2350 = vld [vmem:[%s10 + $0x2c] sm:$0xf]
    %v2351 = vld [vmem:[%s10 + $0x30] sm:$0xf]
    %v2352 = vld [vmem:[%s10 + $0x34] sm:$0xf]
    %v2353 = vld [vmem:[%s10 + $0x38] sm:$0xf]
    %v2354 = vld [vmem:[%s10 + $0x3c] sm:$0xf]
    %v2355 = vld [vmem:[%s11] sm:$0x1]
    %v2357 = vlaneseq
    %v2358 = vshrl.u32 %v2357, 7
    %v2359 = vsub.s32 0, %v2358
    %v2360 = vrot.slane %v2355, %v2359
    %v2378 = vunpack.c.l.b16 %v2339
    %v2379 = vunpack.c.l.b16 %v2340
    %v2380 = vunpack.c.l.b16 %v2341
    %v2381 = vunpack.c.l.b16 %v2342
    %v2382 = vunpack.c.l.b16 %v2343
    %v2383 = vunpack.c.l.b16 %v2344
    %v2384 = vunpack.c.l.b16 %v2345
    %v2385 = vunpack.c.l.b16 %v2346
    %v2386 = vunpack.c.l.b16 %v2347
    %v2387 = vunpack.c.l.b16 %v2348
    %v2388 = vunpack.c.l.b16 %v2349
    %v2389 = vunpack.c.l.b16 %v2350
    %v2390 = vunpack.c.l.b16 %v2351
    %v2391 = vunpack.c.l.b16 %v2352
    %v2392 = vunpack.c.l.b16 %v2353
    %v2393 = vunpack.c.l.b16 %v2354
    %v2394 = vpack.c.b16 %v2379, %v2378
    %v2395 = vpack.c.b16 %v2381, %v2380
    %v2396 = vpack.c.b16 %v2383, %v2382
    %v2397 = vpack.c.b16 %v2385, %v2384
    %v2398 = vpack.c.b16 %v2387, %v2386
    %v2399 = vpack.c.b16 %v2389, %v2388
    %v2400 = vpack.c.b16 %v2391, %v2390
    %v2401 = vpack.c.b16 %v2393, %v2392
    %2410 = vmatprep.subr.bf16.mxu0 0
    %2411 = vmatpush1.bf16.msra.mxu0 %v2394
    %2412 = vmatprep.subr.bf16.mxu0 0
    %2413 = vmatpush1.bf16.msra.mxu0 %v2395
    %2414 = vmatprep.subr.bf16.mxu0 0
    %2415 = vmatpush1.bf16.msra.mxu0 %v2396
    %2416 = vmatprep.subr.bf16.mxu0 0
    %2417 = vmatpush1.bf16.msra.mxu0 %v2397
    %2418 = vmatprep.subr.bf16.mxu0 0
    %2419 = vmatpush1.bf16.msra.mxu0 %v2398
    %2420 = vmatprep.subr.bf16.mxu0 0
    %2421 = vmatpush1.bf16.msra.mxu0 %v2399
    %2422 = vmatprep.subr.bf16.mxu0 0
    %2423 = vmatpush1.bf16.msra.mxu0 %v2400
    %2424 = vmatprep.subr.bf16.mxu0 0
    %2425 = vmatpush1.bf16.msra.mxu0 %v2401
    %2426 = vmatprep.subr.bf16.mxu0 0
    %2427 = vmatpush1.bf16.msra.mxu0 0
    %2428 = vmatprep.subr.bf16.mxu0 0
    %2429 = vmatpush1.bf16.msra.mxu0 0
    %2430 = vmatprep.subr.bf16.mxu0 0
    %2431 = vmatpush1.bf16.msra.mxu0 0
    %2432 = vmatprep.subr.bf16.mxu0 0
    %2433 = vmatpush1.bf16.msra.mxu0 0
    %2434 = vmatprep.subr.bf16.mxu0 0
    %2435 = vmatpush1.bf16.msra.mxu0 0
    %2436 = vmatprep.subr.bf16.mxu0 0
    %2437 = vmatpush1.bf16.msra.mxu0 0
    %2438 = vmatprep.subr.bf16.mxu0 0
    %2439 = vmatpush1.bf16.msra.mxu0 0
    %2440 = vmatprep.subr.bf16.mxu0 0
    %2441 = vmatpush1.bf16.msra.mxu0 0
    %2442 = vmatprep.mubr.bf16.mxu0 0
    %2443 = vmatmul.mubr.bf16.gmra.mrb[0].mxu0 %v2337
    %v2444 = vpop.f32.mrb[0].mxu0
    %v2445 = vadd.f32 %v2360, %v2444
    %v2446 = vpop.f32.mrb[0].mxu0
    %v2447 = vpop.f32.mrb[0].mxu0
    %v2448 = vadd.f32 %v2360, %v2447
    %v2449 = vpop.f32.mrb[0].mxu0
    %2450 = vmatprep.mubr.bf16.mxu0 0
    %2451 = vmatmul.mubr.bf16.gmra.mrb[0].mxu0 %v2338
    %v2452 = vpop.f32.mrb[0].mxu0
    %v2453 = vadd.f32 %v2360, %v2452
    %v2454 = vpop.f32.mrb[0].mxu0
    %v2455 = vpop.f32.mrb[0].mxu0
    %v2456 = vadd.f32 %v2360, %v2455
    %v2457 = vpop.f32.mrb[0].mxu0
    %2458 = vdwg.mxu0
    %v2459 = vadd.f32 %v2445, %v2233
    %v2460 = vadd.f32 %v2448, %v2234
    %v2461 = vadd.f32 %v2453, %v2235
    %v2462 = vadd.f32 %v2456, %v2236
    %v2463 = vld [vmem:[%s12] sm:$0x1]
    %v2464 = vld [vmem:[%s13] sm:$0x1]
    %v2465 = vsel %vm92, %v2459, 0.0
    %2466 = vadd.xlane.f32.xlu0 %v2465
    %v2467 = vpop.xlane.xlu0 %2466
    %v2468 = vsel %vm92, %v2460, 0.0
    %2469 = vadd.xlane.f32.xlu0 %v2468
    %v2470 = vpop.xlane.xlu0 %2469
    %v2471 = vsel %vm92, %v2461, 0.0
    %2472 = vadd.xlane.f32.xlu0 %v2471
    %v2473 = vpop.xlane.xlu0 %2472
    %v2474 = vsel %vm92, %v2462, 0.0
    %2475 = vadd.xlane.f32.xlu0 %v2474
    %v2476 = vpop.xlane.xlu0 %2475
    %v2477 = vmul.f32 %v2467, %v2176
    %v2478 = vmul.f32 %v2470, %v2176
    %v2479 = vmul.f32 %v2473, %v2176
    %v2480 = vmul.f32 %v2476, %v2176
    %v2481 = vsub.f32 %v2459, %v2477
    %v2482 = vsub.f32 %v2460, %v2478
    %v2483 = vsub.f32 %v2461, %v2479
    %v2484 = vsub.f32 %v2462, %v2480
    %v2485 = vmul.f32 %v2481, %v2481
    %v2486 = vmul.f32 %v2482, %v2482
    %v2487 = vmul.f32 %v2483, %v2483
    %v2488 = vmul.f32 %v2484, %v2484
    %v2489 = vsel %vm92, %v2485, 0.0
    %2490 = vadd.xlane.f32.xlu0 %v2489
    %v2491 = vpop.xlane.xlu0 %2490
    %v2492 = vsel %vm92, %v2486, 0.0
    %2493 = vadd.xlane.f32.xlu0 %v2492
    %v2494 = vpop.xlane.xlu0 %2493
    %v2495 = vsel %vm92, %v2487, 0.0
    %2496 = vadd.xlane.f32.xlu0 %v2495
    %v2497 = vpop.xlane.xlu0 %2496
    %v2498 = vsel %vm92, %v2488, 0.0
    %2499 = vadd.xlane.f32.xlu0 %v2498
    %v2500 = vpop.xlane.xlu0 %2499
    %v2501 = vmul.f32 %v2491, %v2176
    %v2502 = vmul.f32 %v2494, %v2176
    %v2503 = vmul.f32 %v2497, %v2176
    %v2504 = vmul.f32 %v2500, %v2176
    %v2505 = vadd.f32 %v2501, 1e-05
    %v2506 = vadd.f32 %v2502, 1e-05
    %v2507 = vadd.f32 %v2503, 1e-05
    %v2508 = vadd.f32 %v2504, 1e-05
    %v2509 = vrsqrt.pop %v2505
    %v2510 = vrsqrt.pop %v2506
    %v2511 = vrsqrt.pop %v2507
    %v2512 = vrsqrt.pop %v2508
    %v2513 = vmul.f32 %v2481, %v2509
    %v2514 = vmul.f32 %v2482, %v2510
    %v2515 = vmul.f32 %v2483, %v2511
    %v2516 = vmul.f32 %v2484, %v2512
    %v2518 = vlaneseq
    %v2519 = vshrl.u32 %v2518, 7
    %v2520 = vsub.s32 0, %v2519
    %v2521 = vrot.slane %v2463, %v2520
    %v2523 = vmul.f32 %v2513, %v2521
    %v2524 = vmul.f32 %v2514, %v2521
    %v2525 = vmul.f32 %v2515, %v2521
    %v2526 = vmul.f32 %v2516, %v2521
    %v2528 = vlaneseq
    %v2529 = vshrl.u32 %v2528, 7
    %v2530 = vsub.s32 0, %v2529
    %v2531 = vrot.slane %v2464, %v2530
    %v2533 = vadd.f32 %v2523, %v2531
    %v2534 = vadd.f32 %v2524, %v2531
    %v2535 = vadd.f32 %v2525, %v2531
    %v2536 = vadd.f32 %v2526, %v2531
    %2537 = vst.msk [vmem:[#allocation7] sm:$0xff] %vm92, %v2533
    %2538 = vst.msk [vmem:[#allocation7 + $0x8] sm:$0xff] %vm92, %v2534
    %2539 = vst.msk [vmem:[#allocation7 + $0x10] sm:$0xff] %vm92, %v2535
    %2540 = vst.msk [vmem:[#allocation7 + $0x18] sm:$0xff] %vm92, %v2536
    // Predicated region
    $region62: #{tpu_custom_call.1} parent=1 // pred_check
      _
    $region63: #{tpu_custom_call.1} parent=1 // pred_check_branch
      %2542 = sbr.rel (0) target = $region65
    $region64: #{tpu_custom_call.1} parent=1 // pred_region
      %s2544 = ssub.s32 512, 512
      %2545 = vsyncadd [#allocation6], %s2544
      %s2546 = sshll.u32 [#allocation7], 4
      %s2547 = int_to_ptr.vmem [resolvable:$true] %s2546
      %2552 = dma.vmem_to_hbm [thread:$0]  %s2547, 512, %s14, [#allocation6], 128, 128, 8
    $region65: #{tpu_custom_call.1} parent=1 // pred_fallthru
      _
    // Predicated region
    $region66: #{tpu_custom_call.1} parent=1 // pred_check
      _
    $region67: #{tpu_custom_call.1} parent=1 // pred_check_branch
      %2554 = sbr.rel (0) target = $region69
    $region68: #{tpu_custom_call.1} parent=1 // pred_region
      %2555 = dma.done [#allocation6], 512
    $region69: #{tpu_custom_call.1} parent=1 // pred_fallthru
      _
    %2556 = vsyncpa [#allocation5], 1
    %2557 = vsyncpa [#allocation6], 1

// kernel: tpu_custom_call.1
$region0: #{tpu_custom_call.1}
  #allocation0 [shape = 'u32[]', space=smem, size = 0x4, offset = 0x4, fixed_abs, tag = 'smem constant byte address 0x4 - core index']
  #allocation1 [shape = 'u32[144,128]{1,0:T(1,128)}', space=vmem, size = 0x12000, scoped, tag = 'internal scratch']
  #allocation2 [shape = 'bf16[32,96]{1,0:T(16,128)(2,1)}', space=vmem, size = 0x2000, scoped, tag = 'scratch operand']
  #allocation3 [shape = 'bf16[32,32]{1,0:T(16,128)(2,1)}', space=vmem, size = 0x2000, scoped, tag = 'scratch operand']
  %s0 = inlined_call_operand.hbm [shape: f32[4,1,8], index: 0, kind: input, shape index: {}]
  %s1 = inlined_call_operand.vmem [shape: f32[32,32], index: 1, kind: input, shape index: {}]
  %s2 = inlined_call_operand.vmem [shape: bf16[32,96], index: 2, kind: input, shape index: {}]
  %s3 = inlined_call_operand.vmem [shape: f32[1,96], index: 3, kind: input, shape index: {}]
  %s4 = inlined_call_operand.vmem [shape: bf16[32,32], index: 4, kind: input, shape index: {}]
  %s5 = inlined_call_operand.vmem [shape: f32[1,32], index: 5, kind: input, shape index: {}]
  %s6 = inlined_call_operand.vmem [shape: f32[1,32], index: 6, kind: input, shape index: {}]
  %s7 = inlined_call_operand.vmem [shape: f32[1,32], index: 7, kind: input, shape index: {}]
  %s8 = inlined_call_operand.vmem [shape: bf16[32,128], index: 8, kind: input, shape index: {}]
  %s9 = inlined_call_operand.vmem [shape: f32[1,128], index: 9, kind: input, shape index: {}]
  %s10 = inlined_call_operand.vmem [shape: bf16[128,32], index: 10, kind: input, shape index: {}]
  %s11 = inlined_call_operand.vmem [shape: f32[1,32], index: 11, kind: input, shape index: {}]
  %s12 = inlined_call_operand.vmem [shape: f32[1,32], index: 12, kind: input, shape index: {}]
  %s13 = inlined_call_operand.vmem [shape: f32[1,32], index: 13, kind: input, shape index: {}]
  %s14 = inlined_call_operand.hbm [shape: f32[32,32], index: 14, kind: output, shape index: {}]
  %s15 = sld [smem:[#allocation0]]
  $region70: #{tpu_custom_call.1} parent=0
    _
  %s17 = ssub.s32 1, %s15
  %s18 = scalar_select 0, %s17, %s15
  $region1: #{tpu_custom_call.1} parent=0
    #allocation4 [shape = 'u8[2048]{0}', space=vmem, size = 0x800, scoped, tag = 'input window, operand 0, single buffered']
    #allocation5 [shape = 's32[1]{0}', space=sflag, size = 0x4, scoped, tag = 'scoped memory for tpu_custom_call.1']
    #allocation6 [shape = 's32[1]{0}', space=sflag, size = 0x4, scoped, tag = 'scoped memory for tpu_custom_call.1']
    #allocation7 [shape = 'u8[16384]{0}', space=vmem, size = 0x4000, scoped, tag = 'output window, operand 0, single buffered']
    %19 = vsyncpa [#allocation5], 0
    %20 = vsyncpa [#allocation6], 0
    // Predicated region
    $region2: #{tpu_custom_call.1} parent=1 // pred_check
      _
    $region3: #{tpu_custom_call.1} parent=1 // pred_check_branch
      %22 = sbr.rel (0) target = $region5
    $region4: #{tpu_custom_call.1} parent=1 // pred_region
      %s24 = ssub.s32 64, 64
      %25 = vsyncadd [#allocation5], %s24
      %s26 = sshll.u32 [#allocation4], 4
      %s27 = int_to_ptr.vmem [resolvable:$true] %s26
      %32 = dma.hbm_to_vmem [thread:$0]  %s0, 64, %s27, [#allocation5], 16, 16, 1
    $region5: #{tpu_custom_call.1} parent=1 // pred_fallthru
      _
    // Predicated region
    $region6: #{tpu_custom_call.1} parent=1 // pred_check
      _
    $region7: #{tpu_custom_call.1} parent=1 // pred_check_branch
      %34 = sbr.rel (0) target = $region9
    $region8: #{tpu_custom_call.1} parent=1 // pred_region
      _
    $region9: #{tpu_custom_call.1} parent=1 // pred_fallthru
      _
    // Predicated region
    $region10: #{tpu_custom_call.1} parent=1 // pred_check
      _
    $region11: #{tpu_custom_call.1} parent=1 // pred_check_branch
      %36 = sbr.rel (0) target = $region13
    $region12: #{tpu_custom_call.1} parent=1 // pred_region
      _
    $region13: #{tpu_custom_call.1} parent=1 // pred_fallthru
      _
    // Predicated region
    $region14: #{tpu_custom_call.1} parent=1 // pred_check
      _
    $region15: #{tpu_custom_call.1} parent=1 // pred_check_branch
      %38 = sbr.rel (0) target = $region17
    $region16: #{tpu_custom_call.1} parent=1 // pred_region
      _
    $region17: #{tpu_custom_call.1} parent=1 // pred_fallthru
      _
    // Predicated region
    $region18: #{tpu_custom_call.1} parent=1 // pred_check
      _
    $region19: #{tpu_custom_call.1} parent=1 // pred_check_branch
      %40 = sbr.rel (0) target = $region21
    $region20: #{tpu_custom_call.1} parent=1 // pred_region
      _
    $region21: #{tpu_custom_call.1} parent=1 // pred_fallthru
      _
    // Predicated region
    $region22: #{tpu_custom_call.1} parent=1 // pred_check
      _
    $region23: #{tpu_custom_call.1} parent=1 // pred_check_branch
      %42 = sbr.rel (0) target = $region25
    $region24: #{tpu_custom_call.1} parent=1 // pred_region
      _
    $region25: #{tpu_custom_call.1} parent=1 // pred_fallthru
      _
    // Predicated region
    $region26: #{tpu_custom_call.1} parent=1 // pred_check
      _
    $region27: #{tpu_custom_call.1} parent=1 // pred_check_branch
      %44 = sbr.rel (0) target = $region29
    $region28: #{tpu_custom_call.1} parent=1 // pred_region
      _
    $region29: #{tpu_custom_call.1} parent=1 // pred_fallthru
      _
    // Predicated region
    $region30: #{tpu_custom_call.1} parent=1 // pred_check
      _
    $region31: #{tpu_custom_call.1} parent=1 // pred_check_branch
      %46 = sbr.rel (0) target = $region33
    $region32: #{tpu_custom_call.1} parent=1 // pred_region
      _
    $region33: #{tpu_custom_call.1} parent=1 // pred_fallthru
      _
    // Predicated region
    $region34: #{tpu_custom_call.1} parent=1 // pred_check
      _
    $region35: #{tpu_custom_call.1} parent=1 // pred_check_branch
      %48 = sbr.rel (0) target = $region37
    $region36: #{tpu_custom_call.1} parent=1 // pred_region
      _
    $region37: #{tpu_custom_call.1} parent=1 // pred_fallthru
      _
    // Predicated region
    $region38: #{tpu_custom_call.1} parent=1 // pred_check
      _
    $region39: #{tpu_custom_call.1} parent=1 // pred_check_branch
      %50 = sbr.rel (0) target = $region41
    $region40: #{tpu_custom_call.1} parent=1 // pred_region
      _
    $region41: #{tpu_custom_call.1} parent=1 // pred_fallthru
      _
    // Predicated region
    $region42: #{tpu_custom_call.1} parent=1 // pred_check
      _
    $region43: #{tpu_custom_call.1} parent=1 // pred_check_branch
      %52 = sbr.rel (0) target = $region45
    $region44: #{tpu_custom_call.1} parent=1 // pred_region
      _
    $region45: #{tpu_custom_call.1} parent=1 // pred_fallthru
      _
    // Predicated region
    $region46: #{tpu_custom_call.1} parent=1 // pred_check
      _
    $region47: #{tpu_custom_call.1} parent=1 // pred_check_branch
      %54 = sbr.rel (0) target = $region49
    $region48: #{tpu_custom_call.1} parent=1 // pred_region
      _
    $region49: #{tpu_custom_call.1} parent=1 // pred_fallthru
      _
    // Predicated region
    $region50: #{tpu_custom_call.1} parent=1 // pred_check
      _
    $region51: #{tpu_custom_call.1} parent=1 // pred_check_branch
      %56 = sbr.rel (0) target = $region53
    $region52: #{tpu_custom_call.1} parent=1 // pred_region
      _
    $region53: #{tpu_custom_call.1} parent=1 // pred_fallthru
      _
    // Predicated region
    $region54: #{tpu_custom_call.1} parent=1 // pred_check
      _
    $region55: #{tpu_custom_call.1} parent=1 // pred_check_branch
      %58 = sbr.rel (0) target = $region57
    $region56: #{tpu_custom_call.1} parent=1 // pred_region
      _
    $region57: #{tpu_custom_call.1} parent=1 // pred_fallthru
      _
    // Predicated region
    $region58: #{tpu_custom_call.1} parent=1 // pred_check
      _
    $region59: #{tpu_custom_call.1} parent=1 // pred_check_branch
      %60 = sbr.rel (0) target = $region61
    $region60: #{tpu_custom_call.1} parent=1 // pred_region
      %61 = dma.done [#allocation5], 64
    $region61: #{tpu_custom_call.1} parent=1 // pred_fallthru
      _
    %v63 = vld [vmem:[%s1] sm:$0xff]
    %v64 = vld [vmem:[%s1 + $0x8] sm:$0xff]
    %v65 = vld [vmem:[%s1 + $0x10] sm:$0xff]
    %v66 = vld [vmem:[%s1 + $0x18] sm:$0xff]
    %v67 = vpack.c.bf16 %v64, %v63
    %v68 = vpack.c.bf16 %v66, %v65
    %v69 = vld [vmem:[%s2] sm:$0xf]
    %v70 = vld [vmem:[%s2 + $0x4] sm:$0xf]
    %v71 = vld [vmem:[%s2 + $0x8] sm:$0xf]
    %v72 = vld [vmem:[%s2 + $0xc] sm:$0xf]
    %v73 = vld [vmem:[%s3] sm:$0x1]
    %v75 = vlaneseq
    %v76 = vshrl.u32 %v75, 7
    %v77 = vsub.s32 0, %v76
    %v78 = vrot.slane %v73, %v77
    %v84 = vunpack.c.l.b16 %v69
    %v85 = vunpack.c.l.b16 %v70
    %v86 = vunpack.c.l.b16 %v71
    %v87 = vunpack.c.l.b16 %v72
    %v88 = vpack.c.b16 %v85, %v84
    %v89 = vpack.c.b16 %v87, %v86
    %vm92 = vcmask 261120
    %v94 = vsel %vm92, %v67, 0
    %v97 = vsel %vm92, %v68, 0
    %99 = vmatprep.subr.bf16.mxu0 0
    %100 = vmatpush1.bf16.msra.mxu0 %v88
    %101 = vmatprep.subr.bf16.mxu0 0
    %102 = vmatpush1.bf16.msra.mxu0 %v89
    %103 = vmatprep.subr.bf16.mxu0 0
    %104 = vmatpush1.bf16.msra.mxu0 0
    %105 = vmatprep.subr.bf16.mxu0 0
    %106 = vmatpush1.bf16.msra.mxu0 0
    %107 = vmatprep.subr.bf16.mxu0 0
    %108 = vmatpush1.bf16.msra.mxu0 0
    %109 = vmatprep.subr.bf16.mxu0 0
    %110 = vmatpush1.bf16.msra.mxu0 0
    %111 = vmatprep.subr.bf16.mxu0 0
    %112 = vmatpush1.bf16.msra.mxu0 0
    %113 = vmatprep.subr.bf16.mxu0 0
    %114 = vmatpush1.bf16.msra.mxu0 0
    %115 = vmatprep.subr.bf16.mxu0 0
    %116 = vmatpush1.bf16.msra.mxu0 0
    %117 = vmatprep.subr.bf16.mxu0 0
    %118 = vmatpush1.bf16.msra.mxu0 0
    %119 = vmatprep.subr.bf16.mxu0 0
    %120 = vmatpush1.bf16.msra.mxu0 0
    %121 = vmatprep.subr.bf16.mxu0 0
    %122 = vmatpush1.bf16.msra.mxu0 0
    %123 = vmatprep.subr.bf16.mxu0 0
    %124 = vmatpush1.bf16.msra.mxu0 0
    %125 = vmatprep.subr.bf16.mxu0 0
    %126 = vmatpush1.bf16.msra.mxu0 0
    %127 = vmatprep.subr.bf16.mxu0 0
    %128 = vmatpush1.bf16.msra.mxu0 0
    %129 = vmatprep.subr.bf16.mxu0 0
    %130 = vmatpush1.bf16.msra.mxu0 0
    %131 = vmatprep.mubr.bf16.mxu0 0
    %132 = vmatmul.mubr.bf16.gmra.mrb[0].mxu0 %v94
    %v133 = vpop.f32.mrb[0].mxu0
    %v134 = vadd.f32 %v78, %v133
    %v135 = vpop.f32.mrb[0].mxu0
    %v136 = vpop.f32.mrb[0].mxu0
    %v137 = vadd.f32 %v78, %v136
    %v138 = vpop.f32.mrb[0].mxu0
    %139 = vmatprep.mubr.bf16.mxu0 0
    %140 = vmatmul.mubr.bf16.gmra.mrb[0].mxu0 %v97
    %v141 = vpop.f32.mrb[0].mxu0
    %v142 = vadd.f32 %v78, %v141
    %v143 = vpop.f32.mrb[0].mxu0
    %v144 = vpop.f32.mrb[0].mxu0
    %v145 = vadd.f32 %v78, %v144
    %v146 = vpop.f32.mrb[0].mxu0
    %147 = vdwg.mxu0
    %v148 = vpack.c.bf16 %v137, %v134
    %v149 = vpack.c.bf16 %v145, %v142
    %vm150 = vcmask 785408
    %151 = vst.msk [vmem:[#allocation2] sm:$0xff] %vm150, %v148
    %152 = vst.msk [vmem:[#allocation2 + $0x8] sm:$0xff] %vm150, %v149
    %v153 = vld [vmem:[#allocation4] sm:$0x1]
    %v154 = vld [vmem:[#allocation2] sm:$0xf]
    %v156 = vlaneseq
    %v157 = vshrl.u32 %v156, 7
    %v158 = vsub.s32 0, %v157
    %v159 = vrot.slane %v153, %v158
    %162 = vrot.lane.b32.xlu0 %v154, 96
    %v163 = vpop.permute.xlu0 %162
    %vm164 = vcmask 64512
    %v166 = vsel %vm164, %v154, 0
    %v169 = vsel %vm164, %v163, 0
    %171 = vmatprep.subr.bf16.mxu0 0
    %172 = vmatpush1.bf16.xpose.msra.mxu0 %v169
    %173 = vmatprep.subr.bf16.mxu0 0
    %174 = vmatpush1.bf16.xpose.msra.mxu0 0
    %175 = vmatprep.subr.bf16.mxu0 0
    %176 = vmatpush1.bf16.xpose.msra.mxu0 0
    %177 = vmatprep.subr.bf16.mxu0 0
    %178 = vmatpush1.bf16.xpose.msra.mxu0 0
    %179 = vmatprep.subr.bf16.mxu0 0
    %180 = vmatpush1.bf16.xpose.msra.mxu0 0
    %181 = vmatprep.subr.bf16.mxu0 0
    %182 = vmatpush1.bf16.xpose.msra.mxu0 0
    %183 = vmatprep.subr.bf16.mxu0 0
    %184 = vmatpush1.bf16.xpose.msra.mxu0 0
    %185 = vmatprep.subr.bf16.mxu0 0
    %186 = vmatpush1.bf16.xpose.msra.mxu0 0
    %187 = vmatprep.subr.bf16.mxu0 0
    %188 = vmatpush1.bf16.xpose.msra.mxu0 0
    %189 = vmatprep.subr.bf16.mxu0 0
    %190 = vmatpush1.bf16.xpose.msra.mxu0 0
    %191 = vmatprep.subr.bf16.mxu0 0
    %192 = vmatpush1.bf16.xpose.msra.mxu0 0
    %193 = vmatprep.subr.bf16.mxu0 0
    %194 = vmatpush1.bf16.xpose.msra.mxu0 0
    %195 = vmatprep.subr.bf16.mxu0 0
    %196 = vmatpush1.bf16.xpose.msra.mxu0 0
    %197 = vmatprep.subr.bf16.mxu0 0
    %198 = vmatpush1.bf16.xpose.msra.mxu0 0
    %199 = vmatprep.subr.bf16.mxu0 0
    %200 = vmatpush1.bf16.xpose.msra.mxu0 0
    %201 = vmatprep.subr.bf16.mxu0 0
    %202 = vmatpush1.bf16.xpose.msra.mxu0 0
    %203 = vmatprep.mubr.bf16.mxu0 0
    %204 = vmatmul.mubr.bf16.gmra.mrb[0].mxu0 %v166
    %v205 = vpop.f32.mrb[0].mxu0
    %v206 = vadd.f32 %v159, %v205
    %v207 = vpop.f32.mrb[0].mxu0
    %v208 = vpop.f32.mrb[0].mxu0
    %v209 = vpop.f32.mrb[0].mxu0
    %210 = vdwg.mxu0
    %v211 = vsel %vm164, %v206, -inf
    %212 = vmax.xlane.f32.xlu0 %v211
    %v213 = vpop.xlane.xlu0 %212
    %v214 = vsub.f32 %v206, %v213
    %v215 = vmul.f32 %v214, 1.442695
    %v216 = vpow.pop %v215
    %v217 = vsel %vm164, %v216, 0.0
    %218 = vadd.xlane.f32.xlu0 %v217
    %v219 = vpop.xlane.xlu0 %218
    %v220 = vrcp.pop %v219
    %v221 = vmul.f32 %v216, %v220
    %v222 = vpack.c.bf16 %v221, %v221
    %223 = vrot.lane.b32.xlu0 %v154, 64
    %v224 = vpop.permute.xlu0 %223
    %v226 = vsel %vm164, %v222, 0
    %vm228 = vcmask 1043456
    %v230 = vsel %vm228, %v224, 0
    %232 = vmatprep.subr.bf16.mxu0 0
    %233 = vmatpush1.bf16.msra.mxu0 %v230
    %234 = vmatprep.subr.bf16.mxu0 0
    %235 = vmatpush1.bf16.msra.mxu0 0
    %236 = vmatprep.subr.bf16.mxu0 0
    %237 = vmatpush1.bf16.msra.mxu0 0
    %238 = vmatprep.subr.bf16.mxu0 0
    %239 = vmatpush1.bf16.msra.mxu0 0
    %240 = vmatprep.subr.bf16.mxu0 0
    %241 = vmatpush1.bf16.msra.mxu0 0
    %242 = vmatprep.subr.bf16.mxu0 0
    %243 = vmatpush1.bf16.msra.mxu0 0
    %244 = vmatprep.subr.bf16.mxu0 0
    %245 = vmatpush1.bf16.msra.mxu0 0
    %246 = vmatprep.subr.bf16.mxu0 0
    %247 = vmatpush1.bf16.msra.mxu0 0
    %248 = vmatprep.subr.bf16.mxu0 0
    %249 = vmatpush1.bf16.msra.mxu0 0
    %250 = vmatprep.subr.bf16.mxu0 0
    %251 = vmatpush1.bf16.msra.mxu0 0
    %252 = vmatprep.subr.bf16.mxu0 0
    %253 = vmatpush1.bf16.msra.mxu0 0
    %254 = vmatprep.subr.bf16.mxu0 0
    %255 = vmatpush1.bf16.msra.mxu0 0
    %256 = vmatprep.subr.bf16.mxu0 0
    %257 = vmatpush1.bf16.msra.mxu0 0
    %258 = vmatprep.subr.bf16.mxu0 0
    %259 = vmatpush1.bf16.msra.mxu0 0
    %260 = vmatprep.subr.bf16.mxu0 0
    %261 = vmatpush1.bf16.msra.mxu0 0
    %262 = vmatprep.subr.bf16.mxu0 0
    %263 = vmatpush1.bf16.msra.mxu0 0
    %264 = vmatprep.mubr.bf16.mxu0 0
    %265 = vmatmul.mubr.bf16.gmra.mrb[0].mxu0 %v226
    %v266 = vpop.f32.mrb[0].mxu0
    %v267 = vadd.f32 0.0, %v266
    %v268 = vpop.f32.mrb[0].mxu0
    %v269 = vpop.f32.mrb[0].mxu0
    %v270 = vpop.f32.mrb[0].mxu0
    %271 = vdwg.mxu0
    %v272 = vpack.c.bf16 %v267, %v267
    %vm273 = vcmask 60416
    %274 = vst.msk [vmem:[#allocation3] sm:$0xf] %vm273, %v272
    %v275 = vld [vmem:[#allocation2] sm:$0xf]
    %277 = vrot.lane.b32.xlu0 %v275, 120
    %v278 = vpop.permute.xlu0 %277
    %279 = vrot.lane.b32.xlu0 %v275, 88
    %v280 = vpop.permute.xlu0 %279
    %v282 = vsel %vm164, %v278, 0
    %v285 = vsel %vm164, %v280, 0
    %287 = vmatprep.subr.bf16.mxu0 0
    %288 = vmatpush1.bf16.xpose.msra.mxu0 %v285
    %289 = vmatprep.subr.bf16.mxu0 0
    %290 = vmatpush1.bf16.xpose.msra.mxu0 0
    %291 = vmatprep.subr.bf16.mxu0 0
    %292 = vmatpush1.bf16.xpose.msra.mxu0 0
    %293 = vmatprep.subr.bf16.mxu0 0
    %294 = vmatpush1.bf16.xpose.msra.mxu0 0
    %295 = vmatprep.subr.bf16.mxu0 0
    %296 = vmatpush1.bf16.xpose.msra.mxu0 0
    %297 = vmatprep.subr.bf16.mxu0 0
    %298 = vmatpush1.bf16.xpose.msra.mxu0 0
    %299 = vmatprep.subr.bf16.mxu0 0
    %300 = vmatpush1.bf16.xpose.msra.mxu0 0
    %301 = vmatprep.subr.bf16.mxu0 0
    %302 = vmatpush1.bf16.xpose.msra.mxu0 0
    %303 = vmatprep.subr.bf16.mxu0 0
    %304 = vmatpush1.bf16.xpose.msra.mxu0 0
    %305 = vmatprep.subr.bf16.mxu0 0
    %306 = vmatpush1.bf16.xpose.msra.mxu0 0
    %307 = vmatprep.subr.bf16.mxu0 0
    %308 = vmatpush1.bf16.xpose.msra.mxu0 0
    %309 = vmatprep.subr.bf16.mxu0 0
    %310 = vmatpush1.bf16.xpose.msra.mxu0 0
    %311 = vmatprep.subr.bf16.mxu0 0
    %312 = vmatpush1.bf16.xpose.msra.mxu0 0
    %313 = vmatprep.subr.bf16.mxu0 0
    %314 = vmatpush1.bf16.xpose.msra.mxu0 0
    %315 = vmatprep.subr.bf16.mxu0 0
    %316 = vmatpush1.bf16.xpose.msra.mxu0 0
    %317 = vmatprep.subr.bf16.mxu0 0
    %318 = vmatpush1.bf16.xpose.msra.mxu0 0
    %319 = vmatprep.mubr.bf16.mxu0 0
    %320 = vmatmul.mubr.bf16.gmra.mrb[0].mxu0 %v282
    %v321 = vpop.f32.mrb[0].mxu0
    %v322 = vadd.f32 %v159, %v321
    %v323 = vpop.f32.mrb[0].mxu0
    %v324 = vpop.f32.mrb[0].mxu0
    %v325 = vpop.f32.mrb[0].mxu0
    %326 = vdwg.mxu0
    %v327 = vsel %vm164, %v322, -inf
    %328 = vmax.xlane.f32.xlu0 %v327
    %v329 = vpop.xlane.xlu0 %328
    %v330 = vsub.f32 %v322, %v329
    %v331 = vmul.f32 %v330, 1.442695
    %v332 = vpow.pop %v331
    %v333 = vsel %vm164, %v332, 0.0
    %334 = vadd.xlane.f32.xlu0 %v333
    %v335 = vpop.xlane.xlu0 %334
    %v336 = vrcp.pop %v335
    %v337 = vmul.f32 %v332, %v336
    %v338 = vpack.c.bf16 %v337, %v337
    %339 = vrot.lane.b32.xlu0 %v275, 56
    %v340 = vpop.permute.xlu0 %339
    %v342 = vsel %vm164, %v338, 0
    %v345 = vsel %vm228, %v340, 0
    %347 = vmatprep.subr.bf16.mxu0 0
    %348 = vmatpush1.bf16.msra.mxu0 %v345
    %349 = vmatprep.subr.bf16.mxu0 0
    %350 = vmatpush1.bf16.msra.mxu0 0
    %351 = vmatprep.subr.bf16.mxu0 0
    %352 = vmatpush1.bf16.msra.mxu0 0
    %353 = vmatprep.subr.bf16.mxu0 0
    %354 = vmatpush1.bf16.msra.mxu0 0
    %355 = vmatprep.subr.bf16.mxu0 0
    %356 = vmatpush1.bf16.msra.mxu0 0
    %357 = vmatprep.subr.bf16.mxu0 0
    %358 = vmatpush1.bf16.msra.mxu0 0
    %359 = vmatprep.subr.bf16.mxu0 0
    %360 = vmatpush1.bf16.msra.mxu0 0
    %361 = vmatprep.subr.bf16.mxu0 0
    %362 = vmatpush1.bf16.msra.mxu0 0
    %363 = vmatprep.subr.bf16.mxu0 0
    %364 = vmatpush1.bf16.msra.mxu0 0
    %365 = vmatprep.subr.bf16.mxu0 0
    %366 = vmatpush1.bf16.msra.mxu0 0
    %367 = vmatprep.subr.bf16.mxu0 0
    %368 = vmatpush1.bf16.msra.mxu0 0
    %369 = vmatprep.subr.bf16.mxu0 0
    %370 = vmatpush1.bf16.msra.mxu0 0
    %371 = vmatprep.subr.bf16.mxu0 0
    %372 = vmatpush1.bf16.msra.mxu0 0
    %373 = vmatprep.subr.bf16.mxu0 0
    %374 = vmatpush1.bf16.msra.mxu0 0
    %375 = vmatprep.subr.bf16.mxu0 0
    %376 = vmatpush1.bf16.msra.mxu0 0
    %377 = vmatprep.subr.bf16.mxu0 0
    %378 = vmatpush1.bf16.msra.mxu0 0
    %379 = vmatprep.mubr.bf16.mxu0 0
    %380 = vmatmul.mubr.bf16.gmra.mrb[0].mxu0 %v342
    %v381 = vpop.f32.mrb[0].mxu0
    %v382 = vadd.f32 0.0, %v381
    %v383 = vpop.f32.mrb[0].mxu0
    %v384 = vpop.f32.mrb[0].mxu0
    %v385 = vpop.f32.mrb[0].mxu0
    %386 = vdwg.mxu0
    %v387 = vpack.c.bf16 %v382, %v382
    %389 = vrot.lane.b32.xlu0 %v387, 8
    %v390 = vpop.permute.xlu0 %389
    %vm392 = vcmask 126016
    %393 = vst.msk [vmem:[#allocation3] sm:$0xf] %vm392, %v390
    %v394 = vld [vmem:[#allocation2] sm:$0xf]
    %396 = vrot.lane.b32.xlu0 %v394, 112
    %v397 = vpop.permute.xlu0 %396
    %398 = vrot.lane.b32.xlu0 %v394, 80
    %v399 = vpop.permute.xlu0 %398
    %v401 = vsel %vm164, %v397, 0
    %v404 = vsel %vm164, %v399, 0
    %406 = vmatprep.subr.bf16.mxu0 0
    %407 = vmatpush1.bf16.xpose.msra.mxu0 %v404
    %408 = vmatprep.subr.bf16.mxu0 0
    %409 = vmatpush1.bf16.xpose.msra.mxu0 0
    %410 = vmatprep.subr.bf16.mxu0 0
    %411 = vmatpush1.bf16.xpose.msra.mxu0 0
    %412 = vmatprep.subr.bf16.mxu0 0
    %413 = vmatpush1.bf16.xpose.msra.mxu0 0
    %414 = vmatprep.subr.bf16.mxu0 0
    %415 = vmatpush1.bf16.xpose.msra.mxu0 0
    %416 = vmatprep.subr.bf16.mxu0 0
    %417 = vmatpush1.bf16.xpose.msra.mxu0 0
    %418 = vmatprep.subr.bf16.mxu0 0
    %419 = vmatpush1.bf16.xpose.msra.mxu0 0
    %420 = vmatprep.subr.bf16.mxu0 0
    %421 = vmatpush1.bf16.xpose.msra.mxu0 0
    %422 = vmatprep.subr.bf16.mxu0 0
    %423 = vmatpush1.bf16.xpose.msra.mxu0 0
    %424 = vmatprep.subr.bf16.mxu0 0
    %425 = vmatpush1.bf16.xpose.msra.mxu0 0
    %426 = vmatprep.subr.bf16.mxu0 0
    %427 = vmatpush1.bf16.xpose.msra.mxu0 0
    %428 = vmatprep.subr.bf16.mxu0 0
    %429 = vmatpush1.bf16.xpose.msra.mxu0 0
    %430 = vmatprep.subr.bf16.mxu0 0
    %431 = vmatpush1.bf16.xpose.msra.mxu0 0
    %432 = vmatprep.subr.bf16.mxu0 0
    %433 = vmatpush1.bf16.xpose.msra.mxu0 0
    %434 = vmatprep.subr.bf16.mxu0 0
    %435 = vmatpush1.bf16.xpose.msra.mxu0 0
    %436 = vmatprep.subr.bf16.mxu0 0
    %437 = vmatpush1.bf16.xpose.msra.mxu0 0
    %438 = vmatprep.mubr.bf16.mxu0 0
    %439 = vmatmul.mubr.bf16.gmra.mrb[0].mxu0 %v401
    %v440 = vpop.f32.mrb[0].mxu0
    %v441 = vadd.f32 %v159, %v440
    %v442 = vpop.f32.mrb[0].mxu0
    %v443 = vpop.f32.mrb[0].mxu0
    %v444 = vpop.f32.mrb[0].mxu0
    %445 = vdwg.mxu0
    %v446 = vsel %vm164, %v441, -inf
    %447 = vmax.xlane.f32.xlu0 %v446
    %v448 = vpop.xlane.xlu0 %447
    %v449 = vsub.f32 %v441, %v448
    %v450 = vmul.f32 %v449, 1.442695
    %v451 = vpow.pop %v450
    %v452 = vsel %vm164, %v451, 0.0
    %453 = vadd.xlane.f32.xlu0 %v452
    %v454 = vpop.xlane.xlu0 %453
    %v455 = vrcp.pop %v454
    %v456 = vmul.f32 %v451, %v455
    %v457 = vpack.c.bf16 %v456, %v456
    %458 = vrot.lane.b32.xlu0 %v394, 48
    %v459 = vpop.permute.xlu0 %458
    %v461 = vsel %vm164, %v457, 0
    %v464 = vsel %vm228, %v459, 0
    %466 = vmatprep.subr.bf16.mxu0 0
    %467 = vmatpush1.bf16.msra.mxu0 %v464
    %468 = vmatprep.subr.bf16.mxu0 0
    %469 = vmatpush1.bf16.msra.mxu0 0
    %470 = vmatprep.subr.bf16.mxu0 0
    %471 = vmatpush1.bf16.msra.mxu0 0
    %472 = vmatprep.subr.bf16.mxu0 0
    %473 = vmatpush1.bf16.msra.mxu0 0
    %474 = vmatprep.subr.bf16.mxu0 0
    %475 = vmatpush1.bf16.msra.mxu0 0
    %476 = vmatprep.subr.bf16.mxu0 0
    %477 = vmatpush1.bf16.msra.mxu0 0
    %478 = vmatprep.subr.bf16.mxu0 0
    %479 = vmatpush1.bf16.msra.mxu0 0
    %480 = vmatprep.subr.bf16.mxu0 0
    %481 = vmatpush1.bf16.msra.mxu0 0
    %482 = vmatprep.subr.bf16.mxu0 0
    %483 = vmatpush1.bf16.msra.mxu0 0
    %484 = vmatprep.subr.bf16.mxu0 0
    %485 = vmatpush1.bf16.msra.mxu0 0
    %486 = vmatprep.subr.bf16.mxu0 0
    %487 = vmatpush1.bf16.msra.mxu0 0
    %488 = vmatprep.subr.bf16.mxu0 0
    %489 = vmatpush1.bf16.msra.mxu0 0
    %490 = vmatprep.subr.bf16.mxu0 0
    %491 = vmatpush1.bf16.msra.mxu0 0
    %492 = vmatprep.subr.bf16.mxu0 0
    %493 = vmatpush1.bf16.msra.mxu0 0
    %494 = vmatprep.subr.bf16.mxu0 0
    %495 = vmatpush1.bf16.msra.mxu0 0
    %496 = vmatprep.subr.bf16.mxu0 0
    %497 = vmatpush1.bf16.msra.mxu0 0
    %498 = vmatprep.mubr.bf16.mxu0 0
    %499 = vmatmul.mubr.bf16.gmra.mrb[0].mxu0 %v461
    %v500 = vpop.f32.mrb[0].mxu0
    %v501 = vadd.f32 0.0, %v500
    %v502 = vpop.f32.mrb[0].mxu0
    %v503 = vpop.f32.mrb[0].mxu0
    %v504 = vpop.f32.mrb[0].mxu0
    %505 = vdwg.mxu0
    %v506 = vpack.c.bf16 %v501, %v501
    %508 = vrot.lane.b32.xlu0 %v506, 16
    %v509 = vpop.permute.xlu0 %508
    %vm511 = vcmask 191616
    %512 = vst.msk [vmem:[#allocation3] sm:$0xf] %vm511, %v509
    %v513 = vld [vmem:[#allocation2] sm:$0xf]
    %515 = vrot.lane.b32.xlu0 %v513, 104
    %v516 = vpop.permute.xlu0 %515
    %517 = vrot.lane.b32.xlu0 %v513, 72
    %v518 = vpop.permute.xlu0 %517
    %v520 = vsel %vm164, %v516, 0
    %v523 = vsel %vm164, %v518, 0
    %525 = vmatprep.subr.bf16.mxu0 0
    %526 = vmatpush1.bf16.xpose.msra.mxu0 %v523
    %527 = vmatprep.subr.bf16.mxu0 0
    %528 = vmatpush1.bf16.xpose.msra.mxu0 0
    %529 = vmatprep.subr.bf16.mxu0 0
    %530 = vmatpush1.bf16.xpose.msra.mxu0 0
    %531 = vmatprep.subr.bf16.mxu0 0
    %532 = vmatpush1.bf16.xpose.msra.mxu0 0
    %533 = vmatprep.subr.bf16.mxu0 0
    %534 = vmatpush1.bf16.xpose.msra.mxu0 0
    %535 = vmatprep.subr.bf16.mxu0 0
    %536 = vmatpush1.bf16.xpose.msra.mxu0 0
    %537 = vmatprep.subr.bf16.mxu0 0
    %538 = vmatpush1.bf16.xpose.msra.mxu0 0
    %539 = vmatprep.subr.bf16.mxu0 0
    %540 = vmatpush1.bf16.xpose.msra.mxu0 0
    %541 = vmatprep.subr.bf16.mxu0 0
    %542 = vmatpush1.bf16.xpose.msra.mxu0 0
    %543 = vmatprep.subr.bf16.mxu0 0
    %544 = vmatpush1.bf16.xpose.msra.mxu0 0
    %545 = vmatprep.subr.bf16.mxu0 0
    %546 = vmatpush1.bf16.xpose.msra.mxu0 0
    %547 = vmatprep.subr.bf16.mxu0 0
    %548 = vmatpush1.bf16.xpose.msra.mxu0 0
    %549 = vmatprep.subr.bf16.mxu0 0
    %550 = vmatpush1.bf16.xpose.msra.mxu0 0
    %551 = vmatprep.subr.bf16.mxu0 0
    %552 = vmatpush1.bf16.xpose.msra.mxu0 0
    %553 = vmatprep.subr.bf16.mxu0 0
    %554 = vmatpush1.bf16.xpose.msra.mxu0 0
    %555 = vmatprep.subr.bf16.mxu0 0
    %556 = vmatpush1.bf16.xpose.msra.mxu0 0
    %557 = vmatprep.mubr.bf16.mxu0 0
    %558 = vmatmul.mubr.bf16.gmra.mrb[0].mxu0 %v520
    %v559 = vpop.f32.mrb[0].mxu0
    %v560 = vadd.f32 %v159, %v559
    %v561 = vpop.f32.mrb[0].mxu0
    %v562 = vpop.f32.mrb[0].mxu0
    %v563 = vpop.f32.mrb[0].mxu0
    %564 = vdwg.mxu0
    %v565 = vsel %vm164, %v560, -inf
    %566 = vmax.xlane.f32.xlu0 %v565
    %v567 = vpop.xlane.xlu0 %566
    %v568 = vsub.f32 %v560, %v567
    %v569 = vmul.f32 %v568, 1.442695
    %v570 = vpow.pop %v569
    %v571 = vsel %vm164, %v570, 0.0
    %572 = vadd.xlane.f32.xlu0 %v571
    %v573 = vpop.xlane.xlu0 %572
    %v574 = vrcp.pop %v573
    %v575 = vmul.f32 %v570, %v574
    %v576 = vpack.c.bf16 %v575, %v575
    %577 = vrot.lane.b32.xlu0 %v513, 40
    %v578 = vpop.permute.xlu0 %577
    %v580 = vsel %vm164, %v576, 0
    %v583 = vsel %vm228, %v578, 0
    %585 = vmatprep.subr.bf16.mxu0 0
    %586 = vmatpush1.bf16.msra.mxu0 %v583
    %587 = vmatprep.subr.bf16.mxu0 0
    %588 = vmatpush1.bf16.msra.mxu0 0
    %589 = vmatprep.subr.bf16.mxu0 0
    %590 = vmatpush1.bf16.msra.mxu0 0
    %591 = vmatprep.subr.bf16.mxu0 0
    %592 = vmatpush1.bf16.msra.mxu0 0
    %593 = vmatprep.subr.bf16.mxu0 0
    %594 = vmatpush1.bf16.msra.mxu0 0
    %595 = vmatprep.subr.bf16.mxu0 0
    %596 = vmatpush1.bf16.msra.mxu0 0
    %597 = vmatprep.subr.bf16.mxu0 0
    %598 = vmatpush1.bf16.msra.mxu0 0
    %599 = vmatprep.subr.bf16.mxu0 0
    %600 = vmatpush1.bf16.msra.mxu0 0
    %601 = vmatprep.subr.bf16.mxu0 0
    %602 = vmatpush1.bf16.msra.mxu0 0
    %603 = vmatprep.subr.bf16.mxu0 0
    %604 = vmatpush1.bf16.msra.mxu0 0
    %605 = vmatprep.subr.bf16.mxu0 0
    %606 = vmatpush1.bf16.msra.mxu0 0
    %607 = vmatprep.subr.bf16.mxu0 0
    %608 = vmatpush1.bf16.msra.mxu0 0
    %609 = vmatprep.subr.bf16.mxu0 0
    %610 = vmatpush1.bf16.msra.mxu0 0
    %611 = vmatprep.subr.bf16.mxu0 0
    %612 = vmatpush1.bf16.msra.mxu0 0
    %613 = vmatprep.subr.bf16.mxu0 0
    %614 = vmatpush1.bf16.msra.mxu0 0
    %615 = vmatprep.subr.bf16.mxu0 0
    %616 = vmatpush1.bf16.msra.mxu0 0
    %617 = vmatprep.mubr.bf16.mxu0 0
    %618 = vmatmul.mubr.bf16.gmra.mrb[0].mxu0 %v580
    %v619 = vpop.f32.mrb[0].mxu0
    %v620 = vadd.f32 0.0, %v619
    %v621 = vpop.f32.mrb[0].mxu0
    %v622 = vpop.f32.mrb[0].mxu0
    %v623 = vpop.f32.mrb[0].mxu0
    %624 = vdwg.mxu0
    %v625 = vpack.c.bf16 %v620, %v620
    %627 = vrot.lane.b32.xlu0 %v625, 24
    %v628 = vpop.permute.xlu0 %627
    %vm630 = vcmask 257216
    %631 = vst.msk [vmem:[#allocation3] sm:$0xf] %vm630, %v628
    %s632 = scalar_lea.vmem [#allocation4], 1
    %v633 = vld [vmem:[%s632] sm:$0x1]
    %v634 = vld [vmem:[#allocation2] sm:$0xf0]
    %v636 = vlaneseq
    %v637 = vshrl.u32 %v636, 7
    %v638 = vsub.s32 0, %v637
    %v639 = vrot.slane %v633, %v638
    %v642 = vrot.slane %v634, 4
    %643 = vrot.lane.b32.xlu0 %v642, 96
    %v644 = vpop.permute.xlu0 %643
    %v646 = vsel %vm164, %v642, 0
    %v649 = vsel %vm164, %v644, 0
    %651 = vmatprep.subr.bf16.mxu0 0
    %652 = vmatpush1.bf16.xpose.msra.mxu0 %v649
    %653 = vmatprep.subr.bf16.mxu0 0
    %654 = vmatpush1.bf16.xpose.msra.mxu0 0
    %655 = vmatprep.subr.bf16.mxu0 0
    %656 = vmatpush1.bf16.xpose.msra.mxu0 0
    %657 = vmatprep.subr.bf16.mxu0 0
    %658 = vmatpush1.bf16.xpose.msra.mxu0 0
    %659 = vmatprep.subr.bf16.mxu0 0
    %660 = vmatpush1.bf16.xpose.msra.mxu0 0
    %661 = vmatprep.subr.bf16.mxu0 0
    %662 = vmatpush1.bf16.xpose.msra.mxu0 0
    %663 = vmatprep.subr.bf16.mxu0 0
    %664 = vmatpush1.bf16.xpose.msra.mxu0 0
    %665 = vmatprep.subr.bf16.mxu0 0
    %666 = vmatpush1.bf16.xpose.msra.mxu0 0
    %667 = vmatprep.subr.bf16.mxu0 0
    %668 = vmatpush1.bf16.xpose.msra.mxu0 0
    %669 = vmatprep.subr.bf16.mxu0 0
    %670 = vmatpush1.bf16.xpose.msra.mxu0 0
    %671 = vmatprep.subr.bf16.mxu0 0
    %672 = vmatpush1.bf16.xpose.msra.mxu0 0
    %673 = vmatprep.subr.bf16.mxu0 0
    %674 = vmatpush1.bf16.xpose.msra.mxu0 0
    %675 = vmatprep.subr.bf16.mxu0 0
    %676 = vmatpush1.bf16.xpose.msra.mxu0 0
    %677 = vmatprep.subr.bf16.mxu0 0
    %678 = vmatpush1.bf16.xpose.msra.mxu0 0
    %679 = vmatprep.subr.bf16.mxu0 0
    %680 = vmatpush1.bf16.xpose.msra.mxu0 0
    %681 = vmatprep.subr.bf16.mxu0 0
    %682 = vmatpush1.bf16.xpose.msra.mxu0 0
    %683 = vmatprep.mubr.bf16.mxu0 0
    %684 = vmatmul.mubr.bf16.gmra.mrb[0].mxu0 %v646
    %v685 = vpop.f32.mrb[0].mxu0
    %v686 = vadd.f32 %v639, %v685
    %v687 = vpop.f32.mrb[0].mxu0
    %v688 = vpop.f32.mrb[0].mxu0
    %v689 = vpop.f32.mrb[0].mxu0
    %690 = vdwg.mxu0
    %v691 = vsel %vm164, %v686, -inf
    %692 = vmax.xlane.f32.xlu0 %v691
    %v693 = vpop.xlane.xlu0 %692
    %v694 = vsub.f32 %v686, %v693
    %v695 = vmul.f32 %v694, 1.442695
    %v696 = vpow.pop %v695
    %v697 = vsel %vm164, %v696, 0.0
    %698 = vadd.xlane.f32.xlu0 %v697
    %v699 = vpop.xlane.xlu0 %698
    %v700 = vrcp.pop %v699
    %v701 = vmul.f32 %v696, %v700
    %v702 = vpack.c.bf16 %v701, %v701
    %703 = vrot.lane.b32.xlu0 %v642, 64
    %v704 = vpop.permute.xlu0 %703
    %v706 = vsel %vm164, %v702, 0
    %v709 = vsel %vm228, %v704, 0
    %711 = vmatprep.subr.bf16.mxu0 0
    %712 = vmatpush1.bf16.msra.mxu0 %v709
    %713 = vmatprep.subr.bf16.mxu0 0
    %714 = vmatpush1.bf16.msra.mxu0 0
    %715 = vmatprep.subr.bf16.mxu0 0
    %716 = vmatpush1.bf16.msra.mxu0 0
    %717 = vmatprep.subr.bf16.mxu0 0
    %718 = vmatpush1.bf16.msra.mxu0 0
    %719 = vmatprep.subr.bf16.mxu0 0
    %720 = vmatpush1.bf16.msra.mxu0 0
    %721 = vmatprep.subr.bf16.mxu0 0
    %722 = vmatpush1.bf16.msra.mxu0 0
    %723 = vmatprep.subr.bf16.mxu0 0
    %724 = vmatpush1.bf16.msra.mxu0 0
    %725 = vmatprep.subr.bf16.mxu0 0
    %726 = vmatpush1.bf16.msra.mxu0 0
    %727 = vmatprep.subr.bf16.mxu0 0
    %728 = vmatpush1.bf16.msra.mxu0 0
    %729 = vmatprep.subr.bf16.mxu0 0
    %730 = vmatpush1.bf16.msra.mxu0 0
    %731 = vmatprep.subr.bf16.mxu0 0
    %732 = vmatpush1.bf16.msra.mxu0 0
    %733 = vmatprep.subr.bf16.mxu0 0
    %734 = vmatpush1.bf16.msra.mxu0 0
    %735 = vmatprep.subr.bf16.mxu0 0
    %736 = vmatpush1.bf16.msra.mxu0 0
    %737 = vmatprep.subr.bf16.mxu0 0
    %738 = vmatpush1.bf16.msra.mxu0 0
    %739 = vmatprep.subr.bf16.mxu0 0
    %740 = vmatpush1.bf16.msra.mxu0 0
    %741 = vmatprep.subr.bf16.mxu0 0
    %742 = vmatpush1.bf16.msra.mxu0 0
    %743 = vmatprep.mubr.bf16.mxu0 0
    %744 = vmatmul.mubr.bf16.gmra.mrb[0].mxu0 %v706
    %v745 = vpop.f32.mrb[0].mxu0
    %v746 = vadd.f32 0.0, %v745
    %v747 = vpop.f32.mrb[0].mxu0
    %v748 = vpop.f32.mrb[0].mxu0
    %v749 = vpop.f32.mrb[0].mxu0
    %750 = vdwg.mxu0
    %v751 = vpack.c.bf16 %v746, %v746
    %v753 = vrot.slane %v751, 4
    %vm755 = vcmask 64516
    %756 = vst.msk [vmem:[#allocation3] sm:$0xf0] %vm755, %v753
    %v757 = vld [vmem:[#allocation2] sm:$0xf0]
    %v759 = vrot.slane %v757, 4
    %760 = vrot.lane.b32.xlu0 %v759, 120
    %v761 = vpop.permute.xlu0 %760
    %762 = vrot.lane.b32.xlu0 %v759, 88
    %v763 = vpop.permute.xlu0 %762
    %v765 = vsel %vm164, %v761, 0
    %v768 = vsel %vm164, %v763, 0
    %770 = vmatprep.subr.bf16.mxu0 0
    %771 = vmatpush1.bf16.xpose.msra.mxu0 %v768
    %772 = vmatprep.subr.bf16.mxu0 0
    %773 = vmatpush1.bf16.xpose.msra.mxu0 0
    %774 = vmatprep.subr.bf16.mxu0 0
    %775 = vmatpush1.bf16.xpose.msra.mxu0 0
    %776 = vmatprep.subr.bf16.mxu0 0
    %777 = vmatpush1.bf16.xpose.msra.mxu0 0
    %778 = vmatprep.subr.bf16.mxu0 0
    %779 = vmatpush1.bf16.xpose.msra.mxu0 0
    %780 = vmatprep.subr.bf16.mxu0 0
    %781 = vmatpush1.bf16.xpose.msra.mxu0 0
    %782 = vmatprep.subr.bf16.mxu0 0
    %783 = vmatpush1.bf16.xpose.msra.mxu0 0
    %784 = vmatprep.subr.bf16.mxu0 0
    %785 = vmatpush1.bf16.xpose.msra.mxu0 0
    %786 = vmatprep.subr.bf16.mxu0 0
    %787 = vmatpush1.bf16.xpose.msra.mxu0 0
    %788 = vmatprep.subr.bf16.mxu0 0
    %789 = vmatpush1.bf16.xpose.msra.mxu0 0
    %790 = vmatprep.subr.bf16.mxu0 0
    %791 = vmatpush1.bf16.xpose.msra.mxu0 0
    %792 = vmatprep.subr.bf16.mxu0 0
    %793 = vmatpush1.bf16.xpose.msra.mxu0 0
    %794 = vmatprep.subr.bf16.mxu0 0
    %795 = vmatpush1.bf16.xpose.msra.mxu0 0
    %796 = vmatprep.subr.bf16.mxu0 0
    %797 = vmatpush1.bf16.xpose.msra.mxu0 0
    %798 = vmatprep.subr.bf16.mxu0 0
    %799 = vmatpush1.bf16.xpose.msra.mxu0 0
    %800 = vmatprep.subr.bf16.mxu0 0
    %801 = vmatpush1.bf16.xpose.msra.mxu0 0
    %802 = vmatprep.mubr.bf16.mxu0 0
    %803 = vmatmul.mubr.bf16.gmra.mrb[0].mxu0 %v765
    %v804 = vpop.f32.mrb[0].mxu0
    %v805 = vadd.f32 %v639, %v804
    %v806 = vpop.f32.mrb[0].mxu0
    %v807 = vpop.f32.mrb[0].mxu0
    %v808 = vpop.f32.mrb[0].mxu0
    %809 = vdwg.mxu0
    %v810 = vsel %vm164, %v805, -inf
    %811 = vmax.xlane.f32.xlu0 %v810
    %v812 = vpop.xlane.xlu0 %811
    %v813 = vsub.f32 %v805, %v812
    %v814 = vmul.f32 %v813, 1.442695
    %v815 = vpow.pop %v814
    %v816 = vsel %vm164, %v815, 0.0
    %817 = vadd.xlane.f32.xlu0 %v816
    %v818 = vpop.xlane.xlu0 %817
    %v819 = vrcp.pop %v818
    %v820 = vmul.f32 %v815, %v819
    %v821 = vpack.c.bf16 %v820, %v820
    %822 = vrot.lane.b32.xlu0 %v759, 56
    %v823 = vpop.permute.xlu0 %822
    %v825 = vsel %vm164, %v821, 0
    %v828 = vsel %vm228, %v823, 0
    %830 = vmatprep.subr.bf16.mxu0 0
    %831 = vmatpush1.bf16.msra.mxu0 %v828
    %832 = vmatprep.subr.bf16.mxu0 0
    %833 = vmatpush1.bf16.msra.mxu0 0
    %834 = vmatprep.subr.bf16.mxu0 0
    %835 = vmatpush1.bf16.msra.mxu0 0
    %836 = vmatprep.subr.bf16.mxu0 0
    %837 = vmatpush1.bf16.msra.mxu0 0
    %838 = vmatprep.subr.bf16.mxu0 0
    %839 = vmatpush1.bf16.msra.mxu0 0
    %840 = vmatprep.subr.bf16.mxu0 0
    %841 = vmatpush1.bf16.msra.mxu0 0
    %842 = vmatprep.subr.bf16.mxu0 0
    %843 = vmatpush1.bf16.msra.mxu0 0
    %844 = vmatprep.subr.bf16.mxu0 0
    %845 = vmatpush1.bf16.msra.mxu0 0
    %846 = vmatprep.subr.bf16.mxu0 0
    %847 = vmatpush1.bf16.msra.mxu0 0
    %848 = vmatprep.subr.bf16.mxu0 0
    %849 = vmatpush1.bf16.msra.mxu0 0
    %850 = vmatprep.subr.bf16.mxu0 0
    %851 = vmatpush1.bf16.msra.mxu0 0
    %852 = vmatprep.subr.bf16.mxu0 0
    %853 = vmatpush1.bf16.msra.mxu0 0
    %854 = vmatprep.subr.bf16.mxu0 0
    %855 = vmatpush1.bf16.msra.mxu0 0
    %856 = vmatprep.subr.bf16.mxu0 0
    %857 = vmatpush1.bf16.msra.mxu0 0
    %858 = vmatprep.subr.bf16.mxu0 0
    %859 = vmatpush1.bf16.msra.mxu0 0
    %860 = vmatprep.subr.bf16.mxu0 0
    %861 = vmatpush1.bf16.msra.mxu0 0
    %862 = vmatprep.mubr.bf16.mxu0 0
    %863 = vmatmul.mubr.bf16.gmra.mrb[0].mxu0 %v825
    %v864 = vpop.f32.mrb[0].mxu0
    %v865 = vadd.f32 0.0, %v864
    %v866 = vpop.f32.mrb[0].mxu0
    %v867 = vpop.f32.mrb[0].mxu0
    %v868 = vpop.f32.mrb[0].mxu0
    %869 = vdwg.mxu0
    %v870 = vpack.c.bf16 %v865, %v865
    %v872 = vrot.slane %v870, 4
    %873 = vrot.lane.b32.xlu0 %v872, 8
    %v874 = vpop.permute.xlu0 %873
    %vm876 = vcmask 130116
    %877 = vst.msk [vmem:[#allocation3] sm:$0xf0] %vm876, %v874
    %v878 = vld [vmem:[#allocation2] sm:$0xf0]
    %v880 = vrot.slane %v878, 4
    %881 = vrot.lane.b32.xlu0 %v880, 112
    %v882 = vpop.permute.xlu0 %881
    %883 = vrot.lane.b32.xlu0 %v880, 80
    %v884 = vpop.permute.xlu0 %883
    %v886 = vsel %vm164, %v882, 0
    %v889 = vsel %vm164, %v884, 0
    %891 = vmatprep.subr.bf16.mxu0 0
    %892 = vmatpush1.bf16.xpose.msra.mxu0 %v889
    %893 = vmatprep.subr.bf16.mxu0 0
    %894 = vmatpush1.bf16.xpose.msra.mxu0 0
    %895 = vmatprep.subr.bf16.mxu0 0
    %896 = vmatpush1.bf16.xpose.msra.mxu0 0
    %897 = vmatprep.subr.bf16.mxu0 0
    %898 = vmatpush1.bf16.xpose.msra.mxu0 0
    %899 = vmatprep.subr.bf16.mxu0 0
    %900 = vmatpush1.bf16.xpose.msra.mxu0 0
    %901 = vmatprep.subr.bf16.mxu0 0
    %902 = vmatpush1.bf16.xpose.msra.mxu0 0
    %903 = vmatprep.subr.bf16.mxu0 0
    %904 = vmatpush1.bf16.xpose.msra.mxu0 0
    %905 = vmatprep.subr.bf16.mxu0 0
    %906 = vmatpush1.bf16.xpose.msra.mxu0 0
    %907 = vmatprep.subr.bf16.mxu0 0
    %908 = vmatpush1.bf16.xpose.msra.mxu0 0
    %909 = vmatprep.subr.bf16.mxu0 0
    %910 = vmatpush1.bf16.xpose.msra.mxu0 0
    %911 = vmatprep.subr.bf16.mxu0 0
    %912 = vmatpush1.bf16.xpose.msra.mxu0 0
    %913 = vmatprep.subr.bf16.mxu0 0
    %914 = vmatpush1.bf16.xpose.msra.mxu0 0
    %915 = vmatprep.subr.bf16.mxu0 0
    %916 = vmatpush1.bf16.xpose.msra.mxu0 0
    %917 = vmatprep.subr.bf16.mxu0 0
    %918 = vmatpush1.bf16.xpose.msra.mxu0 0
    %919 = vmatprep.subr.bf16.mxu0 0
    %920 = vmatpush1.bf16.xpose.msra.mxu0 0
    %921 = vmatprep.subr.bf16.mxu0 0
    %922 = vmatpush1.bf16.xpose.msra.mxu0 0
    %923 = vmatprep.mubr.bf16.mxu0 0
    %924 = vmatmul.mubr.bf16.gmra.mrb[0].mxu0 %v886
    %v925 = vpop.f32.mrb[0].mxu0
    %v926 = vadd.f32 %v639, %v925
    %v927 = vpop.f32.mrb[0].mxu0
    %v928 = vpop.f32.mrb[0].mxu0
    %v929 = vpop.f32.mrb[0].mxu0
    %930 = vdwg.mxu0
    %v931 = vsel %vm164, %v926, -inf
    %932 = vmax.xlane.f32.xlu0 %v931
    %v933 = vpop.xlane.xlu0 %932
    %v934 = vsub.f32 %v926, %v933
    %v935 = vmul.f32 %v934, 1.442695
    %v936 = vpow.pop %v935
    %v937 = vsel %vm164, %v936, 0.0
    %938 = vadd.xlane.f32.xlu0 %v937
    %v939 = vpop.xlane.xlu0 %938
    %v940 = vrcp.pop %v939
    %v941 = vmul.f32 %v936, %v940
    %v942 = vpack.c.bf16 %v941, %v941
    %943 = vrot.lane.b32.xlu0 %v880, 48
    %v944 = vpop.permute.xlu0 %943
    %v946 = vsel %vm164, %v942, 0
    %v949 = vsel %vm228, %v944, 0
    %951 = vmatprep.subr.bf16.mxu0 0
    %952 = vmatpush1.bf16.msra.mxu0 %v949
    %953 = vmatprep.subr.bf16.mxu0 0
    %954 = vmatpush1.bf16.msra.mxu0 0
    %955 = vmatprep.subr.bf16.mxu0 0
    %956 = vmatpush1.bf16.msra.mxu0 0
    %957 = vmatprep.subr.bf16.mxu0 0
    %958 = vmatpush1.bf16.msra.mxu0 0
    %959 = vmatprep.subr.bf16.mxu0 0
    %960 = vmatpush1.bf16.msra.mxu0 0
    %961 = vmatprep.subr.bf16.mxu0 0
    %962 = vmatpush1.bf16.msra.mxu0 0
    %963 = vmatprep.subr.bf16.mxu0 0
    %964 = vmatpush1.bf16.msra.mxu0 0
    %965 = vmatprep.subr.bf16.mxu0 0
    %966 = vmatpush1.bf16.msra.mxu0 0
    %967 = vmatprep.subr.bf16.mxu0 0
    %968 = vmatpush1.bf16.msra.mxu0 0
    %969 = vmatprep.subr.bf16.mxu0 0
    %970 = vmatpush1.bf16.msra.mxu0 0
    %971 = vmatprep.subr.bf16.mxu0 0
    %972 = vmatpush1.bf16.msra.mxu0 0
    %973 = vmatprep.subr.bf16.mxu0 0
    %974 = vmatpush1.bf16.msra.mxu0 0
    %975 = vmatprep.subr.bf16.mxu0 0
    %976 = vmatpush1.bf16.msra.mxu0 0
    %977 = vmatprep.subr.bf16.mxu0 0
    %978 = vmatpush1.bf16.msra.mxu0 0
    %979 = vmatprep.subr.bf16.mxu0 0
    %980 = vmatpush1.bf16.msra.mxu0 0
    %981 = vmatprep.subr.bf16.mxu0 0
    %982 = vmatpush1.bf16.msra.mxu0 0
    %983 = vmatprep.mubr.bf16.mxu0 0
    %984 = vmatmul.mubr.bf16.gmra.mrb[0].mxu0 %v946
    %v985 = vpop.f32.mrb[0].mxu0
    %v986 = vadd.f32 0.0, %v985
    %v987 = vpop.f32.mrb[0].mxu0
    %v988 = vpop.f32.mrb[0].mxu0
    %v989 = vpop.f32.mrb[0].mxu0
    %990 = vdwg.mxu0
    %v991 = vpack.c.bf16 %v986, %v986
    %v993 = vrot.slane %v991, 4
    %994 = vrot.lane.b32.xlu0 %v993, 16
    %v995 = vpop.permute.xlu0 %994
    %vm997 = vcmask 195716
    %998 = vst.msk [vmem:[#allocation3] sm:$0xf0] %vm997, %v995
    %v999 = vld [vmem:[#allocation2] sm:$0xf0]
    %v1001 = vrot.slane %v999, 4
    %1002 = vrot.lane.b32.xlu0 %v1001, 104
    %v1003 = vpop.permute.xlu0 %1002
    %1004 = vrot.lane.b32.xlu0 %v1001, 72
    %v1005 = vpop.permute.xlu0 %1004
    %v1007 = vsel %vm164, %v1003, 0
    %v1010 = vsel %vm164, %v1005, 0
    %1012 = vmatprep.subr.bf16.mxu0 0
    %1013 = vmatpush1.bf16.xpose.msra.mxu0 %v1010
    %1014 = vmatprep.subr.bf16.mxu0 0
    %1015 = vmatpush1.bf16.xpose.msra.mxu0 0
    %1016 = vmatprep.subr.bf16.mxu0 0
    %1017 = vmatpush1.bf16.xpose.msra.mxu0 0
    %1018 = vmatprep.subr.bf16.mxu0 0
    %1019 = vmatpush1.bf16.xpose.msra.mxu0 0
    %1020 = vmatprep.subr.bf16.mxu0 0
    %1021 = vmatpush1.bf16.xpose.msra.mxu0 0
    %1022 = vmatprep.subr.bf16.mxu0 0
    %1023 = vmatpush1.bf16.xpose.msra.mxu0 0
    %1024 = vmatprep.subr.bf16.mxu0 0
    %1025 = vmatpush1.bf16.xpose.msra.mxu0 0
    %1026 = vmatprep.subr.bf16.mxu0 0
    %1027 = vmatpush1.bf16.xpose.msra.mxu0 0
    %1028 = vmatprep.subr.bf16.mxu0 0
    %1029 = vmatpush1.bf16.xpose.msra.mxu0 0
    %1030 = vmatprep.subr.bf16.mxu0 0
    %1031 = vmatpush1.bf16.xpose.msra.mxu0 0
    %1032 = vmatprep.subr.bf16.mxu0 0
    %1033 = vmatpush1.bf16.xpose.msra.mxu0 0
    %1034 = vmatprep.subr.bf16.mxu0 0
    %1035 = vmatpush1.bf16.xpose.msra.mxu0 0
    %1036 = vmatprep.subr.bf16.mxu0 0
    %1037 = vmatpush1.bf16.xpose.msra.mxu0 0
    %1038 = vmatprep.subr.bf16.mxu0 0
    %1039 = vmatpush1.bf16.xpose.msra.mxu0 0
    %1040 = vmatprep.subr.bf16.mxu0 0
    %1041 = vmatpush1.bf16.xpose.msra.mxu0 0
    %1042 = vmatprep.subr.bf16.mxu0 0
    %1043 = vmatpush1.bf16.xpose.msra.mxu0 0
    %1044 = vmatprep.mubr.bf16.mxu0 0
    %1045 = vmatmul.mubr.bf16.gmra.mrb[0].mxu0 %v1007
    %v1046 = vpop.f32.mrb[0].mxu0
    %v1047 = vadd.f32 %v639, %v1046
    %v1048 = vpop.f32.mrb[0].mxu0
    %v1049 = vpop.f32.mrb[0].mxu0
    %v1050 = vpop.f32.mrb[0].mxu0
    %1051 = vdwg.mxu0
    %v1052 = vsel %vm164, %v1047, -inf
    %1053 = vmax.xlane.f32.xlu0 %v1052
    %v1054 = vpop.xlane.xlu0 %1053
    %v1055 = vsub.f32 %v1047, %v1054
    %v1056 = vmul.f32 %v1055, 1.442695
    %v1057 = vpow.pop %v1056
    %v1058 = vsel %vm164, %v1057, 0.0
    %1059 = vadd.xlane.f32.xlu0 %v1058
    %v1060 = vpop.xlane.xlu0 %1059
    %v1061 = vrcp.pop %v1060
    %v1062 = vmul.f32 %v1057, %v1061
    %v1063 = vpack.c.bf16 %v1062, %v1062
    %1064 = vrot.lane.b32.xlu0 %v1001, 40
    %v1065 = vpop.permute.xlu0 %1064
    %v1067 = vsel %vm164, %v1063, 0
    %v1070 = vsel %vm228, %v1065, 0
    %1072 = vmatprep.subr.bf16.mxu0 0
    %1073 = vmatpush1.bf16.msra.mxu0 %v1070
    %1074 = vmatprep.subr.bf16.mxu0 0
    %1075 = vmatpush1.bf16.msra.mxu0 0
    %1076 = vmatprep.subr.bf16.mxu0 0
    %1077 = vmatpush1.bf16.msra.mxu0 0
    %1078 = vmatprep.subr.bf16.mxu0 0
    %1079 = vmatpush1.bf16.msra.mxu0 0
    %1080 = vmatprep.subr.bf16.mxu0 0
    %1081 = vmatpush1.bf16.msra.mxu0 0
    %1082 = vmatprep.subr.bf16.mxu0 0
    %1083 = vmatpush1.bf16.msra.mxu0 0
    %1084 = vmatprep.subr.bf16.mxu0 0
    %1085 = vmatpush1.bf16.msra.mxu0 0
    %1086 = vmatprep.subr.bf16.mxu0 0
    %1087 = vmatpush1.bf16.msra.mxu0 0
    %1088 = vmatprep.subr.bf16.mxu0 0
    %1089 = vmatpush1.bf16.msra.mxu0 0
    %1090 = vmatprep.subr.bf16.mxu0 0
    %1091 = vmatpush1.bf16.msra.mxu0 0
    %1092 = vmatprep.subr.bf16.mxu0 0
    %1093 = vmatpush1.bf16.msra.mxu0 0
    %1094 = vmatprep.subr.bf16.mxu0 0
    %1095 = vmatpush1.bf16.msra.mxu0 0
    %1096 = vmatprep.subr.bf16.mxu0 0
    %1097 = vmatpush1.bf16.msra.mxu0 0
    %1098 = vmatprep.subr.bf16.mxu0 0
    %1099 = vmatpush1.bf16.msra.mxu0 0
    %1100 = vmatprep.subr.bf16.mxu0 0
    %1101 = vmatpush1.bf16.msra.mxu0 0
    %1102 = vmatprep.subr.bf16.mxu0 0
    %1103 = vmatpush1.bf16.msra.mxu0 0
    %1104 = vmatprep.mubr.bf16.mxu0 0
    %1105 = vmatmul.mubr.bf16.gmra.mrb[0].mxu0 %v1067
    %v1106 = vpop.f32.mrb[0].mxu0
    %v1107 = vadd.f32 0.0, %v1106
    %v1108 = vpop.f32.mrb[0].mxu0
    %v1109 = vpop.f32.mrb[0].mxu0
    %v1110 = vpop.f32.mrb[0].mxu0
    %1111 = vdwg.mxu0
    %v1112 = vpack.c.bf16 %v1107, %v1107
    %v1114 = vrot.slane %v1112, 4
    %1115 = vrot.lane.b32.xlu0 %v1114, 24
    %v1116 = vpop.permute.xlu0 %1115
    %vm1118 = vcmask 261316
    %1119 = vst.msk [vmem:[#allocation3] sm:$0xf0] %vm1118, %v1116
    %s1120 = scalar_lea.vmem [#allocation4], 2
    %v1121 = vld [vmem:[%s1120] sm:$0x1]
    %v1122 = vld [vmem:[#allocation2 + $0x8] sm:$0xf]
    %v1124 = vlaneseq
    %v1125 = vshrl.u32 %v1124, 7
    %v1126 = vsub.s32 0, %v1125
    %v1127 = vrot.slane %v1121, %v1126
    %1130 = vrot.lane.b32.xlu0 %v1122, 96
    %v1131 = vpop.permute.xlu0 %1130
    %v1133 = vsel %vm164, %v1122, 0
    %v1136 = vsel %vm164, %v1131, 0
    %1138 = vmatprep.subr.bf16.mxu0 0
    %1139 = vmatpush1.bf16.xpose.msra.mxu0 %v1136
    %1140 = vmatprep.subr.bf16.mxu0 0
    %1141 = vmatpush1.bf16.xpose.msra.mxu0 0
    %1142 = vmatprep.subr.bf16.mxu0 0
    %1143 = vmatpush1.bf16.xpose.msra.mxu0 0
    %1144 = vmatprep.subr.bf16.mxu0 0
    %1145 = vmatpush1.bf16.xpose.msra.mxu0 0
    %1146 = vmatprep.subr.bf16.mxu0 0
    %1147 = vmatpush1.bf16.xpose.msra.mxu0 0
    %1148 = vmatprep.subr.bf16.mxu0 0
    %1149 = vmatpush1.bf16.xpose.msra.mxu0 0
    %1150 = vmatprep.subr.bf16.mxu0 0
    %1151 = vmatpush1.bf16.xpose.msra.mxu0 0
    %1152 = vmatprep.subr.bf16.mxu0 0
    %1153 = vmatpush1.bf16.xpose.msra.mxu0 0
    %1154 = vmatprep.subr.bf16.mxu0 0
    %1155 = vmatpush1.bf16.xpose.msra.mxu0 0
    %1156 = vmatprep.subr.bf16.mxu0 0
    %1157 = vmatpush1.bf16.xpose.msra.mxu0 0
    %1158 = vmatprep.subr.bf16.mxu0 0
    %1159 = vmatpush1.bf16.xpose.msra.mxu0 0
    %1160 = vmatprep.subr.bf16.mxu0 0
    %1161 = vmatpush1.bf16.xpose.msra.mxu0 0
    %1162 = vmatprep.subr.bf16.mxu0 0
    %1163 = vmatpush1.bf16.xpose.msra.mxu0 0
    %1164 = vmatprep.subr.bf16.mxu0 0
    %1165 = vmatpush1.bf16.xpose.msra.mxu0 0
    %1166 = vmatprep.subr.bf16.mxu0 0
    %1167 = vmatpush1.bf16.xpose.msra.mxu0 0
    %1168 = vmatprep.subr.bf16.mxu0 0
    %1169 = vmatpush1.bf16.xpose.msra.mxu0 0
    %1170 = vmatprep.mubr.bf16.mxu0 0
    %1171 = vmatmul.mubr.bf16.gmra.mrb[0].mxu0 %v1133
    %v1172 = vpop.f32.mrb[0].mxu0
    %v1173 = vadd.f32 %v1127, %v1172
    %v1174 = vpop.f32.mrb[0].mxu0
    %v1175 = vpop.f32.mrb[0].mxu0
    %v1176 = vpop.f32.mrb[0].mxu0
    %1177 = vdwg.mxu0
    %v1178 = vsel %vm164, %v1173, -inf
    %1179 = vmax.xlane.f32.xlu0 %v1178
    %v1180 = vpop.xlane.xlu0 %1179
    %v1181 = vsub.f32 %v1173, %v1180
    %v1182 = vmul.f32 %v1181, 1.442695
    %v1183 = vpow.pop %v1182
    %v1184 = vsel %vm164, %v1183, 0.0
    %1185 = vadd.xlane.f32.xlu0 %v1184
    %v1186 = vpop.xlane.xlu0 %1185
    %v1187 = vrcp.pop %v1186
    %v1188 = vmul.f32 %v1183, %v1187
    %v1189 = vpack.c.bf16 %v1188, %v1188
    %1190 = vrot.lane.b32.xlu0 %v1122, 64
    %v1191 = vpop.permute.xlu0 %1190
    %v1193 = vsel %vm164, %v1189, 0
    %v1196 = vsel %vm228, %v1191, 0
    %1198 = vmatprep.subr.bf16.mxu0 0
    %1199 = vmatpush1.bf16.msra.mxu0 %v1196
    %1200 = vmatprep.subr.bf16.mxu0 0
    %1201 = vmatpush1.bf16.msra.mxu0 0
    %1202 = vmatprep.subr.bf16.mxu0 0
    %1203 = vmatpush1.bf16.msra.mxu0 0
    %1204 = vmatprep.subr.bf16.mxu0 0
    %1205 = vmatpush1.bf16.msra.mxu0 0
    %1206 = vmatprep.subr.bf16.mxu0 0
    %1207 = vmatpush1.bf16.msra.mxu0 0
    %1208 = vmatprep.subr.bf16.mxu0 0
    %1209 = vmatpush1.bf16.msra.mxu0 0
    %1210 = vmatprep.subr.bf16.mxu0 0
    %1211 = vmatpush1.bf16.msra.mxu0 0
    %1212 = vmatprep.subr.bf16.mxu0 0
    %1213 = vmatpush1.bf16.msra.mxu0 0
    %1214 = vmatprep.subr.bf16.mxu0 0
    %1215 = vmatpush1.bf16.msra.mxu0 0
    %1216 = vmatprep.subr.bf16.mxu0 0
    %1217 = vmatpush1.bf16.msra.mxu0 0
    %1218 = vmatprep.subr.bf16.mxu0 0
    %1219 = vmatpush1.bf16.msra.mxu0 0
    %1220 = vmatprep.subr.bf16.mxu0 0
    %1221 = vmatpush1.bf16.msra.mxu0 0
    %1222 = vmatprep.subr.bf16.mxu0 0
    %1223 = vmatpush1.bf16.msra.mxu0 0
    %1224 = vmatprep.subr.bf16.mxu0 0
    %1225 = vmatpush1.bf16.msra.mxu0 0
    %1226 = vmatprep.subr.bf16.mxu0 0
    %1227 = vmatpush1.bf16.msra.mxu0 0
    %1228 = vmatprep.subr.bf16.mxu0 0
    %1229 = vmatpush1.bf16.msra.mxu0 0
    %1230 = vmatprep.mubr.bf16.mxu0 0
    %1231 = vmatmul.mubr.bf16.gmra.mrb[0].mxu0 %v1193
    %v1232 = vpop.f32.mrb[0].mxu0
    %v1233 = vadd.f32 0.0, %v1232
    %v1234 = vpop.f32.mrb[0].mxu0
    %v1235 = vpop.f32.mrb[0].mxu0
    %v1236 = vpop.f32.mrb[0].mxu0
    %1237 = vdwg.mxu0
    %v1238 = vpack.c.bf16 %v1233, %v1233
    %1239 = vst.msk [vmem:[#allocation3 + $0x8] sm:$0xf] %vm273, %v1238
    %v1240 = vld [vmem:[#allocation2 + $0x8] sm:$0xf]
    %1242 = vrot.lane.b32.xlu0 %v1240, 120
    %v1243 = vpop.permute.xlu0 %1242
    %1244 = vrot.lane.b32.xlu0 %v1240, 88
    %v1245 = vpop.permute.xlu0 %1244
    %v1247 = vsel %vm164, %v1243, 0
    %v1250 = vsel %vm164, %v1245, 0
    %1252 = vmatprep.subr.bf16.mxu0 0
    %1253 = vmatpush1.bf16.xpose.msra.mxu0 %v1250
    %1254 = vmatprep.subr.bf16.mxu0 0
    %1255 = vmatpush1.bf16.xpose.msra.mxu0 0
    %1256 = vmatprep.subr.bf16.mxu0 0
    %1257 = vmatpush1.bf16.xpose.msra.mxu0 0
    %1258 = vmatprep.subr.bf16.mxu0 0
    %1259 = vmatpush1.bf16.xpose.msra.mxu0 0
    %1260 = vmatprep.subr.bf16.mxu0 0
    %1261 = vmatpush1.bf16.xpose.msra.mxu0 0
    %1262 = vmatprep.subr.bf16.mxu0 0
    %1263 = vmatpush1.bf16.xpose.msra.mxu0 0
    %1264 = vmatprep.subr.bf16.mxu0 0
    %1265 = vmatpush1.bf16.xpose.msra.mxu0 0
    %1266 = vmatprep.subr.bf16.mxu0 0
    %1267 = vmatpush1.bf16.xpose.msra.mxu0 0
    %1268 = vmatprep.subr.bf16.mxu0 0
    %1269 = vmatpush1.bf16.xpose.msra.mxu0 0
    %1270 = vmatprep.subr.bf16.mxu0 0
    %1271 = vmatpush1.bf16.xpose.msra.mxu0 0
    %1272 = vmatprep.subr.bf16.mxu0 0
    %1273 = vmatpush1.bf16.xpose.msra.mxu0 0
    %1274 = vmatprep.subr.bf16.mxu0 0
    %1275 = vmatpush1.bf16.xpose.msra.mxu0 0
    %1276 = vmatprep.subr.bf16.mxu0 0
    %1277 = vmatpush1.bf16.xpose.msra.mxu0 0
    %1278 = vmatprep.subr.bf16.mxu0 0
    %1279 = vmatpush1.bf16.xpose.msra.mxu0 0
    %1280 = vmatprep.subr.bf16.mxu0 0
    %1281 = vmatpush1.bf16.xpose.msra.mxu0 0
    %1282 = vmatprep.subr.bf16.mxu0 0
    %1283 = vmatpush1.bf16.xpose.msra.mxu0 0
    %1284 = vmatprep.mubr.bf16.mxu0 0
    %1285 = vmatmul.mubr.bf16.gmra.mrb[0].mxu0 %v1247
    %v1286 = vpop.f32.mrb[0].mxu0
    %v1287 = vadd.f32 %v1127, %v1286
    %v1288 = vpop.f32.mrb[0].mxu0
    %v1289 = vpop.f32.mrb[0].mxu0
    %v1290 = vpop.f32.mrb[0].mxu0
    %1291 = vdwg.mxu0
    %v1292 = vsel %vm164, %v1287, -inf
    %1293 = vmax.xlane.f32.xlu0 %v1292
    %v1294 = vpop.xlane.xlu0 %1293
    %v1295 = vsub.f32 %v1287, %v1294
    %v1296 = vmul.f32 %v1295, 1.442695
    %v1297 = vpow.pop %v1296
    %v1298 = vsel %vm164, %v1297, 0.0
    %1299 = vadd.xlane.f32.xlu0 %v1298
    %v1300 = vpop.xlane.xlu0 %1299
    %v1301 = vrcp.pop %v1300
    %v1302 = vmul.f32 %v1297, %v1301
    %v1303 = vpack.c.bf16 %v1302, %v1302
    %1304 = vrot.lane.b32.xlu0 %v1240, 56
    %v1305 = vpop.permute.xlu0 %1304
    %v1307 = vsel %vm164, %v1303, 0
    %v1310 = vsel %vm228, %v1305, 0
    %1312 = vmatprep.subr.bf16.mxu0 0
    %1313 = vmatpush1.bf16.msra.mxu0 %v1310
    %1314 = vmatprep.subr.bf16.mxu0 0
    %1315 = vmatpush1.bf16.msra.mxu0 0
    %1316 = vmatprep.subr.bf16.mxu0 0
    %1317 = vmatpush1.bf16.msra.mxu0 0
    %1318 = vmatprep.subr.bf16.mxu0 0
    %1319 = vmatpush1.bf16.msra.mxu0 0
    %1320 = vmatprep.subr.bf16.mxu0 0
    %1321 = vmatpush1.bf16.msra.mxu0 0
    %1322 = vmatprep.subr.bf16.mxu0 0
    %1323 = vmatpush1.bf16.msra.mxu0 0
    %1324 = vmatprep.subr.bf16.mxu0 0
    %1325 = vmatpush1.bf16.msra.mxu0 0
    %1326 = vmatprep.subr.bf16.mxu0 0
    %1327 = vmatpush1.bf16.msra.mxu0 0
    %1328 = vmatprep.subr.bf16.mxu0 0
    %1329 = vmatpush1.bf16.msra.mxu0 0
    %1330 = vmatprep.subr.bf16.mxu0 0
    %1331 = vmatpush1.bf16.msra.mxu0 0
    %1332 = vmatprep.subr.bf16.mxu0 0
    %1333 = vmatpush1.bf16.msra.mxu0 0
    %1334 = vmatprep.subr.bf16.mxu0 0
    %1335 = vmatpush1.bf16.msra.mxu0 0
    %1336 = vmatprep.subr.bf16.mxu0 0
    %1337 = vmatpush1.bf16.msra.mxu0 0
    %1338 = vmatprep.subr.bf16.mxu0 0
    %1339 = vmatpush1.bf16.msra.mxu0 0
    %1340 = vmatprep.subr.bf16.mxu0 0
    %1341 = vmatpush1.bf16.msra.mxu0 0
    %1342 = vmatprep.subr.bf16.mxu0 0
    %1343 = vmatpush1.bf16.msra.mxu0 0
    %1344 = vmatprep.mubr.bf16.mxu0 0
    %1345 = vmatmul.mubr.bf16.gmra.mrb[0].mxu0 %v1307
    %v1346 = vpop.f32.mrb[0].mxu0
    %v1347 = vadd.f32 0.0, %v1346
    %v1348 = vpop.f32.mrb[0].mxu0
    %v1349 = vpop.f32.mrb[0].mxu0
    %v1350 = vpop.f32.mrb[0].mxu0
    %1351 = vdwg.mxu0
    %v1352 = vpack.c.bf16 %v1347, %v1347
    %1354 = vrot.lane.b32.xlu0 %v1352, 8
    %v1355 = vpop.permute.xlu0 %1354
    %1357 = vst.msk [vmem:[#allocation3 + $0x8] sm:$0xf] %vm392, %v1355
    %v1358 = vld [vmem:[#allocation2 + $0x8] sm:$0xf]
    %1360 = vrot.lane.b32.xlu0 %v1358, 112
    %v1361 = vpop.permute.xlu0 %1360
    %1362 = vrot.lane.b32.xlu0 %v1358, 80
    %v1363 = vpop.permute.xlu0 %1362
    %v1365 = vsel %vm164, %v1361, 0
    %v1368 = vsel %vm164, %v1363, 0
    %1370 = vmatprep.subr.bf16.mxu0 0
    %1371 = vmatpush1.bf16.xpose.msra.mxu0 %v1368
    %1372 = vmatprep.subr.bf16.mxu0 0
    %1373 = vmatpush1.bf16.xpose.msra.mxu0 0
    %1374 = vmatprep.subr.bf16.mxu0 0
    %1375 = vmatpush1.bf16.xpose.msra.mxu0 0
    %1376 = vmatprep.subr.bf16.mxu0 0
    %1377 = vmatpush1.bf16.xpose.msra.mxu0 0
    %1378 = vmatprep.subr.bf16.mxu0 0
    %1379 = vmatpush1.bf16.xpose.msra.mxu0 0
    %1380 = vmatprep.subr.bf16.mxu0 0
    %1381 = vmatpush1.bf16.xpose.msra.mxu0 0
    %1382 = vmatprep.subr.bf16.mxu0 0
    %1383 = vmatpush1.bf16.xpose.msra.mxu0 0
    %1384 = vmatprep.subr.bf16.mxu0 0
    %1385 = vmatpush1.bf16.xpose.msra.mxu0 0
    %1386 = vmatprep.subr.bf16.mxu0 0
    %1387 = vmatpush1.bf16.xpose.msra.mxu0 0
    %1388 = vmatprep.subr.bf16.mxu0 0
    %1389 = vmatpush1.bf16.xpose.msra.mxu0 0
    %1390 = vmatprep.subr.bf16.mxu0 0
    %1391 = vmatpush1.bf16.xpose.msra.mxu0 0
    %1392 = vmatprep.subr.bf16.mxu0 0
    %1393 = vmatpush1.bf16.xpose.msra.mxu0 0
    %1394 = vmatprep.subr.bf16.mxu0 0
    %1395 = vmatpush1.bf16.xpose.msra.mxu0 0
    %1396 = vmatprep.subr.bf16.mxu0 0
    %1397 = vmatpush1.bf16.xpose.msra.mxu0 0
    %1398 = vmatprep.subr.bf16.mxu0 0
    %1399 = vmatpush1.bf16.xpose.msra.mxu0 0
    %1400 = vmatprep.subr.bf16.mxu0 0
    %1401 = vmatpush1.bf16.xpose.msra.mxu0 0
    %1402 = vmatprep.mubr.bf16.mxu0 0
    %1403 = vmatmul.mubr.bf16.gmra.mrb[0].mxu0 %v1365
    %v1404 = vpop.f32.mrb[0].mxu0
    %v1405 = vadd.f32 %v1127, %v1404
    %v1406 = vpop.f32.mrb[0].mxu0
    %v1407 = vpop.f32.mrb[0].mxu0
    %v1408 = vpop.f32.mrb[0].mxu0
    %1409 = vdwg.mxu0
    %v1410 = vsel %vm164, %v1405, -inf
    %1411 = vmax.xlane.f32.xlu0 %v1410
    %v1412 = vpop.xlane.xlu0 %1411
    %v1413 = vsub.f32 %v1405, %v1412
    %v1414 = vmul.f32 %v1413, 1.442695
    %v1415 = vpow.pop %v1414
    %v1416 = vsel %vm164, %v1415, 0.0
    %1417 = vadd.xlane.f32.xlu0 %v1416
    %v1418 = vpop.xlane.xlu0 %1417
    %v1419 = vrcp.pop %v1418
    %v1420 = vmul.f32 %v1415, %v1419
    %v1421 = vpack.c.bf16 %v1420, %v1420
    %1422 = vrot.lane.b32.xlu0 %v1358, 48
    %v1423 = vpop.permute.xlu0 %1422
    %v1425 = vsel %vm164, %v1421, 0
    %v1428 = vsel %vm228, %v1423, 0
    %1430 = vmatprep.subr.bf16.mxu0 0
    %1431 = vmatpush1.bf16.msra.mxu0 %v1428
    %1432 = vmatprep.subr.bf16.mxu0 0
    %1433 = vmatpush1.bf16.msra.mxu0 0
    %1434 = vmatprep.subr.bf16.mxu0 0
    %1435 = vmatpush1.bf16.msra.mxu0 0
    %1436 = vmatprep.subr.bf16.mxu0 0
    %1437 = vmatpush1.bf16.msra.mxu0 0
    %1438 = vmatprep.subr.bf16.mxu0 0
    %1439 = vmatpush1.bf16.msra.mxu0 0
    %1440 = vmatprep.subr.bf16.mxu0 0
    %1441 = vmatpush1.bf16.msra.mxu0 0
    %1442 = vmatprep.subr.bf16.mxu0 0
    %1443 = vmatpush1.bf16.msra.mxu0 0
    %1444 = vmatprep.subr.bf16.mxu0 0
    %1445 = vmatpush1.bf16.msra.mxu0 0
    %1446 = vmatprep.subr.bf16.mxu0 0
    %1447 = vmatpush1.bf16.msra.mxu0 0
    %1448 = vmatprep.subr.bf16.mxu0 0
    %1449 = vmatpush1.bf16.msra.mxu0 0
    %1450 = vmatprep.subr.bf16.mxu0 0
    %1451 = vmatpush1.bf16.msra.mxu0 0
    %1452 = vmatprep.subr.bf16.mxu0 0
    %1453 = vmatpush1.bf16.msra.mxu0 0
    %1454 = vmatprep.subr.bf16.mxu0 0
    %1455 = vmatpush1.bf16.msra.mxu0 0
    %1456 = vmatprep.subr.bf16.mxu0 0
    %1457 = vmatpush1.bf16.msra.mxu0 0
    %1458 = vmatprep.subr.bf16.mxu0 0
    %1459 = vmatpush1.bf16.msra.mxu0 0
    %1460 = vmatprep.subr.bf16.mxu0 0
    %1461 = vmatpush1.bf16.msra.mxu0 0
    %1462 = vmatprep.mubr.bf16.mxu0 0
    %1463 = vmatmul.mubr.bf16.gmra.mrb[0].mxu0 %v1425
    %v1464 = vpop.f32.mrb[0].mxu0
    %v1465 = vadd.f32 0.0, %v1464
    %v1466 = vpop.f32.mrb[0].mxu0
    %v1467 = vpop.f32.mrb[0].mxu0
    %v1468 = vpop.f32.mrb[0].mxu0
    %1469 = vdwg.mxu0
    %v1470 = vpack.c.bf16 %v1465, %v1465
    %1472 = vrot.lane.b32.xlu0 %v1470, 16
    %v1473 = vpop.permute.xlu0 %1472
    %1475 = vst.msk [vmem:[#allocation3 + $0x8] sm:$0xf] %vm511, %v1473
    %v1476 = vld [vmem:[#allocation2 + $0x8] sm:$0xf]
    %1478 = vrot.lane.b32.xlu0 %v1476, 104
    %v1479 = vpop.permute.xlu0 %1478
    %1480 = vrot.lane.b32.xlu0 %v1476, 72
    %v1481 = vpop.permute.xlu0 %1480
    %v1483 = vsel %vm164, %v1479, 0
    %v1486 = vsel %vm164, %v1481, 0
    %1488 = vmatprep.subr.bf16.mxu0 0
    %1489 = vmatpush1.bf16.xpose.msra.mxu0 %v1486
    %1490 = vmatprep.subr.bf16.mxu0 0
    %1491 = vmatpush1.bf16.xpose.msra.mxu0 0
    %1492 = vmatprep.subr.bf16.mxu0 0
    %1493 = vmatpush1.bf16.xpose.msra.mxu0 0
    %1494 = vmatprep.subr.bf16.mxu0 0
    %1495 = vmatpush1.bf16.xpose.msra.mxu0 0
    %1496 = vmatprep.subr.bf16.mxu0 0
    %1497 = vmatpush1.bf16.xpose.msra.mxu0 0
    %1498 = vmatprep.subr.bf16.mxu0 0
    %1499 = vmatpush1.bf16.xpose.msra.mxu0 0
    %1500 = vmatprep.subr.bf16.mxu0 0
    %1501 = vmatpush1.bf16.xpose.msra.mxu0 0
    %1502 = vmatprep.subr.bf16.mxu0 0
    %1503 = vmatpush1.bf16.xpose.msra.mxu0 0
    %1504 = vmatprep.subr.bf16.mxu0 0
    %1505 = vmatpush1.bf16.xpose.msra.mxu0 0
    %1506 = vmatprep.subr.bf16.mxu0 0
    %1507 = vmatpush1.bf16.xpose.msra.mxu0 0
    %1508 = vmatprep.subr.bf16.mxu0 0
    %1509 = vmatpush1.bf16.xpose.msra.mxu0 0
    %1510 = vmatprep.subr.bf16.mxu0 0
    %1511 = vmatpush1.bf16.xpose.msra.mxu0 0
    %1512 = vmatprep.subr.bf16.mxu0 0
    %1513 = vmatpush1.bf16.xpose.msra.mxu0 0
    %1514 = vmatprep.subr.bf16.mxu0 0
    %1515 = vmatpush1.bf16.xpose.msra.mxu0 0
    %1516 = vmatprep.subr.bf16.mxu0 0
    %1517 = vmatpush1.bf16.xpose.msra.mxu0 0
    %1518 = vmatprep.subr.bf16.mxu0 0
    %1519 = vmatpush1.bf16.xpose.msra.mxu0 0
    %1520 = vmatprep.mubr.bf16.mxu0 0
    %1521 = vmatmul.mubr.bf16.gmra.mrb[0].mxu0 %v1483
    %v1522 = vpop.f32.mrb[0].mxu0
    %v1523 = vadd.f32 %v1127, %v1522
    %v1524 = vpop.f32.mrb[0].mxu0
    %v1525 = vpop.f32.mrb[0].mxu0
    %v1526 = vpop.f32.mrb[0].mxu0
    %1527 = vdwg.mxu0
    %v1528 = vsel %vm164, %v1523, -inf
    %1529 = vmax.xlane.f32.xlu0 %v1528
    %v1530 = vpop.xlane.xlu0 %1529
    %v1531 = vsub.f32 %v1523, %v1530
    %v1532 = vmul.f32 %v1531, 1.442695
    %v1533 = vpow.pop %v1532
    %v1534 = vsel %vm164, %v1533, 0.0
    %1535 = vadd.xlane.f32.xlu0 %v1534
    %v1536 = vpop.xlane.xlu0 %1535
    %v1537 = vrcp.pop %v1536
    %v1538 = vmul.f32 %v1533, %v1537
    %v1539 = vpack.c.bf16 %v1538, %v1538
    %1540 = vrot.lane.b32.xlu0 %v1476, 40
    %v1541 = vpop.permute.xlu0 %1540
    %v1543 = vsel %vm164, %v1539, 0
    %v1546 = vsel %vm228, %v1541, 0
    %1548 = vmatprep.subr.bf16.mxu0 0
    %1549 = vmatpush1.bf16.msra.mxu0 %v1546
    %1550 = vmatprep.subr.bf16.mxu0 0
    %1551 = vmatpush1.bf16.msra.mxu0 0
    %1552 = vmatprep.subr.bf16.mxu0 0
    %1553 = vmatpush1.bf16.msra.mxu0 0
    %1554 = vmatprep.subr.bf16.mxu0 0
    %1555 = vmatpush1.bf16.msra.mxu0 0
    %1556 = vmatprep.subr.bf16.mxu0 0
    %1557 = vmatpush1.bf16.msra.mxu0 0
    %1558 = vmatprep.subr.bf16.mxu0 0
    %1559 = vmatpush1.bf16.msra.mxu0 0
    %1560 = vmatprep.subr.bf16.mxu0 0
    %1561 = vmatpush1.bf16.msra.mxu0 0
    %1562 = vmatprep.subr.bf16.mxu0 0
    %1563 = vmatpush1.bf16.msra.mxu0 0
    %1564 = vmatprep.subr.bf16.mxu0 0
    %1565 = vmatpush1.bf16.msra.mxu0 0
    %1566 = vmatprep.subr.bf16.mxu0 0
    %1567 = vmatpush1.bf16.msra.mxu0 0
    %1568 = vmatprep.subr.bf16.mxu0 0
    %1569 = vmatpush1.bf16.msra.mxu0 0
    %1570 = vmatprep.subr.bf16.mxu0 0
    %1571 = vmatpush1.bf16.msra.mxu0 0
    %1572 = vmatprep.subr.bf16.mxu0 0
    %1573 = vmatpush1.bf16.msra.mxu0 0
    %1574 = vmatprep.subr.bf16.mxu0 0
    %1575 = vmatpush1.bf16.msra.mxu0 0
    %1576 = vmatprep.subr.bf16.mxu0 0
    %1577 = vmatpush1.bf16.msra.mxu0 0
    %1578 = vmatprep.subr.bf16.mxu0 0
    %1579 = vmatpush1.bf16.msra.mxu0 0
    %1580 = vmatprep.mubr.bf16.mxu0 0
    %1581 = vmatmul.mubr.bf16.gmra.mrb[0].mxu0 %v1543
    %v1582 = vpop.f32.mrb[0].mxu0
    %v1583 = vadd.f32 0.0, %v1582
    %v1584 = vpop.f32.mrb[0].mxu0
    %v1585 = vpop.f32.mrb[0].mxu0
    %v1586 = vpop.f32.mrb[0].mxu0
    %1587 = vdwg.mxu0
    %v1588 = vpack.c.bf16 %v1583, %v1583
    %1590 = vrot.lane.b32.xlu0 %v1588, 24
    %v1591 = vpop.permute.xlu0 %1590
    %1593 = vst.msk [vmem:[#allocation3 + $0x8] sm:$0xf] %vm630, %v1591
    %s1594 = scalar_lea.vmem [#allocation4], 3
    %v1595 = vld [vmem:[%s1594] sm:$0x1]
    %v1596 = vld [vmem:[#allocation2 + $0x8] sm:$0xf0]
    %v1598 = vlaneseq
    %v1599 = vshrl.u32 %v1598, 7
    %v1600 = vsub.s32 0, %v1599
    %v1601 = vrot.slane %v1595, %v1600
    %v1604 = vrot.slane %v1596, 4
    %1605 = vrot.lane.b32.xlu0 %v1604, 96
    %v1606 = vpop.permute.xlu0 %1605
    %v1608 = vsel %vm164, %v1604, 0
    %v1611 = vsel %vm164, %v1606, 0
    %1613 = vmatprep.subr.bf16.mxu0 0
    %1614 = vmatpush1.bf16.xpose.msra.mxu0 %v1611
    %1615 = vmatprep.subr.bf16.mxu0 0
    %1616 = vmatpush1.bf16.xpose.msra.mxu0 0
    %1617 = vmatprep.subr.bf16.mxu0 0
    %1618 = vmatpush1.bf16.xpose.msra.mxu0 0
    %1619 = vmatprep.subr.bf16.mxu0 0
    %1620 = vmatpush1.bf16.xpose.msra.mxu0 0
    %1621 = vmatprep.subr.bf16.mxu0 0
    %1622 = vmatpush1.bf16.xpose.msra.mxu0 0
    %1623 = vmatprep.subr.bf16.mxu0 0
    %1624 = vmatpush1.bf16.xpose.msra.mxu0 0
    %1625 = vmatprep.subr.bf16.mxu0 0
    %1626 = vmatpush1.bf16.xpose.msra.mxu0 0
    %1627 = vmatprep.subr.bf16.mxu0 0
    %1628 = vmatpush1.bf16.xpose.msra.mxu0 0
    %1629 = vmatprep.subr.bf16.mxu0 0
    %1630 = vmatpush1.bf16.xpose.msra.mxu0 0
    %1631 = vmatprep.subr.bf16.mxu0 0
    %1632 = vmatpush1.bf16.xpose.msra.mxu0 0
    %1633 = vmatprep.subr.bf16.mxu0 0
    %1634 = vmatpush1.bf16.xpose.msra.mxu0 0
    %1635 = vmatprep.subr.bf16.mxu0 0
    %1636 = vmatpush1.bf16.xpose.msra.mxu0 0
    %1637 = vmatprep.subr.bf16.mxu0 0
    %1638 = vmatpush1.bf16.xpose.msra.mxu0 0
    %1639 = vmatprep.subr.bf16.mxu0 0
    %1640 = vmatpush1.bf16.xpose.msra.mxu0 0
    %1641 = vmatprep.subr.bf16.mxu0 0
    %1642 = vmatpush1.bf16.xpose.msra.mxu0 0
    %1643 = vmatprep.subr.bf16.mxu0 0
    %1644 = vmatpush1.bf16.xpose.msra.mxu0 0
    %1645 = vmatprep.mubr.bf16.mxu0 0
    %1646 = vmatmul.mubr.bf16.gmra.mrb[0].mxu0 %v1608
    %v1647 = vpop.f32.mrb[0].mxu0
    %v1648 = vadd.f32 %v1601, %v1647
    %v1649 = vpop.f32.mrb[0].mxu0
    %v1650 = vpop.f32.mrb[0].mxu0
    %v1651 = vpop.f32.mrb[0].mxu0
    %1652 = vdwg.mxu0
    %v1653 = vsel %vm164, %v1648, -inf
    %1654 = vmax.xlane.f32.xlu0 %v1653
    %v1655 = vpop.xlane.xlu0 %1654
    %v1656 = vsub.f32 %v1648, %v1655
    %v1657 = vmul.f32 %v1656, 1.442695
    %v1658 = vpow.pop %v1657
    %v1659 = vsel %vm164, %v1658, 0.0
    %1660 = vadd.xlane.f32.xlu0 %v1659
    %v1661 = vpop.xlane.xlu0 %1660
    %v1662 = vrcp.pop %v1661
    %v1663 = vmul.f32 %v1658, %v1662
    %v1664 = vpack.c.bf16 %v1663, %v1663
    %1665 = vrot.lane.b32.xlu0 %v1604, 64
    %v1666 = vpop.permute.xlu0 %1665
    %v1668 = vsel %vm164, %v1664, 0
    %v1671 = vsel %vm228, %v1666, 0
    %1673 = vmatprep.subr.bf16.mxu0 0
    %1674 = vmatpush1.bf16.msra.mxu0 %v1671
    %1675 = vmatprep.subr.bf16.mxu0 0
    %1676 = vmatpush1.bf16.msra.mxu0 0
    %1677 = vmatprep.subr.bf16.mxu0 0
    %1678 = vmatpush1.bf16.msra.mxu0 0
    %1679 = vmatprep.subr.bf16.mxu0 0
    %1680 = vmatpush1.bf16.msra.mxu0 0
    %1681 = vmatprep.subr.bf16.mxu0 0
    %1682 = vmatpush1.bf16.msra.mxu0 0
    %1683 = vmatprep.subr.bf16.mxu0 0
    %1684 = vmatpush1.bf16.msra.mxu0 0
    %1685 = vmatprep.subr.bf16.mxu0 0
    %1686 = vmatpush1.bf16.msra.mxu0 0
    %1687 = vmatprep.subr.bf16.mxu0 0
    %1688 = vmatpush1.bf16.msra.mxu0 0
    %1689 = vmatprep.subr.bf16.mxu0 0
    %1690 = vmatpush1.bf16.msra.mxu0 0
    %1691 = vmatprep.subr.bf16.mxu0 0
    %1692 = vmatpush1.bf16.msra.mxu0 0
    %1693 = vmatprep.subr.bf16.mxu0 0
    %1694 = vmatpush1.bf16.msra.mxu0 0
    %1695 = vmatprep.subr.bf16.mxu0 0
    %1696 = vmatpush1.bf16.msra.mxu0 0
    %1697 = vmatprep.subr.bf16.mxu0 0
    %1698 = vmatpush1.bf16.msra.mxu0 0
    %1699 = vmatprep.subr.bf16.mxu0 0
    %1700 = vmatpush1.bf16.msra.mxu0 0
    %1701 = vmatprep.subr.bf16.mxu0 0
    %1702 = vmatpush1.bf16.msra.mxu0 0
    %1703 = vmatprep.subr.bf16.mxu0 0
    %1704 = vmatpush1.bf16.msra.mxu0 0
    %1705 = vmatprep.mubr.bf16.mxu0 0
    %1706 = vmatmul.mubr.bf16.gmra.mrb[0].mxu0 %v1668
    %v1707 = vpop.f32.mrb[0].mxu0
    %v1708 = vadd.f32 0.0, %v1707
    %v1709 = vpop.f32.mrb[0].mxu0
    %v1710 = vpop.f32.mrb[0].mxu0
    %v1711 = vpop.f32.mrb[0].mxu0
    %1712 = vdwg.mxu0
    %v1713 = vpack.c.bf16 %v1708, %v1708
    %v1715 = vrot.slane %v1713, 4
    %1717 = vst.msk [vmem:[#allocation3 + $0x8] sm:$0xf0] %vm755, %v1715
    %v1718 = vld [vmem:[#allocation2 + $0x8] sm:$0xf0]
    %v1720 = vrot.slane %v1718, 4
    %1721 = vrot.lane.b32.xlu0 %v1720, 120
    %v1722 = vpop.permute.xlu0 %1721
    %1723 = vrot.lane.b32.xlu0 %v1720, 88
    %v1724 = vpop.permute.xlu0 %1723
    %v1726 = vsel %vm164, %v1722, 0
    %v1729 = vsel %vm164, %v1724, 0
    %1731 = vmatprep.subr.bf16.mxu0 0
    %1732 = vmatpush1.bf16.xpose.msra.mxu0 %v1729
    %1733 = vmatprep.subr.bf16.mxu0 0
    %1734 = vmatpush1.bf16.xpose.msra.mxu0 0
    %1735 = vmatprep.subr.bf16.mxu0 0
    %1736 = vmatpush1.bf16.xpose.msra.mxu0 0
    %1737 = vmatprep.subr.bf16.mxu0 0
    %1738 = vmatpush1.bf16.xpose.msra.mxu0 0
    %1739 = vmatprep.subr.bf16.mxu0 0
    %1740 = vmatpush1.bf16.xpose.msra.mxu0 0
    %1741 = vmatprep.subr.bf16.mxu0 0
    %1742 = vmatpush1.bf16.xpose.msra.mxu0 0
    %1743 = vmatprep.subr.bf16.mxu0 0
    %1744 = vmatpush1.bf16.xpose.msra.mxu0 0
    %1745 = vmatprep.subr.bf16.mxu0 0
    %1746 = vmatpush1.bf16.xpose.msra.mxu0 0
    %1747 = vmatprep.subr.bf16.mxu0 0
    %1748 = vmatpush1.bf16.xpose.msra.mxu0 0
    %1749 = vmatprep.subr.bf16.mxu0 0
    %1750 = vmatpush1.bf16.xpose.msra.mxu0 0
    %1751 = vmatprep.subr.bf16.mxu0 0
    %1752 = vmatpush1.bf16.xpose.msra.mxu0 0
    %1753 = vmatprep.subr.bf16.mxu0 0
    %1754 = vmatpush1.bf16.xpose.msra.mxu0 0
    %1755 = vmatprep.subr.bf16.mxu0 0
    %1756 = vmatpush1.bf16.xpose.msra.mxu0 0
    %1757 = vmatprep.subr.bf16.mxu0 0
    %1758 = vmatpush1.bf16.xpose.msra.mxu0 0
    %1759 = vmatprep.subr.bf16.mxu0 0
    %1760 = vmatpush1.bf16.xpose.msra.mxu0 0
    %1761 = vmatprep.subr.bf16.mxu0 0
    %1762 = vmatpush1.bf16.xpose.msra.mxu0 0
    %1763 = vmatprep.mubr.bf16.mxu0 0
    %1764 = vmatmul.mubr.bf16.gmra.mrb[0].mxu0 %v1726
    %v1765 = vpop.f32.mrb[0].mxu0
    %v1766 = vadd.f32 %v1601, %v1765
    %v1767 = vpop.f32.mrb[0].mxu0
    %v1768 = vpop.f32.mrb[0].mxu0
    %v1769 = vpop.f32.mrb[0].mxu0
    %1770 = vdwg.mxu0
    %v1771 = vsel %vm164, %v1766, -inf
    %1772 = vmax.xlane.f32.xlu0 %v1771
    %v1773 = vpop.xlane.xlu0 %1772
    %v1774 = vsub.f32 %v1766, %v1773
    %v1775 = vmul.f32 %v1774, 1.442695
    %v1776 = vpow.pop %v1775
    %v1777 = vsel %vm164, %v1776, 0.0
    %1778 = vadd.xlane.f32.xlu0 %v1777
    %v1779 = vpop.xlane.xlu0 %1778
    %v1780 = vrcp.pop %v1779
    %v1781 = vmul.f32 %v1776, %v1780
    %v1782 = vpack.c.bf16 %v1781, %v1781
    %1783 = vrot.lane.b32.xlu0 %v1720, 56
    %v1784 = vpop.permute.xlu0 %1783
    %v1786 = vsel %vm164, %v1782, 0
    %v1789 = vsel %vm228, %v1784, 0
    %1791 = vmatprep.subr.bf16.mxu0 0
    %1792 = vmatpush1.bf16.msra.mxu0 %v1789
    %1793 = vmatprep.subr.bf16.mxu0 0
    %1794 = vmatpush1.bf16.msra.mxu0 0
    %1795 = vmatprep.subr.bf16.mxu0 0
    %1796 = vmatpush1.bf16.msra.mxu0 0
    %1797 = vmatprep.subr.bf16.mxu0 0
    %1798 = vmatpush1.bf16.msra.mxu0 0
    %1799 = vmatprep.subr.bf16.mxu0 0
    %1800 = vmatpush1.bf16.msra.mxu0 0
    %1801 = vmatprep.subr.bf16.mxu0 0
    %1802 = vmatpush1.bf16.msra.mxu0 0
    %1803 = vmatprep.subr.bf16.mxu0 0
    %1804 = vmatpush1.bf16.msra.mxu0 0
    %1805 = vmatprep.subr.bf16.mxu0 0
    %1806 = vmatpush1.bf16.msra.mxu0 0
    %1807 = vmatprep.subr.bf16.mxu0 0
    %1808 = vmatpush1.bf16.msra.mxu0 0
    %1809 = vmatprep.subr.bf16.mxu0 0
    %1810 = vmatpush1.bf16.msra.mxu0 0
    %1811 = vmatprep.subr.bf16.mxu0 0
    %1812 = vmatpush1.bf16.msra.mxu0 0
    %1813 = vmatprep.subr.bf16.mxu0 0
    %1814 = vmatpush1.bf16.msra.mxu0 0
    %1815 = vmatprep.subr.bf16.mxu0 0
    %1816 = vmatpush1.bf16.msra.mxu0 0
    %1817 = vmatprep.subr.bf16.mxu0 0
    %1818 = vmatpush1.bf16.msra.mxu0 0
    %1819 = vmatprep.subr.bf16.mxu0 0
    %1820 = vmatpush1.bf16.msra.mxu0 0
    %1821 = vmatprep.subr.bf16.mxu0 0
    %1822 = vmatpush1.bf16.msra.mxu0 0
    %1823 = vmatprep.mubr.bf16.mxu0 0
    %1824 = vmatmul.mubr.bf16.gmra.mrb[0].mxu0 %v1786
    %v1825 = vpop.f32.mrb[0].mxu0
    %v1826 = vadd.f32 0.0, %v1825
    %v1827 = vpop.f32.mrb[0].mxu0
    %v1828 = vpop.f32.mrb[0].mxu0
    %v1829 = vpop.f32.mrb[0].mxu0
    %1830 = vdwg.mxu0
    %v1831 = vpack.c.bf16 %v1826, %v1826
    %v1833 = vrot.slane %v1831, 4
    %1834 = vrot.lane.b32.xlu0 %v1833, 8
    %v1835 = vpop.permute.xlu0 %1834
    %1837 = vst.msk [vmem:[#allocation3 + $0x8] sm:$0xf0] %vm876, %v1835
    %v1838 = vld [vmem:[#allocation2 + $0x8] sm:$0xf0]
    %v1840 = vrot.slane %v1838, 4
    %1841 = vrot.lane.b32.xlu0 %v1840, 112
    %v1842 = vpop.permute.xlu0 %1841
    %1843 = vrot.lane.b32.xlu0 %v1840, 80
    %v1844 = vpop.permute.xlu0 %1843
    %v1846 = vsel %vm164, %v1842, 0
    %v1849 = vsel %vm164, %v1844, 0
    %1851 = vmatprep.subr.bf16.mxu0 0
    %1852 = vmatpush1.bf16.xpose.msra.mxu0 %v1849
    %1853 = vmatprep.subr.bf16.mxu0 0
    %1854 = vmatpush1.bf16.xpose.msra.mxu0 0
    %1855 = vmatprep.subr.bf16.mxu0 0
    %1856 = vmatpush1.bf16.xpose.msra.mxu0 0
    %1857 = vmatprep.subr.bf16.mxu0 0
    %1858 = vmatpush1.bf16.xpose.msra.mxu0 0
    %1859 = vmatprep.subr.bf16.mxu0 0
    %1860 = vmatpush1.bf16.xpose.msra.mxu0 0
    %1861 = vmatprep.subr.bf16.mxu0 0
    %1862 = vmatpush1.bf16.xpose.msra.mxu0 0
    %1863 = vmatprep.subr.bf16.mxu0 0
    %1864 = vmatpush1.bf16.xpose.msra.mxu0 0
    %1865 = vmatprep.subr.bf16.mxu0 0
    %1866 = vmatpush1.bf16.xpose.msra.mxu0 0
    %1867 = vmatprep.subr.bf16.mxu0 0
    %1868 = vmatpush1.bf16.xpose.msra.mxu0 0
    %1869 = vmatprep.subr.bf16.mxu0 0
    %1870 = vmatpush1.bf16.xpose.msra.mxu0 0
    %1871 = vmatprep.subr.bf16.mxu0 0
    %1872 = vmatpush1.bf16.xpose.msra.mxu0 0
    %1873 = vmatprep.subr.bf16.mxu0 0
    %1874 = vmatpush1.bf16.xpose.msra.mxu0 0
    %1875 = vmatprep.subr.bf16.mxu0 0
    %1876 = vmatpush1.bf16.xpose.msra.mxu0 0
    %1877 = vmatprep.subr.bf16.mxu0 0
    %1878 = vmatpush1.bf16.xpose.msra.mxu0 0
    %1879 = vmatprep.subr.bf16.mxu0 0
    %1880 = vmatpush1.bf16.xpose.msra.mxu0 0
    %1881 = vmatprep.subr.bf16.mxu0 0
    %1882 = vmatpush1.bf16.xpose.msra.mxu0 0
    %1883 = vmatprep.mubr.bf16.mxu0 0
    %1884 = vmatmul.mubr.bf16.gmra.mrb[0].mxu0 %v1846
    %v1885 = vpop.f32.mrb[0].mxu0
    %v1886 = vadd.f32 %v1601, %v1885
    %v1887 = vpop.f32.mrb[0].mxu0
    %v1888 = vpop.f32.mrb[0].mxu0
    %v1889 = vpop.f32.mrb[0].mxu0
    %1890 = vdwg.mxu0
    %v1891 = vsel %vm164, %v1886, -inf
    %1892 = vmax.xlane.f32.xlu0 %v1891
    %v1893 = vpop.xlane.xlu0 %1892
    %v1894 = vsub.f32 %v1886, %v1893
    %v1895 = vmul.f32 %v1894, 1.442695
    %v1896 = vpow.pop %v1895
    %v1897 = vsel %vm164, %v1896, 0.0
    %1898 = vadd.xlane.f32.xlu0 %v1897
    %v1899 = vpop.xlane.xlu0 %1898
    %v1900 = vrcp.pop %v1899
    %v1901 = vmul.f32 %v1896, %v1900
    %v1902 = vpack.c.bf16 %v1901, %v1901
    %1903 = vrot.lane.b32.xlu0 %v1840, 48
    %v1904 = vpop.permute.xlu0 %1903
    %v1906 = vsel %vm164, %v1902, 0
    %v1909 = vsel %vm228, %v1904, 0
    %1911 = vmatprep.subr.bf16.mxu0 0
    %1912 = vmatpush1.bf16.msra.mxu0 %v1909
    %1913 = vmatprep.subr.bf16.mxu0 0
    %1914 = vmatpush1.bf16.msra.mxu0 0
    %1915 = vmatprep.subr.bf16.mxu0 0
    %1916 = vmatpush1.bf16.msra.mxu0 0
    %1917 = vmatprep.subr.bf16.mxu0 0
    %1918 = vmatpush1.bf16.msra.mxu0 0
    %1919 = vmatprep.subr.bf16.mxu0 0
    %1920 = vmatpush1.bf16.msra.mxu0 0
    %1921 = vmatprep.subr.bf16.mxu0 0
    %1922 = vmatpush1.bf16.msra.mxu0 0
    %1923 = vmatprep.subr.bf16.mxu0 0
    %1924 = vmatpush1.bf16.msra.mxu0 0
    %1925 = vmatprep.subr.bf16.mxu0 0
    %1926 = vmatpush1.bf16.msra.mxu0 0
    %1927 = vmatprep.subr.bf16.mxu0 0
    %1928 = vmatpush1.bf16.msra.mxu0 0
    %1929 = vmatprep.subr.bf16.mxu0 0
    %1930 = vmatpush1.bf16.msra.mxu0 0
    %1931 = vmatprep.subr.bf16.mxu0 0
    %1932 = vmatpush1.bf16.msra.mxu0 0
    %1933 = vmatprep.subr.bf16.mxu0 0
    %1934 = vmatpush1.bf16.msra.mxu0 0
    %1935 = vmatprep.subr.bf16.mxu0 0
    %1936 = vmatpush1.bf16.msra.mxu0 0
    %1937 = vmatprep.subr.bf16.mxu0 0
    %1938 = vmatpush1.bf16.msra.mxu0 0
    %1939 = vmatprep.subr.bf16.mxu0 0
    %1940 = vmatpush1.bf16.msra.mxu0 0
    %1941 = vmatprep.subr.bf16.mxu0 0
    %1942 = vmatpush1.bf16.msra.mxu0 0
    %1943 = vmatprep.mubr.bf16.mxu0 0
    %1944 = vmatmul.mubr.bf16.gmra.mrb[0].mxu0 %v1906
    %v1945 = vpop.f32.mrb[0].mxu0
    %v1946 = vadd.f32 0.0, %v1945
    %v1947 = vpop.f32.mrb[0].mxu0
    %v1948 = vpop.f32.mrb[0].mxu0
    %v1949 = vpop.f32.mrb[0].mxu0
    %1950 = vdwg.mxu0
    %v1951 = vpack.c.bf16 %v1946, %v1946
    %v1953 = vrot.slane %v1951, 4
    %1954 = vrot.lane.b32.xlu0 %v1953, 16
    %v1955 = vpop.permute.xlu0 %1954
    %1957 = vst.msk [vmem:[#allocation3 + $0x8] sm:$0xf0] %vm997, %v1955
    %v1958 = vld [vmem:[#allocation2 + $0x8] sm:$0xf0]
    %v1960 = vrot.slane %v1958, 4
    %1961 = vrot.lane.b32.xlu0 %v1960, 104
    %v1962 = vpop.permute.xlu0 %1961
    %1963 = vrot.lane.b32.xlu0 %v1960, 72
    %v1964 = vpop.permute.xlu0 %1963
    %v1966 = vsel %vm164, %v1962, 0
    %v1969 = vsel %vm164, %v1964, 0
    %1971 = vmatprep.subr.bf16.mxu0 0
    %1972 = vmatpush1.bf16.xpose.msra.mxu0 %v1969
    %1973 = vmatprep.subr.bf16.mxu0 0
    %1974 = vmatpush1.bf16.xpose.msra.mxu0 0
    %1975 = vmatprep.subr.bf16.mxu0 0
    %1976 = vmatpush1.bf16.xpose.msra.mxu0 0
    %1977 = vmatprep.subr.bf16.mxu0 0
    %1978 = vmatpush1.bf16.xpose.msra.mxu0 0
    %1979 = vmatprep.subr.bf16.mxu0 0
    %1980 = vmatpush1.bf16.xpose.msra.mxu0 0
    %1981 = vmatprep.subr.bf16.mxu0 0
    %1982 = vmatpush1.bf16.xpose.msra.mxu0 0
    %1983 = vmatprep.subr.bf16.mxu0 0
    %1984 = vmatpush1.bf16.xpose.msra.mxu0 0
    %1985 = vmatprep.subr.bf16.mxu0 0
    %1986 = vmatpush1.bf16.xpose.msra.mxu0 0
    %1987 = vmatprep.subr.bf16.mxu0 0
    %1988 = vmatpush1.bf16.xpose.msra.mxu0 0
    %1989 = vmatprep.subr.bf16.mxu0 0
    %1990 = vmatpush1.bf16.xpose.msra.mxu0 0
    %1991 = vmatprep.subr.bf16.mxu0 0
    %1992 = vmatpush1.bf16.xpose.msra.mxu0 0
    %1993 = vmatprep.subr.bf16.mxu0 0
    %1994 = vmatpush1.bf16.xpose.msra.mxu0 0
    %1995 = vmatprep.subr.bf16.mxu0 0
    %1996 = vmatpush1.bf16.xpose.msra.mxu0 0
    %1997 = vmatprep.subr.bf16.mxu0 0
    %1998 = vmatpush1.bf16.xpose.msra.mxu0 0
    %1999 = vmatprep.subr.bf16.mxu0 0
    %2000 = vmatpush1.bf16.xpose.msra.mxu0 0
    %2001 = vmatprep.subr.bf16.mxu0 0
    %2002 = vmatpush1.bf16.xpose.msra.mxu0 0
    %2003 = vmatprep.mubr.bf16.mxu0 0
    %2004 = vmatmul.mubr.bf16.gmra.mrb[0].mxu0 %v1966
    %v2005 = vpop.f32.mrb[0].mxu0
    %v2006 = vadd.f32 %v1601, %v2005
    %v2007 = vpop.f32.mrb[0].mxu0
    %v2008 = vpop.f32.mrb[0].mxu0
    %v2009 = vpop.f32.mrb[0].mxu0
    %2010 = vdwg.mxu0
    %v2011 = vsel %vm164, %v2006, -inf
    %2012 = vmax.xlane.f32.xlu0 %v2011
    %v2013 = vpop.xlane.xlu0 %2012
    %v2014 = vsub.f32 %v2006, %v2013
    %v2015 = vmul.f32 %v2014, 1.442695
    %v2016 = vpow.pop %v2015
    %v2017 = vsel %vm164, %v2016, 0.0
    %2018 = vadd.xlane.f32.xlu0 %v2017
    %v2019 = vpop.xlane.xlu0 %2018
    %v2020 = vrcp.pop %v2019
    %v2021 = vmul.f32 %v2016, %v2020
    %v2022 = vpack.c.bf16 %v2021, %v2021
    %2023 = vrot.lane.b32.xlu0 %v1960, 40
    %v2024 = vpop.permute.xlu0 %2023
    %v2026 = vsel %vm164, %v2022, 0
    %v2029 = vsel %vm228, %v2024, 0
    %2031 = vmatprep.subr.bf16.mxu0 0
    %2032 = vmatpush1.bf16.msra.mxu0 %v2029
    %2033 = vmatprep.subr.bf16.mxu0 0
    %2034 = vmatpush1.bf16.msra.mxu0 0
    %2035 = vmatprep.subr.bf16.mxu0 0
    %2036 = vmatpush1.bf16.msra.mxu0 0
    %2037 = vmatprep.subr.bf16.mxu0 0
    %2038 = vmatpush1.bf16.msra.mxu0 0
    %2039 = vmatprep.subr.bf16.mxu0 0
    %2040 = vmatpush1.bf16.msra.mxu0 0
    %2041 = vmatprep.subr.bf16.mxu0 0
    %2042 = vmatpush1.bf16.msra.mxu0 0
    %2043 = vmatprep.subr.bf16.mxu0 0
    %2044 = vmatpush1.bf16.msra.mxu0 0
    %2045 = vmatprep.subr.bf16.mxu0 0
    %2046 = vmatpush1.bf16.msra.mxu0 0
    %2047 = vmatprep.subr.bf16.mxu0 0
    %2048 = vmatpush1.bf16.msra.mxu0 0
    %2049 = vmatprep.subr.bf16.mxu0 0
    %2050 = vmatpush1.bf16.msra.mxu0 0
    %2051 = vmatprep.subr.bf16.mxu0 0
    %2052 = vmatpush1.bf16.msra.mxu0 0
    %2053 = vmatprep.subr.bf16.mxu0 0
    %2054 = vmatpush1.bf16.msra.mxu0 0
    %2055 = vmatprep.subr.bf16.mxu0 0
    %2056 = vmatpush1.bf16.msra.mxu0 0
    %2057 = vmatprep.subr.bf16.mxu0 0
    %2058 = vmatpush1.bf16.msra.mxu0 0
    %2059 = vmatprep.subr.bf16.mxu0 0
    %2060 = vmatpush1.bf16.msra.mxu0 0
    %2061 = vmatprep.subr.bf16.mxu0 0
    %2062 = vmatpush1.bf16.msra.mxu0 0
    %2063 = vmatprep.mubr.bf16.mxu0 0
    %2064 = vmatmul.mubr.bf16.gmra.mrb[0].mxu0 %v2026
    %v2065 = vpop.f32.mrb[0].mxu0
    %v2066 = vadd.f32 0.0, %v2065
    %v2067 = vpop.f32.mrb[0].mxu0
    %v2068 = vpop.f32.mrb[0].mxu0
    %v2069 = vpop.f32.mrb[0].mxu0
    %2070 = vdwg.mxu0
    %v2071 = vpack.c.bf16 %v2066, %v2066
    %v2073 = vrot.slane %v2071, 4
    %2074 = vrot.lane.b32.xlu0 %v2073, 24
    %v2075 = vpop.permute.xlu0 %2074
    %2077 = vst.msk [vmem:[#allocation3 + $0x8] sm:$0xf0] %vm1118, %v2075
    %v2078 = vld [vmem:[#allocation3] sm:$0xff]
    %v2079 = vld [vmem:[#allocation3 + $0x8] sm:$0xff]
    %v2080 = vld [vmem:[%s4] sm:$0xf]
    %v2081 = vld [vmem:[%s4 + $0x4] sm:$0xf]
    %v2082 = vld [vmem:[%s4 + $0x8] sm:$0xf]
    %v2083 = vld [vmem:[%s4 + $0xc] sm:$0xf]
    %v2084 = vld [vmem:[%s5] sm:$0x1]
    %v2086 = vlaneseq
    %v2087 = vshrl.u32 %v2086, 7
    %v2088 = vsub.s32 0, %v2087
    %v2089 = vrot.slane %v2084, %v2088
    %v2095 = vunpack.c.l.b16 %v2080
    %v2096 = vunpack.c.l.b16 %v2081
    %v2097 = vunpack.c.l.b16 %v2082
    %v2098 = vunpack.c.l.b16 %v2083
    %v2099 = vpack.c.b16 %v2096, %v2095
    %v2100 = vpack.c.b16 %v2098, %v2097
    %v2104 = vsel %vm92, %v2078, 0
    %v2107 = vsel %vm92, %v2079, 0
    %2109 = vmatprep.subr.bf16.mxu0 0
    %2110 = vmatpush1.bf16.msra.mxu0 %v2099
    %2111 = vmatprep.subr.bf16.mxu0 0
    %2112 = vmatpush1.bf16.msra.mxu0 %v2100
    %2113 = vmatprep.subr.bf16.mxu0 0
    %2114 = vmatpush1.bf16.msra.mxu0 0
    %2115 = vmatprep.subr.bf16.mxu0 0
    %2116 = vmatpush1.bf16.msra.mxu0 0
    %2117 = vmatprep.subr.bf16.mxu0 0
    %2118 = vmatpush1.bf16.msra.mxu0 0
    %2119 = vmatprep.subr.bf16.mxu0 0
    %2120 = vmatpush1.bf16.msra.mxu0 0
    %2121 = vmatprep.subr.bf16.mxu0 0
    %2122 = vmatpush1.bf16.msra.mxu0 0
    %2123 = vmatprep.subr.bf16.mxu0 0
    %2124 = vmatpush1.bf16.msra.mxu0 0
    %2125 = vmatprep.subr.bf16.mxu0 0
    %2126 = vmatpush1.bf16.msra.mxu0 0
    %2127 = vmatprep.subr.bf16.mxu0 0
    %2128 = vmatpush1.bf16.msra.mxu0 0
    %2129 = vmatprep.subr.bf16.mxu0 0
    %2130 = vmatpush1.bf16.msra.mxu0 0
    %2131 = vmatprep.subr.bf16.mxu0 0
    %2132 = vmatpush1.bf16.msra.mxu0 0
    %2133 = vmatprep.subr.bf16.mxu0 0
    %2134 = vmatpush1.bf16.msra.mxu0 0
    %2135 = vmatprep.subr.bf16.mxu0 0
    %2136 = vmatpush1.bf16.msra.mxu0 0
    %2137 = vmatprep.subr.bf16.mxu0 0
    %2138 = vmatpush1.bf16.msra.mxu0 0
    %2139 = vmatprep.subr.bf16.mxu0 0
    %2140 = vmatpush1.bf16.msra.mxu0 0
    %2141 = vmatprep.mubr.bf16.mxu0 0
    %2142 = vmatmul.mubr.bf16.gmra.mrb[0].mxu0 %v2104
    %v2143 = vpop.f32.mrb[0].mxu0
    %v2144 = vadd.f32 %v2089, %v2143
    %v2145 = vpop.f32.mrb[0].mxu0
    %v2146 = vpop.f32.mrb[0].mxu0
    %v2147 = vadd.f32 %v2089, %v2146
    %v2148 = vpop.f32.mrb[0].mxu0
    %2149 = vmatprep.mubr.bf16.mxu0 0
    %2150 = vmatmul.mubr.bf16.gmra.mrb[0].mxu0 %v2107
    %v2151 = vpop.f32.mrb[0].mxu0
    %v2152 = vadd.f32 %v2089, %v2151
    %v2153 = vpop.f32.mrb[0].mxu0
    %v2154 = vpop.f32.mrb[0].mxu0
    %v2155 = vadd.f32 %v2089, %v2154
    %v2156 = vpop.f32.mrb[0].mxu0
    %2157 = vdwg.mxu0
    %v2158 = vadd.f32 %v2144, %v63
    %v2159 = vadd.f32 %v2147, %v64
    %v2160 = vadd.f32 %v2152, %v65
    %v2161 = vadd.f32 %v2155, %v66
    %v2162 = vld [vmem:[%s6] sm:$0x1]
    %v2163 = vld [vmem:[%s7] sm:$0x1]
    %v2164 = vsel %vm92, %v2158, 0.0
    %2165 = vadd.xlane.f32.xlu0 %v2164
    %v2166 = vpop.xlane.xlu0 %2165
    %v2167 = vsel %vm92, %v2159, 0.0
    %2168 = vadd.xlane.f32.xlu0 %v2167
    %v2169 = vpop.xlane.xlu0 %2168
    %v2170 = vsel %vm92, %v2160, 0.0
    %2171 = vadd.xlane.f32.xlu0 %v2170
    %v2172 = vpop.xlane.xlu0 %2171
    %v2173 = vsel %vm92, %v2161, 0.0
    %2174 = vadd.xlane.f32.xlu0 %v2173
    %v2175 = vpop.xlane.xlu0 %2174
    %v2176 = vrcp.pop 32.0
    %v2177 = vmul.f32 %v2166, %v2176
    %v2178 = vmul.f32 %v2169, %v2176
    %v2179 = vmul.f32 %v2172, %v2176
    %v2180 = vmul.f32 %v2175, %v2176
    %v2181 = vsub.f32 %v2158, %v2177
    %v2182 = vsub.f32 %v2159, %v2178
    %v2183 = vsub.f32 %v2160, %v2179
    %v2184 = vsub.f32 %v2161, %v2180
    %v2185 = vmul.f32 %v2181, %v2181
    %v2186 = vmul.f32 %v2182, %v2182
    %v2187 = vmul.f32 %v2183, %v2183
    %v2188 = vmul.f32 %v2184, %v2184
    %v2189 = vsel %vm92, %v2185, 0.0
    %2190 = vadd.xlane.f32.xlu0 %v2189
    %v2191 = vpop.xlane.xlu0 %2190
    %v2192 = vsel %vm92, %v2186, 0.0
    %2193 = vadd.xlane.f32.xlu0 %v2192
    %v2194 = vpop.xlane.xlu0 %2193
    %v2195 = vsel %vm92, %v2187, 0.0
    %2196 = vadd.xlane.f32.xlu0 %v2195
    %v2197 = vpop.xlane.xlu0 %2196
    %v2198 = vsel %vm92, %v2188, 0.0
    %2199 = vadd.xlane.f32.xlu0 %v2198
    %v2200 = vpop.xlane.xlu0 %2199
    %v2201 = vmul.f32 %v2191, %v2176
    %v2202 = vmul.f32 %v2194, %v2176
    %v2203 = vmul.f32 %v2197, %v2176
    %v2204 = vmul.f32 %v2200, %v2176
    %v2205 = vadd.f32 %v2201, 1e-05
    %v2206 = vadd.f32 %v2202, 1e-05
    %v2207 = vadd.f32 %v2203, 1e-05
    %v2208 = vadd.f32 %v2204, 1e-05
    %v2209 = vrsqrt.pop %v2205
    %v2210 = vrsqrt.pop %v2206
    %v2211 = vrsqrt.pop %v2207
    %v2212 = vrsqrt.pop %v2208
    %v2213 = vmul.f32 %v2181, %v2209
    %v2214 = vmul.f32 %v2182, %v2210
    %v2215 = vmul.f32 %v2183, %v2211
    %v2216 = vmul.f32 %v2184, %v2212
    %v2218 = vlaneseq
    %v2219 = vshrl.u32 %v2218, 7
    %v2220 = vsub.s32 0, %v2219
    %v2221 = vrot.slane %v2162, %v2220
    %v2223 = vmul.f32 %v2213, %v2221
    %v2224 = vmul.f32 %v2214, %v2221
    %v2225 = vmul.f32 %v2215, %v2221
    %v2226 = vmul.f32 %v2216, %v2221
    %v2228 = vlaneseq
    %v2229 = vshrl.u32 %v2228, 7
    %v2230 = vsub.s32 0, %v2229
    %v2231 = vrot.slane %v2163, %v2230
    %v2233 = vadd.f32 %v2223, %v2231
    %v2234 = vadd.f32 %v2224, %v2231
    %v2235 = vadd.f32 %v2225, %v2231
    %v2236 = vadd.f32 %v2226, %v2231
    %v2237 = vpack.c.bf16 %v2234, %v2233
    %v2238 = vpack.c.bf16 %v2236, %v2235
    %v2239 = vld [vmem:[%s8] sm:$0xf]
    %v2240 = vld [vmem:[%s8 + $0x4] sm:$0xf]
    %v2241 = vld [vmem:[%s8 + $0x8] sm:$0xf]
    %v2242 = vld [vmem:[%s8 + $0xc] sm:$0xf]
    %v2243 = vld [vmem:[%s9] sm:$0x1]
    %v2245 = vlaneseq
    %v2246 = vshrl.u32 %v2245, 7
    %v2247 = vsub.s32 0, %v2246
    %v2248 = vrot.slane %v2243, %v2247
    %v2254 = vunpack.c.l.b16 %v2239
    %v2255 = vunpack.c.l.b16 %v2240
    %v2256 = vunpack.c.l.b16 %v2241
    %v2257 = vunpack.c.l.b16 %v2242
    %v2258 = vpack.c.b16 %v2255, %v2254
    %v2259 = vpack.c.b16 %v2257, %v2256
    %v2263 = vsel %vm92, %v2237, 0
    %v2266 = vsel %vm92, %v2238, 0
    %2268 = vmatprep.subr.bf16.mxu0 0
    %2269 = vmatpush1.bf16.msra.mxu0 %v2258
    %2270 = vmatprep.subr.bf16.mxu0 0
    %2271 = vmatpush1.bf16.msra.mxu0 %v2259
    %2272 = vmatprep.subr.bf16.mxu0 0
    %2273 = vmatpush1.bf16.msra.mxu0 0
    %2274 = vmatprep.subr.bf16.mxu0 0
    %2275 = vmatpush1.bf16.msra.mxu0 0
    %2276 = vmatprep.subr.bf16.mxu0 0
    %2277 = vmatpush1.bf16.msra.mxu0 0
    %2278 = vmatprep.subr.bf16.mxu0 0
    %2279 = vmatpush1.bf16.msra.mxu0 0
    %2280 = vmatprep.subr.bf16.mxu0 0
    %2281 = vmatpush1.bf16.msra.mxu0 0
    %2282 = vmatprep.subr.bf16.mxu0 0
    %2283 = vmatpush1.bf16.msra.mxu0 0
    %2284 = vmatprep.subr.bf16.mxu0 0
    %2285 = vmatpush1.bf16.msra.mxu0 0
    %2286 = vmatprep.subr.bf16.mxu0 0
    %2287 = vmatpush1.bf16.msra.mxu0 0
    %2288 = vmatprep.subr.bf16.mxu0 0
    %2289 = vmatpush1.bf16.msra.mxu0 0
    %2290 = vmatprep.subr.bf16.mxu0 0
    %2291 = vmatpush1.bf16.msra.mxu0 0
    %2292 = vmatprep.subr.bf16.mxu0 0
    %2293 = vmatpush1.bf16.msra.mxu0 0
    %2294 = vmatprep.subr.bf16.mxu0 0
    %2295 = vmatpush1.bf16.msra.mxu0 0
    %2296 = vmatprep.subr.bf16.mxu0 0
    %2297 = vmatpush1.bf16.msra.mxu0 0
    %2298 = vmatprep.subr.bf16.mxu0 0
    %2299 = vmatpush1.bf16.msra.mxu0 0
    %2300 = vmatprep.mubr.bf16.mxu0 0
    %2301 = vmatmul.mubr.bf16.gmra.mrb[0].mxu0 %v2263
    %v2302 = vpop.f32.mrb[0].mxu0
    %v2303 = vadd.f32 %v2248, %v2302
    %v2304 = vpop.f32.mrb[0].mxu0
    %v2305 = vpop.f32.mrb[0].mxu0
    %v2306 = vadd.f32 %v2248, %v2305
    %v2307 = vpop.f32.mrb[0].mxu0
    %2308 = vmatprep.mubr.bf16.mxu0 0
    %2309 = vmatmul.mubr.bf16.gmra.mrb[0].mxu0 %v2266
    %v2310 = vpop.f32.mrb[0].mxu0
    %v2311 = vadd.f32 %v2248, %v2310
    %v2312 = vpop.f32.mrb[0].mxu0
    %v2313 = vpop.f32.mrb[0].mxu0
    %v2314 = vadd.f32 %v2248, %v2313
    %v2315 = vpop.f32.mrb[0].mxu0
    %2316 = vdwg.mxu0
    %v2317 = vmul.f32 %v2303, 0.5
    %v2318 = vmul.f32 %v2306, 0.5
    %v2319 = vmul.f32 %v2311, 0.5
    %v2320 = vmul.f32 %v2314, 0.5
    %v2321 = vmul.f32 %v2303, 0.70710677
    %v2322 = vmul.f32 %v2306, 0.70710677
    %v2323 = vmul.f32 %v2311, 0.70710677
    %v2324 = vmul.f32 %v2314, 0.70710677
    %v2325 = verf.f32.pop %v2321
    %v2326 = verf.f32.pop %v2322
    %v2327 = verf.f32.pop %v2323
    %v2328 = verf.f32.pop %v2324
    %v2329 = vadd.f32 %v2325, 1.0
    %v2330 = vadd.f32 %v2326, 1.0
    %v2331 = vadd.f32 %v2327, 1.0
    %v2332 = vadd.f32 %v2328, 1.0
    %v2333 = vmul.f32 %v2317, %v2329
    %v2334 = vmul.f32 %v2318, %v2330
    %v2335 = vmul.f32 %v2319, %v2331
    %v2336 = vmul.f32 %v2320, %v2332
    %v2337 = vpack.c.bf16 %v2334, %v2333
    %v2338 = vpack.c.bf16 %v2336, %v2335
    %v2339 = vld [vmem:[%s10] sm:$0xf]
    %v2340 = vld [vmem:[%s10 + $0x4] sm:$0xf]
    %v2341 = vld [vmem:[%s10 + $0x8] sm:$0xf]
    %v2342 = vld [vmem:[%s10 + $0xc] sm:$0xf]
    %v2343 = vld [vmem:[%s10 + $0x10] sm:$0xf]
    %v2344 = vld [vmem:[%s10 + $0x14] sm:$0xf]
    %v2345 = vld [vmem:[%s10 + $0x18] sm:$0xf]
    %v2346 = vld [vmem:[%s10 + $0x1c] sm:$0xf]
    %v2347 = vld [vmem:[%s10 + $0x20] sm:$0xf]
    %v2348 = vld [vmem:[%s10 + $0x24] sm:$0xf]
    %v2349 = vld [vmem:[%s10 + $0x28] sm:$0xf]
    %v2350 = vld [vmem:[%s10 + $0x2c] sm:$0xf]
    %v2351 = vld [vmem:[%s10 + $0x30] sm:$0xf]
    %v2352 = vld [vmem:[%s10 + $0x34] sm:$0xf]
    %v2353 = vld [vmem:[%s10 + $0x38] sm:$0xf]
    %v2354 = vld [vmem:[%s10 + $0x3c] sm:$0xf]
    %v2355 = vld [vmem:[%s11] sm:$0x1]
    %v2357 = vlaneseq
    %v2358 = vshrl.u32 %v2357, 7
    %v2359 = vsub.s32 0, %v2358
    %v2360 = vrot.slane %v2355, %v2359
    %v2378 = vunpack.c.l.b16 %v2339
    %v2379 = vunpack.c.l.b16 %v2340
    %v2380 = vunpack.c.l.b16 %v2341
    %v2381 = vunpack.c.l.b16 %v2342
    %v2382 = vunpack.c.l.b16 %v2343
    %v2383 = vunpack.c.l.b16 %v2344
    %v2384 = vunpack.c.l.b16 %v2345
    %v2385 = vunpack.c.l.b16 %v2346
    %v2386 = vunpack.c.l.b16 %v2347
    %v2387 = vunpack.c.l.b16 %v2348
    %v2388 = vunpack.c.l.b16 %v2349
    %v2389 = vunpack.c.l.b16 %v2350
    %v2390 = vunpack.c.l.b16 %v2351
    %v2391 = vunpack.c.l.b16 %v2352
    %v2392 = vunpack.c.l.b16 %v2353
    %v2393 = vunpack.c.l.b16 %v2354
    %v2394 = vpack.c.b16 %v2379, %v2378
    %v2395 = vpack.c.b16 %v2381, %v2380
    %v2396 = vpack.c.b16 %v2383, %v2382
    %v2397 = vpack.c.b16 %v2385, %v2384
    %v2398 = vpack.c.b16 %v2387, %v2386
    %v2399 = vpack.c.b16 %v2389, %v2388
    %v2400 = vpack.c.b16 %v2391, %v2390
    %v2401 = vpack.c.b16 %v2393, %v2392
    %2410 = vmatprep.subr.bf16.mxu0 0
    %2411 = vmatpush1.bf16.msra.mxu0 %v2394
    %2412 = vmatprep.subr.bf16.mxu0 0
    %2413 = vmatpush1.bf16.msra.mxu0 %v2395
    %2414 = vmatprep.subr.bf16.mxu0 0
    %2415 = vmatpush1.bf16.msra.mxu0 %v2396
    %2416 = vmatprep.subr.bf16.mxu0 0
    %2417 = vmatpush1.bf16.msra.mxu0 %v2397
    %2418 = vmatprep.subr.bf16.mxu0 0
    %2419 = vmatpush1.bf16.msra.mxu0 %v2398
    %2420 = vmatprep.subr.bf16.mxu0 0
    %2421 = vmatpush1.bf16.msra.mxu0 %v2399
    %2422 = vmatprep.subr.bf16.mxu0 0
    %2423 = vmatpush1.bf16.msra.mxu0 %v2400
    %2424 = vmatprep.subr.bf16.mxu0 0
    %2425 = vmatpush1.bf16.msra.mxu0 %v2401
    %2426 = vmatprep.subr.bf16.mxu0 0
    %2427 = vmatpush1.bf16.msra.mxu0 0
    %2428 = vmatprep.subr.bf16.mxu0 0
    %2429 = vmatpush1.bf16.msra.mxu0 0
    %2430 = vmatprep.subr.bf16.mxu0 0
    %2431 = vmatpush1.bf16.msra.mxu0 0
    %2432 = vmatprep.subr.bf16.mxu0 0
    %2433 = vmatpush1.bf16.msra.mxu0 0
    %2434 = vmatprep.subr.bf16.mxu0 0
    %2435 = vmatpush1.bf16.msra.mxu0 0
    %2436 = vmatprep.subr.bf16.mxu0 0
    %2437 = vmatpush1.bf16.msra.mxu0 0
    %2438 = vmatprep.subr.bf16.mxu0 0
    %2439 = vmatpush1.bf16.msra.mxu0 0
    %2440 = vmatprep.subr.bf16.mxu0 0
    %2441 = vmatpush1.bf16.msra.mxu0 0
    %2442 = vmatprep.mubr.bf16.mxu0 0
    %2443 = vmatmul.mubr.bf16.gmra.mrb[0].mxu0 %v2337
    %v2444 = vpop.f32.mrb[0].mxu0
    %v2445 = vadd.f32 %v2360, %v2444
    %v2446 = vpop.f32.mrb[0].mxu0
    %v2447 = vpop.f32.mrb[0].mxu0
    %v2448 = vadd.f32 %v2360, %v2447
    %v2449 = vpop.f32.mrb[0].mxu0
    %2450 = vmatprep.mubr.bf16.mxu0 0
    %2451 = vmatmul.mubr.bf16.gmra.mrb[0].mxu0 %v2338
    %v2452 = vpop.f32.mrb[0].mxu0
    %v2453 = vadd.f32 %v2360, %v2452
    %v2454 = vpop.f32.mrb[0].mxu0
    %v2455 = vpop.f32.mrb[0].mxu0
    %v2456 = vadd.f32 %v2360, %v2455
    %v2457 = vpop.f32.mrb[0].mxu0
    %2458 = vdwg.mxu0
    %v2459 = vadd.f32 %v2445, %v2233
    %v2460 = vadd.f32 %v2448, %v2234
    %v2461 = vadd.f32 %v2453, %v2235
    %v2462 = vadd.f32 %v2456, %v2236
    %v2463 = vld [vmem:[%s12] sm:$0x1]
    %v2464 = vld [vmem:[%s13] sm:$0x1]
    %v2465 = vsel %vm92, %v2459, 0.0
    %2466 = vadd.xlane.f32.xlu0 %v2465
    %v2467 = vpop.xlane.xlu0 %2466
    %v2468 = vsel %vm92, %v2460, 0.0
    %2469 = vadd.xlane.f32.xlu0 %v2468
    %v2470 = vpop.xlane.xlu0 %2469
    %v2471 = vsel %vm92, %v2461, 0.0
    %2472 = vadd.xlane.f32.xlu0 %v2471
    %v2473 = vpop.xlane.xlu0 %2472
    %v2474 = vsel %vm92, %v2462, 0.0
    %2475 = vadd.xlane.f32.xlu0 %v2474
    %v2476 = vpop.xlane.xlu0 %2475
    %v2477 = vmul.f32 %v2467, %v2176
    %v2478 = vmul.f32 %v2470, %v2176
    %v2479 = vmul.f32 %v2473, %v2176
    %v2480 = vmul.f32 %v2476, %v2176
    %v2481 = vsub.f32 %v2459, %v2477
    %v2482 = vsub.f32 %v2460, %v2478
    %v2483 = vsub.f32 %v2461, %v2479
    %v2484 = vsub.f32 %v2462, %v2480
    %v2485 = vmul.f32 %v2481, %v2481
    %v2486 = vmul.f32 %v2482, %v2482
    %v2487 = vmul.f32 %v2483, %v2483
    %v2488 = vmul.f32 %v2484, %v2484
    %v2489 = vsel %vm92, %v2485, 0.0
    %2490 = vadd.xlane.f32.xlu0 %v2489
    %v2491 = vpop.xlane.xlu0 %2490
    %v2492 = vsel %vm92, %v2486, 0.0
    %2493 = vadd.xlane.f32.xlu0 %v2492
    %v2494 = vpop.xlane.xlu0 %2493
    %v2495 = vsel %vm92, %v2487, 0.0
    %2496 = vadd.xlane.f32.xlu0 %v2495
    %v2497 = vpop.xlane.xlu0 %2496
    %v2498 = vsel %vm92, %v2488, 0.0
    %2499 = vadd.xlane.f32.xlu0 %v2498
    %v2500 = vpop.xlane.xlu0 %2499
    %v2501 = vmul.f32 %v2491, %v2176
    %v2502 = vmul.f32 %v2494, %v2176
    %v2503 = vmul.f32 %v2497, %v2176
    %v2504 = vmul.f32 %v2500, %v2176
    %v2505 = vadd.f32 %v2501, 1e-05
    %v2506 = vadd.f32 %v2502, 1e-05
    %v2507 = vadd.f32 %v2503, 1e-05
    %v2508 = vadd.f32 %v2504, 1e-05
    %v2509 = vrsqrt.pop %v2505
    %v2510 = vrsqrt.pop %v2506
    %v2511 = vrsqrt.pop %v2507
    %v2512 = vrsqrt.pop %v2508
    %v2513 = vmul.f32 %v2481, %v2509
    %v2514 = vmul.f32 %v2482, %v2510
    %v2515 = vmul.f32 %v2483, %v2511
    %v2516 = vmul.f32 %v2484, %v2512
    %v2518 = vlaneseq
    %v2519 = vshrl.u32 %v2518, 7
    %v2520 = vsub.s32 0, %v2519
    %v2521 = vrot.slane %v2463, %v2520
    %v2523 = vmul.f32 %v2513, %v2521
    %v2524 = vmul.f32 %v2514, %v2521
    %v2525 = vmul.f32 %v2515, %v2521
    %v2526 = vmul.f32 %v2516, %v2521
    %v2528 = vlaneseq
    %v2529 = vshrl.u32 %v2528, 7
    %v2530 = vsub.s32 0, %v2529
    %v2531 = vrot.slane %v2464, %v2530
    %v2533 = vadd.f32 %v2523, %v2531
    %v2534 = vadd.f32 %v2524, %v2531
    %v2535 = vadd.f32 %v2525, %v2531
    %v2536 = vadd.f32 %v2526, %v2531
    %2537 = vst.msk [vmem:[#allocation7] sm:$0xff] %vm92, %v2533
    %2538 = vst.msk [vmem:[#allocation7 + $0x8] sm:$0xff] %vm92, %v2534
    %2539 = vst.msk [vmem:[#allocation7 + $0x10] sm:$0xff] %vm92, %v2535
    %2540 = vst.msk [vmem:[#allocation7 + $0x18] sm:$0xff] %vm92, %v2536
    // Predicated region
    $region62: #{tpu_custom_call.1} parent=1 // pred_check
      _
    $region63: #{tpu_custom_call.1} parent=1 // pred_check_branch
      %2542 = sbr.rel (0) target = $region65
    $region64: #{tpu_custom_call.1} parent=1 // pred_region
      %s2544 = ssub.s32 512, 512
      %2545 = vsyncadd [#allocation6], %s2544
      %s2546 = sshll.u32 [#allocation7], 4
      %s2547 = int_to_ptr.vmem [resolvable:$true] %s2546
      %2552 = dma.vmem_to_hbm [thread:$0]  %s2547, 512, %s14, [#allocation6], 128, 128, 8
    $region65: #{tpu_custom_call.1} parent=1 // pred_fallthru
      _
    // Predicated region
    $region66: #{tpu_custom_call.1} parent=1 // pred_check
      _
    $region67: #{tpu_custom_call.1} parent=1 // pred_check_branch
      %2554 = sbr.rel (0) target = $region69
    $region68: #{tpu_custom_call.1} parent=1 // pred_region
      %2555 = dma.done [#allocation6], 512
    $region69: #{tpu_custom_call.1} parent=1 // pred_fallthru
      _
    %2556 = vsyncpa [#allocation5], 1
    %2557 = vsyncpa [#allocation6], 1

</llo_original>
